<compile_context>
chip_gen: v7x
topology: tpu7x:2x2x1
jax: 0.10.0
libtpu: 0.0.40
codegen_flags: <defaults>
</compile_context>

<pallas_src>
import functools

import jax
import jax.numpy as jnp
from jax.experimental import pallas as pl
from jax.experimental.pallas import tpu as pltpu

# ---------------- model config (small, synthetic) ----------------
VOCAB = 64
B = 2            # batch
S = 16           # sequence length
H = 128          # hidden size ("deberta.config.hidden_size")
NH = 4           # attention heads
DH = H // NH     # head dim
FF = 256         # feed-forward intermediate
LAYERS = 2
CLS_HID = 256    # classifier / projection hidden (fixed by the module)
PROJ = 128       # proj_dim (module default)
LOGIT_PAD = 128  # lane-dense slab carrying the scalar logit in column 0
LN_EPS = 1e-7


# ---------------- fused whole-model Pallas kernel ----------------
def _model_kernel(emb_ref, maskb_ref, eg_ref, eb_ref,
                  wqkv_ref, bqkv_ref, wo_ref, bo_ref, ln1g_ref, ln1b_ref,
                  w1_ref, b1_ref, w2_ref, b2_ref, ln2g_ref, ln2b_ref,
                  wh1_ref, bh1_ref, wh2_ref, bh2_ref,
                  out_ref, *, num_heads, num_layers):
    bs, hd = emb_ref.shape            # (B*S, H)
    bb, ss = maskb_ref.shape          # (B, S)
    dh = hd // num_heads
    scale = 1.0 / (dh ** 0.5)

    def layernorm(x, g, b):           # f32 elementwise (v5e-safe)
        mu = jnp.mean(x, axis=-1, keepdims=True)
        var = jnp.mean(jnp.square(x - mu), axis=-1, keepdims=True)
        return (x - mu) * jax.lax.rsqrt(var + LN_EPS) * g + b

    def mm(x, w_bf16):                # bf16 MXU operands, f32 accumulate
        return jnp.dot(x.astype(jnp.bfloat16), w_bf16,
                       preferred_element_type=jnp.float32)

    maskb = maskb_ref[...]                                   # (B, S) additive key bias
    h = layernorm(emb_ref[...], eg_ref[...], eb_ref[...])    # (B*S, H) f32

    for l in range(num_layers):
        # --- fused QKV projection: one (B*S,H) @ (H,3H) MXU pass ---
        qkv = mm(h, wqkv_ref[l]) + bqkv_ref[l]               # (B*S, 3H) f32

        # --- multi-head attention: static (batch, head) loop, all in VMEM,
        #     context assembled lane-dense into (B*S, H) via concatenation ---
        ctx_rows = []
        for b in range(bb):
            r0 = b * ss
            mb = maskb[b:b + 1, :]                           # (1, S)
            head_ctx = []
            for hh in range(num_heads):
                c0 = hh * dh
                qh = qkv[r0:r0 + ss, c0:c0 + dh]             # (S, DH)
                kh = qkv[r0:r0 + ss, hd + c0:hd + c0 + dh]
                vh = qkv[r0:r0 + ss, 2 * hd + c0:2 * hd + c0 + dh]
                sc = jnp.dot(qh, kh.T, preferred_element_type=jnp.float32) * scale
                sc = sc + mb                                 # key padding bias
                sc = sc - jnp.max(sc, axis=-1, keepdims=True)
                pr = jnp.exp(sc)
                pr = pr * pl.reciprocal(jnp.sum(pr, axis=-1, keepdims=True),
                                        approx=True)
                head_ctx.append(jnp.dot(pr, vh,
                                        preferred_element_type=jnp.float32))
            ctx_rows.append(jnp.concatenate(head_ctx, axis=-1))   # (S, H)
        ctx = jnp.concatenate(ctx_rows, axis=0)                   # (B*S, H)

        # --- attention output projection + residual LN ---
        attn_out = mm(ctx, wo_ref[l]) + bo_ref[l]
        h = layernorm(attn_out + h, ln1g_ref[l], ln1b_ref[l])

        # --- feed-forward + residual LN ---
        ff = mm(h, w1_ref[l]) + b1_ref[l]
        ff = jax.nn.gelu(ff)
        ff = mm(ff, w2_ref[l]) + b2_ref[l]
        h = layernorm(ff + h, ln2g_ref[l], ln2b_ref[l])

    # --- CLS pooling + fused classifier/projection heads ---
    # classifier: Linear(H,256)->ReLU->Dropout(eval id)->Linear(256,1)
    # projection: Linear(H,256)->ReLU->Linear(256,PROJ)
    # First linears are concatenated to (H, 512); second linears are packed
    # block-diagonally into a lane-dense (512, 256) weight: logit -> column 0,
    # projection features -> columns [LOGIT_PAD:].
    pooled = jnp.concatenate([h[b * ss:b * ss + 1, :] for b in range(bb)],
                             axis=0)                               # (B, H)
    hcp = jnp.maximum(mm(pooled, wh1_ref[...]) + bh1_ref[...], 0.0)  # (B, 512)
    out_ref[...] = mm(hcp, wh2_ref[...]) + bh2_ref[...]              # (B, 256)


# ---------------- parameters (deterministic synthetic init) ----------------
def init_params(key):
    def w(k, shape, scale=0.02):
        return (scale * jax.random.normal(k, shape, dtype=jnp.float32)
                ).astype(jnp.bfloat16)

    keys = iter(jax.random.split(key, 32))
    p = {
        "word_emb": 0.02 * jax.random.normal(next(keys), (VOCAB, H),
                                             dtype=jnp.float32),
        "pos_emb": 0.02 * jax.random.normal(next(keys), (S, H),
                                            dtype=jnp.float32),
        "emb_ln_g": jnp.ones((1, H), jnp.float32),
        "emb_ln_b": jnp.zeros((1, H), jnp.float32),
        # layer-stacked encoder weights (bf16 MXU operands, f32 biases/LN)
        "wqkv": w(next(keys), (LAYERS, H, 3 * H)),
        "bqkv": jnp.zeros((LAYERS, 1, 3 * H), jnp.float32),
        "wo": w(next(keys), (LAYERS, H, H)),
        "bo": jnp.zeros((LAYERS, 1, H), jnp.float32),
        "ln1_g": jnp.ones((LAYERS, 1, H), jnp.float32),
        "ln1_b": jnp.zeros((LAYERS, 1, H), jnp.float32),
        "w1": w(next(keys), (LAYERS, H, FF)),
        "b1": jnp.zeros((LAYERS, 1, FF), jnp.float32),
        "w2": w(next(keys), (LAYERS, FF, H)),
        "b2": jnp.zeros((LAYERS, 1, H), jnp.float32),
        "ln2_g": jnp.ones((LAYERS, 1, H), jnp.float32),
        "ln2_b": jnp.zeros((LAYERS, 1, H), jnp.float32),
    }
    # heads: first linears concatenated, second linears block-diagonal
    cls_w1 = w(next(keys), (H, CLS_HID))
    prj_w1 = w(next(keys), (H, CLS_HID))
    p["head_w1"] = jnp.concatenate([cls_w1, prj_w1], axis=1)       # (H, 512)
    p["head_b1"] = jnp.zeros((1, 2 * CLS_HID), jnp.float32)
    cls_w2 = w(next(keys), (CLS_HID, 1))
    prj_w2 = w(next(keys), (CLS_HID, PROJ))
    head_w2 = jnp.zeros((2 * CLS_HID, LOGIT_PAD + PROJ), jnp.bfloat16)
    head_w2 = head_w2.at[:CLS_HID, 0:1].set(cls_w2)
    head_w2 = head_w2.at[CLS_HID:, LOGIT_PAD:].set(prj_w2)
    p["head_w2"] = head_w2                                         # (512, 256)
    p["head_b2"] = jnp.zeros((1, LOGIT_PAD + PROJ), jnp.float32)
    return p


# ---------------- forward (matches StyleChangeModelSCL.forward) -------------
def style_change_model_scl_forward(p, input_ids, attention_mask,
                                   return_features=False):
    bx, sx = input_ids.shape
    # embedding lookup + positional add outside the kernel (gather), f32
    emb = (jnp.take(p["word_emb"], input_ids, axis=0)
           + p["pos_emb"][None, :sx, :]).reshape(bx * sx, H).astype(jnp.float32)
    mask_bias = (1.0 - attention_mask.astype(jnp.float32)) * (-1e9)   # (B, S)

    # advisory cost estimate for XLA scheduling around the fused kernel
    matmul_flops = LAYERS * 2 * bx * sx * H * (3 * H + H + 2 * FF)
    attn_flops = LAYERS * bx * NH * 4 * sx * sx * DH
    head_flops = 2 * bx * (H * 2 * CLS_HID + 2 * CLS_HID * (LOGIT_PAD + PROJ))
    transcend = LAYERS * (bx * NH * sx * sx + bx * sx * FF) \
        + (1 + 2 * LAYERS) * bx * sx
    weight_bytes = sum(int(p[k].size) * p[k].dtype.itemsize for k in
                       ("wqkv", "wo", "w1", "w2", "head_w1", "head_w2"))
    bytes_acc = weight_bytes + emb.size * 4 + bx * (LOGIT_PAD + PROJ) * 4 + 65536

    out = pl.pallas_call(
        functools.partial(_model_kernel, num_heads=NH, num_layers=LAYERS),
        out_shape=jax.ShapeDtypeStruct((bx, LOGIT_PAD + PROJ), jnp.float32),
        compiler_params=pltpu.CompilerParams(
            vmem_limit_bytes=32 * 1024 * 1024),
        cost_estimate=pl.CostEstimate(flops=int(matmul_flops + attn_flops
                                                + head_flops),
                                      transcendentals=int(transcend),
                                      bytes_accessed=int(bytes_acc)),
    )(emb, mask_bias, p["emb_ln_g"], p["emb_ln_b"],
      p["wqkv"], p["bqkv"], p["wo"], p["bo"], p["ln1_g"], p["ln1_b"],
      p["w1"], p["b1"], p["w2"], p["b2"], p["ln2_g"], p["ln2_b"],
      p["head_w1"], p["head_b1"], p["head_w2"], p["head_b2"])

    logits = out[:, 0]                 # (B,)
    features = out[:, LOGIT_PAD:]      # (B, PROJ)
    if return_features:
        return logits, features
    return logits


# ---------------- main ----------------
if __name__ == "__main__":
    key = jax.random.PRNGKey(0)
    k_params, k_ids = jax.random.split(key)
    params = init_params(k_params)

    input_ids = jax.random.randint(k_ids, (B, S), 0, VOCAB, dtype=jnp.int32)
    # batch 1 has 3 padding tokens at the end
    attention_mask = jnp.ones((B, S), jnp.float32).at[1, S - 3:].set(0.0)

    logits, features = style_change_model_scl_forward(
        params, input_ids, attention_mask, return_features=True)
    jax.block_until_ready((logits, features))

    assert logits.shape == (B,) and features.shape == (B, PROJ)
    assert bool(jnp.all(jnp.isfinite(logits))) and bool(jnp.all(jnp.isfinite(features)))
    print("KERNEL_OK")
</pallas_src>

<mosaic_0001>
module attributes {stable_mosaic.version = 11 : i64} {
  func.func @_model_kernel(%arg0: memref<32x128xf32, #tpu.memory_space<vmem>>, %arg1: memref<2x16xf32, #tpu.memory_space<vmem>>, %arg2: memref<1x128xf32, #tpu.memory_space<vmem>>, %arg3: memref<1x128xf32, #tpu.memory_space<vmem>>, %arg4: memref<2x128x384xbf16, #tpu.memory_space<vmem>>, %arg5: memref<2x1x384xf32, #tpu.memory_space<vmem>>, %arg6: memref<2x128x128xbf16, #tpu.memory_space<vmem>>, %arg7: memref<2x1x128xf32, #tpu.memory_space<vmem>>, %arg8: memref<2x1x128xf32, #tpu.memory_space<vmem>>, %arg9: memref<2x1x128xf32, #tpu.memory_space<vmem>>, %arg10: memref<2x128x256xbf16, #tpu.memory_space<vmem>>, %arg11: memref<2x1x256xf32, #tpu.memory_space<vmem>>, %arg12: memref<2x256x128xbf16, #tpu.memory_space<vmem>>, %arg13: memref<2x1x128xf32, #tpu.memory_space<vmem>>, %arg14: memref<2x1x128xf32, #tpu.memory_space<vmem>>, %arg15: memref<2x1x128xf32, #tpu.memory_space<vmem>>, %arg16: memref<128x512xbf16, #tpu.memory_space<vmem>>, %arg17: memref<1x512xf32, #tpu.memory_space<vmem>>, %arg18: memref<512x256xbf16, #tpu.memory_space<vmem>>, %arg19: memref<1x256xf32, #tpu.memory_space<vmem>>, %arg20: memref<2x256xf32, #tpu.memory_space<vmem>>) attributes {dimension_semantics = [], scalar_prefetch = 0 : i64, scratch_operands = 0 : i64, tpu.core_type = #tpu.core_type<tc>} {
    %c0 = arith.constant 0 : index
    %c0_0 = arith.constant 0 : index
    %0 = vector.load %arg1[%c0, %c0_0] : memref<2x16xf32, #tpu.memory_space<vmem>>, vector<2x16xf32>
    %c0_1 = arith.constant 0 : index
    %c0_2 = arith.constant 0 : index
    %1 = vector.load %arg0[%c0_1, %c0_2] : memref<32x128xf32, #tpu.memory_space<vmem>>, vector<32x128xf32>
    %c0_3 = arith.constant 0 : index
    %c0_4 = arith.constant 0 : index
    %2 = vector.load %arg2[%c0_3, %c0_4] : memref<1x128xf32, #tpu.memory_space<vmem>>, vector<1x128xf32>
    %c0_5 = arith.constant 0 : index
    %c0_6 = arith.constant 0 : index
    %3 = vector.load %arg3[%c0_5, %c0_6] : memref<1x128xf32, #tpu.memory_space<vmem>>, vector<1x128xf32>
    %cst = arith.constant dense<0.000000e+00> : vector<32xf32>
    %4 = vector.multi_reduction <add>, %1, %cst [1] : vector<32x128xf32> to vector<32xf32>
    %5 = vector.shape_cast %4 : vector<32xf32> to vector<32x1xf32>
    %cst_7 = arith.constant 1.280000e+02 : f32
    %6 = vector.broadcast %cst_7 : f32 to vector<32x1xf32>
    %7 = arith.divf %5, %6 : vector<32x1xf32>
    %8 = vector.broadcast %7 : vector<32x1xf32> to vector<32x128xf32>
    %9 = arith.subf %1, %8 : vector<32x128xf32>
    %10 = arith.mulf %9, %9 : vector<32x128xf32>
    %cst_8 = arith.constant dense<0.000000e+00> : vector<32xf32>
    %11 = vector.multi_reduction <add>, %10, %cst_8 [1] : vector<32x128xf32> to vector<32xf32>
    %12 = vector.shape_cast %11 : vector<32xf32> to vector<32x1xf32>
    %cst_9 = arith.constant 1.280000e+02 : f32
    %13 = vector.broadcast %cst_9 : f32 to vector<32x1xf32>
    %14 = arith.divf %12, %13 : vector<32x1xf32>
    %15 = vector.broadcast %7 : vector<32x1xf32> to vector<32x128xf32>
    %16 = arith.subf %1, %15 : vector<32x128xf32>
    %cst_10 = arith.constant 1.000000e-07 : f32
    %17 = vector.broadcast %cst_10 : f32 to vector<32x1xf32>
    %18 = arith.addf %14, %17 : vector<32x1xf32>
    %19 = math.rsqrt %18 : vector<32x1xf32>
    %20 = vector.broadcast %19 : vector<32x1xf32> to vector<32x128xf32>
    %21 = arith.mulf %16, %20 : vector<32x128xf32>
    %22 = vector.broadcast %2 : vector<1x128xf32> to vector<32x128xf32>
    %23 = arith.mulf %21, %22 : vector<32x128xf32>
    %24 = vector.broadcast %3 : vector<1x128xf32> to vector<32x128xf32>
    %25 = arith.addf %23, %24 : vector<32x128xf32>
    %c0_11 = arith.constant 0 : index
    %c0_12 = arith.constant 0 : index
    %c0_13 = arith.constant 0 : index
    %26 = vector.load %arg4[%c0_11, %c0_12, %c0_13] : memref<2x128x384xbf16, #tpu.memory_space<vmem>>, vector<1x128x384xbf16>
    %27 = vector.shape_cast %26 : vector<1x128x384xbf16> to vector<128x384xbf16>
    %28 = arith.truncf %25 : vector<32x128xf32> to vector<32x128xbf16>
    %cst_14 = arith.constant dense<0.000000e+00> : vector<32x384xf32>
    %29 = tpu.matmul %28, %27, %cst_14 {dimension_numbers = #tpu.dot_dimension_numbers<[1], [0], [0], [1], [0, 0, 1, 1], [], []>} : vector<32x128xbf16>, vector<128x384xbf16>, vector<32x384xf32> -> vector<32x384xf32>
    %c0_15 = arith.constant 0 : index
    %c0_16 = arith.constant 0 : index
    %c0_17 = arith.constant 0 : index
    %30 = vector.load %arg5[%c0_15, %c0_16, %c0_17] : memref<2x1x384xf32, #tpu.memory_space<vmem>>, vector<1x1x384xf32>
    %31 = vector.shape_cast %30 : vector<1x1x384xf32> to vector<1x384xf32>
    %32 = vector.broadcast %31 : vector<1x384xf32> to vector<32x384xf32>
    %33 = arith.addf %29, %32 : vector<32x384xf32>
    %34 = vector.extract_strided_slice %0 {offsets = [0, 0], sizes = [1, 16], strides = [1, 1]} : vector<2x16xf32> to vector<1x16xf32>
    %35 = vector.extract_strided_slice %33 {offsets = [0, 0], sizes = [16, 32], strides = [1, 1]} : vector<32x384xf32> to vector<16x32xf32>
    %36 = vector.extract_strided_slice %33 {offsets = [0, 128], sizes = [16, 32], strides = [1, 1]} : vector<32x384xf32> to vector<16x32xf32>
    %37 = vector.extract_strided_slice %33 {offsets = [0, 256], sizes = [16, 32], strides = [1, 1]} : vector<32x384xf32> to vector<16x32xf32>
    %38 = tpu.transpose %36, [1, 0] : vector<16x32xf32> -> vector<32x16xf32>
    %cst_18 = arith.constant dense<0.000000e+00> : vector<16x16xf32>
    %39 = tpu.matmul %35, %38, %cst_18 {dimension_numbers = #tpu.dot_dimension_numbers<[1], [0], [0], [1], [0, 0, 1, 1], [], []>} : vector<16x32xf32>, vector<32x16xf32>, vector<16x16xf32> -> vector<16x16xf32>
    %cst_19 = arith.constant 0.176776692 : f32
    %40 = vector.broadcast %cst_19 : f32 to vector<16x16xf32>
    %41 = arith.mulf %39, %40 : vector<16x16xf32>
    %42 = vector.broadcast %34 : vector<1x16xf32> to vector<16x16xf32>
    %43 = arith.addf %41, %42 : vector<16x16xf32>
    %cst_20 = arith.constant dense<0xFF800000> : vector<16xf32>
    %44 = vector.multi_reduction <maximumf>, %43, %cst_20 [1] : vector<16x16xf32> to vector<16xf32>
    %45 = vector.shape_cast %44 : vector<16xf32> to vector<16x1xf32>
    %46 = vector.broadcast %45 : vector<16x1xf32> to vector<16x16xf32>
    %47 = arith.subf %43, %46 : vector<16x16xf32>
    %48 = math.exp %47 : vector<16x16xf32>
    %cst_21 = arith.constant dense<0.000000e+00> : vector<16xf32>
    %49 = vector.multi_reduction <add>, %48, %cst_21 [1] : vector<16x16xf32> to vector<16xf32>
    %50 = vector.shape_cast %49 : vector<16xf32> to vector<16x1xf32>
    %51 = tpu.reciprocal %50 {approx = true} : vector<16x1xf32> -> vector<16x1xf32>
    %52 = vector.broadcast %51 : vector<16x1xf32> to vector<16x16xf32>
    %53 = arith.mulf %48, %52 : vector<16x16xf32>
    %cst_22 = arith.constant dense<0.000000e+00> : vector<16x32xf32>
    %54 = tpu.matmul %53, %37, %cst_22 {dimension_numbers = #tpu.dot_dimension_numbers<[1], [0], [0], [1], [0, 0, 1, 1], [], []>} : vector<16x16xf32>, vector<16x32xf32>, vector<16x32xf32> -> vector<16x32xf32>
    %55 = vector.extract_strided_slice %33 {offsets = [0, 32], sizes = [16, 32], strides = [1, 1]} : vector<32x384xf32> to vector<16x32xf32>
    %56 = vector.extract_strided_slice %33 {offsets = [0, 160], sizes = [16, 32], strides = [1, 1]} : vector<32x384xf32> to vector<16x32xf32>
    %57 = vector.extract_strided_slice %33 {offsets = [0, 288], sizes = [16, 32], strides = [1, 1]} : vector<32x384xf32> to vector<16x32xf32>
    %58 = tpu.transpose %56, [1, 0] : vector<16x32xf32> -> vector<32x16xf32>
    %cst_23 = arith.constant dense<0.000000e+00> : vector<16x16xf32>
    %59 = tpu.matmul %55, %58, %cst_23 {dimension_numbers = #tpu.dot_dimension_numbers<[1], [0], [0], [1], [0, 0, 1, 1], [], []>} : vector<16x32xf32>, vector<32x16xf32>, vector<16x16xf32> -> vector<16x16xf32>
    %cst_24 = arith.constant 0.176776692 : f32
    %60 = vector.broadcast %cst_24 : f32 to vector<16x16xf32>
    %61 = arith.mulf %59, %60 : vector<16x16xf32>
    %62 = vector.broadcast %34 : vector<1x16xf32> to vector<16x16xf32>
    %63 = arith.addf %61, %62 : vector<16x16xf32>
    %cst_25 = arith.constant dense<0xFF800000> : vector<16xf32>
    %64 = vector.multi_reduction <maximumf>, %63, %cst_25 [1] : vector<16x16xf32> to vector<16xf32>
    %65 = vector.shape_cast %64 : vector<16xf32> to vector<16x1xf32>
    %66 = vector.broadcast %65 : vector<16x1xf32> to vector<16x16xf32>
    %67 = arith.subf %63, %66 : vector<16x16xf32>
    %68 = math.exp %67 : vector<16x16xf32>
    %cst_26 = arith.constant dense<0.000000e+00> : vector<16xf32>
    %69 = vector.multi_reduction <add>, %68, %cst_26 [1] : vector<16x16xf32> to vector<16xf32>
    %70 = vector.shape_cast %69 : vector<16xf32> to vector<16x1xf32>
    %71 = tpu.reciprocal %70 {approx = true} : vector<16x1xf32> -> vector<16x1xf32>
    %72 = vector.broadcast %71 : vector<16x1xf32> to vector<16x16xf32>
    %73 = arith.mulf %68, %72 : vector<16x16xf32>
    %cst_27 = arith.constant dense<0.000000e+00> : vector<16x32xf32>
    %74 = tpu.matmul %73, %57, %cst_27 {dimension_numbers = #tpu.dot_dimension_numbers<[1], [0], [0], [1], [0, 0, 1, 1], [], []>} : vector<16x16xf32>, vector<16x32xf32>, vector<16x32xf32> -> vector<16x32xf32>
    %75 = vector.extract_strided_slice %33 {offsets = [0, 64], sizes = [16, 32], strides = [1, 1]} : vector<32x384xf32> to vector<16x32xf32>
    %76 = vector.extract_strided_slice %33 {offsets = [0, 192], sizes = [16, 32], strides = [1, 1]} : vector<32x384xf32> to vector<16x32xf32>
    %77 = vector.extract_strided_slice %33 {offsets = [0, 320], sizes = [16, 32], strides = [1, 1]} : vector<32x384xf32> to vector<16x32xf32>
    %78 = tpu.transpose %76, [1, 0] : vector<16x32xf32> -> vector<32x16xf32>
    %cst_28 = arith.constant dense<0.000000e+00> : vector<16x16xf32>
    %79 = tpu.matmul %75, %78, %cst_28 {dimension_numbers = #tpu.dot_dimension_numbers<[1], [0], [0], [1], [0, 0, 1, 1], [], []>} : vector<16x32xf32>, vector<32x16xf32>, vector<16x16xf32> -> vector<16x16xf32>
    %cst_29 = arith.constant 0.176776692 : f32
    %80 = vector.broadcast %cst_29 : f32 to vector<16x16xf32>
    %81 = arith.mulf %79, %80 : vector<16x16xf32>
    %82 = vector.broadcast %34 : vector<1x16xf32> to vector<16x16xf32>
    %83 = arith.addf %81, %82 : vector<16x16xf32>
    %cst_30 = arith.constant dense<0xFF800000> : vector<16xf32>
    %84 = vector.multi_reduction <maximumf>, %83, %cst_30 [1] : vector<16x16xf32> to vector<16xf32>
    %85 = vector.shape_cast %84 : vector<16xf32> to vector<16x1xf32>
    %86 = vector.broadcast %85 : vector<16x1xf32> to vector<16x16xf32>
    %87 = arith.subf %83, %86 : vector<16x16xf32>
    %88 = math.exp %87 : vector<16x16xf32>
    %cst_31 = arith.constant dense<0.000000e+00> : vector<16xf32>
    %89 = vector.multi_reduction <add>, %88, %cst_31 [1] : vector<16x16xf32> to vector<16xf32>
    %90 = vector.shape_cast %89 : vector<16xf32> to vector<16x1xf32>
    %91 = tpu.reciprocal %90 {approx = true} : vector<16x1xf32> -> vector<16x1xf32>
    %92 = vector.broadcast %91 : vector<16x1xf32> to vector<16x16xf32>
    %93 = arith.mulf %88, %92 : vector<16x16xf32>
    %cst_32 = arith.constant dense<0.000000e+00> : vector<16x32xf32>
    %94 = tpu.matmul %93, %77, %cst_32 {dimension_numbers = #tpu.dot_dimension_numbers<[1], [0], [0], [1], [0, 0, 1, 1], [], []>} : vector<16x16xf32>, vector<16x32xf32>, vector<16x32xf32> -> vector<16x32xf32>
    %95 = vector.extract_strided_slice %33 {offsets = [0, 96], sizes = [16, 32], strides = [1, 1]} : vector<32x384xf32> to vector<16x32xf32>
    %96 = vector.extract_strided_slice %33 {offsets = [0, 224], sizes = [16, 32], strides = [1, 1]} : vector<32x384xf32> to vector<16x32xf32>
    %97 = vector.extract_strided_slice %33 {offsets = [0, 352], sizes = [16, 32], strides = [1, 1]} : vector<32x384xf32> to vector<16x32xf32>
    %98 = tpu.transpose %96, [1, 0] : vector<16x32xf32> -> vector<32x16xf32>
    %cst_33 = arith.constant dense<0.000000e+00> : vector<16x16xf32>
    %99 = tpu.matmul %95, %98, %cst_33 {dimension_numbers = #tpu.dot_dimension_numbers<[1], [0], [0], [1], [0, 0, 1, 1], [], []>} : vector<16x32xf32>, vector<32x16xf32>, vector<16x16xf32> -> vector<16x16xf32>
    %cst_34 = arith.constant 0.176776692 : f32
    %100 = vector.broadcast %cst_34 : f32 to vector<16x16xf32>
    %101 = arith.mulf %99, %100 : vector<16x16xf32>
    %102 = vector.broadcast %34 : vector<1x16xf32> to vector<16x16xf32>
    %103 = arith.addf %101, %102 : vector<16x16xf32>
    %cst_35 = arith.constant dense<0xFF800000> : vector<16xf32>
    %104 = vector.multi_reduction <maximumf>, %103, %cst_35 [1] : vector<16x16xf32> to vector<16xf32>
    %105 = vector.shape_cast %104 : vector<16xf32> to vector<16x1xf32>
    %106 = vector.broadcast %105 : vector<16x1xf32> to vector<16x16xf32>
    %107 = arith.subf %103, %106 : vector<16x16xf32>
    %108 = math.exp %107 : vector<16x16xf32>
    %cst_36 = arith.constant dense<0.000000e+00> : vector<16xf32>
    %109 = vector.multi_reduction <add>, %108, %cst_36 [1] : vector<16x16xf32> to vector<16xf32>
    %110 = vector.shape_cast %109 : vector<16xf32> to vector<16x1xf32>
    %111 = tpu.reciprocal %110 {approx = true} : vector<16x1xf32> -> vector<16x1xf32>
    %112 = vector.broadcast %111 : vector<16x1xf32> to vector<16x16xf32>
    %113 = arith.mulf %108, %112 : vector<16x16xf32>
    %cst_37 = arith.constant dense<0.000000e+00> : vector<16x32xf32>
    %114 = tpu.matmul %113, %97, %cst_37 {dimension_numbers = #tpu.dot_dimension_numbers<[1], [0], [0], [1], [0, 0, 1, 1], [], []>} : vector<16x16xf32>, vector<16x32xf32>, vector<16x32xf32> -> vector<16x32xf32>
    %115 = tpu.concatenate %54, %74, %94, %114 in 1 : vector<16x32xf32>, vector<16x32xf32>, vector<16x32xf32>, vector<16x32xf32> -> vector<16x128xf32>
    %116 = vector.extract_strided_slice %0 {offsets = [1, 0], sizes = [1, 16], strides = [1, 1]} : vector<2x16xf32> to vector<1x16xf32>
    %117 = vector.extract_strided_slice %33 {offsets = [16, 0], sizes = [16, 32], strides = [1, 1]} : vector<32x384xf32> to vector<16x32xf32>
    %118 = vector.extract_strided_slice %33 {offsets = [16, 128], sizes = [16, 32], strides = [1, 1]} : vector<32x384xf32> to vector<16x32xf32>
    %119 = vector.extract_strided_slice %33 {offsets = [16, 256], sizes = [16, 32], strides = [1, 1]} : vector<32x384xf32> to vector<16x32xf32>
    %120 = tpu.transpose %118, [1, 0] : vector<16x32xf32> -> vector<32x16xf32>
    %cst_38 = arith.constant dense<0.000000e+00> : vector<16x16xf32>
    %121 = tpu.matmul %117, %120, %cst_38 {dimension_numbers = #tpu.dot_dimension_numbers<[1], [0], [0], [1], [0, 0, 1, 1], [], []>} : vector<16x32xf32>, vector<32x16xf32>, vector<16x16xf32> -> vector<16x16xf32>
    %cst_39 = arith.constant 0.176776692 : f32
    %122 = vector.broadcast %cst_39 : f32 to vector<16x16xf32>
    %123 = arith.mulf %121, %122 : vector<16x16xf32>
    %124 = vector.broadcast %116 : vector<1x16xf32> to vector<16x16xf32>
    %125 = arith.addf %123, %124 : vector<16x16xf32>
    %cst_40 = arith.constant dense<0xFF800000> : vector<16xf32>
    %126 = vector.multi_reduction <maximumf>, %125, %cst_40 [1] : vector<16x16xf32> to vector<16xf32>
    %127 = vector.shape_cast %126 : vector<16xf32> to vector<16x1xf32>
    %128 = vector.broadcast %127 : vector<16x1xf32> to vector<16x16xf32>
    %129 = arith.subf %125, %128 : vector<16x16xf32>
    %130 = math.exp %129 : vector<16x16xf32>
    %cst_41 = arith.constant dense<0.000000e+00> : vector<16xf32>
    %131 = vector.multi_reduction <add>, %130, %cst_41 [1] : vector<16x16xf32> to vector<16xf32>
    %132 = vector.shape_cast %131 : vector<16xf32> to vector<16x1xf32>
    %133 = tpu.reciprocal %132 {approx = true} : vector<16x1xf32> -> vector<16x1xf32>
    %134 = vector.broadcast %133 : vector<16x1xf32> to vector<16x16xf32>
    %135 = arith.mulf %130, %134 : vector<16x16xf32>
    %cst_42 = arith.constant dense<0.000000e+00> : vector<16x32xf32>
    %136 = tpu.matmul %135, %119, %cst_42 {dimension_numbers = #tpu.dot_dimension_numbers<[1], [0], [0], [1], [0, 0, 1, 1], [], []>} : vector<16x16xf32>, vector<16x32xf32>, vector<16x32xf32> -> vector<16x32xf32>
    %137 = vector.extract_strided_slice %33 {offsets = [16, 32], sizes = [16, 32], strides = [1, 1]} : vector<32x384xf32> to vector<16x32xf32>
    %138 = vector.extract_strided_slice %33 {offsets = [16, 160], sizes = [16, 32], strides = [1, 1]} : vector<32x384xf32> to vector<16x32xf32>
    %139 = vector.extract_strided_slice %33 {offsets = [16, 288], sizes = [16, 32], strides = [1, 1]} : vector<32x384xf32> to vector<16x32xf32>
    %140 = tpu.transpose %138, [1, 0] : vector<16x32xf32> -> vector<32x16xf32>
    %cst_43 = arith.constant dense<0.000000e+00> : vector<16x16xf32>
    %141 = tpu.matmul %137, %140, %cst_43 {dimension_numbers = #tpu.dot_dimension_numbers<[1], [0], [0], [1], [0, 0, 1, 1], [], []>} : vector<16x32xf32>, vector<32x16xf32>, vector<16x16xf32> -> vector<16x16xf32>
    %cst_44 = arith.constant 0.176776692 : f32
    %142 = vector.broadcast %cst_44 : f32 to vector<16x16xf32>
    %143 = arith.mulf %141, %142 : vector<16x16xf32>
    %144 = vector.broadcast %116 : vector<1x16xf32> to vector<16x16xf32>
    %145 = arith.addf %143, %144 : vector<16x16xf32>
    %cst_45 = arith.constant dense<0xFF800000> : vector<16xf32>
    %146 = vector.multi_reduction <maximumf>, %145, %cst_45 [1] : vector<16x16xf32> to vector<16xf32>
    %147 = vector.shape_cast %146 : vector<16xf32> to vector<16x1xf32>
    %148 = vector.broadcast %147 : vector<16x1xf32> to vector<16x16xf32>
    %149 = arith.subf %145, %148 : vector<16x16xf32>
    %150 = math.exp %149 : vector<16x16xf32>
    %cst_46 = arith.constant dense<0.000000e+00> : vector<16xf32>
    %151 = vector.multi_reduction <add>, %150, %cst_46 [1] : vector<16x16xf32> to vector<16xf32>
    %152 = vector.shape_cast %151 : vector<16xf32> to vector<16x1xf32>
    %153 = tpu.reciprocal %152 {approx = true} : vector<16x1xf32> -> vector<16x1xf32>
    %154 = vector.broadcast %153 : vector<16x1xf32> to vector<16x16xf32>
    %155 = arith.mulf %150, %154 : vector<16x16xf32>
    %cst_47 = arith.constant dense<0.000000e+00> : vector<16x32xf32>
    %156 = tpu.matmul %155, %139, %cst_47 {dimension_numbers = #tpu.dot_dimension_numbers<[1], [0], [0], [1], [0, 0, 1, 1], [], []>} : vector<16x16xf32>, vector<16x32xf32>, vector<16x32xf32> -> vector<16x32xf32>
    %157 = vector.extract_strided_slice %33 {offsets = [16, 64], sizes = [16, 32], strides = [1, 1]} : vector<32x384xf32> to vector<16x32xf32>
    %158 = vector.extract_strided_slice %33 {offsets = [16, 192], sizes = [16, 32], strides = [1, 1]} : vector<32x384xf32> to vector<16x32xf32>
    %159 = vector.extract_strided_slice %33 {offsets = [16, 320], sizes = [16, 32], strides = [1, 1]} : vector<32x384xf32> to vector<16x32xf32>
    %160 = tpu.transpose %158, [1, 0] : vector<16x32xf32> -> vector<32x16xf32>
    %cst_48 = arith.constant dense<0.000000e+00> : vector<16x16xf32>
    %161 = tpu.matmul %157, %160, %cst_48 {dimension_numbers = #tpu.dot_dimension_numbers<[1], [0], [0], [1], [0, 0, 1, 1], [], []>} : vector<16x32xf32>, vector<32x16xf32>, vector<16x16xf32> -> vector<16x16xf32>
    %cst_49 = arith.constant 0.176776692 : f32
    %162 = vector.broadcast %cst_49 : f32 to vector<16x16xf32>
    %163 = arith.mulf %161, %162 : vector<16x16xf32>
    %164 = vector.broadcast %116 : vector<1x16xf32> to vector<16x16xf32>
    %165 = arith.addf %163, %164 : vector<16x16xf32>
    %cst_50 = arith.constant dense<0xFF800000> : vector<16xf32>
    %166 = vector.multi_reduction <maximumf>, %165, %cst_50 [1] : vector<16x16xf32> to vector<16xf32>
    %167 = vector.shape_cast %166 : vector<16xf32> to vector<16x1xf32>
    %168 = vector.broadcast %167 : vector<16x1xf32> to vector<16x16xf32>
    %169 = arith.subf %165, %168 : vector<16x16xf32>
    %170 = math.exp %169 : vector<16x16xf32>
    %cst_51 = arith.constant dense<0.000000e+00> : vector<16xf32>
    %171 = vector.multi_reduction <add>, %170, %cst_51 [1] : vector<16x16xf32> to vector<16xf32>
    %172 = vector.shape_cast %171 : vector<16xf32> to vector<16x1xf32>
    %173 = tpu.reciprocal %172 {approx = true} : vector<16x1xf32> -> vector<16x1xf32>
    %174 = vector.broadcast %173 : vector<16x1xf32> to vector<16x16xf32>
    %175 = arith.mulf %170, %174 : vector<16x16xf32>
    %cst_52 = arith.constant dense<0.000000e+00> : vector<16x32xf32>
    %176 = tpu.matmul %175, %159, %cst_52 {dimension_numbers = #tpu.dot_dimension_numbers<[1], [0], [0], [1], [0, 0, 1, 1], [], []>} : vector<16x16xf32>, vector<16x32xf32>, vector<16x32xf32> -> vector<16x32xf32>
    %177 = vector.extract_strided_slice %33 {offsets = [16, 96], sizes = [16, 32], strides = [1, 1]} : vector<32x384xf32> to vector<16x32xf32>
    %178 = vector.extract_strided_slice %33 {offsets = [16, 224], sizes = [16, 32], strides = [1, 1]} : vector<32x384xf32> to vector<16x32xf32>
    %179 = vector.extract_strided_slice %33 {offsets = [16, 352], sizes = [16, 32], strides = [1, 1]} : vector<32x384xf32> to vector<16x32xf32>
    %180 = tpu.transpose %178, [1, 0] : vector<16x32xf32> -> vector<32x16xf32>
    %cst_53 = arith.constant dense<0.000000e+00> : vector<16x16xf32>
    %181 = tpu.matmul %177, %180, %cst_53 {dimension_numbers = #tpu.dot_dimension_numbers<[1], [0], [0], [1], [0, 0, 1, 1], [], []>} : vector<16x32xf32>, vector<32x16xf32>, vector<16x16xf32> -> vector<16x16xf32>
    %cst_54 = arith.constant 0.176776692 : f32
    %182 = vector.broadcast %cst_54 : f32 to vector<16x16xf32>
    %183 = arith.mulf %181, %182 : vector<16x16xf32>
    %184 = vector.broadcast %116 : vector<1x16xf32> to vector<16x16xf32>
    %185 = arith.addf %183, %184 : vector<16x16xf32>
    %cst_55 = arith.constant dense<0xFF800000> : vector<16xf32>
    %186 = vector.multi_reduction <maximumf>, %185, %cst_55 [1] : vector<16x16xf32> to vector<16xf32>
    %187 = vector.shape_cast %186 : vector<16xf32> to vector<16x1xf32>
    %188 = vector.broadcast %187 : vector<16x1xf32> to vector<16x16xf32>
    %189 = arith.subf %185, %188 : vector<16x16xf32>
    %190 = math.exp %189 : vector<16x16xf32>
    %cst_56 = arith.constant dense<0.000000e+00> : vector<16xf32>
    %191 = vector.multi_reduction <add>, %190, %cst_56 [1] : vector<16x16xf32> to vector<16xf32>
    %192 = vector.shape_cast %191 : vector<16xf32> to vector<16x1xf32>
    %193 = tpu.reciprocal %192 {approx = true} : vector<16x1xf32> -> vector<16x1xf32>
    %194 = vector.broadcast %193 : vector<16x1xf32> to vector<16x16xf32>
    %195 = arith.mulf %190, %194 : vector<16x16xf32>
    %cst_57 = arith.constant dense<0.000000e+00> : vector<16x32xf32>
    %196 = tpu.matmul %195, %179, %cst_57 {dimension_numbers = #tpu.dot_dimension_numbers<[1], [0], [0], [1], [0, 0, 1, 1], [], []>} : vector<16x16xf32>, vector<16x32xf32>, vector<16x32xf32> -> vector<16x32xf32>
    %197 = tpu.concatenate %136, %156, %176, %196 in 1 : vector<16x32xf32>, vector<16x32xf32>, vector<16x32xf32>, vector<16x32xf32> -> vector<16x128xf32>
    %198 = tpu.concatenate %115, %197 in 0 : vector<16x128xf32>, vector<16x128xf32> -> vector<32x128xf32>
    %c0_58 = arith.constant 0 : index
    %c0_59 = arith.constant 0 : index
    %c0_60 = arith.constant 0 : index
    %199 = vector.load %arg6[%c0_58, %c0_59, %c0_60] : memref<2x128x128xbf16, #tpu.memory_space<vmem>>, vector<1x128x128xbf16>
    %200 = vector.shape_cast %199 : vector<1x128x128xbf16> to vector<128x128xbf16>
    %201 = arith.truncf %198 : vector<32x128xf32> to vector<32x128xbf16>
    %cst_61 = arith.constant dense<0.000000e+00> : vector<32x128xf32>
    %202 = tpu.matmul %201, %200, %cst_61 {dimension_numbers = #tpu.dot_dimension_numbers<[1], [0], [0], [1], [0, 0, 1, 1], [], []>} : vector<32x128xbf16>, vector<128x128xbf16>, vector<32x128xf32> -> vector<32x128xf32>
    %c0_62 = arith.constant 0 : index
    %c0_63 = arith.constant 0 : index
    %c0_64 = arith.constant 0 : index
    %203 = vector.load %arg7[%c0_62, %c0_63, %c0_64] : memref<2x1x128xf32, #tpu.memory_space<vmem>>, vector<1x1x128xf32>
    %204 = vector.shape_cast %203 : vector<1x1x128xf32> to vector<1x128xf32>
    %205 = vector.broadcast %204 : vector<1x128xf32> to vector<32x128xf32>
    %206 = arith.addf %202, %205 : vector<32x128xf32>
    %207 = arith.addf %206, %25 : vector<32x128xf32>
    %c0_65 = arith.constant 0 : index
    %c0_66 = arith.constant 0 : index
    %c0_67 = arith.constant 0 : index
    %208 = vector.load %arg8[%c0_65, %c0_66, %c0_67] : memref<2x1x128xf32, #tpu.memory_space<vmem>>, vector<1x1x128xf32>
    %209 = vector.shape_cast %208 : vector<1x1x128xf32> to vector<1x128xf32>
    %c0_68 = arith.constant 0 : index
    %c0_69 = arith.constant 0 : index
    %c0_70 = arith.constant 0 : index
    %210 = vector.load %arg9[%c0_68, %c0_69, %c0_70] : memref<2x1x128xf32, #tpu.memory_space<vmem>>, vector<1x1x128xf32>
    %211 = vector.shape_cast %210 : vector<1x1x128xf32> to vector<1x128xf32>
    %cst_71 = arith.constant dense<0.000000e+00> : vector<32xf32>
    %212 = vector.multi_reduction <add>, %207, %cst_71 [1] : vector<32x128xf32> to vector<32xf32>
    %213 = vector.shape_cast %212 : vector<32xf32> to vector<32x1xf32>
    %cst_72 = arith.constant 1.280000e+02 : f32
    %214 = vector.broadcast %cst_72 : f32 to vector<32x1xf32>
    %215 = arith.divf %213, %214 : vector<32x1xf32>
    %216 = vector.broadcast %215 : vector<32x1xf32> to vector<32x128xf32>
    %217 = arith.subf %207, %216 : vector<32x128xf32>
    %218 = arith.mulf %217, %217 : vector<32x128xf32>
    %cst_73 = arith.constant dense<0.000000e+00> : vector<32xf32>
    %219 = vector.multi_reduction <add>, %218, %cst_73 [1] : vector<32x128xf32> to vector<32xf32>
    %220 = vector.shape_cast %219 : vector<32xf32> to vector<32x1xf32>
    %cst_74 = arith.constant 1.280000e+02 : f32
    %221 = vector.broadcast %cst_74 : f32 to vector<32x1xf32>
    %222 = arith.divf %220, %221 : vector<32x1xf32>
    %223 = vector.broadcast %215 : vector<32x1xf32> to vector<32x128xf32>
    %224 = arith.subf %207, %223 : vector<32x128xf32>
    %cst_75 = arith.constant 1.000000e-07 : f32
    %225 = vector.broadcast %cst_75 : f32 to vector<32x1xf32>
    %226 = arith.addf %222, %225 : vector<32x1xf32>
    %227 = math.rsqrt %226 : vector<32x1xf32>
    %228 = vector.broadcast %227 : vector<32x1xf32> to vector<32x128xf32>
    %229 = arith.mulf %224, %228 : vector<32x128xf32>
    %230 = vector.broadcast %209 : vector<1x128xf32> to vector<32x128xf32>
    %231 = arith.mulf %229, %230 : vector<32x128xf32>
    %232 = vector.broadcast %211 : vector<1x128xf32> to vector<32x128xf32>
    %233 = arith.addf %231, %232 : vector<32x128xf32>
    %c0_76 = arith.constant 0 : index
    %c0_77 = arith.constant 0 : index
    %c0_78 = arith.constant 0 : index
    %234 = vector.load %arg10[%c0_76, %c0_77, %c0_78] : memref<2x128x256xbf16, #tpu.memory_space<vmem>>, vector<1x128x256xbf16>
    %235 = vector.shape_cast %234 : vector<1x128x256xbf16> to vector<128x256xbf16>
    %236 = arith.truncf %233 : vector<32x128xf32> to vector<32x128xbf16>
    %cst_79 = arith.constant dense<0.000000e+00> : vector<32x256xf32>
    %237 = tpu.matmul %236, %235, %cst_79 {dimension_numbers = #tpu.dot_dimension_numbers<[1], [0], [0], [1], [0, 0, 1, 1], [], []>} : vector<32x128xbf16>, vector<128x256xbf16>, vector<32x256xf32> -> vector<32x256xf32>
    %c0_80 = arith.constant 0 : index
    %c0_81 = arith.constant 0 : index
    %c0_82 = arith.constant 0 : index
    %238 = vector.load %arg11[%c0_80, %c0_81, %c0_82] : memref<2x1x256xf32, #tpu.memory_space<vmem>>, vector<1x1x256xf32>
    %239 = vector.shape_cast %238 : vector<1x1x256xf32> to vector<1x256xf32>
    %240 = vector.broadcast %239 : vector<1x256xf32> to vector<32x256xf32>
    %241 = arith.addf %237, %240 : vector<32x256xf32>
    %242 = arith.mulf %241, %241 : vector<32x256xf32>
    %243 = arith.mulf %241, %242 : vector<32x256xf32>
    %cst_83 = arith.constant 4.471500e-02 : f32
    %244 = vector.broadcast %cst_83 : f32 to vector<32x256xf32>
    %245 = arith.mulf %244, %243 : vector<32x256xf32>
    %246 = arith.addf %241, %245 : vector<32x256xf32>
    %cst_84 = arith.constant 0.797884583 : f32
    %247 = vector.broadcast %cst_84 : f32 to vector<32x256xf32>
    %248 = arith.mulf %247, %246 : vector<32x256xf32>
    %249 = math.tanh %248 : vector<32x256xf32>
    %cst_85 = arith.constant 1.000000e+00 : f32
    %250 = vector.broadcast %cst_85 : f32 to vector<32x256xf32>
    %251 = arith.addf %250, %249 : vector<32x256xf32>
    %cst_86 = arith.constant 5.000000e-01 : f32
    %252 = vector.broadcast %cst_86 : f32 to vector<32x256xf32>
    %253 = arith.mulf %252, %251 : vector<32x256xf32>
    %254 = arith.mulf %241, %253 : vector<32x256xf32>
    %c0_87 = arith.constant 0 : index
    %c0_88 = arith.constant 0 : index
    %c0_89 = arith.constant 0 : index
    %255 = vector.load %arg12[%c0_87, %c0_88, %c0_89] : memref<2x256x128xbf16, #tpu.memory_space<vmem>>, vector<1x256x128xbf16>
    %256 = vector.shape_cast %255 : vector<1x256x128xbf16> to vector<256x128xbf16>
    %257 = arith.truncf %254 : vector<32x256xf32> to vector<32x256xbf16>
    %cst_90 = arith.constant dense<0.000000e+00> : vector<32x128xf32>
    %258 = tpu.matmul %257, %256, %cst_90 {dimension_numbers = #tpu.dot_dimension_numbers<[1], [0], [0], [1], [0, 0, 1, 1], [], []>} : vector<32x256xbf16>, vector<256x128xbf16>, vector<32x128xf32> -> vector<32x128xf32>
    %c0_91 = arith.constant 0 : index
    %c0_92 = arith.constant 0 : index
    %c0_93 = arith.constant 0 : index
    %259 = vector.load %arg13[%c0_91, %c0_92, %c0_93] : memref<2x1x128xf32, #tpu.memory_space<vmem>>, vector<1x1x128xf32>
    %260 = vector.shape_cast %259 : vector<1x1x128xf32> to vector<1x128xf32>
    %261 = vector.broadcast %260 : vector<1x128xf32> to vector<32x128xf32>
    %262 = arith.addf %258, %261 : vector<32x128xf32>
    %263 = arith.addf %262, %233 : vector<32x128xf32>
    %c0_94 = arith.constant 0 : index
    %c0_95 = arith.constant 0 : index
    %c0_96 = arith.constant 0 : index
    %264 = vector.load %arg14[%c0_94, %c0_95, %c0_96] : memref<2x1x128xf32, #tpu.memory_space<vmem>>, vector<1x1x128xf32>
    %265 = vector.shape_cast %264 : vector<1x1x128xf32> to vector<1x128xf32>
    %c0_97 = arith.constant 0 : index
    %c0_98 = arith.constant 0 : index
    %c0_99 = arith.constant 0 : index
    %266 = vector.load %arg15[%c0_97, %c0_98, %c0_99] : memref<2x1x128xf32, #tpu.memory_space<vmem>>, vector<1x1x128xf32>
    %267 = vector.shape_cast %266 : vector<1x1x128xf32> to vector<1x128xf32>
    %cst_100 = arith.constant dense<0.000000e+00> : vector<32xf32>
    %268 = vector.multi_reduction <add>, %263, %cst_100 [1] : vector<32x128xf32> to vector<32xf32>
    %269 = vector.shape_cast %268 : vector<32xf32> to vector<32x1xf32>
    %cst_101 = arith.constant 1.280000e+02 : f32
    %270 = vector.broadcast %cst_101 : f32 to vector<32x1xf32>
    %271 = arith.divf %269, %270 : vector<32x1xf32>
    %272 = vector.broadcast %271 : vector<32x1xf32> to vector<32x128xf32>
    %273 = arith.subf %263, %272 : vector<32x128xf32>
    %274 = arith.mulf %273, %273 : vector<32x128xf32>
    %cst_102 = arith.constant dense<0.000000e+00> : vector<32xf32>
    %275 = vector.multi_reduction <add>, %274, %cst_102 [1] : vector<32x128xf32> to vector<32xf32>
    %276 = vector.shape_cast %275 : vector<32xf32> to vector<32x1xf32>
    %cst_103 = arith.constant 1.280000e+02 : f32
    %277 = vector.broadcast %cst_103 : f32 to vector<32x1xf32>
    %278 = arith.divf %276, %277 : vector<32x1xf32>
    %279 = vector.broadcast %271 : vector<32x1xf32> to vector<32x128xf32>
    %280 = arith.subf %263, %279 : vector<32x128xf32>
    %cst_104 = arith.constant 1.000000e-07 : f32
    %281 = vector.broadcast %cst_104 : f32 to vector<32x1xf32>
    %282 = arith.addf %278, %281 : vector<32x1xf32>
    %283 = math.rsqrt %282 : vector<32x1xf32>
    %284 = vector.broadcast %283 : vector<32x1xf32> to vector<32x128xf32>
    %285 = arith.mulf %280, %284 : vector<32x128xf32>
    %286 = vector.broadcast %265 : vector<1x128xf32> to vector<32x128xf32>
    %287 = arith.mulf %285, %286 : vector<32x128xf32>
    %288 = vector.broadcast %267 : vector<1x128xf32> to vector<32x128xf32>
    %289 = arith.addf %287, %288 : vector<32x128xf32>
    %c1 = arith.constant 1 : index
    %c0_105 = arith.constant 0 : index
    %c0_106 = arith.constant 0 : index
    %290 = vector.load %arg4[%c1, %c0_105, %c0_106] : memref<2x128x384xbf16, #tpu.memory_space<vmem>>, vector<1x128x384xbf16>
    %291 = vector.shape_cast %290 : vector<1x128x384xbf16> to vector<128x384xbf16>
    %292 = arith.truncf %289 : vector<32x128xf32> to vector<32x128xbf16>
    %cst_107 = arith.constant dense<0.000000e+00> : vector<32x384xf32>
    %293 = tpu.matmul %292, %291, %cst_107 {dimension_numbers = #tpu.dot_dimension_numbers<[1], [0], [0], [1], [0, 0, 1, 1], [], []>} : vector<32x128xbf16>, vector<128x384xbf16>, vector<32x384xf32> -> vector<32x384xf32>
    %c1_108 = arith.constant 1 : index
    %c0_109 = arith.constant 0 : index
    %c0_110 = arith.constant 0 : index
    %294 = vector.load %arg5[%c1_108, %c0_109, %c0_110] : memref<2x1x384xf32, #tpu.memory_space<vmem>>, vector<1x1x384xf32>
    %295 = vector.shape_cast %294 : vector<1x1x384xf32> to vector<1x384xf32>
    %296 = vector.broadcast %295 : vector<1x384xf32> to vector<32x384xf32>
    %297 = arith.addf %293, %296 : vector<32x384xf32>
    %298 = vector.extract_strided_slice %0 {offsets = [0, 0], sizes = [1, 16], strides = [1, 1]} : vector<2x16xf32> to vector<1x16xf32>
    %299 = vector.extract_strided_slice %297 {offsets = [0, 0], sizes = [16, 32], strides = [1, 1]} : vector<32x384xf32> to vector<16x32xf32>
    %300 = vector.extract_strided_slice %297 {offsets = [0, 128], sizes = [16, 32], strides = [1, 1]} : vector<32x384xf32> to vector<16x32xf32>
    %301 = vector.extract_strided_slice %297 {offsets = [0, 256], sizes = [16, 32], strides = [1, 1]} : vector<32x384xf32> to vector<16x32xf32>
    %302 = tpu.transpose %300, [1, 0] : vector<16x32xf32> -> vector<32x16xf32>
    %cst_111 = arith.constant dense<0.000000e+00> : vector<16x16xf32>
    %303 = tpu.matmul %299, %302, %cst_111 {dimension_numbers = #tpu.dot_dimension_numbers<[1], [0], [0], [1], [0, 0, 1, 1], [], []>} : vector<16x32xf32>, vector<32x16xf32>, vector<16x16xf32> -> vector<16x16xf32>
    %cst_112 = arith.constant 0.176776692 : f32
    %304 = vector.broadcast %cst_112 : f32 to vector<16x16xf32>
    %305 = arith.mulf %303, %304 : vector<16x16xf32>
    %306 = vector.broadcast %298 : vector<1x16xf32> to vector<16x16xf32>
    %307 = arith.addf %305, %306 : vector<16x16xf32>
    %cst_113 = arith.constant dense<0xFF800000> : vector<16xf32>
    %308 = vector.multi_reduction <maximumf>, %307, %cst_113 [1] : vector<16x16xf32> to vector<16xf32>
    %309 = vector.shape_cast %308 : vector<16xf32> to vector<16x1xf32>
    %310 = vector.broadcast %309 : vector<16x1xf32> to vector<16x16xf32>
    %311 = arith.subf %307, %310 : vector<16x16xf32>
    %312 = math.exp %311 : vector<16x16xf32>
    %cst_114 = arith.constant dense<0.000000e+00> : vector<16xf32>
    %313 = vector.multi_reduction <add>, %312, %cst_114 [1] : vector<16x16xf32> to vector<16xf32>
    %314 = vector.shape_cast %313 : vector<16xf32> to vector<16x1xf32>
    %315 = tpu.reciprocal %314 {approx = true} : vector<16x1xf32> -> vector<16x1xf32>
    %316 = vector.broadcast %315 : vector<16x1xf32> to vector<16x16xf32>
    %317 = arith.mulf %312, %316 : vector<16x16xf32>
    %cst_115 = arith.constant dense<0.000000e+00> : vector<16x32xf32>
    %318 = tpu.matmul %317, %301, %cst_115 {dimension_numbers = #tpu.dot_dimension_numbers<[1], [0], [0], [1], [0, 0, 1, 1], [], []>} : vector<16x16xf32>, vector<16x32xf32>, vector<16x32xf32> -> vector<16x32xf32>
    %319 = vector.extract_strided_slice %297 {offsets = [0, 32], sizes = [16, 32], strides = [1, 1]} : vector<32x384xf32> to vector<16x32xf32>
    %320 = vector.extract_strided_slice %297 {offsets = [0, 160], sizes = [16, 32], strides = [1, 1]} : vector<32x384xf32> to vector<16x32xf32>
    %321 = vector.extract_strided_slice %297 {offsets = [0, 288], sizes = [16, 32], strides = [1, 1]} : vector<32x384xf32> to vector<16x32xf32>
    %322 = tpu.transpose %320, [1, 0] : vector<16x32xf32> -> vector<32x16xf32>
    %cst_116 = arith.constant dense<0.000000e+00> : vector<16x16xf32>
    %323 = tpu.matmul %319, %322, %cst_116 {dimension_numbers = #tpu.dot_dimension_numbers<[1], [0], [0], [1], [0, 0, 1, 1], [], []>} : vector<16x32xf32>, vector<32x16xf32>, vector<16x16xf32> -> vector<16x16xf32>
    %cst_117 = arith.constant 0.176776692 : f32
    %324 = vector.broadcast %cst_117 : f32 to vector<16x16xf32>
    %325 = arith.mulf %323, %324 : vector<16x16xf32>
    %326 = vector.broadcast %298 : vector<1x16xf32> to vector<16x16xf32>
    %327 = arith.addf %325, %326 : vector<16x16xf32>
    %cst_118 = arith.constant dense<0xFF800000> : vector<16xf32>
    %328 = vector.multi_reduction <maximumf>, %327, %cst_118 [1] : vector<16x16xf32> to vector<16xf32>
    %329 = vector.shape_cast %328 : vector<16xf32> to vector<16x1xf32>
    %330 = vector.broadcast %329 : vector<16x1xf32> to vector<16x16xf32>
    %331 = arith.subf %327, %330 : vector<16x16xf32>
    %332 = math.exp %331 : vector<16x16xf32>
    %cst_119 = arith.constant dense<0.000000e+00> : vector<16xf32>
    %333 = vector.multi_reduction <add>, %332, %cst_119 [1] : vector<16x16xf32> to vector<16xf32>
    %334 = vector.shape_cast %333 : vector<16xf32> to vector<16x1xf32>
    %335 = tpu.reciprocal %334 {approx = true} : vector<16x1xf32> -> vector<16x1xf32>
    %336 = vector.broadcast %335 : vector<16x1xf32> to vector<16x16xf32>
    %337 = arith.mulf %332, %336 : vector<16x16xf32>
    %cst_120 = arith.constant dense<0.000000e+00> : vector<16x32xf32>
    %338 = tpu.matmul %337, %321, %cst_120 {dimension_numbers = #tpu.dot_dimension_numbers<[1], [0], [0], [1], [0, 0, 1, 1], [], []>} : vector<16x16xf32>, vector<16x32xf32>, vector<16x32xf32> -> vector<16x32xf32>
    %339 = vector.extract_strided_slice %297 {offsets = [0, 64], sizes = [16, 32], strides = [1, 1]} : vector<32x384xf32> to vector<16x32xf32>
    %340 = vector.extract_strided_slice %297 {offsets = [0, 192], sizes = [16, 32], strides = [1, 1]} : vector<32x384xf32> to vector<16x32xf32>
    %341 = vector.extract_strided_slice %297 {offsets = [0, 320], sizes = [16, 32], strides = [1, 1]} : vector<32x384xf32> to vector<16x32xf32>
    %342 = tpu.transpose %340, [1, 0] : vector<16x32xf32> -> vector<32x16xf32>
    %cst_121 = arith.constant dense<0.000000e+00> : vector<16x16xf32>
    %343 = tpu.matmul %339, %342, %cst_121 {dimension_numbers = #tpu.dot_dimension_numbers<[1], [0], [0], [1], [0, 0, 1, 1], [], []>} : vector<16x32xf32>, vector<32x16xf32>, vector<16x16xf32> -> vector<16x16xf32>
    %cst_122 = arith.constant 0.176776692 : f32
    %344 = vector.broadcast %cst_122 : f32 to vector<16x16xf32>
    %345 = arith.mulf %343, %344 : vector<16x16xf32>
    %346 = vector.broadcast %298 : vector<1x16xf32> to vector<16x16xf32>
    %347 = arith.addf %345, %346 : vector<16x16xf32>
    %cst_123 = arith.constant dense<0xFF800000> : vector<16xf32>
    %348 = vector.multi_reduction <maximumf>, %347, %cst_123 [1] : vector<16x16xf32> to vector<16xf32>
    %349 = vector.shape_cast %348 : vector<16xf32> to vector<16x1xf32>
    %350 = vector.broadcast %349 : vector<16x1xf32> to vector<16x16xf32>
    %351 = arith.subf %347, %350 : vector<16x16xf32>
    %352 = math.exp %351 : vector<16x16xf32>
    %cst_124 = arith.constant dense<0.000000e+00> : vector<16xf32>
    %353 = vector.multi_reduction <add>, %352, %cst_124 [1] : vector<16x16xf32> to vector<16xf32>
    %354 = vector.shape_cast %353 : vector<16xf32> to vector<16x1xf32>
    %355 = tpu.reciprocal %354 {approx = true} : vector<16x1xf32> -> vector<16x1xf32>
    %356 = vector.broadcast %355 : vector<16x1xf32> to vector<16x16xf32>
    %357 = arith.mulf %352, %356 : vector<16x16xf32>
    %cst_125 = arith.constant dense<0.000000e+00> : vector<16x32xf32>
    %358 = tpu.matmul %357, %341, %cst_125 {dimension_numbers = #tpu.dot_dimension_numbers<[1], [0], [0], [1], [0, 0, 1, 1], [], []>} : vector<16x16xf32>, vector<16x32xf32>, vector<16x32xf32> -> vector<16x32xf32>
    %359 = vector.extract_strided_slice %297 {offsets = [0, 96], sizes = [16, 32], strides = [1, 1]} : vector<32x384xf32> to vector<16x32xf32>
    %360 = vector.extract_strided_slice %297 {offsets = [0, 224], sizes = [16, 32], strides = [1, 1]} : vector<32x384xf32> to vector<16x32xf32>
    %361 = vector.extract_strided_slice %297 {offsets = [0, 352], sizes = [16, 32], strides = [1, 1]} : vector<32x384xf32> to vector<16x32xf32>
    %362 = tpu.transpose %360, [1, 0] : vector<16x32xf32> -> vector<32x16xf32>
    %cst_126 = arith.constant dense<0.000000e+00> : vector<16x16xf32>
    %363 = tpu.matmul %359, %362, %cst_126 {dimension_numbers = #tpu.dot_dimension_numbers<[1], [0], [0], [1], [0, 0, 1, 1], [], []>} : vector<16x32xf32>, vector<32x16xf32>, vector<16x16xf32> -> vector<16x16xf32>
    %cst_127 = arith.constant 0.176776692 : f32
    %364 = vector.broadcast %cst_127 : f32 to vector<16x16xf32>
    %365 = arith.mulf %363, %364 : vector<16x16xf32>
    %366 = vector.broadcast %298 : vector<1x16xf32> to vector<16x16xf32>
    %367 = arith.addf %365, %366 : vector<16x16xf32>
    %cst_128 = arith.constant dense<0xFF800000> : vector<16xf32>
    %368 = vector.multi_reduction <maximumf>, %367, %cst_128 [1] : vector<16x16xf32> to vector<16xf32>
    %369 = vector.shape_cast %368 : vector<16xf32> to vector<16x1xf32>
    %370 = vector.broadcast %369 : vector<16x1xf32> to vector<16x16xf32>
    %371 = arith.subf %367, %370 : vector<16x16xf32>
    %372 = math.exp %371 : vector<16x16xf32>
    %cst_129 = arith.constant dense<0.000000e+00> : vector<16xf32>
    %373 = vector.multi_reduction <add>, %372, %cst_129 [1] : vector<16x16xf32> to vector<16xf32>
    %374 = vector.shape_cast %373 : vector<16xf32> to vector<16x1xf32>
    %375 = tpu.reciprocal %374 {approx = true} : vector<16x1xf32> -> vector<16x1xf32>
    %376 = vector.broadcast %375 : vector<16x1xf32> to vector<16x16xf32>
    %377 = arith.mulf %372, %376 : vector<16x16xf32>
    %cst_130 = arith.constant dense<0.000000e+00> : vector<16x32xf32>
    %378 = tpu.matmul %377, %361, %cst_130 {dimension_numbers = #tpu.dot_dimension_numbers<[1], [0], [0], [1], [0, 0, 1, 1], [], []>} : vector<16x16xf32>, vector<16x32xf32>, vector<16x32xf32> -> vector<16x32xf32>
    %379 = tpu.concatenate %318, %338, %358, %378 in 1 : vector<16x32xf32>, vector<16x32xf32>, vector<16x32xf32>, vector<16x32xf32> -> vector<16x128xf32>
    %380 = vector.extract_strided_slice %0 {offsets = [1, 0], sizes = [1, 16], strides = [1, 1]} : vector<2x16xf32> to vector<1x16xf32>
    %381 = vector.extract_strided_slice %297 {offsets = [16, 0], sizes = [16, 32], strides = [1, 1]} : vector<32x384xf32> to vector<16x32xf32>
    %382 = vector.extract_strided_slice %297 {offsets = [16, 128], sizes = [16, 32], strides = [1, 1]} : vector<32x384xf32> to vector<16x32xf32>
    %383 = vector.extract_strided_slice %297 {offsets = [16, 256], sizes = [16, 32], strides = [1, 1]} : vector<32x384xf32> to vector<16x32xf32>
    %384 = tpu.transpose %382, [1, 0] : vector<16x32xf32> -> vector<32x16xf32>
    %cst_131 = arith.constant dense<0.000000e+00> : vector<16x16xf32>
    %385 = tpu.matmul %381, %384, %cst_131 {dimension_numbers = #tpu.dot_dimension_numbers<[1], [0], [0], [1], [0, 0, 1, 1], [], []>} : vector<16x32xf32>, vector<32x16xf32>, vector<16x16xf32> -> vector<16x16xf32>
    %cst_132 = arith.constant 0.176776692 : f32
    %386 = vector.broadcast %cst_132 : f32 to vector<16x16xf32>
    %387 = arith.mulf %385, %386 : vector<16x16xf32>
    %388 = vector.broadcast %380 : vector<1x16xf32> to vector<16x16xf32>
    %389 = arith.addf %387, %388 : vector<16x16xf32>
    %cst_133 = arith.constant dense<0xFF800000> : vector<16xf32>
    %390 = vector.multi_reduction <maximumf>, %389, %cst_133 [1] : vector<16x16xf32> to vector<16xf32>
    %391 = vector.shape_cast %390 : vector<16xf32> to vector<16x1xf32>
    %392 = vector.broadcast %391 : vector<16x1xf32> to vector<16x16xf32>
    %393 = arith.subf %389, %392 : vector<16x16xf32>
    %394 = math.exp %393 : vector<16x16xf32>
    %cst_134 = arith.constant dense<0.000000e+00> : vector<16xf32>
    %395 = vector.multi_reduction <add>, %394, %cst_134 [1] : vector<16x16xf32> to vector<16xf32>
    %396 = vector.shape_cast %395 : vector<16xf32> to vector<16x1xf32>
    %397 = tpu.reciprocal %396 {approx = true} : vector<16x1xf32> -> vector<16x1xf32>
    %398 = vector.broadcast %397 : vector<16x1xf32> to vector<16x16xf32>
    %399 = arith.mulf %394, %398 : vector<16x16xf32>
    %cst_135 = arith.constant dense<0.000000e+00> : vector<16x32xf32>
    %400 = tpu.matmul %399, %383, %cst_135 {dimension_numbers = #tpu.dot_dimension_numbers<[1], [0], [0], [1], [0, 0, 1, 1], [], []>} : vector<16x16xf32>, vector<16x32xf32>, vector<16x32xf32> -> vector<16x32xf32>
    %401 = vector.extract_strided_slice %297 {offsets = [16, 32], sizes = [16, 32], strides = [1, 1]} : vector<32x384xf32> to vector<16x32xf32>
    %402 = vector.extract_strided_slice %297 {offsets = [16, 160], sizes = [16, 32], strides = [1, 1]} : vector<32x384xf32> to vector<16x32xf32>
    %403 = vector.extract_strided_slice %297 {offsets = [16, 288], sizes = [16, 32], strides = [1, 1]} : vector<32x384xf32> to vector<16x32xf32>
    %404 = tpu.transpose %402, [1, 0] : vector<16x32xf32> -> vector<32x16xf32>
    %cst_136 = arith.constant dense<0.000000e+00> : vector<16x16xf32>
    %405 = tpu.matmul %401, %404, %cst_136 {dimension_numbers = #tpu.dot_dimension_numbers<[1], [0], [0], [1], [0, 0, 1, 1], [], []>} : vector<16x32xf32>, vector<32x16xf32>, vector<16x16xf32> -> vector<16x16xf32>
    %cst_137 = arith.constant 0.176776692 : f32
    %406 = vector.broadcast %cst_137 : f32 to vector<16x16xf32>
    %407 = arith.mulf %405, %406 : vector<16x16xf32>
    %408 = vector.broadcast %380 : vector<1x16xf32> to vector<16x16xf32>
    %409 = arith.addf %407, %408 : vector<16x16xf32>
    %cst_138 = arith.constant dense<0xFF800000> : vector<16xf32>
    %410 = vector.multi_reduction <maximumf>, %409, %cst_138 [1] : vector<16x16xf32> to vector<16xf32>
    %411 = vector.shape_cast %410 : vector<16xf32> to vector<16x1xf32>
    %412 = vector.broadcast %411 : vector<16x1xf32> to vector<16x16xf32>
    %413 = arith.subf %409, %412 : vector<16x16xf32>
    %414 = math.exp %413 : vector<16x16xf32>
    %cst_139 = arith.constant dense<0.000000e+00> : vector<16xf32>
    %415 = vector.multi_reduction <add>, %414, %cst_139 [1] : vector<16x16xf32> to vector<16xf32>
    %416 = vector.shape_cast %415 : vector<16xf32> to vector<16x1xf32>
    %417 = tpu.reciprocal %416 {approx = true} : vector<16x1xf32> -> vector<16x1xf32>
    %418 = vector.broadcast %417 : vector<16x1xf32> to vector<16x16xf32>
    %419 = arith.mulf %414, %418 : vector<16x16xf32>
    %cst_140 = arith.constant dense<0.000000e+00> : vector<16x32xf32>
    %420 = tpu.matmul %419, %403, %cst_140 {dimension_numbers = #tpu.dot_dimension_numbers<[1], [0], [0], [1], [0, 0, 1, 1], [], []>} : vector<16x16xf32>, vector<16x32xf32>, vector<16x32xf32> -> vector<16x32xf32>
    %421 = vector.extract_strided_slice %297 {offsets = [16, 64], sizes = [16, 32], strides = [1, 1]} : vector<32x384xf32> to vector<16x32xf32>
    %422 = vector.extract_strided_slice %297 {offsets = [16, 192], sizes = [16, 32], strides = [1, 1]} : vector<32x384xf32> to vector<16x32xf32>
    %423 = vector.extract_strided_slice %297 {offsets = [16, 320], sizes = [16, 32], strides = [1, 1]} : vector<32x384xf32> to vector<16x32xf32>
    %424 = tpu.transpose %422, [1, 0] : vector<16x32xf32> -> vector<32x16xf32>
    %cst_141 = arith.constant dense<0.000000e+00> : vector<16x16xf32>
    %425 = tpu.matmul %421, %424, %cst_141 {dimension_numbers = #tpu.dot_dimension_numbers<[1], [0], [0], [1], [0, 0, 1, 1], [], []>} : vector<16x32xf32>, vector<32x16xf32>, vector<16x16xf32> -> vector<16x16xf32>
    %cst_142 = arith.constant 0.176776692 : f32
    %426 = vector.broadcast %cst_142 : f32 to vector<16x16xf32>
    %427 = arith.mulf %425, %426 : vector<16x16xf32>
    %428 = vector.broadcast %380 : vector<1x16xf32> to vector<16x16xf32>
    %429 = arith.addf %427, %428 : vector<16x16xf32>
    %cst_143 = arith.constant dense<0xFF800000> : vector<16xf32>
    %430 = vector.multi_reduction <maximumf>, %429, %cst_143 [1] : vector<16x16xf32> to vector<16xf32>
    %431 = vector.shape_cast %430 : vector<16xf32> to vector<16x1xf32>
    %432 = vector.broadcast %431 : vector<16x1xf32> to vector<16x16xf32>
    %433 = arith.subf %429, %432 : vector<16x16xf32>
    %434 = math.exp %433 : vector<16x16xf32>
    %cst_144 = arith.constant dense<0.000000e+00> : vector<16xf32>
    %435 = vector.multi_reduction <add>, %434, %cst_144 [1] : vector<16x16xf32> to vector<16xf32>
    %436 = vector.shape_cast %435 : vector<16xf32> to vector<16x1xf32>
    %437 = tpu.reciprocal %436 {approx = true} : vector<16x1xf32> -> vector<16x1xf32>
    %438 = vector.broadcast %437 : vector<16x1xf32> to vector<16x16xf32>
    %439 = arith.mulf %434, %438 : vector<16x16xf32>
    %cst_145 = arith.constant dense<0.000000e+00> : vector<16x32xf32>
    %440 = tpu.matmul %439, %423, %cst_145 {dimension_numbers = #tpu.dot_dimension_numbers<[1], [0], [0], [1], [0, 0, 1, 1], [], []>} : vector<16x16xf32>, vector<16x32xf32>, vector<16x32xf32> -> vector<16x32xf32>
    %441 = vector.extract_strided_slice %297 {offsets = [16, 96], sizes = [16, 32], strides = [1, 1]} : vector<32x384xf32> to vector<16x32xf32>
    %442 = vector.extract_strided_slice %297 {offsets = [16, 224], sizes = [16, 32], strides = [1, 1]} : vector<32x384xf32> to vector<16x32xf32>
    %443 = vector.extract_strided_slice %297 {offsets = [16, 352], sizes = [16, 32], strides = [1, 1]} : vector<32x384xf32> to vector<16x32xf32>
    %444 = tpu.transpose %442, [1, 0] : vector<16x32xf32> -> vector<32x16xf32>
    %cst_146 = arith.constant dense<0.000000e+00> : vector<16x16xf32>
    %445 = tpu.matmul %441, %444, %cst_146 {dimension_numbers = #tpu.dot_dimension_numbers<[1], [0], [0], [1], [0, 0, 1, 1], [], []>} : vector<16x32xf32>, vector<32x16xf32>, vector<16x16xf32> -> vector<16x16xf32>
    %cst_147 = arith.constant 0.176776692 : f32
    %446 = vector.broadcast %cst_147 : f32 to vector<16x16xf32>
    %447 = arith.mulf %445, %446 : vector<16x16xf32>
    %448 = vector.broadcast %380 : vector<1x16xf32> to vector<16x16xf32>
    %449 = arith.addf %447, %448 : vector<16x16xf32>
    %cst_148 = arith.constant dense<0xFF800000> : vector<16xf32>
    %450 = vector.multi_reduction <maximumf>, %449, %cst_148 [1] : vector<16x16xf32> to vector<16xf32>
    %451 = vector.shape_cast %450 : vector<16xf32> to vector<16x1xf32>
    %452 = vector.broadcast %451 : vector<16x1xf32> to vector<16x16xf32>
    %453 = arith.subf %449, %452 : vector<16x16xf32>
    %454 = math.exp %453 : vector<16x16xf32>
    %cst_149 = arith.constant dense<0.000000e+00> : vector<16xf32>
    %455 = vector.multi_reduction <add>, %454, %cst_149 [1] : vector<16x16xf32> to vector<16xf32>
    %456 = vector.shape_cast %455 : vector<16xf32> to vector<16x1xf32>
    %457 = tpu.reciprocal %456 {approx = true} : vector<16x1xf32> -> vector<16x1xf32>
    %458 = vector.broadcast %457 : vector<16x1xf32> to vector<16x16xf32>
    %459 = arith.mulf %454, %458 : vector<16x16xf32>
    %cst_150 = arith.constant dense<0.000000e+00> : vector<16x32xf32>
    %460 = tpu.matmul %459, %443, %cst_150 {dimension_numbers = #tpu.dot_dimension_numbers<[1], [0], [0], [1], [0, 0, 1, 1], [], []>} : vector<16x16xf32>, vector<16x32xf32>, vector<16x32xf32> -> vector<16x32xf32>
    %461 = tpu.concatenate %400, %420, %440, %460 in 1 : vector<16x32xf32>, vector<16x32xf32>, vector<16x32xf32>, vector<16x32xf32> -> vector<16x128xf32>
    %462 = tpu.concatenate %379, %461 in 0 : vector<16x128xf32>, vector<16x128xf32> -> vector<32x128xf32>
    %c1_151 = arith.constant 1 : index
    %c0_152 = arith.constant 0 : index
    %c0_153 = arith.constant 0 : index
    %463 = vector.load %arg6[%c1_151, %c0_152, %c0_153] : memref<2x128x128xbf16, #tpu.memory_space<vmem>>, vector<1x128x128xbf16>
    %464 = vector.shape_cast %463 : vector<1x128x128xbf16> to vector<128x128xbf16>
    %465 = arith.truncf %462 : vector<32x128xf32> to vector<32x128xbf16>
    %cst_154 = arith.constant dense<0.000000e+00> : vector<32x128xf32>
    %466 = tpu.matmul %465, %464, %cst_154 {dimension_numbers = #tpu.dot_dimension_numbers<[1], [0], [0], [1], [0, 0, 1, 1], [], []>} : vector<32x128xbf16>, vector<128x128xbf16>, vector<32x128xf32> -> vector<32x128xf32>
    %c1_155 = arith.constant 1 : index
    %c0_156 = arith.constant 0 : index
    %c0_157 = arith.constant 0 : index
    %467 = vector.load %arg7[%c1_155, %c0_156, %c0_157] : memref<2x1x128xf32, #tpu.memory_space<vmem>>, vector<1x1x128xf32>
    %468 = vector.shape_cast %467 : vector<1x1x128xf32> to vector<1x128xf32>
    %469 = vector.broadcast %468 : vector<1x128xf32> to vector<32x128xf32>
    %470 = arith.addf %466, %469 : vector<32x128xf32>
    %471 = arith.addf %470, %289 : vector<32x128xf32>
    %c1_158 = arith.constant 1 : index
    %c0_159 = arith.constant 0 : index
    %c0_160 = arith.constant 0 : index
    %472 = vector.load %arg8[%c1_158, %c0_159, %c0_160] : memref<2x1x128xf32, #tpu.memory_space<vmem>>, vector<1x1x128xf32>
    %473 = vector.shape_cast %472 : vector<1x1x128xf32> to vector<1x128xf32>
    %c1_161 = arith.constant 1 : index
    %c0_162 = arith.constant 0 : index
    %c0_163 = arith.constant 0 : index
    %474 = vector.load %arg9[%c1_161, %c0_162, %c0_163] : memref<2x1x128xf32, #tpu.memory_space<vmem>>, vector<1x1x128xf32>
    %475 = vector.shape_cast %474 : vector<1x1x128xf32> to vector<1x128xf32>
    %cst_164 = arith.constant dense<0.000000e+00> : vector<32xf32>
    %476 = vector.multi_reduction <add>, %471, %cst_164 [1] : vector<32x128xf32> to vector<32xf32>
    %477 = vector.shape_cast %476 : vector<32xf32> to vector<32x1xf32>
    %cst_165 = arith.constant 1.280000e+02 : f32
    %478 = vector.broadcast %cst_165 : f32 to vector<32x1xf32>
    %479 = arith.divf %477, %478 : vector<32x1xf32>
    %480 = vector.broadcast %479 : vector<32x1xf32> to vector<32x128xf32>
    %481 = arith.subf %471, %480 : vector<32x128xf32>
    %482 = arith.mulf %481, %481 : vector<32x128xf32>
    %cst_166 = arith.constant dense<0.000000e+00> : vector<32xf32>
    %483 = vector.multi_reduction <add>, %482, %cst_166 [1] : vector<32x128xf32> to vector<32xf32>
    %484 = vector.shape_cast %483 : vector<32xf32> to vector<32x1xf32>
    %cst_167 = arith.constant 1.280000e+02 : f32
    %485 = vector.broadcast %cst_167 : f32 to vector<32x1xf32>
    %486 = arith.divf %484, %485 : vector<32x1xf32>
    %487 = vector.broadcast %479 : vector<32x1xf32> to vector<32x128xf32>
    %488 = arith.subf %471, %487 : vector<32x128xf32>
    %cst_168 = arith.constant 1.000000e-07 : f32
    %489 = vector.broadcast %cst_168 : f32 to vector<32x1xf32>
    %490 = arith.addf %486, %489 : vector<32x1xf32>
    %491 = math.rsqrt %490 : vector<32x1xf32>
    %492 = vector.broadcast %491 : vector<32x1xf32> to vector<32x128xf32>
    %493 = arith.mulf %488, %492 : vector<32x128xf32>
    %494 = vector.broadcast %473 : vector<1x128xf32> to vector<32x128xf32>
    %495 = arith.mulf %493, %494 : vector<32x128xf32>
    %496 = vector.broadcast %475 : vector<1x128xf32> to vector<32x128xf32>
    %497 = arith.addf %495, %496 : vector<32x128xf32>
    %c1_169 = arith.constant 1 : index
    %c0_170 = arith.constant 0 : index
    %c0_171 = arith.constant 0 : index
    %498 = vector.load %arg10[%c1_169, %c0_170, %c0_171] : memref<2x128x256xbf16, #tpu.memory_space<vmem>>, vector<1x128x256xbf16>
    %499 = vector.shape_cast %498 : vector<1x128x256xbf16> to vector<128x256xbf16>
    %500 = arith.truncf %497 : vector<32x128xf32> to vector<32x128xbf16>
    %cst_172 = arith.constant dense<0.000000e+00> : vector<32x256xf32>
    %501 = tpu.matmul %500, %499, %cst_172 {dimension_numbers = #tpu.dot_dimension_numbers<[1], [0], [0], [1], [0, 0, 1, 1], [], []>} : vector<32x128xbf16>, vector<128x256xbf16>, vector<32x256xf32> -> vector<32x256xf32>
    %c1_173 = arith.constant 1 : index
    %c0_174 = arith.constant 0 : index
    %c0_175 = arith.constant 0 : index
    %502 = vector.load %arg11[%c1_173, %c0_174, %c0_175] : memref<2x1x256xf32, #tpu.memory_space<vmem>>, vector<1x1x256xf32>
    %503 = vector.shape_cast %502 : vector<1x1x256xf32> to vector<1x256xf32>
    %504 = vector.broadcast %503 : vector<1x256xf32> to vector<32x256xf32>
    %505 = arith.addf %501, %504 : vector<32x256xf32>
    %506 = arith.mulf %505, %505 : vector<32x256xf32>
    %507 = arith.mulf %505, %506 : vector<32x256xf32>
    %cst_176 = arith.constant 4.471500e-02 : f32
    %508 = vector.broadcast %cst_176 : f32 to vector<32x256xf32>
    %509 = arith.mulf %508, %507 : vector<32x256xf32>
    %510 = arith.addf %505, %509 : vector<32x256xf32>
    %cst_177 = arith.constant 0.797884583 : f32
    %511 = vector.broadcast %cst_177 : f32 to vector<32x256xf32>
    %512 = arith.mulf %511, %510 : vector<32x256xf32>
    %513 = math.tanh %512 : vector<32x256xf32>
    %cst_178 = arith.constant 1.000000e+00 : f32
    %514 = vector.broadcast %cst_178 : f32 to vector<32x256xf32>
    %515 = arith.addf %514, %513 : vector<32x256xf32>
    %cst_179 = arith.constant 5.000000e-01 : f32
    %516 = vector.broadcast %cst_179 : f32 to vector<32x256xf32>
    %517 = arith.mulf %516, %515 : vector<32x256xf32>
    %518 = arith.mulf %505, %517 : vector<32x256xf32>
    %c1_180 = arith.constant 1 : index
    %c0_181 = arith.constant 0 : index
    %c0_182 = arith.constant 0 : index
    %519 = vector.load %arg12[%c1_180, %c0_181, %c0_182] : memref<2x256x128xbf16, #tpu.memory_space<vmem>>, vector<1x256x128xbf16>
    %520 = vector.shape_cast %519 : vector<1x256x128xbf16> to vector<256x128xbf16>
    %521 = arith.truncf %518 : vector<32x256xf32> to vector<32x256xbf16>
    %cst_183 = arith.constant dense<0.000000e+00> : vector<32x128xf32>
    %522 = tpu.matmul %521, %520, %cst_183 {dimension_numbers = #tpu.dot_dimension_numbers<[1], [0], [0], [1], [0, 0, 1, 1], [], []>} : vector<32x256xbf16>, vector<256x128xbf16>, vector<32x128xf32> -> vector<32x128xf32>
    %c1_184 = arith.constant 1 : index
    %c0_185 = arith.constant 0 : index
    %c0_186 = arith.constant 0 : index
    %523 = vector.load %arg13[%c1_184, %c0_185, %c0_186] : memref<2x1x128xf32, #tpu.memory_space<vmem>>, vector<1x1x128xf32>
    %524 = vector.shape_cast %523 : vector<1x1x128xf32> to vector<1x128xf32>
    %525 = vector.broadcast %524 : vector<1x128xf32> to vector<32x128xf32>
    %526 = arith.addf %522, %525 : vector<32x128xf32>
    %527 = arith.addf %526, %497 : vector<32x128xf32>
    %c1_187 = arith.constant 1 : index
    %c0_188 = arith.constant 0 : index
    %c0_189 = arith.constant 0 : index
    %528 = vector.load %arg14[%c1_187, %c0_188, %c0_189] : memref<2x1x128xf32, #tpu.memory_space<vmem>>, vector<1x1x128xf32>
    %529 = vector.shape_cast %528 : vector<1x1x128xf32> to vector<1x128xf32>
    %c1_190 = arith.constant 1 : index
    %c0_191 = arith.constant 0 : index
    %c0_192 = arith.constant 0 : index
    %530 = vector.load %arg15[%c1_190, %c0_191, %c0_192] : memref<2x1x128xf32, #tpu.memory_space<vmem>>, vector<1x1x128xf32>
    %531 = vector.shape_cast %530 : vector<1x1x128xf32> to vector<1x128xf32>
    %cst_193 = arith.constant dense<0.000000e+00> : vector<32xf32>
    %532 = vector.multi_reduction <add>, %527, %cst_193 [1] : vector<32x128xf32> to vector<32xf32>
    %533 = vector.shape_cast %532 : vector<32xf32> to vector<32x1xf32>
    %cst_194 = arith.constant 1.280000e+02 : f32
    %534 = vector.broadcast %cst_194 : f32 to vector<32x1xf32>
    %535 = arith.divf %533, %534 : vector<32x1xf32>
    %536 = vector.broadcast %535 : vector<32x1xf32> to vector<32x128xf32>
    %537 = arith.subf %527, %536 : vector<32x128xf32>
    %538 = arith.mulf %537, %537 : vector<32x128xf32>
    %cst_195 = arith.constant dense<0.000000e+00> : vector<32xf32>
    %539 = vector.multi_reduction <add>, %538, %cst_195 [1] : vector<32x128xf32> to vector<32xf32>
    %540 = vector.shape_cast %539 : vector<32xf32> to vector<32x1xf32>
    %cst_196 = arith.constant 1.280000e+02 : f32
    %541 = vector.broadcast %cst_196 : f32 to vector<32x1xf32>
    %542 = arith.divf %540, %541 : vector<32x1xf32>
    %543 = vector.broadcast %535 : vector<32x1xf32> to vector<32x128xf32>
    %544 = arith.subf %527, %543 : vector<32x128xf32>
    %cst_197 = arith.constant 1.000000e-07 : f32
    %545 = vector.broadcast %cst_197 : f32 to vector<32x1xf32>
    %546 = arith.addf %542, %545 : vector<32x1xf32>
    %547 = math.rsqrt %546 : vector<32x1xf32>
    %548 = vector.broadcast %547 : vector<32x1xf32> to vector<32x128xf32>
    %549 = arith.mulf %544, %548 : vector<32x128xf32>
    %550 = vector.broadcast %529 : vector<1x128xf32> to vector<32x128xf32>
    %551 = arith.mulf %549, %550 : vector<32x128xf32>
    %552 = vector.broadcast %531 : vector<1x128xf32> to vector<32x128xf32>
    %553 = arith.addf %551, %552 : vector<32x128xf32>
    %554 = vector.extract_strided_slice %553 {offsets = [0, 0], sizes = [1, 128], strides = [1, 1]} : vector<32x128xf32> to vector<1x128xf32>
    %555 = vector.extract_strided_slice %553 {offsets = [16, 0], sizes = [1, 128], strides = [1, 1]} : vector<32x128xf32> to vector<1x128xf32>
    %556 = tpu.concatenate %554, %555 in 0 : vector<1x128xf32>, vector<1x128xf32> -> vector<2x128xf32>
    %c0_198 = arith.constant 0 : index
    %c0_199 = arith.constant 0 : index
    %557 = vector.load %arg16[%c0_198, %c0_199] : memref<128x512xbf16, #tpu.memory_space<vmem>>, vector<128x512xbf16>
    %558 = arith.truncf %556 : vector<2x128xf32> to vector<2x128xbf16>
    %cst_200 = arith.constant dense<0.000000e+00> : vector<2x512xf32>
    %559 = tpu.matmul %558, %557, %cst_200 {dimension_numbers = #tpu.dot_dimension_numbers<[1], [0], [0], [1], [0, 0, 1, 1], [], []>} : vector<2x128xbf16>, vector<128x512xbf16>, vector<2x512xf32> -> vector<2x512xf32>
    %c0_201 = arith.constant 0 : index
    %c0_202 = arith.constant 0 : index
    %560 = vector.load %arg17[%c0_201, %c0_202] : memref<1x512xf32, #tpu.memory_space<vmem>>, vector<1x512xf32>
    %561 = vector.broadcast %560 : vector<1x512xf32> to vector<2x512xf32>
    %562 = arith.addf %559, %561 : vector<2x512xf32>
    %cst_203 = arith.constant 0.000000e+00 : f32
    %563 = vector.broadcast %cst_203 : f32 to vector<2x512xf32>
    %564 = arith.maximumf %562, %563 : vector<2x512xf32>
    %c0_204 = arith.constant 0 : index
    %c0_205 = arith.constant 0 : index
    %565 = vector.load %arg18[%c0_204, %c0_205] : memref<512x256xbf16, #tpu.memory_space<vmem>>, vector<512x256xbf16>
    %566 = arith.truncf %564 : vector<2x512xf32> to vector<2x512xbf16>
    %cst_206 = arith.constant dense<0.000000e+00> : vector<2x256xf32>
    %567 = tpu.matmul %566, %565, %cst_206 {dimension_numbers = #tpu.dot_dimension_numbers<[1], [0], [0], [1], [0, 0, 1, 1], [], []>} : vector<2x512xbf16>, vector<512x256xbf16>, vector<2x256xf32> -> vector<2x256xf32>
    %c0_207 = arith.constant 0 : index
    %c0_208 = arith.constant 0 : index
    %568 = vector.load %arg19[%c0_207, %c0_208] : memref<1x256xf32, #tpu.memory_space<vmem>>, vector<1x256xf32>
    %569 = vector.broadcast %568 : vector<1x256xf32> to vector<2x256xf32>
    %570 = arith.addf %567, %569 : vector<2x256xf32>
    %c0_209 = arith.constant 0 : index
    %c0_210 = arith.constant 0 : index
    %571 = vector.load %arg20[%c0_209, %c0_210] : memref<2x256xf32, #tpu.memory_space<vmem>>, vector<2x256xf32>
    tpu.vector_store %arg20[%c0_209, %c0_210], %570 {strides = array<i32>} : memref<2x256xf32, #tpu.memory_space<vmem>>, vector<2x256xf32>,
    return
  }
}

</mosaic_0001>

<llo_original>
// kernel: tpu_custom_call.1
$region0: #{tpu_custom_call.1}
  #allocation0 [shape = 'u32[]', space=smem, size = 0x4, offset = 0x4, fixed_abs, tag = 'smem constant byte address 0x4 - core index']
  #allocation1 [shape = 'u32[144,128]{1,0:T(1,128)}', space=vmem, size = 0x12000, scoped, tag = 'internal scratch']
  %s0 = inlined_call_operand.hbm [shape: f32[32,128], index: 0, kind: input, shape index: {}]
  %s1 = inlined_call_operand.hbm [shape: f32[2,16], index: 1, kind: input, shape index: {}]
  %s2 = inlined_call_operand.hbm [shape: f32[1,128], index: 2, kind: input, shape index: {}]
  %s3 = inlined_call_operand.hbm [shape: f32[1,128], index: 3, kind: input, shape index: {}]
  %s4 = inlined_call_operand.hbm [shape: bf16[2,128,384], index: 4, kind: input, shape index: {}]
  %s5 = inlined_call_operand.vmem [shape: f32[2,1,384], index: 5, kind: input, shape index: {}]
  %s6 = inlined_call_operand.hbm [shape: bf16[2,128,128], index: 6, kind: input, shape index: {}]
  %s7 = inlined_call_operand.vmem [shape: f32[2,1,128], index: 7, kind: input, shape index: {}]
  %s8 = inlined_call_operand.vmem [shape: f32[2,1,128], index: 8, kind: input, shape index: {}]
  %s9 = inlined_call_operand.vmem [shape: f32[2,1,128], index: 9, kind: input, shape index: {}]
  %s10 = inlined_call_operand.hbm [shape: bf16[2,128,256], index: 10, kind: input, shape index: {}]
  %s11 = inlined_call_operand.vmem [shape: f32[2,1,256], index: 11, kind: input, shape index: {}]
  %s12 = inlined_call_operand.hbm [shape: bf16[2,256,128], index: 12, kind: input, shape index: {}]
  %s13 = inlined_call_operand.vmem [shape: f32[2,1,128], index: 13, kind: input, shape index: {}]
  %s14 = inlined_call_operand.vmem [shape: f32[2,1,128], index: 14, kind: input, shape index: {}]
  %s15 = inlined_call_operand.vmem [shape: f32[2,1,128], index: 15, kind: input, shape index: {}]
  %s16 = inlined_call_operand.hbm [shape: bf16[128,512], index: 16, kind: input, shape index: {}]
  %s17 = inlined_call_operand.vmem [shape: f32[1,512], index: 17, kind: input, shape index: {}]
  %s18 = inlined_call_operand.hbm [shape: bf16[512,256], index: 18, kind: input, shape index: {}]
  %s19 = inlined_call_operand.vmem [shape: f32[1,256], index: 19, kind: input, shape index: {}]
  %s20 = inlined_call_operand.hbm [shape: f32[2,256], index: 20, kind: output, shape index: {}]
  %s21 = sld [smem:[#allocation0]]
  $region130: #{tpu_custom_call.1} parent=0
    _
  %s23 = ssub.s32 1, %s21
  %s24 = scalar_select 0, %s23, %s21
  $region1: #{tpu_custom_call.1} parent=0
    #allocation2 [shape = 'u8[16384]{0}', space=vmem, size = 0x4000, scoped, tag = 'input window, operand 0, single buffered']
    #allocation3 [shape = 's32[1]{0}', space=sflag, size = 0x4, scoped, tag = 'scoped memory for tpu_custom_call.1']
    #allocation4 [shape = 's32[1]{0}', space=sflag, size = 0x4, scoped, tag = 'scoped memory for tpu_custom_call.1']
    #allocation5 [shape = 'u8[1024]{0}', space=vmem, size = 0x400, scoped, tag = 'input window, operand 1, single buffered']
    #allocation6 [shape = 's32[1]{0}', space=sflag, size = 0x4, scoped, tag = 'scoped memory for tpu_custom_call.1']
    #allocation7 [shape = 'u8[512]{0}', space=vmem, size = 0x400, scoped, tag = 'input window, operand 2, single buffered']
    #allocation8 [shape = 'u8[512]{0}', space=vmem, size = 0x400, scoped, tag = 'input window, operand 3, single buffered']
    #allocation9 [shape = 's32[1]{0}', space=sflag, size = 0x4, scoped, tag = 'scoped memory for tpu_custom_call.1']
    #allocation10 [shape = 'u8[196608]{0}', space=vmem, size = 0x30000, scoped, tag = 'input window, operand 4, single buffered']
    #allocation11 [shape = 'u8[65536]{0}', space=vmem, size = 0x10000, scoped, tag = 'input window, operand 6, single buffered']
    #allocation12 [shape = 's32[1]{0}', space=sflag, size = 0x4, scoped, tag = 'scoped memory for tpu_custom_call.1']
    #allocation13 [shape = 'u8[131072]{0}', space=vmem, size = 0x20000, scoped, tag = 'input window, operand 10, single buffered']
    #allocation14 [shape = 'u8[131072]{0}', space=vmem, size = 0x20000, scoped, tag = 'input window, operand 12, single buffered']
    #allocation15 [shape = 's32[1]{0}', space=sflag, size = 0x4, scoped, tag = 'scoped memory for tpu_custom_call.1']
    #allocation16 [shape = 'u8[131072]{0}', space=vmem, size = 0x20000, scoped, tag = 'input window, operand 16, single buffered']
    #allocation17 [shape = 'u8[262144]{0}', space=vmem, size = 0x40000, scoped, tag = 'input window, operand 18, single buffered']
    #allocation18 [shape = 's32[1]{0}', space=sflag, size = 0x4, scoped, tag = 'scoped memory for tpu_custom_call.1']
    #allocation19 [shape = 'u8[2048]{0}', space=vmem, size = 0x800, scoped, tag = 'output window, operand 0, single buffered']
    %25 = vsyncpa [#allocation3], 0
    %26 = vsyncpa [#allocation6], 0
    %27 = vsyncpa [#allocation9], 0
    %28 = vsyncpa [#allocation12], 0
    %29 = vsyncpa [#allocation15], 0
    %30 = vsyncpa [#allocation18], 0
    %31 = vsyncpa [#allocation4], 0
    // Predicated region
    $region2: #{tpu_custom_call.1} parent=1 // pred_check
      _
    $region3: #{tpu_custom_call.1} parent=1 // pred_check_branch
      %33 = sbr.rel (0) target = $region5
    $region4: #{tpu_custom_call.1} parent=1 // pred_region
      %s35 = ssub.s32 512, 512
      %36 = vsyncadd [#allocation3], %s35
      %s37 = sshll.u32 [#allocation2], 4
      %s38 = int_to_ptr.vmem [resolvable:$true] %s37
      %43 = dma.hbm_to_vmem [thread:$0]  %s0, 512, %s38, [#allocation3], 128, 128, 8
    $region5: #{tpu_custom_call.1} parent=1 // pred_fallthru
      _
    // Predicated region
    $region6: #{tpu_custom_call.1} parent=1 // pred_check
      _
    $region7: #{tpu_custom_call.1} parent=1 // pred_check_branch
      %45 = sbr.rel (0) target = $region9
    $region8: #{tpu_custom_call.1} parent=1 // pred_region
      %s47 = ssub.s32 32, 32
      %48 = vsyncadd [#allocation6], %s47
      %s50 = sshll.u32 [#allocation5], 4
      %s51 = int_to_ptr.vmem [resolvable:$true] %s50
      %53 = dma.hbm_to_vmem [thread:$0]  %s1, 32, %s51, [#allocation6]
    $region9: #{tpu_custom_call.1} parent=1 // pred_fallthru
      _
    // Predicated region
    $region10: #{tpu_custom_call.1} parent=1 // pred_check
      _
    $region11: #{tpu_custom_call.1} parent=1 // pred_check_branch
      %55 = sbr.rel (0) target = $region13
    $region12: #{tpu_custom_call.1} parent=1 // pred_region
      %s57 = ssub.s32 16, 16
      %58 = vsyncadd [#allocation6], %s57
      %s60 = sshll.u32 [#allocation7], 4
      %s61 = int_to_ptr.vmem [resolvable:$true] %s60
      %63 = dma.hbm_to_vmem [thread:$0]  %s2, 16, %s61, [#allocation6]
    $region13: #{tpu_custom_call.1} parent=1 // pred_fallthru
      _
    // Predicated region
    $region14: #{tpu_custom_call.1} parent=1 // pred_check
      _
    $region15: #{tpu_custom_call.1} parent=1 // pred_check_branch
      %65 = sbr.rel (0) target = $region17
    $region16: #{tpu_custom_call.1} parent=1 // pred_region
      %s67 = ssub.s32 16, 16
      %68 = vsyncadd [#allocation9], %s67
      %s70 = sshll.u32 [#allocation8], 4
      %s71 = int_to_ptr.vmem [resolvable:$true] %s70
      %73 = dma.hbm_to_vmem [thread:$0]  %s3, 16, %s71, [#allocation9]
    $region17: #{tpu_custom_call.1} parent=1 // pred_fallthru
      _
    // Predicated region
    $region18: #{tpu_custom_call.1} parent=1 // pred_check
      _
    $region19: #{tpu_custom_call.1} parent=1 // pred_check_branch
      %75 = sbr.rel (0) target = $region21
    $region20: #{tpu_custom_call.1} parent=1 // pred_region
      %s77 = ssub.s32 6144, 6144
      %78 = vsyncadd [#allocation9], %s77
      %s79 = sshll.u32 [#allocation10], 4
      %s80 = int_to_ptr.vmem [resolvable:$true] %s79
      %85 = dma.hbm_to_vmem [thread:$0]  %s4, 6144, %s80, [#allocation9], 192, 192, 12
    $region21: #{tpu_custom_call.1} parent=1 // pred_fallthru
      _
    // Predicated region
    $region22: #{tpu_custom_call.1} parent=1 // pred_check
      _
    $region23: #{tpu_custom_call.1} parent=1 // pred_check_branch
      %87 = sbr.rel (0) target = $region25
    $region24: #{tpu_custom_call.1} parent=1 // pred_region
      _
    $region25: #{tpu_custom_call.1} parent=1 // pred_fallthru
      _
    // Predicated region
    $region26: #{tpu_custom_call.1} parent=1 // pred_check
      _
    $region27: #{tpu_custom_call.1} parent=1 // pred_check_branch
      %89 = sbr.rel (0) target = $region29
    $region28: #{tpu_custom_call.1} parent=1 // pred_region
      %s91 = ssub.s32 2048, 2048
      %92 = vsyncadd [#allocation12], %s91
      %s93 = sshll.u32 [#allocation11], 4
      %s94 = int_to_ptr.vmem [resolvable:$true] %s93
      %99 = dma.hbm_to_vmem [thread:$0]  %s6, 2048, %s94, [#allocation12], 64, 64, 4
    $region29: #{tpu_custom_call.1} parent=1 // pred_fallthru
      _
    // Predicated region
    $region30: #{tpu_custom_call.1} parent=1 // pred_check
      _
    $region31: #{tpu_custom_call.1} parent=1 // pred_check_branch
      %101 = sbr.rel (0) target = $region33
    $region32: #{tpu_custom_call.1} parent=1 // pred_region
      _
    $region33: #{tpu_custom_call.1} parent=1 // pred_fallthru
      _
    // Predicated region
    $region34: #{tpu_custom_call.1} parent=1 // pred_check
      _
    $region35: #{tpu_custom_call.1} parent=1 // pred_check_branch
      %103 = sbr.rel (0) target = $region37
    $region36: #{tpu_custom_call.1} parent=1 // pred_region
      _
    $region37: #{tpu_custom_call.1} parent=1 // pred_fallthru
      _
    // Predicated region
    $region38: #{tpu_custom_call.1} parent=1 // pred_check
      _
    $region39: #{tpu_custom_call.1} parent=1 // pred_check_branch
      %105 = sbr.rel (0) target = $region41
    $region40: #{tpu_custom_call.1} parent=1 // pred_region
      _
    $region41: #{tpu_custom_call.1} parent=1 // pred_fallthru
      _
    // Predicated region
    $region42: #{tpu_custom_call.1} parent=1 // pred_check
      _
    $region43: #{tpu_custom_call.1} parent=1 // pred_check_branch
      %107 = sbr.rel (0) target = $region45
    $region44: #{tpu_custom_call.1} parent=1 // pred_region
      %s109 = ssub.s32 4096, 4096
      %110 = vsyncadd [#allocation12], %s109
      %s111 = sshll.u32 [#allocation13], 4
      %s112 = int_to_ptr.vmem [resolvable:$true] %s111
      %117 = dma.hbm_to_vmem [thread:$0]  %s10, 4096, %s112, [#allocation12], 128, 128, 8
    $region45: #{tpu_custom_call.1} parent=1 // pred_fallthru
      _
    // Predicated region
    $region46: #{tpu_custom_call.1} parent=1 // pred_check
      _
    $region47: #{tpu_custom_call.1} parent=1 // pred_check_branch
      %119 = sbr.rel (0) target = $region49
    $region48: #{tpu_custom_call.1} parent=1 // pred_region
      _
    $region49: #{tpu_custom_call.1} parent=1 // pred_fallthru
      _
    // Predicated region
    $region50: #{tpu_custom_call.1} parent=1 // pred_check
      _
    $region51: #{tpu_custom_call.1} parent=1 // pred_check_branch
      %121 = sbr.rel (0) target = $region53
    $region52: #{tpu_custom_call.1} parent=1 // pred_region
      %s123 = ssub.s32 4096, 4096
      %124 = vsyncadd [#allocation15], %s123
      %s125 = sshll.u32 [#allocation14], 4
      %s126 = int_to_ptr.vmem [resolvable:$true] %s125
      %131 = dma.hbm_to_vmem [thread:$0]  %s12, 4096, %s126, [#allocation15], 64, 64, 4
    $region53: #{tpu_custom_call.1} parent=1 // pred_fallthru
      _
    // Predicated region
    $region54: #{tpu_custom_call.1} parent=1 // pred_check
      _
    $region55: #{tpu_custom_call.1} parent=1 // pred_check_branch
      %133 = sbr.rel (0) target = $region57
    $region56: #{tpu_custom_call.1} parent=1 // pred_region
      _
    $region57: #{tpu_custom_call.1} parent=1 // pred_fallthru
      _
    // Predicated region
    $region58: #{tpu_custom_call.1} parent=1 // pred_check
      _
    $region59: #{tpu_custom_call.1} parent=1 // pred_check_branch
      %135 = sbr.rel (0) target = $region61
    $region60: #{tpu_custom_call.1} parent=1 // pred_region
      _
    $region61: #{tpu_custom_call.1} parent=1 // pred_fallthru
      _
    // Predicated region
    $region62: #{tpu_custom_call.1} parent=1 // pred_check
      _
    $region63: #{tpu_custom_call.1} parent=1 // pred_check_branch
      %137 = sbr.rel (0) target = $region65
    $region64: #{tpu_custom_call.1} parent=1 // pred_region
      _
    $region65: #{tpu_custom_call.1} parent=1 // pred_fallthru
      _
    // Predicated region
    $region66: #{tpu_custom_call.1} parent=1 // pred_check
      _
    $region67: #{tpu_custom_call.1} parent=1 // pred_check_branch
      %139 = sbr.rel (0) target = $region69
    $region68: #{tpu_custom_call.1} parent=1 // pred_region
      %s141 = ssub.s32 4096, 4096
      %142 = vsyncadd [#allocation15], %s141
      %s143 = sshll.u32 [#allocation16], 4
      %s144 = int_to_ptr.vmem [resolvable:$true] %s143
      %149 = dma.hbm_to_vmem [thread:$0]  %s16, 4096, %s144, [#allocation15], 256, 256, 16
    $region69: #{tpu_custom_call.1} parent=1 // pred_fallthru
      _
    // Predicated region
    $region70: #{tpu_custom_call.1} parent=1 // pred_check
      _
    $region71: #{tpu_custom_call.1} parent=1 // pred_check_branch
      %151 = sbr.rel (0) target = $region73
    $region72: #{tpu_custom_call.1} parent=1 // pred_region
      _
    $region73: #{tpu_custom_call.1} parent=1 // pred_fallthru
      _
    // Predicated region
    $region74: #{tpu_custom_call.1} parent=1 // pred_check
      _
    $region75: #{tpu_custom_call.1} parent=1 // pred_check_branch
      %153 = sbr.rel (0) target = $region77
    $region76: #{tpu_custom_call.1} parent=1 // pred_region
      %s155 = ssub.s32 8192, 8192
      %156 = vsyncadd [#allocation18], %s155
      %s157 = sshll.u32 [#allocation17], 4
      %s158 = int_to_ptr.vmem [resolvable:$true] %s157
      %163 = dma.hbm_to_vmem [thread:$0]  %s18, 8192, %s158, [#allocation18], 128, 128, 8
    $region77: #{tpu_custom_call.1} parent=1 // pred_fallthru
      _
    // Predicated region
    $region78: #{tpu_custom_call.1} parent=1 // pred_check
      _
    $region79: #{tpu_custom_call.1} parent=1 // pred_check_branch
      %165 = sbr.rel (0) target = $region81
    $region80: #{tpu_custom_call.1} parent=1 // pred_region
      _
    $region81: #{tpu_custom_call.1} parent=1 // pred_fallthru
      _
    // Predicated region
    $region82: #{tpu_custom_call.1} parent=1 // pred_check
      _
    $region83: #{tpu_custom_call.1} parent=1 // pred_check_branch
      %167 = sbr.rel (0) target = $region85
    $region84: #{tpu_custom_call.1} parent=1 // pred_region
      %168 = dma.done [#allocation3], 512
    $region85: #{tpu_custom_call.1} parent=1 // pred_fallthru
      _
    // Predicated region
    $region86: #{tpu_custom_call.1} parent=1 // pred_check
      _
    $region87: #{tpu_custom_call.1} parent=1 // pred_check_branch
      %170 = sbr.rel (0) target = $region89
    $region88: #{tpu_custom_call.1} parent=1 // pred_region
      %171 = dma.done [#allocation6], 32
    $region89: #{tpu_custom_call.1} parent=1 // pred_fallthru
      _
    // Predicated region
    $region90: #{tpu_custom_call.1} parent=1 // pred_check
      _
    $region91: #{tpu_custom_call.1} parent=1 // pred_check_branch
      %173 = sbr.rel (0) target = $region93
    $region92: #{tpu_custom_call.1} parent=1 // pred_region
      %174 = dma.done [#allocation6], 16
    $region93: #{tpu_custom_call.1} parent=1 // pred_fallthru
      _
    // Predicated region
    $region94: #{tpu_custom_call.1} parent=1 // pred_check
      _
    $region95: #{tpu_custom_call.1} parent=1 // pred_check_branch
      %176 = sbr.rel (0) target = $region97
    $region96: #{tpu_custom_call.1} parent=1 // pred_region
      %177 = dma.done [#allocation9], 16
    $region97: #{tpu_custom_call.1} parent=1 // pred_fallthru
      _
    // Predicated region
    $region98: #{tpu_custom_call.1} parent=1 // pred_check
      _
    $region99: #{tpu_custom_call.1} parent=1 // pred_check_branch
      %179 = sbr.rel (0) target = $region101
    $region100: #{tpu_custom_call.1} parent=1 // pred_region
      %180 = dma.done [#allocation9], 6144
    $region101: #{tpu_custom_call.1} parent=1 // pred_fallthru
      _
    // Predicated region
    $region102: #{tpu_custom_call.1} parent=1 // pred_check
      _
    $region103: #{tpu_custom_call.1} parent=1 // pred_check_branch
      %182 = sbr.rel (0) target = $region105
    $region104: #{tpu_custom_call.1} parent=1 // pred_region
      %183 = dma.done [#allocation12], 2048
    $region105: #{tpu_custom_call.1} parent=1 // pred_fallthru
      _
    // Predicated region
    $region106: #{tpu_custom_call.1} parent=1 // pred_check
      _
    $region107: #{tpu_custom_call.1} parent=1 // pred_check_branch
      %185 = sbr.rel (0) target = $region109
    $region108: #{tpu_custom_call.1} parent=1 // pred_region
      %186 = dma.done [#allocation12], 4096
    $region109: #{tpu_custom_call.1} parent=1 // pred_fallthru
      _
    // Predicated region
    $region110: #{tpu_custom_call.1} parent=1 // pred_check
      _
    $region111: #{tpu_custom_call.1} parent=1 // pred_check_branch
      %188 = sbr.rel (0) target = $region113
    $region112: #{tpu_custom_call.1} parent=1 // pred_region
      %189 = dma.done [#allocation15], 4096
    $region113: #{tpu_custom_call.1} parent=1 // pred_fallthru
      _
    // Predicated region
    $region114: #{tpu_custom_call.1} parent=1 // pred_check
      _
    $region115: #{tpu_custom_call.1} parent=1 // pred_check_branch
      %191 = sbr.rel (0) target = $region117
    $region116: #{tpu_custom_call.1} parent=1 // pred_region
      %192 = dma.done [#allocation15], 4096
    $region117: #{tpu_custom_call.1} parent=1 // pred_fallthru
      _
    // Predicated region
    $region118: #{tpu_custom_call.1} parent=1 // pred_check
      _
    $region119: #{tpu_custom_call.1} parent=1 // pred_check_branch
      %194 = sbr.rel (0) target = $region121
    $region120: #{tpu_custom_call.1} parent=1 // pred_region
      %195 = dma.done [#allocation18], 8192
    $region121: #{tpu_custom_call.1} parent=1 // pred_fallthru
      _
    %v197 = vld [vmem:[#allocation5] sm:$0x3]
    %v198 = vld [vmem:[#allocation2] sm:$0xff]
    %v199 = vld [vmem:[#allocation2 + $0x8] sm:$0xff]
    %v200 = vld [vmem:[#allocation2 + $0x10] sm:$0xff]
    %v201 = vld [vmem:[#allocation2 + $0x18] sm:$0xff]
    %v202 = vld [vmem:[#allocation7] sm:$0x1]
    %v203 = vld [vmem:[#allocation8] sm:$0x1]
    %204 = vadd.xlane.f32.xlu0 %v198
    %v205 = vpop.xlane.xlu0 %204
    %206 = vadd.xlane.f32.xlu0 %v199
    %v207 = vpop.xlane.xlu0 %206
    %208 = vadd.xlane.f32.xlu0 %v200
    %v209 = vpop.xlane.xlu0 %208
    %210 = vadd.xlane.f32.xlu0 %v201
    %v211 = vpop.xlane.xlu0 %210
    %v212 = vrcp.pop 128.0
    %v213 = vmul.f32 %v205, %v212
    %v214 = vmul.f32 %v207, %v212
    %v215 = vmul.f32 %v209, %v212
    %v216 = vmul.f32 %v211, %v212
    %v217 = vsub.f32 %v198, %v213
    %v218 = vsub.f32 %v199, %v214
    %v219 = vsub.f32 %v200, %v215
    %v220 = vsub.f32 %v201, %v216
    %v221 = vmul.f32 %v217, %v217
    %v222 = vmul.f32 %v218, %v218
    %v223 = vmul.f32 %v219, %v219
    %v224 = vmul.f32 %v220, %v220
    %225 = vadd.xlane.f32.xlu0 %v221
    %v226 = vpop.xlane.xlu0 %225
    %227 = vadd.xlane.f32.xlu0 %v222
    %v228 = vpop.xlane.xlu0 %227
    %229 = vadd.xlane.f32.xlu0 %v223
    %v230 = vpop.xlane.xlu0 %229
    %231 = vadd.xlane.f32.xlu0 %v224
    %v232 = vpop.xlane.xlu0 %231
    %v233 = vmul.f32 %v226, %v212
    %v234 = vmul.f32 %v228, %v212
    %v235 = vmul.f32 %v230, %v212
    %v236 = vmul.f32 %v232, %v212
    %v237 = vadd.f32 %v233, 1e-07
    %v238 = vadd.f32 %v234, 1e-07
    %v239 = vadd.f32 %v235, 1e-07
    %v240 = vadd.f32 %v236, 1e-07
    %v241 = vrsqrt.pop %v237
    %v242 = vrsqrt.pop %v238
    %v243 = vrsqrt.pop %v239
    %v244 = vrsqrt.pop %v240
    %v245 = vmul.f32 %v217, %v241
    %v246 = vmul.f32 %v218, %v242
    %v247 = vmul.f32 %v219, %v243
    %v248 = vmul.f32 %v220, %v244
    %v250 = vlaneseq
    %v251 = vshrl.u32 %v250, 7
    %v252 = vsub.s32 0, %v251
    %v253 = vrot.slane %v202, %v252
    %v255 = vmul.f32 %v245, %v253
    %v256 = vmul.f32 %v246, %v253
    %v257 = vmul.f32 %v247, %v253
    %v258 = vmul.f32 %v248, %v253
    %v260 = vlaneseq
    %v261 = vshrl.u32 %v260, 7
    %v262 = vsub.s32 0, %v261
    %v263 = vrot.slane %v203, %v262
    %v265 = vadd.f32 %v255, %v263
    %v266 = vadd.f32 %v256, %v263
    %v267 = vadd.f32 %v257, %v263
    %v268 = vadd.f32 %v258, %v263
    %v269 = vld [vmem:[#allocation10] sm:$0xff]
    %v270 = vld [vmem:[#allocation10 + $0x8] sm:$0xf]
    %v271 = vld [vmem:[#allocation10 + $0xc] sm:$0xff]
    %v272 = vld [vmem:[#allocation10 + $0x14] sm:$0xf]
    %v273 = vld [vmem:[#allocation10 + $0x18] sm:$0xff]
    %v274 = vld [vmem:[#allocation10 + $0x20] sm:$0xf]
    %v275 = vld [vmem:[#allocation10 + $0x24] sm:$0xff]
    %v276 = vld [vmem:[#allocation10 + $0x2c] sm:$0xf]
    %v277 = vld [vmem:[#allocation10 + $0x30] sm:$0xff]
    %v278 = vld [vmem:[#allocation10 + $0x38] sm:$0xf]
    %v279 = vld [vmem:[#allocation10 + $0x3c] sm:$0xff]
    %v280 = vld [vmem:[#allocation10 + $0x44] sm:$0xf]
    %v281 = vld [vmem:[#allocation10 + $0x48] sm:$0xff]
    %v282 = vld [vmem:[#allocation10 + $0x50] sm:$0xf]
    %v283 = vld [vmem:[#allocation10 + $0x54] sm:$0xff]
    %v284 = vld [vmem:[#allocation10 + $0x5c] sm:$0xf]
    %v285 = vld [vmem:[#allocation10 + $0x60] sm:$0xff]
    %v286 = vld [vmem:[#allocation10 + $0x68] sm:$0xf]
    %v287 = vld [vmem:[#allocation10 + $0x6c] sm:$0xff]
    %v288 = vld [vmem:[#allocation10 + $0x74] sm:$0xf]
    %v289 = vld [vmem:[#allocation10 + $0x78] sm:$0xff]
    %v290 = vld [vmem:[#allocation10 + $0x80] sm:$0xf]
    %v291 = vld [vmem:[#allocation10 + $0x84] sm:$0xff]
    %v292 = vld [vmem:[#allocation10 + $0x8c] sm:$0xf]
    %v293 = vld [vmem:[#allocation10 + $0x90] sm:$0xff]
    %v294 = vld [vmem:[#allocation10 + $0x98] sm:$0xf]
    %v295 = vld [vmem:[#allocation10 + $0x9c] sm:$0xff]
    %v296 = vld [vmem:[#allocation10 + $0xa4] sm:$0xf]
    %v297 = vld [vmem:[#allocation10 + $0xa8] sm:$0xff]
    %v298 = vld [vmem:[#allocation10 + $0xb0] sm:$0xf]
    %v299 = vld [vmem:[#allocation10 + $0xb4] sm:$0xff]
    %v300 = vld [vmem:[#allocation10 + $0xbc] sm:$0xf]
    %v301 = vpack.c.bf16 %v266, %v265
    %v302 = vpack.c.bf16 %v268, %v267
    %v303 = vld [vmem:[%s5] sm:$0x7]
    %v305 = vlaneseq
    %v306 = vshrl.u32 %v305, 7
    %v307 = vsub.s32 0, %v306
    %v308 = vrot.slane %v303, %v307
    %v309 = vlaneseq
    %v310 = vshrl.u32 %v309, 7
    %v311 = vsub.s32 1, %v310
    %v312 = vrot.slane %v303, %v311
    %v313 = vlaneseq
    %v314 = vshrl.u32 %v313, 7
    %v315 = vsub.s32 2, %v314
    %v316 = vrot.slane %v303, %v315
    %v352 = vunpack.c.l.b16 %v269
    %v353 = vunpack.c.h.b16 %v269
    %v354 = vunpack.c.l.b16 %v270
    %v355 = vunpack.c.l.b16 %v271
    %v356 = vunpack.c.h.b16 %v271
    %v357 = vunpack.c.l.b16 %v272
    %v358 = vunpack.c.l.b16 %v273
    %v359 = vunpack.c.h.b16 %v273
    %v360 = vunpack.c.l.b16 %v274
    %v361 = vunpack.c.l.b16 %v275
    %v362 = vunpack.c.h.b16 %v275
    %v363 = vunpack.c.l.b16 %v276
    %v364 = vunpack.c.l.b16 %v277
    %v365 = vunpack.c.h.b16 %v277
    %v366 = vunpack.c.l.b16 %v278
    %v367 = vunpack.c.l.b16 %v279
    %v368 = vunpack.c.h.b16 %v279
    %v369 = vunpack.c.l.b16 %v280
    %v370 = vunpack.c.l.b16 %v281
    %v371 = vunpack.c.h.b16 %v281
    %v372 = vunpack.c.l.b16 %v282
    %v373 = vunpack.c.l.b16 %v283
    %v374 = vunpack.c.h.b16 %v283
    %v375 = vunpack.c.l.b16 %v284
    %v376 = vunpack.c.l.b16 %v285
    %v377 = vunpack.c.h.b16 %v285
    %v378 = vunpack.c.l.b16 %v286
    %v379 = vunpack.c.l.b16 %v287
    %v380 = vunpack.c.h.b16 %v287
    %v381 = vunpack.c.l.b16 %v288
    %v382 = vunpack.c.l.b16 %v289
    %v383 = vunpack.c.h.b16 %v289
    %v384 = vunpack.c.l.b16 %v290
    %v385 = vunpack.c.l.b16 %v291
    %v386 = vunpack.c.h.b16 %v291
    %v387 = vunpack.c.l.b16 %v292
    %v388 = vunpack.c.l.b16 %v293
    %v389 = vunpack.c.h.b16 %v293
    %v390 = vunpack.c.l.b16 %v294
    %v391 = vunpack.c.l.b16 %v295
    %v392 = vunpack.c.h.b16 %v295
    %v393 = vunpack.c.l.b16 %v296
    %v394 = vunpack.c.l.b16 %v297
    %v395 = vunpack.c.h.b16 %v297
    %v396 = vunpack.c.l.b16 %v298
    %v397 = vunpack.c.l.b16 %v299
    %v398 = vunpack.c.h.b16 %v299
    %v399 = vunpack.c.l.b16 %v300
    %v400 = vpack.c.b16 %v355, %v352
    %v401 = vpack.c.b16 %v356, %v353
    %v402 = vpack.c.b16 %v357, %v354
    %v403 = vpack.c.b16 %v361, %v358
    %v404 = vpack.c.b16 %v362, %v359
    %v405 = vpack.c.b16 %v363, %v360
    %v406 = vpack.c.b16 %v367, %v364
    %v407 = vpack.c.b16 %v368, %v365
    %v408 = vpack.c.b16 %v369, %v366
    %v409 = vpack.c.b16 %v373, %v370
    %v410 = vpack.c.b16 %v374, %v371
    %v411 = vpack.c.b16 %v375, %v372
    %v412 = vpack.c.b16 %v379, %v376
    %v413 = vpack.c.b16 %v380, %v377
    %v414 = vpack.c.b16 %v381, %v378
    %v415 = vpack.c.b16 %v385, %v382
    %v416 = vpack.c.b16 %v386, %v383
    %v417 = vpack.c.b16 %v387, %v384
    %v418 = vpack.c.b16 %v391, %v388
    %v419 = vpack.c.b16 %v392, %v389
    %v420 = vpack.c.b16 %v393, %v390
    %v421 = vpack.c.b16 %v397, %v394
    %v422 = vpack.c.b16 %v398, %v395
    %v423 = vpack.c.b16 %v399, %v396
    %448 = vmatprep.subr.bf16.mxu0 %v401
    %449 = vmatpush1.bf16.msra.mxu0 %v400
    %450 = vmatprep.subr.bf16.mxu0 %v404
    %451 = vmatpush1.bf16.msra.mxu0 %v403
    %452 = vmatprep.subr.bf16.mxu0 %v407
    %453 = vmatpush1.bf16.msra.mxu0 %v406
    %454 = vmatprep.subr.bf16.mxu0 %v410
    %455 = vmatpush1.bf16.msra.mxu0 %v409
    %456 = vmatprep.subr.bf16.mxu0 %v413
    %457 = vmatpush1.bf16.msra.mxu0 %v412
    %458 = vmatprep.subr.bf16.mxu0 %v416
    %459 = vmatpush1.bf16.msra.mxu0 %v415
    %460 = vmatprep.subr.bf16.mxu0 %v419
    %461 = vmatpush1.bf16.msra.mxu0 %v418
    %462 = vmatprep.subr.bf16.mxu0 %v422
    %463 = vmatpush1.bf16.msra.mxu0 %v421
    %464 = vmatprep.subr.bf16.mxu0 0
    %465 = vmatpush1.bf16.msra.mxu0 0
    %466 = vmatprep.subr.bf16.mxu0 0
    %467 = vmatpush1.bf16.msra.mxu0 0
    %468 = vmatprep.subr.bf16.mxu0 0
    %469 = vmatpush1.bf16.msra.mxu0 0
    %470 = vmatprep.subr.bf16.mxu0 0
    %471 = vmatpush1.bf16.msra.mxu0 0
    %472 = vmatprep.subr.bf16.mxu0 0
    %473 = vmatpush1.bf16.msra.mxu0 0
    %474 = vmatprep.subr.bf16.mxu0 0
    %475 = vmatpush1.bf16.msra.mxu0 0
    %476 = vmatprep.subr.bf16.mxu0 0
    %477 = vmatpush1.bf16.msra.mxu0 0
    %478 = vmatprep.subr.bf16.mxu0 0
    %479 = vmatpush1.bf16.msra.mxu0 0
    %480 = vmatprep.mubr.bf16.mxu0 0
    %481 = vmatmul.mubr.bf16.gmra.mrb[0].mxu0 %v301
    %v482 = vpop.f32.mrb[0].mxu0
    %v483 = vadd.f32 %v308, %v482
    %v484 = vpop.f32.mrb[0].mxu0
    %v485 = vadd.f32 %v312, %v484
    %v486 = vpop.f32.mrb[0].mxu0
    %v487 = vadd.f32 %v308, %v486
    %v488 = vpop.f32.mrb[0].mxu0
    %v489 = vadd.f32 %v312, %v488
    %490 = vmatprep.mubr.bf16.mxu0 0
    %491 = vmatmul.mubr.bf16.gmra.mrb[0].mxu0 %v302
    %v492 = vpop.f32.mrb[0].mxu0
    %v493 = vadd.f32 %v308, %v492
    %v494 = vpop.f32.mrb[0].mxu0
    %v495 = vadd.f32 %v312, %v494
    %v496 = vpop.f32.mrb[0].mxu0
    %v497 = vadd.f32 %v308, %v496
    %v498 = vpop.f32.mrb[0].mxu0
    %v499 = vadd.f32 %v312, %v498
    %500 = vdwg.mxu0
    %501 = vmatprep.subr.bf16.mxu0 0
    %502 = vmatpush1.bf16.msra.mxu0 %v402
    %503 = vmatprep.subr.bf16.mxu0 0
    %504 = vmatpush1.bf16.msra.mxu0 %v405
    %505 = vmatprep.subr.bf16.mxu0 0
    %506 = vmatpush1.bf16.msra.mxu0 %v408
    %507 = vmatprep.subr.bf16.mxu0 0
    %508 = vmatpush1.bf16.msra.mxu0 %v411
    %509 = vmatprep.subr.bf16.mxu0 0
    %510 = vmatpush1.bf16.msra.mxu0 %v414
    %511 = vmatprep.subr.bf16.mxu0 0
    %512 = vmatpush1.bf16.msra.mxu0 %v417
    %513 = vmatprep.subr.bf16.mxu0 0
    %514 = vmatpush1.bf16.msra.mxu0 %v420
    %515 = vmatprep.subr.bf16.mxu0 0
    %516 = vmatpush1.bf16.msra.mxu0 %v423
    %517 = vmatprep.subr.bf16.mxu0 0
    %518 = vmatpush1.bf16.msra.mxu0 0
    %519 = vmatprep.subr.bf16.mxu0 0
    %520 = vmatpush1.bf16.msra.mxu0 0
    %521 = vmatprep.subr.bf16.mxu0 0
    %522 = vmatpush1.bf16.msra.mxu0 0
    %523 = vmatprep.subr.bf16.mxu0 0
    %524 = vmatpush1.bf16.msra.mxu0 0
    %525 = vmatprep.subr.bf16.mxu0 0
    %526 = vmatpush1.bf16.msra.mxu0 0
    %527 = vmatprep.subr.bf16.mxu0 0
    %528 = vmatpush1.bf16.msra.mxu0 0
    %529 = vmatprep.subr.bf16.mxu0 0
    %530 = vmatpush1.bf16.msra.mxu0 0
    %531 = vmatprep.subr.bf16.mxu0 0
    %532 = vmatpush1.bf16.msra.mxu0 0
    %533 = vmatprep.mubr.bf16.mxu0 0
    %534 = vmatmul.mubr.bf16.gmra.mrb[0].mxu0 %v301
    %v535 = vpop.f32.mrb[0].mxu0
    %v536 = vadd.f32 %v316, %v535
    %v537 = vpop.f32.mrb[0].mxu0
    %v538 = vpop.f32.mrb[0].mxu0
    %v539 = vadd.f32 %v316, %v538
    %v540 = vpop.f32.mrb[0].mxu0
    %541 = vmatprep.mubr.bf16.mxu0 0
    %542 = vmatmul.mubr.bf16.gmra.mrb[0].mxu0 %v302
    %v543 = vpop.f32.mrb[0].mxu0
    %v544 = vadd.f32 %v316, %v543
    %v545 = vpop.f32.mrb[0].mxu0
    %v546 = vpop.f32.mrb[0].mxu0
    %v547 = vadd.f32 %v316, %v546
    %v548 = vpop.f32.mrb[0].mxu0
    %549 = vdwg.mxu0
    %vm550 = vcmask 261120
    %v552 = vsel %vm550, %v483, 0
    %v555 = vsel %vm550, %v487, 0
    %v558 = vsel %vm550, %v485, 0
    %v561 = vsel %vm550, %v489, 0
    %563 = vmatprep.subr.mxu0 0.0
    %564 = vmatpush1.xpose.msra.mxu0 %v558
    %565 = vmatprep.subr.mxu0 0.0
    %566 = vmatpush1.xpose.msra.mxu0 %v561
    %567 = vmatprep.subr.mxu0 0.0
    %568 = vmatpush1.xpose.msra.mxu0 0.0
    %569 = vmatprep.subr.mxu0 0.0
    %570 = vmatpush1.xpose.msra.mxu0 0.0
    %571 = vmatprep.subr.mxu0 0.0
    %572 = vmatpush1.xpose.msra.mxu0 0.0
    %573 = vmatprep.subr.mxu0 0.0
    %574 = vmatpush1.xpose.msra.mxu0 0.0
    %575 = vmatprep.subr.mxu0 0.0
    %576 = vmatpush1.xpose.msra.mxu0 0.0
    %577 = vmatprep.subr.mxu0 0.0
    %578 = vmatpush1.xpose.msra.mxu0 0.0
    %579 = vmatprep.subr.mxu0 0.0
    %580 = vmatpush1.xpose.msra.mxu0 0.0
    %581 = vmatprep.subr.mxu0 0.0
    %582 = vmatpush1.xpose.msra.mxu0 0.0
    %583 = vmatprep.subr.mxu0 0.0
    %584 = vmatpush1.xpose.msra.mxu0 0.0
    %585 = vmatprep.subr.mxu0 0.0
    %586 = vmatpush1.xpose.msra.mxu0 0.0
    %587 = vmatprep.subr.mxu0 0.0
    %588 = vmatpush1.xpose.msra.mxu0 0.0
    %589 = vmatprep.subr.mxu0 0.0
    %590 = vmatpush1.xpose.msra.mxu0 0.0
    %591 = vmatprep.subr.mxu0 0.0
    %592 = vmatpush1.xpose.msra.mxu0 0.0
    %593 = vmatprep.subr.mxu0 0.0
    %594 = vmatpush1.xpose.msra.mxu0 0.0
    %595 = vmatprep.subr.mxu0 0.0
    %596 = vmatpush1.xpose.msra.mxu0 0.0
    %597 = vmatprep.subr.mxu0 0.0
    %598 = vmatpush1.xpose.msra.mxu0 0.0
    %599 = vmatprep.subr.mxu0 0.0
    %600 = vmatpush1.xpose.msra.mxu0 0.0
    %601 = vmatprep.subr.mxu0 0.0
    %602 = vmatpush1.xpose.msra.mxu0 0.0
    %603 = vmatprep.subr.mxu0 0.0
    %604 = vmatpush1.xpose.msra.mxu0 0.0
    %605 = vmatprep.subr.mxu0 0.0
    %606 = vmatpush1.xpose.msra.mxu0 0.0
    %607 = vmatprep.subr.mxu0 0.0
    %608 = vmatpush1.xpose.msra.mxu0 0.0
    %609 = vmatprep.subr.mxu0 0.0
    %610 = vmatpush1.xpose.msra.mxu0 0.0
    %611 = vmatprep.subr.mxu0 0.0
    %612 = vmatpush1.xpose.msra.mxu0 0.0
    %613 = vmatprep.subr.mxu0 0.0
    %614 = vmatpush1.xpose.msra.mxu0 0.0
    %615 = vmatprep.subr.mxu0 0.0
    %616 = vmatpush1.xpose.msra.mxu0 0.0
    %617 = vmatprep.subr.mxu0 0.0
    %618 = vmatpush1.xpose.msra.mxu0 0.0
    %619 = vmatprep.subr.mxu0 0.0
    %620 = vmatpush1.xpose.msra.mxu0 0.0
    %621 = vmatprep.subr.mxu0 0.0
    %622 = vmatpush1.xpose.msra.mxu0 0.0
    %623 = vmatprep.subr.mxu0 0.0
    %624 = vmatpush1.xpose.msra.mxu0 0.0
    %625 = vmatprep.subr.mxu0 0.0
    %626 = vmatpush1.xpose.msra.mxu0 0.0
    %627 = vmatprep.mubr.f32.mxu0 0.0
    %628 = vmatmul.mubr.f32.gmra.mrb[0].mxu0 %v552
    %v629 = vpop.f32.mrb[0].mxu0
    %v630 = vadd.f32 0.0, %v629
    %v631 = vpop.f32.mrb[0].mxu0
    %632 = vmatprep.mubr.f32.mxu0 0.0
    %633 = vmatmul.mubr.f32.gmra.mrb[0].mxu0 %v555
    %v634 = vpop.f32.mrb[0].mxu0
    %v635 = vadd.f32 0.0, %v634
    %v636 = vpop.f32.mrb[0].mxu0
    %637 = vdwg.mxu0
    %v638 = vmul.f32 %v630, 0.17677669
    %v639 = vmul.f32 %v635, 0.17677669
    %v640 = vlaneseq
    %v641 = vshrl.u32 %v640, 7
    %v642 = vsub.s32 0, %v641
    %v643 = vrot.slane %v197, %v642
    %v644 = vadd.f32 %v638, %v643
    %v645 = vadd.f32 %v639, %v643
    %vm646 = vcmask 130048
    %v647 = vsel %vm646, %v644, -inf
    %648 = vmax.xlane.f32.xlu0 %v647
    %v649 = vpop.xlane.xlu0 %648
    %v650 = vsel %vm646, %v645, -inf
    %651 = vmax.xlane.f32.xlu0 %v650
    %v652 = vpop.xlane.xlu0 %651
    %v653 = vsub.f32 %v644, %v649
    %v654 = vsub.f32 %v645, %v652
    %v655 = vmul.f32 %v653, 1.442695
    %v656 = vpow.pop %v655
    %v657 = vmul.f32 %v654, 1.442695
    %v658 = vpow.pop %v657
    %v659 = vsel %vm646, %v656, 0.0
    %660 = vadd.xlane.f32.xlu0 %v659
    %v661 = vpop.xlane.xlu0 %660
    %v662 = vsel %vm646, %v658, 0.0
    %663 = vadd.xlane.f32.xlu0 %v662
    %v664 = vpop.xlane.xlu0 %663
    %v665 = vrcp.pop %v661
    %v666 = vrcp.pop %v664
    %v667 = vmul.f32 %v656, %v665
    %v668 = vmul.f32 %v658, %v666
    %v670 = vsel %vm646, %v667, 0
    %v673 = vsel %vm646, %v668, 0
    %675 = vmatprep.subr.mxu0 0.0
    %676 = vmatpush1.msra.mxu0 %v536
    %677 = vmatprep.subr.mxu0 0.0
    %678 = vmatpush1.msra.mxu0 %v539
    %679 = vmatprep.subr.mxu0 0.0
    %680 = vmatpush1.msra.mxu0 0.0
    %681 = vmatprep.subr.mxu0 0.0
    %682 = vmatpush1.msra.mxu0 0.0
    %683 = vmatprep.subr.mxu0 0.0
    %684 = vmatpush1.msra.mxu0 0.0
    %685 = vmatprep.subr.mxu0 0.0
    %686 = vmatpush1.msra.mxu0 0.0
    %687 = vmatprep.subr.mxu0 0.0
    %688 = vmatpush1.msra.mxu0 0.0
    %689 = vmatprep.subr.mxu0 0.0
    %690 = vmatpush1.msra.mxu0 0.0
    %691 = vmatprep.subr.mxu0 0.0
    %692 = vmatpush1.msra.mxu0 0.0
    %693 = vmatprep.subr.mxu0 0.0
    %694 = vmatpush1.msra.mxu0 0.0
    %695 = vmatprep.subr.mxu0 0.0
    %696 = vmatpush1.msra.mxu0 0.0
    %697 = vmatprep.subr.mxu0 0.0
    %698 = vmatpush1.msra.mxu0 0.0
    %699 = vmatprep.subr.mxu0 0.0
    %700 = vmatpush1.msra.mxu0 0.0
    %701 = vmatprep.subr.mxu0 0.0
    %702 = vmatpush1.msra.mxu0 0.0
    %703 = vmatprep.subr.mxu0 0.0
    %704 = vmatpush1.msra.mxu0 0.0
    %705 = vmatprep.subr.mxu0 0.0
    %706 = vmatpush1.msra.mxu0 0.0
    %707 = vmatprep.subr.mxu0 0.0
    %708 = vmatpush1.msra.mxu0 0.0
    %709 = vmatprep.subr.mxu0 0.0
    %710 = vmatpush1.msra.mxu0 0.0
    %711 = vmatprep.subr.mxu0 0.0
    %712 = vmatpush1.msra.mxu0 0.0
    %713 = vmatprep.subr.mxu0 0.0
    %714 = vmatpush1.msra.mxu0 0.0
    %715 = vmatprep.subr.mxu0 0.0
    %716 = vmatpush1.msra.mxu0 0.0
    %717 = vmatprep.subr.mxu0 0.0
    %718 = vmatpush1.msra.mxu0 0.0
    %719 = vmatprep.subr.mxu0 0.0
    %720 = vmatpush1.msra.mxu0 0.0
    %721 = vmatprep.subr.mxu0 0.0
    %722 = vmatpush1.msra.mxu0 0.0
    %723 = vmatprep.subr.mxu0 0.0
    %724 = vmatpush1.msra.mxu0 0.0
    %725 = vmatprep.subr.mxu0 0.0
    %726 = vmatpush1.msra.mxu0 0.0
    %727 = vmatprep.subr.mxu0 0.0
    %728 = vmatpush1.msra.mxu0 0.0
    %729 = vmatprep.subr.mxu0 0.0
    %730 = vmatpush1.msra.mxu0 0.0
    %731 = vmatprep.subr.mxu0 0.0
    %732 = vmatpush1.msra.mxu0 0.0
    %733 = vmatprep.subr.mxu0 0.0
    %734 = vmatpush1.msra.mxu0 0.0
    %735 = vmatprep.subr.mxu0 0.0
    %736 = vmatpush1.msra.mxu0 0.0
    %737 = vmatprep.subr.mxu0 0.0
    %738 = vmatpush1.msra.mxu0 0.0
    %739 = vmatprep.mubr.f32.mxu0 0.0
    %740 = vmatmul.mubr.f32.gmra.mrb[0].mxu0 %v670
    %v741 = vpop.f32.mrb[0].mxu0
    %v742 = vadd.f32 0.0, %v741
    %v743 = vpop.f32.mrb[0].mxu0
    %744 = vmatprep.mubr.f32.mxu0 0.0
    %745 = vmatmul.mubr.f32.gmra.mrb[0].mxu0 %v673
    %v746 = vpop.f32.mrb[0].mxu0
    %v747 = vadd.f32 0.0, %v746
    %v748 = vpop.f32.mrb[0].mxu0
    %749 = vdwg.mxu0
    %750 = vrot.lane.b32.xlu0 %v483, 96
    %v751 = vpop.permute.xlu0 %750
    %752 = vrot.lane.b32.xlu0 %v487, 96
    %v753 = vpop.permute.xlu0 %752
    %754 = vrot.lane.b32.xlu0 %v485, 96
    %v755 = vpop.permute.xlu0 %754
    %756 = vrot.lane.b32.xlu0 %v489, 96
    %v757 = vpop.permute.xlu0 %756
    %v758 = vsel %vm550, %v751, 0
    %v760 = vsel %vm550, %v753, 0
    %v762 = vsel %vm550, %v755, 0
    %v764 = vsel %vm550, %v757, 0
    %766 = vmatprep.subr.mxu0 0.0
    %767 = vmatpush1.xpose.msra.mxu0 %v762
    %768 = vmatprep.subr.mxu0 0.0
    %769 = vmatpush1.xpose.msra.mxu0 %v764
    %770 = vmatprep.subr.mxu0 0.0
    %771 = vmatpush1.xpose.msra.mxu0 0.0
    %772 = vmatprep.subr.mxu0 0.0
    %773 = vmatpush1.xpose.msra.mxu0 0.0
    %774 = vmatprep.subr.mxu0 0.0
    %775 = vmatpush1.xpose.msra.mxu0 0.0
    %776 = vmatprep.subr.mxu0 0.0
    %777 = vmatpush1.xpose.msra.mxu0 0.0
    %778 = vmatprep.subr.mxu0 0.0
    %779 = vmatpush1.xpose.msra.mxu0 0.0
    %780 = vmatprep.subr.mxu0 0.0
    %781 = vmatpush1.xpose.msra.mxu0 0.0
    %782 = vmatprep.subr.mxu0 0.0
    %783 = vmatpush1.xpose.msra.mxu0 0.0
    %784 = vmatprep.subr.mxu0 0.0
    %785 = vmatpush1.xpose.msra.mxu0 0.0
    %786 = vmatprep.subr.mxu0 0.0
    %787 = vmatpush1.xpose.msra.mxu0 0.0
    %788 = vmatprep.subr.mxu0 0.0
    %789 = vmatpush1.xpose.msra.mxu0 0.0
    %790 = vmatprep.subr.mxu0 0.0
    %791 = vmatpush1.xpose.msra.mxu0 0.0
    %792 = vmatprep.subr.mxu0 0.0
    %793 = vmatpush1.xpose.msra.mxu0 0.0
    %794 = vmatprep.subr.mxu0 0.0
    %795 = vmatpush1.xpose.msra.mxu0 0.0
    %796 = vmatprep.subr.mxu0 0.0
    %797 = vmatpush1.xpose.msra.mxu0 0.0
    %798 = vmatprep.subr.mxu0 0.0
    %799 = vmatpush1.xpose.msra.mxu0 0.0
    %800 = vmatprep.subr.mxu0 0.0
    %801 = vmatpush1.xpose.msra.mxu0 0.0
    %802 = vmatprep.subr.mxu0 0.0
    %803 = vmatpush1.xpose.msra.mxu0 0.0
    %804 = vmatprep.subr.mxu0 0.0
    %805 = vmatpush1.xpose.msra.mxu0 0.0
    %806 = vmatprep.subr.mxu0 0.0
    %807 = vmatpush1.xpose.msra.mxu0 0.0
    %808 = vmatprep.subr.mxu0 0.0
    %809 = vmatpush1.xpose.msra.mxu0 0.0
    %810 = vmatprep.subr.mxu0 0.0
    %811 = vmatpush1.xpose.msra.mxu0 0.0
    %812 = vmatprep.subr.mxu0 0.0
    %813 = vmatpush1.xpose.msra.mxu0 0.0
    %814 = vmatprep.subr.mxu0 0.0
    %815 = vmatpush1.xpose.msra.mxu0 0.0
    %816 = vmatprep.subr.mxu0 0.0
    %817 = vmatpush1.xpose.msra.mxu0 0.0
    %818 = vmatprep.subr.mxu0 0.0
    %819 = vmatpush1.xpose.msra.mxu0 0.0
    %820 = vmatprep.subr.mxu0 0.0
    %821 = vmatpush1.xpose.msra.mxu0 0.0
    %822 = vmatprep.subr.mxu0 0.0
    %823 = vmatpush1.xpose.msra.mxu0 0.0
    %824 = vmatprep.subr.mxu0 0.0
    %825 = vmatpush1.xpose.msra.mxu0 0.0
    %826 = vmatprep.subr.mxu0 0.0
    %827 = vmatpush1.xpose.msra.mxu0 0.0
    %828 = vmatprep.subr.mxu0 0.0
    %829 = vmatpush1.xpose.msra.mxu0 0.0
    %830 = vmatprep.mubr.f32.mxu0 0.0
    %831 = vmatmul.mubr.f32.gmra.mrb[0].mxu0 %v758
    %v832 = vpop.f32.mrb[0].mxu0
    %v833 = vadd.f32 0.0, %v832
    %v834 = vpop.f32.mrb[0].mxu0
    %835 = vmatprep.mubr.f32.mxu0 0.0
    %836 = vmatmul.mubr.f32.gmra.mrb[0].mxu0 %v760
    %v837 = vpop.f32.mrb[0].mxu0
    %v838 = vadd.f32 0.0, %v837
    %v839 = vpop.f32.mrb[0].mxu0
    %840 = vdwg.mxu0
    %v841 = vmul.f32 %v833, 0.17677669
    %v842 = vmul.f32 %v838, 0.17677669
    %v843 = vadd.f32 %v841, %v643
    %v844 = vadd.f32 %v842, %v643
    %v845 = vsel %vm646, %v843, -inf
    %846 = vmax.xlane.f32.xlu0 %v845
    %v847 = vpop.xlane.xlu0 %846
    %v848 = vsel %vm646, %v844, -inf
    %849 = vmax.xlane.f32.xlu0 %v848
    %v850 = vpop.xlane.xlu0 %849
    %v851 = vsub.f32 %v843, %v847
    %v852 = vsub.f32 %v844, %v850
    %v853 = vmul.f32 %v851, 1.442695
    %v854 = vpow.pop %v853
    %v855 = vmul.f32 %v852, 1.442695
    %v856 = vpow.pop %v855
    %v857 = vsel %vm646, %v854, 0.0
    %858 = vadd.xlane.f32.xlu0 %v857
    %v859 = vpop.xlane.xlu0 %858
    %v860 = vsel %vm646, %v856, 0.0
    %861 = vadd.xlane.f32.xlu0 %v860
    %v862 = vpop.xlane.xlu0 %861
    %v863 = vrcp.pop %v859
    %v864 = vrcp.pop %v862
    %v865 = vmul.f32 %v854, %v863
    %v866 = vmul.f32 %v856, %v864
    %869 = vrot.lane.b32.xlu0 %v536, 96
    %v870 = vpop.permute.xlu0 %869
    %871 = vrot.lane.b32.xlu0 %v539, 96
    %v872 = vpop.permute.xlu0 %871
    %v876 = vsel %vm646, %v865, 0
    %v879 = vsel %vm646, %v866, 0
    %881 = vmatprep.subr.mxu0 0.0
    %882 = vmatpush1.msra.mxu0 %v870
    %883 = vmatprep.subr.mxu0 0.0
    %884 = vmatpush1.msra.mxu0 %v872
    %885 = vmatprep.subr.mxu0 0.0
    %886 = vmatpush1.msra.mxu0 0.0
    %887 = vmatprep.subr.mxu0 0.0
    %888 = vmatpush1.msra.mxu0 0.0
    %889 = vmatprep.subr.mxu0 0.0
    %890 = vmatpush1.msra.mxu0 0.0
    %891 = vmatprep.subr.mxu0 0.0
    %892 = vmatpush1.msra.mxu0 0.0
    %893 = vmatprep.subr.mxu0 0.0
    %894 = vmatpush1.msra.mxu0 0.0
    %895 = vmatprep.subr.mxu0 0.0
    %896 = vmatpush1.msra.mxu0 0.0
    %897 = vmatprep.subr.mxu0 0.0
    %898 = vmatpush1.msra.mxu0 0.0
    %899 = vmatprep.subr.mxu0 0.0
    %900 = vmatpush1.msra.mxu0 0.0
    %901 = vmatprep.subr.mxu0 0.0
    %902 = vmatpush1.msra.mxu0 0.0
    %903 = vmatprep.subr.mxu0 0.0
    %904 = vmatpush1.msra.mxu0 0.0
    %905 = vmatprep.subr.mxu0 0.0
    %906 = vmatpush1.msra.mxu0 0.0
    %907 = vmatprep.subr.mxu0 0.0
    %908 = vmatpush1.msra.mxu0 0.0
    %909 = vmatprep.subr.mxu0 0.0
    %910 = vmatpush1.msra.mxu0 0.0
    %911 = vmatprep.subr.mxu0 0.0
    %912 = vmatpush1.msra.mxu0 0.0
    %913 = vmatprep.subr.mxu0 0.0
    %914 = vmatpush1.msra.mxu0 0.0
    %915 = vmatprep.subr.mxu0 0.0
    %916 = vmatpush1.msra.mxu0 0.0
    %917 = vmatprep.subr.mxu0 0.0
    %918 = vmatpush1.msra.mxu0 0.0
    %919 = vmatprep.subr.mxu0 0.0
    %920 = vmatpush1.msra.mxu0 0.0
    %921 = vmatprep.subr.mxu0 0.0
    %922 = vmatpush1.msra.mxu0 0.0
    %923 = vmatprep.subr.mxu0 0.0
    %924 = vmatpush1.msra.mxu0 0.0
    %925 = vmatprep.subr.mxu0 0.0
    %926 = vmatpush1.msra.mxu0 0.0
    %927 = vmatprep.subr.mxu0 0.0
    %928 = vmatpush1.msra.mxu0 0.0
    %929 = vmatprep.subr.mxu0 0.0
    %930 = vmatpush1.msra.mxu0 0.0
    %931 = vmatprep.subr.mxu0 0.0
    %932 = vmatpush1.msra.mxu0 0.0
    %933 = vmatprep.subr.mxu0 0.0
    %934 = vmatpush1.msra.mxu0 0.0
    %935 = vmatprep.subr.mxu0 0.0
    %936 = vmatpush1.msra.mxu0 0.0
    %937 = vmatprep.subr.mxu0 0.0
    %938 = vmatpush1.msra.mxu0 0.0
    %939 = vmatprep.subr.mxu0 0.0
    %940 = vmatpush1.msra.mxu0 0.0
    %941 = vmatprep.subr.mxu0 0.0
    %942 = vmatpush1.msra.mxu0 0.0
    %943 = vmatprep.subr.mxu0 0.0
    %944 = vmatpush1.msra.mxu0 0.0
    %945 = vmatprep.mubr.f32.mxu0 0.0
    %946 = vmatmul.mubr.f32.gmra.mrb[0].mxu0 %v876
    %v947 = vpop.f32.mrb[0].mxu0
    %v948 = vadd.f32 0.0, %v947
    %v949 = vpop.f32.mrb[0].mxu0
    %950 = vmatprep.mubr.f32.mxu0 0.0
    %951 = vmatmul.mubr.f32.gmra.mrb[0].mxu0 %v879
    %v952 = vpop.f32.mrb[0].mxu0
    %v953 = vadd.f32 0.0, %v952
    %v954 = vpop.f32.mrb[0].mxu0
    %955 = vdwg.mxu0
    %956 = vrot.lane.b32.xlu0 %v483, 64
    %v957 = vpop.permute.xlu0 %956
    %958 = vrot.lane.b32.xlu0 %v487, 64
    %v959 = vpop.permute.xlu0 %958
    %960 = vrot.lane.b32.xlu0 %v485, 64
    %v961 = vpop.permute.xlu0 %960
    %962 = vrot.lane.b32.xlu0 %v489, 64
    %v963 = vpop.permute.xlu0 %962
    %v964 = vsel %vm550, %v957, 0
    %v966 = vsel %vm550, %v959, 0
    %v968 = vsel %vm550, %v961, 0
    %v970 = vsel %vm550, %v963, 0
    %972 = vmatprep.subr.mxu0 0.0
    %973 = vmatpush1.xpose.msra.mxu0 %v968
    %974 = vmatprep.subr.mxu0 0.0
    %975 = vmatpush1.xpose.msra.mxu0 %v970
    %976 = vmatprep.subr.mxu0 0.0
    %977 = vmatpush1.xpose.msra.mxu0 0.0
    %978 = vmatprep.subr.mxu0 0.0
    %979 = vmatpush1.xpose.msra.mxu0 0.0
    %980 = vmatprep.subr.mxu0 0.0
    %981 = vmatpush1.xpose.msra.mxu0 0.0
    %982 = vmatprep.subr.mxu0 0.0
    %983 = vmatpush1.xpose.msra.mxu0 0.0
    %984 = vmatprep.subr.mxu0 0.0
    %985 = vmatpush1.xpose.msra.mxu0 0.0
    %986 = vmatprep.subr.mxu0 0.0
    %987 = vmatpush1.xpose.msra.mxu0 0.0
    %988 = vmatprep.subr.mxu0 0.0
    %989 = vmatpush1.xpose.msra.mxu0 0.0
    %990 = vmatprep.subr.mxu0 0.0
    %991 = vmatpush1.xpose.msra.mxu0 0.0
    %992 = vmatprep.subr.mxu0 0.0
    %993 = vmatpush1.xpose.msra.mxu0 0.0
    %994 = vmatprep.subr.mxu0 0.0
    %995 = vmatpush1.xpose.msra.mxu0 0.0
    %996 = vmatprep.subr.mxu0 0.0
    %997 = vmatpush1.xpose.msra.mxu0 0.0
    %998 = vmatprep.subr.mxu0 0.0
    %999 = vmatpush1.xpose.msra.mxu0 0.0
    %1000 = vmatprep.subr.mxu0 0.0
    %1001 = vmatpush1.xpose.msra.mxu0 0.0
    %1002 = vmatprep.subr.mxu0 0.0
    %1003 = vmatpush1.xpose.msra.mxu0 0.0
    %1004 = vmatprep.subr.mxu0 0.0
    %1005 = vmatpush1.xpose.msra.mxu0 0.0
    %1006 = vmatprep.subr.mxu0 0.0
    %1007 = vmatpush1.xpose.msra.mxu0 0.0
    %1008 = vmatprep.subr.mxu0 0.0
    %1009 = vmatpush1.xpose.msra.mxu0 0.0
    %1010 = vmatprep.subr.mxu0 0.0
    %1011 = vmatpush1.xpose.msra.mxu0 0.0
    %1012 = vmatprep.subr.mxu0 0.0
    %1013 = vmatpush1.xpose.msra.mxu0 0.0
    %1014 = vmatprep.subr.mxu0 0.0
    %1015 = vmatpush1.xpose.msra.mxu0 0.0
    %1016 = vmatprep.subr.mxu0 0.0
    %1017 = vmatpush1.xpose.msra.mxu0 0.0
    %1018 = vmatprep.subr.mxu0 0.0
    %1019 = vmatpush1.xpose.msra.mxu0 0.0
    %1020 = vmatprep.subr.mxu0 0.0
    %1021 = vmatpush1.xpose.msra.mxu0 0.0
    %1022 = vmatprep.subr.mxu0 0.0
    %1023 = vmatpush1.xpose.msra.mxu0 0.0
    %1024 = vmatprep.subr.mxu0 0.0
    %1025 = vmatpush1.xpose.msra.mxu0 0.0
    %1026 = vmatprep.subr.mxu0 0.0
    %1027 = vmatpush1.xpose.msra.mxu0 0.0
    %1028 = vmatprep.subr.mxu0 0.0
    %1029 = vmatpush1.xpose.msra.mxu0 0.0
    %1030 = vmatprep.subr.mxu0 0.0
    %1031 = vmatpush1.xpose.msra.mxu0 0.0
    %1032 = vmatprep.subr.mxu0 0.0
    %1033 = vmatpush1.xpose.msra.mxu0 0.0
    %1034 = vmatprep.subr.mxu0 0.0
    %1035 = vmatpush1.xpose.msra.mxu0 0.0
    %1036 = vmatprep.mubr.f32.mxu0 0.0
    %1037 = vmatmul.mubr.f32.gmra.mrb[0].mxu0 %v964
    %v1038 = vpop.f32.mrb[0].mxu0
    %v1039 = vadd.f32 0.0, %v1038
    %v1040 = vpop.f32.mrb[0].mxu0
    %1041 = vmatprep.mubr.f32.mxu0 0.0
    %1042 = vmatmul.mubr.f32.gmra.mrb[0].mxu0 %v966
    %v1043 = vpop.f32.mrb[0].mxu0
    %v1044 = vadd.f32 0.0, %v1043
    %v1045 = vpop.f32.mrb[0].mxu0
    %1046 = vdwg.mxu0
    %v1047 = vmul.f32 %v1039, 0.17677669
    %v1048 = vmul.f32 %v1044, 0.17677669
    %v1049 = vadd.f32 %v1047, %v643
    %v1050 = vadd.f32 %v1048, %v643
    %v1051 = vsel %vm646, %v1049, -inf
    %1052 = vmax.xlane.f32.xlu0 %v1051
    %v1053 = vpop.xlane.xlu0 %1052
    %v1054 = vsel %vm646, %v1050, -inf
    %1055 = vmax.xlane.f32.xlu0 %v1054
    %v1056 = vpop.xlane.xlu0 %1055
    %v1057 = vsub.f32 %v1049, %v1053
    %v1058 = vsub.f32 %v1050, %v1056
    %v1059 = vmul.f32 %v1057, 1.442695
    %v1060 = vpow.pop %v1059
    %v1061 = vmul.f32 %v1058, 1.442695
    %v1062 = vpow.pop %v1061
    %v1063 = vsel %vm646, %v1060, 0.0
    %1064 = vadd.xlane.f32.xlu0 %v1063
    %v1065 = vpop.xlane.xlu0 %1064
    %v1066 = vsel %vm646, %v1062, 0.0
    %1067 = vadd.xlane.f32.xlu0 %v1066
    %v1068 = vpop.xlane.xlu0 %1067
    %v1069 = vrcp.pop %v1065
    %v1070 = vrcp.pop %v1068
    %v1071 = vmul.f32 %v1060, %v1069
    %v1072 = vmul.f32 %v1062, %v1070
    %1073 = vrot.lane.b32.xlu0 %v536, 64
    %v1074 = vpop.permute.xlu0 %1073
    %1075 = vrot.lane.b32.xlu0 %v539, 64
    %v1076 = vpop.permute.xlu0 %1075
    %v1080 = vsel %vm646, %v1071, 0
    %v1083 = vsel %vm646, %v1072, 0
    %1085 = vmatprep.subr.mxu0 0.0
    %1086 = vmatpush1.msra.mxu0 %v1074
    %1087 = vmatprep.subr.mxu0 0.0
    %1088 = vmatpush1.msra.mxu0 %v1076
    %1089 = vmatprep.subr.mxu0 0.0
    %1090 = vmatpush1.msra.mxu0 0.0
    %1091 = vmatprep.subr.mxu0 0.0
    %1092 = vmatpush1.msra.mxu0 0.0
    %1093 = vmatprep.subr.mxu0 0.0
    %1094 = vmatpush1.msra.mxu0 0.0
    %1095 = vmatprep.subr.mxu0 0.0
    %1096 = vmatpush1.msra.mxu0 0.0
    %1097 = vmatprep.subr.mxu0 0.0
    %1098 = vmatpush1.msra.mxu0 0.0
    %1099 = vmatprep.subr.mxu0 0.0
    %1100 = vmatpush1.msra.mxu0 0.0
    %1101 = vmatprep.subr.mxu0 0.0
    %1102 = vmatpush1.msra.mxu0 0.0
    %1103 = vmatprep.subr.mxu0 0.0
    %1104 = vmatpush1.msra.mxu0 0.0
    %1105 = vmatprep.subr.mxu0 0.0
    %1106 = vmatpush1.msra.mxu0 0.0
    %1107 = vmatprep.subr.mxu0 0.0
    %1108 = vmatpush1.msra.mxu0 0.0
    %1109 = vmatprep.subr.mxu0 0.0
    %1110 = vmatpush1.msra.mxu0 0.0
    %1111 = vmatprep.subr.mxu0 0.0
    %1112 = vmatpush1.msra.mxu0 0.0
    %1113 = vmatprep.subr.mxu0 0.0
    %1114 = vmatpush1.msra.mxu0 0.0
    %1115 = vmatprep.subr.mxu0 0.0
    %1116 = vmatpush1.msra.mxu0 0.0
    %1117 = vmatprep.subr.mxu0 0.0
    %1118 = vmatpush1.msra.mxu0 0.0
    %1119 = vmatprep.subr.mxu0 0.0
    %1120 = vmatpush1.msra.mxu0 0.0
    %1121 = vmatprep.subr.mxu0 0.0
    %1122 = vmatpush1.msra.mxu0 0.0
    %1123 = vmatprep.subr.mxu0 0.0
    %1124 = vmatpush1.msra.mxu0 0.0
    %1125 = vmatprep.subr.mxu0 0.0
    %1126 = vmatpush1.msra.mxu0 0.0
    %1127 = vmatprep.subr.mxu0 0.0
    %1128 = vmatpush1.msra.mxu0 0.0
    %1129 = vmatprep.subr.mxu0 0.0
    %1130 = vmatpush1.msra.mxu0 0.0
    %1131 = vmatprep.subr.mxu0 0.0
    %1132 = vmatpush1.msra.mxu0 0.0
    %1133 = vmatprep.subr.mxu0 0.0
    %1134 = vmatpush1.msra.mxu0 0.0
    %1135 = vmatprep.subr.mxu0 0.0
    %1136 = vmatpush1.msra.mxu0 0.0
    %1137 = vmatprep.subr.mxu0 0.0
    %1138 = vmatpush1.msra.mxu0 0.0
    %1139 = vmatprep.subr.mxu0 0.0
    %1140 = vmatpush1.msra.mxu0 0.0
    %1141 = vmatprep.subr.mxu0 0.0
    %1142 = vmatpush1.msra.mxu0 0.0
    %1143 = vmatprep.subr.mxu0 0.0
    %1144 = vmatpush1.msra.mxu0 0.0
    %1145 = vmatprep.subr.mxu0 0.0
    %1146 = vmatpush1.msra.mxu0 0.0
    %1147 = vmatprep.subr.mxu0 0.0
    %1148 = vmatpush1.msra.mxu0 0.0
    %1149 = vmatprep.mubr.f32.mxu0 0.0
    %1150 = vmatmul.mubr.f32.gmra.mrb[0].mxu0 %v1080
    %v1151 = vpop.f32.mrb[0].mxu0
    %v1152 = vadd.f32 0.0, %v1151
    %v1153 = vpop.f32.mrb[0].mxu0
    %1154 = vmatprep.mubr.f32.mxu0 0.0
    %1155 = vmatmul.mubr.f32.gmra.mrb[0].mxu0 %v1083
    %v1156 = vpop.f32.mrb[0].mxu0
    %v1157 = vadd.f32 0.0, %v1156
    %v1158 = vpop.f32.mrb[0].mxu0
    %1159 = vdwg.mxu0
    %1160 = vrot.lane.b32.xlu0 %v483, 32
    %v1161 = vpop.permute.xlu0 %1160
    %1162 = vrot.lane.b32.xlu0 %v487, 32
    %v1163 = vpop.permute.xlu0 %1162
    %1164 = vrot.lane.b32.xlu0 %v485, 32
    %v1165 = vpop.permute.xlu0 %1164
    %1166 = vrot.lane.b32.xlu0 %v489, 32
    %v1167 = vpop.permute.xlu0 %1166
    %v1168 = vsel %vm550, %v1161, 0
    %v1170 = vsel %vm550, %v1163, 0
    %v1172 = vsel %vm550, %v1165, 0
    %v1174 = vsel %vm550, %v1167, 0
    %1176 = vmatprep.subr.mxu0 0.0
    %1177 = vmatpush1.xpose.msra.mxu0 %v1172
    %1178 = vmatprep.subr.mxu0 0.0
    %1179 = vmatpush1.xpose.msra.mxu0 %v1174
    %1180 = vmatprep.subr.mxu0 0.0
    %1181 = vmatpush1.xpose.msra.mxu0 0.0
    %1182 = vmatprep.subr.mxu0 0.0
    %1183 = vmatpush1.xpose.msra.mxu0 0.0
    %1184 = vmatprep.subr.mxu0 0.0
    %1185 = vmatpush1.xpose.msra.mxu0 0.0
    %1186 = vmatprep.subr.mxu0 0.0
    %1187 = vmatpush1.xpose.msra.mxu0 0.0
    %1188 = vmatprep.subr.mxu0 0.0
    %1189 = vmatpush1.xpose.msra.mxu0 0.0
    %1190 = vmatprep.subr.mxu0 0.0
    %1191 = vmatpush1.xpose.msra.mxu0 0.0
    %1192 = vmatprep.subr.mxu0 0.0
    %1193 = vmatpush1.xpose.msra.mxu0 0.0
    %1194 = vmatprep.subr.mxu0 0.0
    %1195 = vmatpush1.xpose.msra.mxu0 0.0
    %1196 = vmatprep.subr.mxu0 0.0
    %1197 = vmatpush1.xpose.msra.mxu0 0.0
    %1198 = vmatprep.subr.mxu0 0.0
    %1199 = vmatpush1.xpose.msra.mxu0 0.0
    %1200 = vmatprep.subr.mxu0 0.0
    %1201 = vmatpush1.xpose.msra.mxu0 0.0
    %1202 = vmatprep.subr.mxu0 0.0
    %1203 = vmatpush1.xpose.msra.mxu0 0.0
    %1204 = vmatprep.subr.mxu0 0.0
    %1205 = vmatpush1.xpose.msra.mxu0 0.0
    %1206 = vmatprep.subr.mxu0 0.0
    %1207 = vmatpush1.xpose.msra.mxu0 0.0
    %1208 = vmatprep.subr.mxu0 0.0
    %1209 = vmatpush1.xpose.msra.mxu0 0.0
    %1210 = vmatprep.subr.mxu0 0.0
    %1211 = vmatpush1.xpose.msra.mxu0 0.0
    %1212 = vmatprep.subr.mxu0 0.0
    %1213 = vmatpush1.xpose.msra.mxu0 0.0
    %1214 = vmatprep.subr.mxu0 0.0
    %1215 = vmatpush1.xpose.msra.mxu0 0.0
    %1216 = vmatprep.subr.mxu0 0.0
    %1217 = vmatpush1.xpose.msra.mxu0 0.0
    %1218 = vmatprep.subr.mxu0 0.0
    %1219 = vmatpush1.xpose.msra.mxu0 0.0
    %1220 = vmatprep.subr.mxu0 0.0
    %1221 = vmatpush1.xpose.msra.mxu0 0.0
    %1222 = vmatprep.subr.mxu0 0.0
    %1223 = vmatpush1.xpose.msra.mxu0 0.0
    %1224 = vmatprep.subr.mxu0 0.0
    %1225 = vmatpush1.xpose.msra.mxu0 0.0
    %1226 = vmatprep.subr.mxu0 0.0
    %1227 = vmatpush1.xpose.msra.mxu0 0.0
    %1228 = vmatprep.subr.mxu0 0.0
    %1229 = vmatpush1.xpose.msra.mxu0 0.0
    %1230 = vmatprep.subr.mxu0 0.0
    %1231 = vmatpush1.xpose.msra.mxu0 0.0
    %1232 = vmatprep.subr.mxu0 0.0
    %1233 = vmatpush1.xpose.msra.mxu0 0.0
    %1234 = vmatprep.subr.mxu0 0.0
    %1235 = vmatpush1.xpose.msra.mxu0 0.0
    %1236 = vmatprep.subr.mxu0 0.0
    %1237 = vmatpush1.xpose.msra.mxu0 0.0
    %1238 = vmatprep.subr.mxu0 0.0
    %1239 = vmatpush1.xpose.msra.mxu0 0.0
    %1240 = vmatprep.mubr.f32.mxu0 0.0
    %1241 = vmatmul.mubr.f32.gmra.mrb[0].mxu0 %v1168
    %v1242 = vpop.f32.mrb[0].mxu0
    %v1243 = vadd.f32 0.0, %v1242
    %v1244 = vpop.f32.mrb[0].mxu0
    %1245 = vmatprep.mubr.f32.mxu0 0.0
    %1246 = vmatmul.mubr.f32.gmra.mrb[0].mxu0 %v1170
    %v1247 = vpop.f32.mrb[0].mxu0
    %v1248 = vadd.f32 0.0, %v1247
    %v1249 = vpop.f32.mrb[0].mxu0
    %1250 = vdwg.mxu0
    %v1251 = vmul.f32 %v1243, 0.17677669
    %v1252 = vmul.f32 %v1248, 0.17677669
    %v1253 = vadd.f32 %v1251, %v643
    %v1254 = vadd.f32 %v1252, %v643
    %v1255 = vsel %vm646, %v1253, -inf
    %1256 = vmax.xlane.f32.xlu0 %v1255
    %v1257 = vpop.xlane.xlu0 %1256
    %v1258 = vsel %vm646, %v1254, -inf
    %1259 = vmax.xlane.f32.xlu0 %v1258
    %v1260 = vpop.xlane.xlu0 %1259
    %v1261 = vsub.f32 %v1253, %v1257
    %v1262 = vsub.f32 %v1254, %v1260
    %v1263 = vmul.f32 %v1261, 1.442695
    %v1264 = vpow.pop %v1263
    %v1265 = vmul.f32 %v1262, 1.442695
    %v1266 = vpow.pop %v1265
    %v1267 = vsel %vm646, %v1264, 0.0
    %1268 = vadd.xlane.f32.xlu0 %v1267
    %v1269 = vpop.xlane.xlu0 %1268
    %v1270 = vsel %vm646, %v1266, 0.0
    %1271 = vadd.xlane.f32.xlu0 %v1270
    %v1272 = vpop.xlane.xlu0 %1271
    %v1273 = vrcp.pop %v1269
    %v1274 = vrcp.pop %v1272
    %v1275 = vmul.f32 %v1264, %v1273
    %v1276 = vmul.f32 %v1266, %v1274
    %1277 = vrot.lane.b32.xlu0 %v536, 32
    %v1278 = vpop.permute.xlu0 %1277
    %1279 = vrot.lane.b32.xlu0 %v539, 32
    %v1280 = vpop.permute.xlu0 %1279
    %v1284 = vsel %vm646, %v1275, 0
    %v1287 = vsel %vm646, %v1276, 0
    %1289 = vmatprep.subr.mxu0 0.0
    %1290 = vmatpush1.msra.mxu0 %v1278
    %1291 = vmatprep.subr.mxu0 0.0
    %1292 = vmatpush1.msra.mxu0 %v1280
    %1293 = vmatprep.subr.mxu0 0.0
    %1294 = vmatpush1.msra.mxu0 0.0
    %1295 = vmatprep.subr.mxu0 0.0
    %1296 = vmatpush1.msra.mxu0 0.0
    %1297 = vmatprep.subr.mxu0 0.0
    %1298 = vmatpush1.msra.mxu0 0.0
    %1299 = vmatprep.subr.mxu0 0.0
    %1300 = vmatpush1.msra.mxu0 0.0
    %1301 = vmatprep.subr.mxu0 0.0
    %1302 = vmatpush1.msra.mxu0 0.0
    %1303 = vmatprep.subr.mxu0 0.0
    %1304 = vmatpush1.msra.mxu0 0.0
    %1305 = vmatprep.subr.mxu0 0.0
    %1306 = vmatpush1.msra.mxu0 0.0
    %1307 = vmatprep.subr.mxu0 0.0
    %1308 = vmatpush1.msra.mxu0 0.0
    %1309 = vmatprep.subr.mxu0 0.0
    %1310 = vmatpush1.msra.mxu0 0.0
    %1311 = vmatprep.subr.mxu0 0.0
    %1312 = vmatpush1.msra.mxu0 0.0
    %1313 = vmatprep.subr.mxu0 0.0
    %1314 = vmatpush1.msra.mxu0 0.0
    %1315 = vmatprep.subr.mxu0 0.0
    %1316 = vmatpush1.msra.mxu0 0.0
    %1317 = vmatprep.subr.mxu0 0.0
    %1318 = vmatpush1.msra.mxu0 0.0
    %1319 = vmatprep.subr.mxu0 0.0
    %1320 = vmatpush1.msra.mxu0 0.0
    %1321 = vmatprep.subr.mxu0 0.0
    %1322 = vmatpush1.msra.mxu0 0.0
    %1323 = vmatprep.subr.mxu0 0.0
    %1324 = vmatpush1.msra.mxu0 0.0
    %1325 = vmatprep.subr.mxu0 0.0
    %1326 = vmatpush1.msra.mxu0 0.0
    %1327 = vmatprep.subr.mxu0 0.0
    %1328 = vmatpush1.msra.mxu0 0.0
    %1329 = vmatprep.subr.mxu0 0.0
    %1330 = vmatpush1.msra.mxu0 0.0
    %1331 = vmatprep.subr.mxu0 0.0
    %1332 = vmatpush1.msra.mxu0 0.0
    %1333 = vmatprep.subr.mxu0 0.0
    %1334 = vmatpush1.msra.mxu0 0.0
    %1335 = vmatprep.subr.mxu0 0.0
    %1336 = vmatpush1.msra.mxu0 0.0
    %1337 = vmatprep.subr.mxu0 0.0
    %1338 = vmatpush1.msra.mxu0 0.0
    %1339 = vmatprep.subr.mxu0 0.0
    %1340 = vmatpush1.msra.mxu0 0.0
    %1341 = vmatprep.subr.mxu0 0.0
    %1342 = vmatpush1.msra.mxu0 0.0
    %1343 = vmatprep.subr.mxu0 0.0
    %1344 = vmatpush1.msra.mxu0 0.0
    %1345 = vmatprep.subr.mxu0 0.0
    %1346 = vmatpush1.msra.mxu0 0.0
    %1347 = vmatprep.subr.mxu0 0.0
    %1348 = vmatpush1.msra.mxu0 0.0
    %1349 = vmatprep.subr.mxu0 0.0
    %1350 = vmatpush1.msra.mxu0 0.0
    %1351 = vmatprep.subr.mxu0 0.0
    %1352 = vmatpush1.msra.mxu0 0.0
    %1353 = vmatprep.mubr.f32.mxu0 0.0
    %1354 = vmatmul.mubr.f32.gmra.mrb[0].mxu0 %v1284
    %v1355 = vpop.f32.mrb[0].mxu0
    %v1356 = vadd.f32 0.0, %v1355
    %v1357 = vpop.f32.mrb[0].mxu0
    %1358 = vmatprep.mubr.f32.mxu0 0.0
    %1359 = vmatmul.mubr.f32.gmra.mrb[0].mxu0 %v1287
    %v1360 = vpop.f32.mrb[0].mxu0
    %v1361 = vadd.f32 0.0, %v1360
    %v1362 = vpop.f32.mrb[0].mxu0
    %1363 = vdwg.mxu0
    %1366 = vrot.lane.b32.xlu0 %v948, 32
    %v1367 = vpop.permute.xlu0 %1366
    %1368 = vrot.lane.b32.xlu0 %v953, 32
    %v1369 = vpop.permute.xlu0 %1368
    %1374 = vrot.lane.b32.xlu0 %v1152, 64
    %v1375 = vpop.permute.xlu0 %1374
    %1376 = vrot.lane.b32.xlu0 %v1157, 64
    %v1377 = vpop.permute.xlu0 %1376
    %1382 = vrot.lane.b32.xlu0 %v1356, 96
    %v1383 = vpop.permute.xlu0 %1382
    %1384 = vrot.lane.b32.xlu0 %v1361, 96
    %v1385 = vpop.permute.xlu0 %1384
    %v1388 = vsel %vm550, %v742, %v1367
    %v1389 = vsel %vm550, %v747, %v1369
    %vm1390 = vcmask 523264
    %v1391 = vsel %vm1390, %v1388, %v1375
    %v1392 = vsel %vm1390, %v1389, %v1377
    %vm1393 = vcmask 785408
    %v1394 = vsel %vm1393, %v1391, %v1383
    %v1395 = vsel %vm1393, %v1392, %v1385
    %v1397 = vsel %vm550, %v493, 0
    %v1400 = vsel %vm550, %v497, 0
    %v1403 = vsel %vm550, %v495, 0
    %v1406 = vsel %vm550, %v499, 0
    %1408 = vmatprep.subr.mxu0 0.0
    %1409 = vmatpush1.xpose.msra.mxu0 %v1403
    %1410 = vmatprep.subr.mxu0 0.0
    %1411 = vmatpush1.xpose.msra.mxu0 %v1406
    %1412 = vmatprep.subr.mxu0 0.0
    %1413 = vmatpush1.xpose.msra.mxu0 0.0
    %1414 = vmatprep.subr.mxu0 0.0
    %1415 = vmatpush1.xpose.msra.mxu0 0.0
    %1416 = vmatprep.subr.mxu0 0.0
    %1417 = vmatpush1.xpose.msra.mxu0 0.0
    %1418 = vmatprep.subr.mxu0 0.0
    %1419 = vmatpush1.xpose.msra.mxu0 0.0
    %1420 = vmatprep.subr.mxu0 0.0
    %1421 = vmatpush1.xpose.msra.mxu0 0.0
    %1422 = vmatprep.subr.mxu0 0.0
    %1423 = vmatpush1.xpose.msra.mxu0 0.0
    %1424 = vmatprep.subr.mxu0 0.0
    %1425 = vmatpush1.xpose.msra.mxu0 0.0
    %1426 = vmatprep.subr.mxu0 0.0
    %1427 = vmatpush1.xpose.msra.mxu0 0.0
    %1428 = vmatprep.subr.mxu0 0.0
    %1429 = vmatpush1.xpose.msra.mxu0 0.0
    %1430 = vmatprep.subr.mxu0 0.0
    %1431 = vmatpush1.xpose.msra.mxu0 0.0
    %1432 = vmatprep.subr.mxu0 0.0
    %1433 = vmatpush1.xpose.msra.mxu0 0.0
    %1434 = vmatprep.subr.mxu0 0.0
    %1435 = vmatpush1.xpose.msra.mxu0 0.0
    %1436 = vmatprep.subr.mxu0 0.0
    %1437 = vmatpush1.xpose.msra.mxu0 0.0
    %1438 = vmatprep.subr.mxu0 0.0
    %1439 = vmatpush1.xpose.msra.mxu0 0.0
    %1440 = vmatprep.subr.mxu0 0.0
    %1441 = vmatpush1.xpose.msra.mxu0 0.0
    %1442 = vmatprep.subr.mxu0 0.0
    %1443 = vmatpush1.xpose.msra.mxu0 0.0
    %1444 = vmatprep.subr.mxu0 0.0
    %1445 = vmatpush1.xpose.msra.mxu0 0.0
    %1446 = vmatprep.subr.mxu0 0.0
    %1447 = vmatpush1.xpose.msra.mxu0 0.0
    %1448 = vmatprep.subr.mxu0 0.0
    %1449 = vmatpush1.xpose.msra.mxu0 0.0
    %1450 = vmatprep.subr.mxu0 0.0
    %1451 = vmatpush1.xpose.msra.mxu0 0.0
    %1452 = vmatprep.subr.mxu0 0.0
    %1453 = vmatpush1.xpose.msra.mxu0 0.0
    %1454 = vmatprep.subr.mxu0 0.0
    %1455 = vmatpush1.xpose.msra.mxu0 0.0
    %1456 = vmatprep.subr.mxu0 0.0
    %1457 = vmatpush1.xpose.msra.mxu0 0.0
    %1458 = vmatprep.subr.mxu0 0.0
    %1459 = vmatpush1.xpose.msra.mxu0 0.0
    %1460 = vmatprep.subr.mxu0 0.0
    %1461 = vmatpush1.xpose.msra.mxu0 0.0
    %1462 = vmatprep.subr.mxu0 0.0
    %1463 = vmatpush1.xpose.msra.mxu0 0.0
    %1464 = vmatprep.subr.mxu0 0.0
    %1465 = vmatpush1.xpose.msra.mxu0 0.0
    %1466 = vmatprep.subr.mxu0 0.0
    %1467 = vmatpush1.xpose.msra.mxu0 0.0
    %1468 = vmatprep.subr.mxu0 0.0
    %1469 = vmatpush1.xpose.msra.mxu0 0.0
    %1470 = vmatprep.subr.mxu0 0.0
    %1471 = vmatpush1.xpose.msra.mxu0 0.0
    %1472 = vmatprep.mubr.f32.mxu0 0.0
    %1473 = vmatmul.mubr.f32.gmra.mrb[0].mxu0 %v1397
    %v1474 = vpop.f32.mrb[0].mxu0
    %v1475 = vadd.f32 0.0, %v1474
    %v1476 = vpop.f32.mrb[0].mxu0
    %1477 = vmatprep.mubr.f32.mxu0 0.0
    %1478 = vmatmul.mubr.f32.gmra.mrb[0].mxu0 %v1400
    %v1479 = vpop.f32.mrb[0].mxu0
    %v1480 = vadd.f32 0.0, %v1479
    %v1481 = vpop.f32.mrb[0].mxu0
    %1482 = vdwg.mxu0
    %v1483 = vmul.f32 %v1475, 0.17677669
    %v1484 = vmul.f32 %v1480, 0.17677669
    %v1485 = vlaneseq
    %v1486 = vshrl.u32 %v1485, 7
    %v1487 = vsub.s32 1, %v1486
    %v1488 = vrot.slane %v197, %v1487
    %v1489 = vadd.f32 %v1483, %v1488
    %v1490 = vadd.f32 %v1484, %v1488
    %v1491 = vsel %vm646, %v1489, -inf
    %1492 = vmax.xlane.f32.xlu0 %v1491
    %v1493 = vpop.xlane.xlu0 %1492
    %v1494 = vsel %vm646, %v1490, -inf
    %1495 = vmax.xlane.f32.xlu0 %v1494
    %v1496 = vpop.xlane.xlu0 %1495
    %v1497 = vsub.f32 %v1489, %v1493
    %v1498 = vsub.f32 %v1490, %v1496
    %v1499 = vmul.f32 %v1497, 1.442695
    %v1500 = vpow.pop %v1499
    %v1501 = vmul.f32 %v1498, 1.442695
    %v1502 = vpow.pop %v1501
    %v1503 = vsel %vm646, %v1500, 0.0
    %1504 = vadd.xlane.f32.xlu0 %v1503
    %v1505 = vpop.xlane.xlu0 %1504
    %v1506 = vsel %vm646, %v1502, 0.0
    %1507 = vadd.xlane.f32.xlu0 %v1506
    %v1508 = vpop.xlane.xlu0 %1507
    %v1509 = vrcp.pop %v1505
    %v1510 = vrcp.pop %v1508
    %v1511 = vmul.f32 %v1500, %v1509
    %v1512 = vmul.f32 %v1502, %v1510
    %v1514 = vsel %vm646, %v1511, 0
    %v1517 = vsel %vm646, %v1512, 0
    %1519 = vmatprep.subr.mxu0 0.0
    %1520 = vmatpush1.msra.mxu0 %v544
    %1521 = vmatprep.subr.mxu0 0.0
    %1522 = vmatpush1.msra.mxu0 %v547
    %1523 = vmatprep.subr.mxu0 0.0
    %1524 = vmatpush1.msra.mxu0 0.0
    %1525 = vmatprep.subr.mxu0 0.0
    %1526 = vmatpush1.msra.mxu0 0.0
    %1527 = vmatprep.subr.mxu0 0.0
    %1528 = vmatpush1.msra.mxu0 0.0
    %1529 = vmatprep.subr.mxu0 0.0
    %1530 = vmatpush1.msra.mxu0 0.0
    %1531 = vmatprep.subr.mxu0 0.0
    %1532 = vmatpush1.msra.mxu0 0.0
    %1533 = vmatprep.subr.mxu0 0.0
    %1534 = vmatpush1.msra.mxu0 0.0
    %1535 = vmatprep.subr.mxu0 0.0
    %1536 = vmatpush1.msra.mxu0 0.0
    %1537 = vmatprep.subr.mxu0 0.0
    %1538 = vmatpush1.msra.mxu0 0.0
    %1539 = vmatprep.subr.mxu0 0.0
    %1540 = vmatpush1.msra.mxu0 0.0
    %1541 = vmatprep.subr.mxu0 0.0
    %1542 = vmatpush1.msra.mxu0 0.0
    %1543 = vmatprep.subr.mxu0 0.0
    %1544 = vmatpush1.msra.mxu0 0.0
    %1545 = vmatprep.subr.mxu0 0.0
    %1546 = vmatpush1.msra.mxu0 0.0
    %1547 = vmatprep.subr.mxu0 0.0
    %1548 = vmatpush1.msra.mxu0 0.0
    %1549 = vmatprep.subr.mxu0 0.0
    %1550 = vmatpush1.msra.mxu0 0.0
    %1551 = vmatprep.subr.mxu0 0.0
    %1552 = vmatpush1.msra.mxu0 0.0
    %1553 = vmatprep.subr.mxu0 0.0
    %1554 = vmatpush1.msra.mxu0 0.0
    %1555 = vmatprep.subr.mxu0 0.0
    %1556 = vmatpush1.msra.mxu0 0.0
    %1557 = vmatprep.subr.mxu0 0.0
    %1558 = vmatpush1.msra.mxu0 0.0
    %1559 = vmatprep.subr.mxu0 0.0
    %1560 = vmatpush1.msra.mxu0 0.0
    %1561 = vmatprep.subr.mxu0 0.0
    %1562 = vmatpush1.msra.mxu0 0.0
    %1563 = vmatprep.subr.mxu0 0.0
    %1564 = vmatpush1.msra.mxu0 0.0
    %1565 = vmatprep.subr.mxu0 0.0
    %1566 = vmatpush1.msra.mxu0 0.0
    %1567 = vmatprep.subr.mxu0 0.0
    %1568 = vmatpush1.msra.mxu0 0.0
    %1569 = vmatprep.subr.mxu0 0.0
    %1570 = vmatpush1.msra.mxu0 0.0
    %1571 = vmatprep.subr.mxu0 0.0
    %1572 = vmatpush1.msra.mxu0 0.0
    %1573 = vmatprep.subr.mxu0 0.0
    %1574 = vmatpush1.msra.mxu0 0.0
    %1575 = vmatprep.subr.mxu0 0.0
    %1576 = vmatpush1.msra.mxu0 0.0
    %1577 = vmatprep.subr.mxu0 0.0
    %1578 = vmatpush1.msra.mxu0 0.0
    %1579 = vmatprep.subr.mxu0 0.0
    %1580 = vmatpush1.msra.mxu0 0.0
    %1581 = vmatprep.subr.mxu0 0.0
    %1582 = vmatpush1.msra.mxu0 0.0
    %1583 = vmatprep.mubr.f32.mxu0 0.0
    %1584 = vmatmul.mubr.f32.gmra.mrb[0].mxu0 %v1514
    %v1585 = vpop.f32.mrb[0].mxu0
    %v1586 = vadd.f32 0.0, %v1585
    %v1587 = vpop.f32.mrb[0].mxu0
    %1588 = vmatprep.mubr.f32.mxu0 0.0
    %1589 = vmatmul.mubr.f32.gmra.mrb[0].mxu0 %v1517
    %v1590 = vpop.f32.mrb[0].mxu0
    %v1591 = vadd.f32 0.0, %v1590
    %v1592 = vpop.f32.mrb[0].mxu0
    %1593 = vdwg.mxu0
    %1594 = vrot.lane.b32.xlu0 %v493, 96
    %v1595 = vpop.permute.xlu0 %1594
    %1596 = vrot.lane.b32.xlu0 %v497, 96
    %v1597 = vpop.permute.xlu0 %1596
    %1598 = vrot.lane.b32.xlu0 %v495, 96
    %v1599 = vpop.permute.xlu0 %1598
    %1600 = vrot.lane.b32.xlu0 %v499, 96
    %v1601 = vpop.permute.xlu0 %1600
    %v1602 = vsel %vm550, %v1595, 0
    %v1604 = vsel %vm550, %v1597, 0
    %v1606 = vsel %vm550, %v1599, 0
    %v1608 = vsel %vm550, %v1601, 0
    %1610 = vmatprep.subr.mxu0 0.0
    %1611 = vmatpush1.xpose.msra.mxu0 %v1606
    %1612 = vmatprep.subr.mxu0 0.0
    %1613 = vmatpush1.xpose.msra.mxu0 %v1608
    %1614 = vmatprep.subr.mxu0 0.0
    %1615 = vmatpush1.xpose.msra.mxu0 0.0
    %1616 = vmatprep.subr.mxu0 0.0
    %1617 = vmatpush1.xpose.msra.mxu0 0.0
    %1618 = vmatprep.subr.mxu0 0.0
    %1619 = vmatpush1.xpose.msra.mxu0 0.0
    %1620 = vmatprep.subr.mxu0 0.0
    %1621 = vmatpush1.xpose.msra.mxu0 0.0
    %1622 = vmatprep.subr.mxu0 0.0
    %1623 = vmatpush1.xpose.msra.mxu0 0.0
    %1624 = vmatprep.subr.mxu0 0.0
    %1625 = vmatpush1.xpose.msra.mxu0 0.0
    %1626 = vmatprep.subr.mxu0 0.0
    %1627 = vmatpush1.xpose.msra.mxu0 0.0
    %1628 = vmatprep.subr.mxu0 0.0
    %1629 = vmatpush1.xpose.msra.mxu0 0.0
    %1630 = vmatprep.subr.mxu0 0.0
    %1631 = vmatpush1.xpose.msra.mxu0 0.0
    %1632 = vmatprep.subr.mxu0 0.0
    %1633 = vmatpush1.xpose.msra.mxu0 0.0
    %1634 = vmatprep.subr.mxu0 0.0
    %1635 = vmatpush1.xpose.msra.mxu0 0.0
    %1636 = vmatprep.subr.mxu0 0.0
    %1637 = vmatpush1.xpose.msra.mxu0 0.0
    %1638 = vmatprep.subr.mxu0 0.0
    %1639 = vmatpush1.xpose.msra.mxu0 0.0
    %1640 = vmatprep.subr.mxu0 0.0
    %1641 = vmatpush1.xpose.msra.mxu0 0.0
    %1642 = vmatprep.subr.mxu0 0.0
    %1643 = vmatpush1.xpose.msra.mxu0 0.0
    %1644 = vmatprep.subr.mxu0 0.0
    %1645 = vmatpush1.xpose.msra.mxu0 0.0
    %1646 = vmatprep.subr.mxu0 0.0
    %1647 = vmatpush1.xpose.msra.mxu0 0.0
    %1648 = vmatprep.subr.mxu0 0.0
    %1649 = vmatpush1.xpose.msra.mxu0 0.0
    %1650 = vmatprep.subr.mxu0 0.0
    %1651 = vmatpush1.xpose.msra.mxu0 0.0
    %1652 = vmatprep.subr.mxu0 0.0
    %1653 = vmatpush1.xpose.msra.mxu0 0.0
    %1654 = vmatprep.subr.mxu0 0.0
    %1655 = vmatpush1.xpose.msra.mxu0 0.0
    %1656 = vmatprep.subr.mxu0 0.0
    %1657 = vmatpush1.xpose.msra.mxu0 0.0
    %1658 = vmatprep.subr.mxu0 0.0
    %1659 = vmatpush1.xpose.msra.mxu0 0.0
    %1660 = vmatprep.subr.mxu0 0.0
    %1661 = vmatpush1.xpose.msra.mxu0 0.0
    %1662 = vmatprep.subr.mxu0 0.0
    %1663 = vmatpush1.xpose.msra.mxu0 0.0
    %1664 = vmatprep.subr.mxu0 0.0
    %1665 = vmatpush1.xpose.msra.mxu0 0.0
    %1666 = vmatprep.subr.mxu0 0.0
    %1667 = vmatpush1.xpose.msra.mxu0 0.0
    %1668 = vmatprep.subr.mxu0 0.0
    %1669 = vmatpush1.xpose.msra.mxu0 0.0
    %1670 = vmatprep.subr.mxu0 0.0
    %1671 = vmatpush1.xpose.msra.mxu0 0.0
    %1672 = vmatprep.subr.mxu0 0.0
    %1673 = vmatpush1.xpose.msra.mxu0 0.0
    %1674 = vmatprep.mubr.f32.mxu0 0.0
    %1675 = vmatmul.mubr.f32.gmra.mrb[0].mxu0 %v1602
    %v1676 = vpop.f32.mrb[0].mxu0
    %v1677 = vadd.f32 0.0, %v1676
    %v1678 = vpop.f32.mrb[0].mxu0
    %1679 = vmatprep.mubr.f32.mxu0 0.0
    %1680 = vmatmul.mubr.f32.gmra.mrb[0].mxu0 %v1604
    %v1681 = vpop.f32.mrb[0].mxu0
    %v1682 = vadd.f32 0.0, %v1681
    %v1683 = vpop.f32.mrb[0].mxu0
    %1684 = vdwg.mxu0
    %v1685 = vmul.f32 %v1677, 0.17677669
    %v1686 = vmul.f32 %v1682, 0.17677669
    %v1687 = vadd.f32 %v1685, %v1488
    %v1688 = vadd.f32 %v1686, %v1488
    %v1689 = vsel %vm646, %v1687, -inf
    %1690 = vmax.xlane.f32.xlu0 %v1689
    %v1691 = vpop.xlane.xlu0 %1690
    %v1692 = vsel %vm646, %v1688, -inf
    %1693 = vmax.xlane.f32.xlu0 %v1692
    %v1694 = vpop.xlane.xlu0 %1693
    %v1695 = vsub.f32 %v1687, %v1691
    %v1696 = vsub.f32 %v1688, %v1694
    %v1697 = vmul.f32 %v1695, 1.442695
    %v1698 = vpow.pop %v1697
    %v1699 = vmul.f32 %v1696, 1.442695
    %v1700 = vpow.pop %v1699
    %v1701 = vsel %vm646, %v1698, 0.0
    %1702 = vadd.xlane.f32.xlu0 %v1701
    %v1703 = vpop.xlane.xlu0 %1702
    %v1704 = vsel %vm646, %v1700, 0.0
    %1705 = vadd.xlane.f32.xlu0 %v1704
    %v1706 = vpop.xlane.xlu0 %1705
    %v1707 = vrcp.pop %v1703
    %v1708 = vrcp.pop %v1706
    %v1709 = vmul.f32 %v1698, %v1707
    %v1710 = vmul.f32 %v1700, %v1708
    %1713 = vrot.lane.b32.xlu0 %v544, 96
    %v1714 = vpop.permute.xlu0 %1713
    %1715 = vrot.lane.b32.xlu0 %v547, 96
    %v1716 = vpop.permute.xlu0 %1715
    %v1720 = vsel %vm646, %v1709, 0
    %v1723 = vsel %vm646, %v1710, 0
    %1725 = vmatprep.subr.mxu0 0.0
    %1726 = vmatpush1.msra.mxu0 %v1714
    %1727 = vmatprep.subr.mxu0 0.0
    %1728 = vmatpush1.msra.mxu0 %v1716
    %1729 = vmatprep.subr.mxu0 0.0
    %1730 = vmatpush1.msra.mxu0 0.0
    %1731 = vmatprep.subr.mxu0 0.0
    %1732 = vmatpush1.msra.mxu0 0.0
    %1733 = vmatprep.subr.mxu0 0.0
    %1734 = vmatpush1.msra.mxu0 0.0
    %1735 = vmatprep.subr.mxu0 0.0
    %1736 = vmatpush1.msra.mxu0 0.0
    %1737 = vmatprep.subr.mxu0 0.0
    %1738 = vmatpush1.msra.mxu0 0.0
    %1739 = vmatprep.subr.mxu0 0.0
    %1740 = vmatpush1.msra.mxu0 0.0
    %1741 = vmatprep.subr.mxu0 0.0
    %1742 = vmatpush1.msra.mxu0 0.0
    %1743 = vmatprep.subr.mxu0 0.0
    %1744 = vmatpush1.msra.mxu0 0.0
    %1745 = vmatprep.subr.mxu0 0.0
    %1746 = vmatpush1.msra.mxu0 0.0
    %1747 = vmatprep.subr.mxu0 0.0
    %1748 = vmatpush1.msra.mxu0 0.0
    %1749 = vmatprep.subr.mxu0 0.0
    %1750 = vmatpush1.msra.mxu0 0.0
    %1751 = vmatprep.subr.mxu0 0.0
    %1752 = vmatpush1.msra.mxu0 0.0
    %1753 = vmatprep.subr.mxu0 0.0
    %1754 = vmatpush1.msra.mxu0 0.0
    %1755 = vmatprep.subr.mxu0 0.0
    %1756 = vmatpush1.msra.mxu0 0.0
    %1757 = vmatprep.subr.mxu0 0.0
    %1758 = vmatpush1.msra.mxu0 0.0
    %1759 = vmatprep.subr.mxu0 0.0
    %1760 = vmatpush1.msra.mxu0 0.0
    %1761 = vmatprep.subr.mxu0 0.0
    %1762 = vmatpush1.msra.mxu0 0.0
    %1763 = vmatprep.subr.mxu0 0.0
    %1764 = vmatpush1.msra.mxu0 0.0
    %1765 = vmatprep.subr.mxu0 0.0
    %1766 = vmatpush1.msra.mxu0 0.0
    %1767 = vmatprep.subr.mxu0 0.0
    %1768 = vmatpush1.msra.mxu0 0.0
    %1769 = vmatprep.subr.mxu0 0.0
    %1770 = vmatpush1.msra.mxu0 0.0
    %1771 = vmatprep.subr.mxu0 0.0
    %1772 = vmatpush1.msra.mxu0 0.0
    %1773 = vmatprep.subr.mxu0 0.0
    %1774 = vmatpush1.msra.mxu0 0.0
    %1775 = vmatprep.subr.mxu0 0.0
    %1776 = vmatpush1.msra.mxu0 0.0
    %1777 = vmatprep.subr.mxu0 0.0
    %1778 = vmatpush1.msra.mxu0 0.0
    %1779 = vmatprep.subr.mxu0 0.0
    %1780 = vmatpush1.msra.mxu0 0.0
    %1781 = vmatprep.subr.mxu0 0.0
    %1782 = vmatpush1.msra.mxu0 0.0
    %1783 = vmatprep.subr.mxu0 0.0
    %1784 = vmatpush1.msra.mxu0 0.0
    %1785 = vmatprep.subr.mxu0 0.0
    %1786 = vmatpush1.msra.mxu0 0.0
    %1787 = vmatprep.subr.mxu0 0.0
    %1788 = vmatpush1.msra.mxu0 0.0
    %1789 = vmatprep.mubr.f32.mxu0 0.0
    %1790 = vmatmul.mubr.f32.gmra.mrb[0].mxu0 %v1720
    %v1791 = vpop.f32.mrb[0].mxu0
    %v1792 = vadd.f32 0.0, %v1791
    %v1793 = vpop.f32.mrb[0].mxu0
    %1794 = vmatprep.mubr.f32.mxu0 0.0
    %1795 = vmatmul.mubr.f32.gmra.mrb[0].mxu0 %v1723
    %v1796 = vpop.f32.mrb[0].mxu0
    %v1797 = vadd.f32 0.0, %v1796
    %v1798 = vpop.f32.mrb[0].mxu0
    %1799 = vdwg.mxu0
    %1800 = vrot.lane.b32.xlu0 %v493, 64
    %v1801 = vpop.permute.xlu0 %1800
    %1802 = vrot.lane.b32.xlu0 %v497, 64
    %v1803 = vpop.permute.xlu0 %1802
    %1804 = vrot.lane.b32.xlu0 %v495, 64
    %v1805 = vpop.permute.xlu0 %1804
    %1806 = vrot.lane.b32.xlu0 %v499, 64
    %v1807 = vpop.permute.xlu0 %1806
    %v1808 = vsel %vm550, %v1801, 0
    %v1810 = vsel %vm550, %v1803, 0
    %v1812 = vsel %vm550, %v1805, 0
    %v1814 = vsel %vm550, %v1807, 0
    %1816 = vmatprep.subr.mxu0 0.0
    %1817 = vmatpush1.xpose.msra.mxu0 %v1812
    %1818 = vmatprep.subr.mxu0 0.0
    %1819 = vmatpush1.xpose.msra.mxu0 %v1814
    %1820 = vmatprep.subr.mxu0 0.0
    %1821 = vmatpush1.xpose.msra.mxu0 0.0
    %1822 = vmatprep.subr.mxu0 0.0
    %1823 = vmatpush1.xpose.msra.mxu0 0.0
    %1824 = vmatprep.subr.mxu0 0.0
    %1825 = vmatpush1.xpose.msra.mxu0 0.0
    %1826 = vmatprep.subr.mxu0 0.0
    %1827 = vmatpush1.xpose.msra.mxu0 0.0
    %1828 = vmatprep.subr.mxu0 0.0
    %1829 = vmatpush1.xpose.msra.mxu0 0.0
    %1830 = vmatprep.subr.mxu0 0.0
    %1831 = vmatpush1.xpose.msra.mxu0 0.0
    %1832 = vmatprep.subr.mxu0 0.0
    %1833 = vmatpush1.xpose.msra.mxu0 0.0
    %1834 = vmatprep.subr.mxu0 0.0
    %1835 = vmatpush1.xpose.msra.mxu0 0.0
    %1836 = vmatprep.subr.mxu0 0.0
    %1837 = vmatpush1.xpose.msra.mxu0 0.0
    %1838 = vmatprep.subr.mxu0 0.0
    %1839 = vmatpush1.xpose.msra.mxu0 0.0
    %1840 = vmatprep.subr.mxu0 0.0
    %1841 = vmatpush1.xpose.msra.mxu0 0.0
    %1842 = vmatprep.subr.mxu0 0.0
    %1843 = vmatpush1.xpose.msra.mxu0 0.0
    %1844 = vmatprep.subr.mxu0 0.0
    %1845 = vmatpush1.xpose.msra.mxu0 0.0
    %1846 = vmatprep.subr.mxu0 0.0
    %1847 = vmatpush1.xpose.msra.mxu0 0.0
    %1848 = vmatprep.subr.mxu0 0.0
    %1849 = vmatpush1.xpose.msra.mxu0 0.0
    %1850 = vmatprep.subr.mxu0 0.0
    %1851 = vmatpush1.xpose.msra.mxu0 0.0
    %1852 = vmatprep.subr.mxu0 0.0
    %1853 = vmatpush1.xpose.msra.mxu0 0.0
    %1854 = vmatprep.subr.mxu0 0.0
    %1855 = vmatpush1.xpose.msra.mxu0 0.0
    %1856 = vmatprep.subr.mxu0 0.0
    %1857 = vmatpush1.xpose.msra.mxu0 0.0
    %1858 = vmatprep.subr.mxu0 0.0
    %1859 = vmatpush1.xpose.msra.mxu0 0.0
    %1860 = vmatprep.subr.mxu0 0.0
    %1861 = vmatpush1.xpose.msra.mxu0 0.0
    %1862 = vmatprep.subr.mxu0 0.0
    %1863 = vmatpush1.xpose.msra.mxu0 0.0
    %1864 = vmatprep.subr.mxu0 0.0
    %1865 = vmatpush1.xpose.msra.mxu0 0.0
    %1866 = vmatprep.subr.mxu0 0.0
    %1867 = vmatpush1.xpose.msra.mxu0 0.0
    %1868 = vmatprep.subr.mxu0 0.0
    %1869 = vmatpush1.xpose.msra.mxu0 0.0
    %1870 = vmatprep.subr.mxu0 0.0
    %1871 = vmatpush1.xpose.msra.mxu0 0.0
    %1872 = vmatprep.subr.mxu0 0.0
    %1873 = vmatpush1.xpose.msra.mxu0 0.0
    %1874 = vmatprep.subr.mxu0 0.0
    %1875 = vmatpush1.xpose.msra.mxu0 0.0
    %1876 = vmatprep.subr.mxu0 0.0
    %1877 = vmatpush1.xpose.msra.mxu0 0.0
    %1878 = vmatprep.subr.mxu0 0.0
    %1879 = vmatpush1.xpose.msra.mxu0 0.0
    %1880 = vmatprep.mubr.f32.mxu0 0.0
    %1881 = vmatmul.mubr.f32.gmra.mrb[0].mxu0 %v1808
    %v1882 = vpop.f32.mrb[0].mxu0
    %v1883 = vadd.f32 0.0, %v1882
    %v1884 = vpop.f32.mrb[0].mxu0
    %1885 = vmatprep.mubr.f32.mxu0 0.0
    %1886 = vmatmul.mubr.f32.gmra.mrb[0].mxu0 %v1810
    %v1887 = vpop.f32.mrb[0].mxu0
    %v1888 = vadd.f32 0.0, %v1887
    %v1889 = vpop.f32.mrb[0].mxu0
    %1890 = vdwg.mxu0
    %v1891 = vmul.f32 %v1883, 0.17677669
    %v1892 = vmul.f32 %v1888, 0.17677669
    %v1893 = vadd.f32 %v1891, %v1488
    %v1894 = vadd.f32 %v1892, %v1488
    %v1895 = vsel %vm646, %v1893, -inf
    %1896 = vmax.xlane.f32.xlu0 %v1895
    %v1897 = vpop.xlane.xlu0 %1896
    %v1898 = vsel %vm646, %v1894, -inf
    %1899 = vmax.xlane.f32.xlu0 %v1898
    %v1900 = vpop.xlane.xlu0 %1899
    %v1901 = vsub.f32 %v1893, %v1897
    %v1902 = vsub.f32 %v1894, %v1900
    %v1903 = vmul.f32 %v1901, 1.442695
    %v1904 = vpow.pop %v1903
    %v1905 = vmul.f32 %v1902, 1.442695
    %v1906 = vpow.pop %v1905
    %v1907 = vsel %vm646, %v1904, 0.0
    %1908 = vadd.xlane.f32.xlu0 %v1907
    %v1909 = vpop.xlane.xlu0 %1908
    %v1910 = vsel %vm646, %v1906, 0.0
    %1911 = vadd.xlane.f32.xlu0 %v1910
    %v1912 = vpop.xlane.xlu0 %1911
    %v1913 = vrcp.pop %v1909
    %v1914 = vrcp.pop %v1912
    %v1915 = vmul.f32 %v1904, %v1913
    %v1916 = vmul.f32 %v1906, %v1914
    %1917 = vrot.lane.b32.xlu0 %v544, 64
    %v1918 = vpop.permute.xlu0 %1917
    %1919 = vrot.lane.b32.xlu0 %v547, 64
    %v1920 = vpop.permute.xlu0 %1919
    %v1924 = vsel %vm646, %v1915, 0
    %v1927 = vsel %vm646, %v1916, 0
    %1929 = vmatprep.subr.mxu0 0.0
    %1930 = vmatpush1.msra.mxu0 %v1918
    %1931 = vmatprep.subr.mxu0 0.0
    %1932 = vmatpush1.msra.mxu0 %v1920
    %1933 = vmatprep.subr.mxu0 0.0
    %1934 = vmatpush1.msra.mxu0 0.0
    %1935 = vmatprep.subr.mxu0 0.0
    %1936 = vmatpush1.msra.mxu0 0.0
    %1937 = vmatprep.subr.mxu0 0.0
    %1938 = vmatpush1.msra.mxu0 0.0
    %1939 = vmatprep.subr.mxu0 0.0
    %1940 = vmatpush1.msra.mxu0 0.0
    %1941 = vmatprep.subr.mxu0 0.0
    %1942 = vmatpush1.msra.mxu0 0.0
    %1943 = vmatprep.subr.mxu0 0.0
    %1944 = vmatpush1.msra.mxu0 0.0
    %1945 = vmatprep.subr.mxu0 0.0
    %1946 = vmatpush1.msra.mxu0 0.0
    %1947 = vmatprep.subr.mxu0 0.0
    %1948 = vmatpush1.msra.mxu0 0.0
    %1949 = vmatprep.subr.mxu0 0.0
    %1950 = vmatpush1.msra.mxu0 0.0
    %1951 = vmatprep.subr.mxu0 0.0
    %1952 = vmatpush1.msra.mxu0 0.0
    %1953 = vmatprep.subr.mxu0 0.0
    %1954 = vmatpush1.msra.mxu0 0.0
    %1955 = vmatprep.subr.mxu0 0.0
    %1956 = vmatpush1.msra.mxu0 0.0
    %1957 = vmatprep.subr.mxu0 0.0
    %1958 = vmatpush1.msra.mxu0 0.0
    %1959 = vmatprep.subr.mxu0 0.0
    %1960 = vmatpush1.msra.mxu0 0.0
    %1961 = vmatprep.subr.mxu0 0.0
    %1962 = vmatpush1.msra.mxu0 0.0
    %1963 = vmatprep.subr.mxu0 0.0
    %1964 = vmatpush1.msra.mxu0 0.0
    %1965 = vmatprep.subr.mxu0 0.0
    %1966 = vmatpush1.msra.mxu0 0.0
    %1967 = vmatprep.subr.mxu0 0.0
    %1968 = vmatpush1.msra.mxu0 0.0
    %1969 = vmatprep.subr.mxu0 0.0
    %1970 = vmatpush1.msra.mxu0 0.0
    %1971 = vmatprep.subr.mxu0 0.0
    %1972 = vmatpush1.msra.mxu0 0.0
    %1973 = vmatprep.subr.mxu0 0.0
    %1974 = vmatpush1.msra.mxu0 0.0
    %1975 = vmatprep.subr.mxu0 0.0
    %1976 = vmatpush1.msra.mxu0 0.0
    %1977 = vmatprep.subr.mxu0 0.0
    %1978 = vmatpush1.msra.mxu0 0.0
    %1979 = vmatprep.subr.mxu0 0.0
    %1980 = vmatpush1.msra.mxu0 0.0
    %1981 = vmatprep.subr.mxu0 0.0
    %1982 = vmatpush1.msra.mxu0 0.0
    %1983 = vmatprep.subr.mxu0 0.0
    %1984 = vmatpush1.msra.mxu0 0.0
    %1985 = vmatprep.subr.mxu0 0.0
    %1986 = vmatpush1.msra.mxu0 0.0
    %1987 = vmatprep.subr.mxu0 0.0
    %1988 = vmatpush1.msra.mxu0 0.0
    %1989 = vmatprep.subr.mxu0 0.0
    %1990 = vmatpush1.msra.mxu0 0.0
    %1991 = vmatprep.subr.mxu0 0.0
    %1992 = vmatpush1.msra.mxu0 0.0
    %1993 = vmatprep.mubr.f32.mxu0 0.0
    %1994 = vmatmul.mubr.f32.gmra.mrb[0].mxu0 %v1924
    %v1995 = vpop.f32.mrb[0].mxu0
    %v1996 = vadd.f32 0.0, %v1995
    %v1997 = vpop.f32.mrb[0].mxu0
    %1998 = vmatprep.mubr.f32.mxu0 0.0
    %1999 = vmatmul.mubr.f32.gmra.mrb[0].mxu0 %v1927
    %v2000 = vpop.f32.mrb[0].mxu0
    %v2001 = vadd.f32 0.0, %v2000
    %v2002 = vpop.f32.mrb[0].mxu0
    %2003 = vdwg.mxu0
    %2004 = vrot.lane.b32.xlu0 %v493, 32
    %v2005 = vpop.permute.xlu0 %2004
    %2006 = vrot.lane.b32.xlu0 %v497, 32
    %v2007 = vpop.permute.xlu0 %2006
    %2008 = vrot.lane.b32.xlu0 %v495, 32
    %v2009 = vpop.permute.xlu0 %2008
    %2010 = vrot.lane.b32.xlu0 %v499, 32
    %v2011 = vpop.permute.xlu0 %2010
    %v2012 = vsel %vm550, %v2005, 0
    %v2014 = vsel %vm550, %v2007, 0
    %v2016 = vsel %vm550, %v2009, 0
    %v2018 = vsel %vm550, %v2011, 0
    %2020 = vmatprep.subr.mxu0 0.0
    %2021 = vmatpush1.xpose.msra.mxu0 %v2016
    %2022 = vmatprep.subr.mxu0 0.0
    %2023 = vmatpush1.xpose.msra.mxu0 %v2018
    %2024 = vmatprep.subr.mxu0 0.0
    %2025 = vmatpush1.xpose.msra.mxu0 0.0
    %2026 = vmatprep.subr.mxu0 0.0
    %2027 = vmatpush1.xpose.msra.mxu0 0.0
    %2028 = vmatprep.subr.mxu0 0.0
    %2029 = vmatpush1.xpose.msra.mxu0 0.0
    %2030 = vmatprep.subr.mxu0 0.0
    %2031 = vmatpush1.xpose.msra.mxu0 0.0
    %2032 = vmatprep.subr.mxu0 0.0
    %2033 = vmatpush1.xpose.msra.mxu0 0.0
    %2034 = vmatprep.subr.mxu0 0.0
    %2035 = vmatpush1.xpose.msra.mxu0 0.0
    %2036 = vmatprep.subr.mxu0 0.0
    %2037 = vmatpush1.xpose.msra.mxu0 0.0
    %2038 = vmatprep.subr.mxu0 0.0
    %2039 = vmatpush1.xpose.msra.mxu0 0.0
    %2040 = vmatprep.subr.mxu0 0.0
    %2041 = vmatpush1.xpose.msra.mxu0 0.0
    %2042 = vmatprep.subr.mxu0 0.0
    %2043 = vmatpush1.xpose.msra.mxu0 0.0
    %2044 = vmatprep.subr.mxu0 0.0
    %2045 = vmatpush1.xpose.msra.mxu0 0.0
    %2046 = vmatprep.subr.mxu0 0.0
    %2047 = vmatpush1.xpose.msra.mxu0 0.0
    %2048 = vmatprep.subr.mxu0 0.0
    %2049 = vmatpush1.xpose.msra.mxu0 0.0
    %2050 = vmatprep.subr.mxu0 0.0
    %2051 = vmatpush1.xpose.msra.mxu0 0.0
    %2052 = vmatprep.subr.mxu0 0.0
    %2053 = vmatpush1.xpose.msra.mxu0 0.0
    %2054 = vmatprep.subr.mxu0 0.0
    %2055 = vmatpush1.xpose.msra.mxu0 0.0
    %2056 = vmatprep.subr.mxu0 0.0
    %2057 = vmatpush1.xpose.msra.mxu0 0.0
    %2058 = vmatprep.subr.mxu0 0.0
    %2059 = vmatpush1.xpose.msra.mxu0 0.0
    %2060 = vmatprep.subr.mxu0 0.0
    %2061 = vmatpush1.xpose.msra.mxu0 0.0
    %2062 = vmatprep.subr.mxu0 0.0
    %2063 = vmatpush1.xpose.msra.mxu0 0.0
    %2064 = vmatprep.subr.mxu0 0.0
    %2065 = vmatpush1.xpose.msra.mxu0 0.0
    %2066 = vmatprep.subr.mxu0 0.0
    %2067 = vmatpush1.xpose.msra.mxu0 0.0
    %2068 = vmatprep.subr.mxu0 0.0
    %2069 = vmatpush1.xpose.msra.mxu0 0.0
    %2070 = vmatprep.subr.mxu0 0.0
    %2071 = vmatpush1.xpose.msra.mxu0 0.0
    %2072 = vmatprep.subr.mxu0 0.0
    %2073 = vmatpush1.xpose.msra.mxu0 0.0
    %2074 = vmatprep.subr.mxu0 0.0
    %2075 = vmatpush1.xpose.msra.mxu0 0.0
    %2076 = vmatprep.subr.mxu0 0.0
    %2077 = vmatpush1.xpose.msra.mxu0 0.0
    %2078 = vmatprep.subr.mxu0 0.0
    %2079 = vmatpush1.xpose.msra.mxu0 0.0
    %2080 = vmatprep.subr.mxu0 0.0
    %2081 = vmatpush1.xpose.msra.mxu0 0.0
    %2082 = vmatprep.subr.mxu0 0.0
    %2083 = vmatpush1.xpose.msra.mxu0 0.0
    %2084 = vmatprep.mubr.f32.mxu0 0.0
    %2085 = vmatmul.mubr.f32.gmra.mrb[0].mxu0 %v2012
    %v2086 = vpop.f32.mrb[0].mxu0
    %v2087 = vadd.f32 0.0, %v2086
    %v2088 = vpop.f32.mrb[0].mxu0
    %2089 = vmatprep.mubr.f32.mxu0 0.0
    %2090 = vmatmul.mubr.f32.gmra.mrb[0].mxu0 %v2014
    %v2091 = vpop.f32.mrb[0].mxu0
    %v2092 = vadd.f32 0.0, %v2091
    %v2093 = vpop.f32.mrb[0].mxu0
    %2094 = vdwg.mxu0
    %v2095 = vmul.f32 %v2087, 0.17677669
    %v2096 = vmul.f32 %v2092, 0.17677669
    %v2097 = vadd.f32 %v2095, %v1488
    %v2098 = vadd.f32 %v2096, %v1488
    %v2099 = vsel %vm646, %v2097, -inf
    %2100 = vmax.xlane.f32.xlu0 %v2099
    %v2101 = vpop.xlane.xlu0 %2100
    %v2102 = vsel %vm646, %v2098, -inf
    %2103 = vmax.xlane.f32.xlu0 %v2102
    %v2104 = vpop.xlane.xlu0 %2103
    %v2105 = vsub.f32 %v2097, %v2101
    %v2106 = vsub.f32 %v2098, %v2104
    %v2107 = vmul.f32 %v2105, 1.442695
    %v2108 = vpow.pop %v2107
    %v2109 = vmul.f32 %v2106, 1.442695
    %v2110 = vpow.pop %v2109
    %v2111 = vsel %vm646, %v2108, 0.0
    %2112 = vadd.xlane.f32.xlu0 %v2111
    %v2113 = vpop.xlane.xlu0 %2112
    %v2114 = vsel %vm646, %v2110, 0.0
    %2115 = vadd.xlane.f32.xlu0 %v2114
    %v2116 = vpop.xlane.xlu0 %2115
    %v2117 = vrcp.pop %v2113
    %v2118 = vrcp.pop %v2116
    %v2119 = vmul.f32 %v2108, %v2117
    %v2120 = vmul.f32 %v2110, %v2118
    %2121 = vrot.lane.b32.xlu0 %v544, 32
    %v2122 = vpop.permute.xlu0 %2121
    %2123 = vrot.lane.b32.xlu0 %v547, 32
    %v2124 = vpop.permute.xlu0 %2123
    %v2128 = vsel %vm646, %v2119, 0
    %v2131 = vsel %vm646, %v2120, 0
    %2133 = vmatprep.subr.mxu0 0.0
    %2134 = vmatpush1.msra.mxu0 %v2122
    %2135 = vmatprep.subr.mxu0 0.0
    %2136 = vmatpush1.msra.mxu0 %v2124
    %2137 = vmatprep.subr.mxu0 0.0
    %2138 = vmatpush1.msra.mxu0 0.0
    %2139 = vmatprep.subr.mxu0 0.0
    %2140 = vmatpush1.msra.mxu0 0.0
    %2141 = vmatprep.subr.mxu0 0.0
    %2142 = vmatpush1.msra.mxu0 0.0
    %2143 = vmatprep.subr.mxu0 0.0
    %2144 = vmatpush1.msra.mxu0 0.0
    %2145 = vmatprep.subr.mxu0 0.0
    %2146 = vmatpush1.msra.mxu0 0.0
    %2147 = vmatprep.subr.mxu0 0.0
    %2148 = vmatpush1.msra.mxu0 0.0
    %2149 = vmatprep.subr.mxu0 0.0
    %2150 = vmatpush1.msra.mxu0 0.0
    %2151 = vmatprep.subr.mxu0 0.0
    %2152 = vmatpush1.msra.mxu0 0.0
    %2153 = vmatprep.subr.mxu0 0.0
    %2154 = vmatpush1.msra.mxu0 0.0
    %2155 = vmatprep.subr.mxu0 0.0
    %2156 = vmatpush1.msra.mxu0 0.0
    %2157 = vmatprep.subr.mxu0 0.0
    %2158 = vmatpush1.msra.mxu0 0.0
    %2159 = vmatprep.subr.mxu0 0.0
    %2160 = vmatpush1.msra.mxu0 0.0
    %2161 = vmatprep.subr.mxu0 0.0
    %2162 = vmatpush1.msra.mxu0 0.0
    %2163 = vmatprep.subr.mxu0 0.0
    %2164 = vmatpush1.msra.mxu0 0.0
    %2165 = vmatprep.subr.mxu0 0.0
    %2166 = vmatpush1.msra.mxu0 0.0
    %2167 = vmatprep.subr.mxu0 0.0
    %2168 = vmatpush1.msra.mxu0 0.0
    %2169 = vmatprep.subr.mxu0 0.0
    %2170 = vmatpush1.msra.mxu0 0.0
    %2171 = vmatprep.subr.mxu0 0.0
    %2172 = vmatpush1.msra.mxu0 0.0
    %2173 = vmatprep.subr.mxu0 0.0
    %2174 = vmatpush1.msra.mxu0 0.0
    %2175 = vmatprep.subr.mxu0 0.0
    %2176 = vmatpush1.msra.mxu0 0.0
    %2177 = vmatprep.subr.mxu0 0.0
    %2178 = vmatpush1.msra.mxu0 0.0
    %2179 = vmatprep.subr.mxu0 0.0
    %2180 = vmatpush1.msra.mxu0 0.0
    %2181 = vmatprep.subr.mxu0 0.0
    %2182 = vmatpush1.msra.mxu0 0.0
    %2183 = vmatprep.subr.mxu0 0.0
    %2184 = vmatpush1.msra.mxu0 0.0
    %2185 = vmatprep.subr.mxu0 0.0
    %2186 = vmatpush1.msra.mxu0 0.0
    %2187 = vmatprep.subr.mxu0 0.0
    %2188 = vmatpush1.msra.mxu0 0.0
    %2189 = vmatprep.subr.mxu0 0.0
    %2190 = vmatpush1.msra.mxu0 0.0
    %2191 = vmatprep.subr.mxu0 0.0
    %2192 = vmatpush1.msra.mxu0 0.0
    %2193 = vmatprep.subr.mxu0 0.0
    %2194 = vmatpush1.msra.mxu0 0.0
    %2195 = vmatprep.subr.mxu0 0.0
    %2196 = vmatpush1.msra.mxu0 0.0
    %2197 = vmatprep.mubr.f32.mxu0 0.0
    %2198 = vmatmul.mubr.f32.gmra.mrb[0].mxu0 %v2128
    %v2199 = vpop.f32.mrb[0].mxu0
    %v2200 = vadd.f32 0.0, %v2199
    %v2201 = vpop.f32.mrb[0].mxu0
    %2202 = vmatprep.mubr.f32.mxu0 0.0
    %2203 = vmatmul.mubr.f32.gmra.mrb[0].mxu0 %v2131
    %v2204 = vpop.f32.mrb[0].mxu0
    %v2205 = vadd.f32 0.0, %v2204
    %v2206 = vpop.f32.mrb[0].mxu0
    %2207 = vdwg.mxu0
    %2210 = vrot.lane.b32.xlu0 %v1792, 32
    %v2211 = vpop.permute.xlu0 %2210
    %2212 = vrot.lane.b32.xlu0 %v1797, 32
    %v2213 = vpop.permute.xlu0 %2212
    %2218 = vrot.lane.b32.xlu0 %v1996, 64
    %v2219 = vpop.permute.xlu0 %2218
    %2220 = vrot.lane.b32.xlu0 %v2001, 64
    %v2221 = vpop.permute.xlu0 %2220
    %2226 = vrot.lane.b32.xlu0 %v2200, 96
    %v2227 = vpop.permute.xlu0 %2226
    %2228 = vrot.lane.b32.xlu0 %v2205, 96
    %v2229 = vpop.permute.xlu0 %2228
    %v2232 = vsel %vm550, %v1586, %v2211
    %v2233 = vsel %vm550, %v1591, %v2213
    %v2234 = vsel %vm1390, %v2232, %v2219
    %v2235 = vsel %vm1390, %v2233, %v2221
    %v2236 = vsel %vm1393, %v2234, %v2227
    %v2237 = vsel %vm1393, %v2235, %v2229
    %v2238 = vld [vmem:[#allocation11] sm:$0xf]
    %v2239 = vld [vmem:[#allocation11 + $0x4] sm:$0xf]
    %v2240 = vld [vmem:[#allocation11 + $0x8] sm:$0xf]
    %v2241 = vld [vmem:[#allocation11 + $0xc] sm:$0xf]
    %v2242 = vld [vmem:[#allocation11 + $0x10] sm:$0xf]
    %v2243 = vld [vmem:[#allocation11 + $0x14] sm:$0xf]
    %v2244 = vld [vmem:[#allocation11 + $0x18] sm:$0xf]
    %v2245 = vld [vmem:[#allocation11 + $0x1c] sm:$0xf]
    %v2246 = vld [vmem:[#allocation11 + $0x20] sm:$0xf]
    %v2247 = vld [vmem:[#allocation11 + $0x24] sm:$0xf]
    %v2248 = vld [vmem:[#allocation11 + $0x28] sm:$0xf]
    %v2249 = vld [vmem:[#allocation11 + $0x2c] sm:$0xf]
    %v2250 = vld [vmem:[#allocation11 + $0x30] sm:$0xf]
    %v2251 = vld [vmem:[#allocation11 + $0x34] sm:$0xf]
    %v2252 = vld [vmem:[#allocation11 + $0x38] sm:$0xf]
    %v2253 = vld [vmem:[#allocation11 + $0x3c] sm:$0xf]
    %v2254 = vpack.c.bf16 %v1395, %v1394
    %v2255 = vpack.c.bf16 %v2237, %v2236
    %v2256 = vld [vmem:[%s7] sm:$0x1]
    %v2258 = vlaneseq
    %v2259 = vshrl.u32 %v2258, 7
    %v2260 = vsub.s32 0, %v2259
    %v2261 = vrot.slane %v2256, %v2260
    %v2279 = vunpack.c.l.b16 %v2238
    %v2280 = vunpack.c.l.b16 %v2239
    %v2281 = vunpack.c.l.b16 %v2240
    %v2282 = vunpack.c.l.b16 %v2241
    %v2283 = vunpack.c.l.b16 %v2242
    %v2284 = vunpack.c.l.b16 %v2243
    %v2285 = vunpack.c.l.b16 %v2244
    %v2286 = vunpack.c.l.b16 %v2245
    %v2287 = vunpack.c.l.b16 %v2246
    %v2288 = vunpack.c.l.b16 %v2247
    %v2289 = vunpack.c.l.b16 %v2248
    %v2290 = vunpack.c.l.b16 %v2249
    %v2291 = vunpack.c.l.b16 %v2250
    %v2292 = vunpack.c.l.b16 %v2251
    %v2293 = vunpack.c.l.b16 %v2252
    %v2294 = vunpack.c.l.b16 %v2253
    %v2295 = vpack.c.b16 %v2280, %v2279
    %v2296 = vpack.c.b16 %v2282, %v2281
    %v2297 = vpack.c.b16 %v2284, %v2283
    %v2298 = vpack.c.b16 %v2286, %v2285
    %v2299 = vpack.c.b16 %v2288, %v2287
    %v2300 = vpack.c.b16 %v2290, %v2289
    %v2301 = vpack.c.b16 %v2292, %v2291
    %v2302 = vpack.c.b16 %v2294, %v2293
    %2311 = vmatprep.subr.bf16.mxu0 0
    %2312 = vmatpush1.bf16.msra.mxu0 %v2295
    %2313 = vmatprep.subr.bf16.mxu0 0
    %2314 = vmatpush1.bf16.msra.mxu0 %v2296
    %2315 = vmatprep.subr.bf16.mxu0 0
    %2316 = vmatpush1.bf16.msra.mxu0 %v2297
    %2317 = vmatprep.subr.bf16.mxu0 0
    %2318 = vmatpush1.bf16.msra.mxu0 %v2298
    %2319 = vmatprep.subr.bf16.mxu0 0
    %2320 = vmatpush1.bf16.msra.mxu0 %v2299
    %2321 = vmatprep.subr.bf16.mxu0 0
    %2322 = vmatpush1.bf16.msra.mxu0 %v2300
    %2323 = vmatprep.subr.bf16.mxu0 0
    %2324 = vmatpush1.bf16.msra.mxu0 %v2301
    %2325 = vmatprep.subr.bf16.mxu0 0
    %2326 = vmatpush1.bf16.msra.mxu0 %v2302
    %2327 = vmatprep.subr.bf16.mxu0 0
    %2328 = vmatpush1.bf16.msra.mxu0 0
    %2329 = vmatprep.subr.bf16.mxu0 0
    %2330 = vmatpush1.bf16.msra.mxu0 0
    %2331 = vmatprep.subr.bf16.mxu0 0
    %2332 = vmatpush1.bf16.msra.mxu0 0
    %2333 = vmatprep.subr.bf16.mxu0 0
    %2334 = vmatpush1.bf16.msra.mxu0 0
    %2335 = vmatprep.subr.bf16.mxu0 0
    %2336 = vmatpush1.bf16.msra.mxu0 0
    %2337 = vmatprep.subr.bf16.mxu0 0
    %2338 = vmatpush1.bf16.msra.mxu0 0
    %2339 = vmatprep.subr.bf16.mxu0 0
    %2340 = vmatpush1.bf16.msra.mxu0 0
    %2341 = vmatprep.subr.bf16.mxu0 0
    %2342 = vmatpush1.bf16.msra.mxu0 0
    %2343 = vmatprep.mubr.bf16.mxu0 0
    %2344 = vmatmul.mubr.bf16.gmra.mrb[0].mxu0 %v2254
    %v2345 = vpop.f32.mrb[0].mxu0
    %v2346 = vadd.f32 %v2261, %v2345
    %v2347 = vpop.f32.mrb[0].mxu0
    %v2348 = vpop.f32.mrb[0].mxu0
    %v2349 = vadd.f32 %v2261, %v2348
    %v2350 = vpop.f32.mrb[0].mxu0
    %2351 = vmatprep.mubr.bf16.mxu0 0
    %2352 = vmatmul.mubr.bf16.gmra.mrb[0].mxu0 %v2255
    %v2353 = vpop.f32.mrb[0].mxu0
    %v2354 = vadd.f32 %v2261, %v2353
    %v2355 = vpop.f32.mrb[0].mxu0
    %v2356 = vpop.f32.mrb[0].mxu0
    %v2357 = vadd.f32 %v2261, %v2356
    %v2358 = vpop.f32.mrb[0].mxu0
    %2359 = vdwg.mxu0
    %v2360 = vadd.f32 %v2346, %v265
    %v2361 = vadd.f32 %v2349, %v266
    %v2362 = vadd.f32 %v2354, %v267
    %v2363 = vadd.f32 %v2357, %v268
    %v2364 = vld [vmem:[%s8] sm:$0x1]
    %v2365 = vld [vmem:[%s9] sm:$0x1]
    %2366 = vadd.xlane.f32.xlu0 %v2360
    %v2367 = vpop.xlane.xlu0 %2366
    %2368 = vadd.xlane.f32.xlu0 %v2361
    %v2369 = vpop.xlane.xlu0 %2368
    %2370 = vadd.xlane.f32.xlu0 %v2362
    %v2371 = vpop.xlane.xlu0 %2370
    %2372 = vadd.xlane.f32.xlu0 %v2363
    %v2373 = vpop.xlane.xlu0 %2372
    %v2374 = vmul.f32 %v2367, %v212
    %v2375 = vmul.f32 %v2369, %v212
    %v2376 = vmul.f32 %v2371, %v212
    %v2377 = vmul.f32 %v2373, %v212
    %v2378 = vsub.f32 %v2360, %v2374
    %v2379 = vsub.f32 %v2361, %v2375
    %v2380 = vsub.f32 %v2362, %v2376
    %v2381 = vsub.f32 %v2363, %v2377
    %v2382 = vmul.f32 %v2378, %v2378
    %v2383 = vmul.f32 %v2379, %v2379
    %v2384 = vmul.f32 %v2380, %v2380
    %v2385 = vmul.f32 %v2381, %v2381
    %2386 = vadd.xlane.f32.xlu0 %v2382
    %v2387 = vpop.xlane.xlu0 %2386
    %2388 = vadd.xlane.f32.xlu0 %v2383
    %v2389 = vpop.xlane.xlu0 %2388
    %2390 = vadd.xlane.f32.xlu0 %v2384
    %v2391 = vpop.xlane.xlu0 %2390
    %2392 = vadd.xlane.f32.xlu0 %v2385
    %v2393 = vpop.xlane.xlu0 %2392
    %v2394 = vmul.f32 %v2387, %v212
    %v2395 = vmul.f32 %v2389, %v212
    %v2396 = vmul.f32 %v2391, %v212
    %v2397 = vmul.f32 %v2393, %v212
    %v2398 = vadd.f32 %v2394, 1e-07
    %v2399 = vadd.f32 %v2395, 1e-07
    %v2400 = vadd.f32 %v2396, 1e-07
    %v2401 = vadd.f32 %v2397, 1e-07
    %v2402 = vrsqrt.pop %v2398
    %v2403 = vrsqrt.pop %v2399
    %v2404 = vrsqrt.pop %v2400
    %v2405 = vrsqrt.pop %v2401
    %v2406 = vmul.f32 %v2378, %v2402
    %v2407 = vmul.f32 %v2379, %v2403
    %v2408 = vmul.f32 %v2380, %v2404
    %v2409 = vmul.f32 %v2381, %v2405
    %v2411 = vlaneseq
    %v2412 = vshrl.u32 %v2411, 7
    %v2413 = vsub.s32 0, %v2412
    %v2414 = vrot.slane %v2364, %v2413
    %v2416 = vmul.f32 %v2406, %v2414
    %v2417 = vmul.f32 %v2407, %v2414
    %v2418 = vmul.f32 %v2408, %v2414
    %v2419 = vmul.f32 %v2409, %v2414
    %v2421 = vlaneseq
    %v2422 = vshrl.u32 %v2421, 7
    %v2423 = vsub.s32 0, %v2422
    %v2424 = vrot.slane %v2365, %v2423
    %v2426 = vadd.f32 %v2416, %v2424
    %v2427 = vadd.f32 %v2417, %v2424
    %v2428 = vadd.f32 %v2418, %v2424
    %v2429 = vadd.f32 %v2419, %v2424
    %v2430 = vld [vmem:[#allocation13] sm:$0xff]
    %v2431 = vld [vmem:[#allocation13 + $0x8] sm:$0xff]
    %v2432 = vld [vmem:[#allocation13 + $0x10] sm:$0xff]
    %v2433 = vld [vmem:[#allocation13 + $0x18] sm:$0xff]
    %v2434 = vld [vmem:[#allocation13 + $0x20] sm:$0xff]
    %v2435 = vld [vmem:[#allocation13 + $0x28] sm:$0xff]
    %v2436 = vld [vmem:[#allocation13 + $0x30] sm:$0xff]
    %v2437 = vld [vmem:[#allocation13 + $0x38] sm:$0xff]
    %v2438 = vld [vmem:[#allocation13 + $0x40] sm:$0xff]
    %v2439 = vld [vmem:[#allocation13 + $0x48] sm:$0xff]
    %v2440 = vld [vmem:[#allocation13 + $0x50] sm:$0xff]
    %v2441 = vld [vmem:[#allocation13 + $0x58] sm:$0xff]
    %v2442 = vld [vmem:[#allocation13 + $0x60] sm:$0xff]
    %v2443 = vld [vmem:[#allocation13 + $0x68] sm:$0xff]
    %v2444 = vld [vmem:[#allocation13 + $0x70] sm:$0xff]
    %v2445 = vld [vmem:[#allocation13 + $0x78] sm:$0xff]
    %v2446 = vpack.c.bf16 %v2427, %v2426
    %v2447 = vpack.c.bf16 %v2429, %v2428
    %v2448 = vld [vmem:[%s11] sm:$0x3]
    %v2450 = vlaneseq
    %v2451 = vshrl.u32 %v2450, 7
    %v2452 = vsub.s32 0, %v2451
    %v2453 = vrot.slane %v2448, %v2452
    %v2454 = vlaneseq
    %v2455 = vshrl.u32 %v2454, 7
    %v2456 = vsub.s32 1, %v2455
    %v2457 = vrot.slane %v2448, %v2456
    %v2476 = vunpack.c.l.b16 %v2430
    %v2477 = vunpack.c.h.b16 %v2430
    %v2478 = vunpack.c.l.b16 %v2431
    %v2479 = vunpack.c.h.b16 %v2431
    %v2480 = vunpack.c.l.b16 %v2432
    %v2481 = vunpack.c.h.b16 %v2432
    %v2482 = vunpack.c.l.b16 %v2433
    %v2483 = vunpack.c.h.b16 %v2433
    %v2484 = vunpack.c.l.b16 %v2434
    %v2485 = vunpack.c.h.b16 %v2434
    %v2486 = vunpack.c.l.b16 %v2435
    %v2487 = vunpack.c.h.b16 %v2435
    %v2488 = vunpack.c.l.b16 %v2436
    %v2489 = vunpack.c.h.b16 %v2436
    %v2490 = vunpack.c.l.b16 %v2437
    %v2491 = vunpack.c.h.b16 %v2437
    %v2492 = vunpack.c.l.b16 %v2438
    %v2493 = vunpack.c.h.b16 %v2438
    %v2494 = vunpack.c.l.b16 %v2439
    %v2495 = vunpack.c.h.b16 %v2439
    %v2496 = vunpack.c.l.b16 %v2440
    %v2497 = vunpack.c.h.b16 %v2440
    %v2498 = vunpack.c.l.b16 %v2441
    %v2499 = vunpack.c.h.b16 %v2441
    %v2500 = vunpack.c.l.b16 %v2442
    %v2501 = vunpack.c.h.b16 %v2442
    %v2502 = vunpack.c.l.b16 %v2443
    %v2503 = vunpack.c.h.b16 %v2443
    %v2504 = vunpack.c.l.b16 %v2444
    %v2505 = vunpack.c.h.b16 %v2444
    %v2506 = vunpack.c.l.b16 %v2445
    %v2507 = vunpack.c.h.b16 %v2445
    %v2508 = vpack.c.b16 %v2478, %v2476
    %v2509 = vpack.c.b16 %v2479, %v2477
    %v2510 = vpack.c.b16 %v2482, %v2480
    %v2511 = vpack.c.b16 %v2483, %v2481
    %v2512 = vpack.c.b16 %v2486, %v2484
    %v2513 = vpack.c.b16 %v2487, %v2485
    %v2514 = vpack.c.b16 %v2490, %v2488
    %v2515 = vpack.c.b16 %v2491, %v2489
    %v2516 = vpack.c.b16 %v2494, %v2492
    %v2517 = vpack.c.b16 %v2495, %v2493
    %v2518 = vpack.c.b16 %v2498, %v2496
    %v2519 = vpack.c.b16 %v2499, %v2497
    %v2520 = vpack.c.b16 %v2502, %v2500
    %v2521 = vpack.c.b16 %v2503, %v2501
    %v2522 = vpack.c.b16 %v2506, %v2504
    %v2523 = vpack.c.b16 %v2507, %v2505
    %2540 = vmatprep.subr.bf16.mxu0 %v2509
    %2541 = vmatpush1.bf16.msra.mxu0 %v2508
    %2542 = vmatprep.subr.bf16.mxu0 %v2511
    %2543 = vmatpush1.bf16.msra.mxu0 %v2510
    %2544 = vmatprep.subr.bf16.mxu0 %v2513
    %2545 = vmatpush1.bf16.msra.mxu0 %v2512
    %2546 = vmatprep.subr.bf16.mxu0 %v2515
    %2547 = vmatpush1.bf16.msra.mxu0 %v2514
    %2548 = vmatprep.subr.bf16.mxu0 %v2517
    %2549 = vmatpush1.bf16.msra.mxu0 %v2516
    %2550 = vmatprep.subr.bf16.mxu0 %v2519
    %2551 = vmatpush1.bf16.msra.mxu0 %v2518
    %2552 = vmatprep.subr.bf16.mxu0 %v2521
    %2553 = vmatpush1.bf16.msra.mxu0 %v2520
    %2554 = vmatprep.subr.bf16.mxu0 %v2523
    %2555 = vmatpush1.bf16.msra.mxu0 %v2522
    %2556 = vmatprep.subr.bf16.mxu0 0
    %2557 = vmatpush1.bf16.msra.mxu0 0
    %2558 = vmatprep.subr.bf16.mxu0 0
    %2559 = vmatpush1.bf16.msra.mxu0 0
    %2560 = vmatprep.subr.bf16.mxu0 0
    %2561 = vmatpush1.bf16.msra.mxu0 0
    %2562 = vmatprep.subr.bf16.mxu0 0
    %2563 = vmatpush1.bf16.msra.mxu0 0
    %2564 = vmatprep.subr.bf16.mxu0 0
    %2565 = vmatpush1.bf16.msra.mxu0 0
    %2566 = vmatprep.subr.bf16.mxu0 0
    %2567 = vmatpush1.bf16.msra.mxu0 0
    %2568 = vmatprep.subr.bf16.mxu0 0
    %2569 = vmatpush1.bf16.msra.mxu0 0
    %2570 = vmatprep.subr.bf16.mxu0 0
    %2571 = vmatpush1.bf16.msra.mxu0 0
    %2572 = vmatprep.mubr.bf16.mxu0 0
    %2573 = vmatmul.mubr.bf16.gmra.mrb[0].mxu0 %v2446
    %v2574 = vpop.f32.mrb[0].mxu0
    %v2575 = vadd.f32 %v2453, %v2574
    %v2576 = vpop.f32.mrb[0].mxu0
    %v2577 = vadd.f32 %v2457, %v2576
    %v2578 = vpop.f32.mrb[0].mxu0
    %v2579 = vadd.f32 %v2453, %v2578
    %v2580 = vpop.f32.mrb[0].mxu0
    %v2581 = vadd.f32 %v2457, %v2580
    %2582 = vmatprep.mubr.bf16.mxu0 0
    %2583 = vmatmul.mubr.bf16.gmra.mrb[0].mxu0 %v2447
    %v2584 = vpop.f32.mrb[0].mxu0
    %v2585 = vadd.f32 %v2453, %v2584
    %v2586 = vpop.f32.mrb[0].mxu0
    %v2587 = vadd.f32 %v2457, %v2586
    %v2588 = vpop.f32.mrb[0].mxu0
    %v2589 = vadd.f32 %v2453, %v2588
    %v2590 = vpop.f32.mrb[0].mxu0
    %v2591 = vadd.f32 %v2457, %v2590
    %2592 = vdwg.mxu0
    %v2593 = vmul.f32 %v2575, %v2575
    %v2594 = vmul.f32 %v2577, %v2577
    %v2595 = vmul.f32 %v2579, %v2579
    %v2596 = vmul.f32 %v2581, %v2581
    %v2597 = vmul.f32 %v2585, %v2585
    %v2598 = vmul.f32 %v2587, %v2587
    %v2599 = vmul.f32 %v2589, %v2589
    %v2600 = vmul.f32 %v2591, %v2591
    %v2601 = vmul.f32 %v2575, %v2593
    %v2602 = vmul.f32 %v2577, %v2594
    %v2603 = vmul.f32 %v2579, %v2595
    %v2604 = vmul.f32 %v2581, %v2596
    %v2605 = vmul.f32 %v2585, %v2597
    %v2606 = vmul.f32 %v2587, %v2598
    %v2607 = vmul.f32 %v2589, %v2599
    %v2608 = vmul.f32 %v2591, %v2600
    %v2609 = vmul.f32 %v2601, 0.044715
    %v2610 = vmul.f32 %v2602, 0.044715
    %v2611 = vmul.f32 %v2603, 0.044715
    %v2612 = vmul.f32 %v2604, 0.044715
    %v2613 = vmul.f32 %v2605, 0.044715
    %v2614 = vmul.f32 %v2606, 0.044715
    %v2615 = vmul.f32 %v2607, 0.044715
    %v2616 = vmul.f32 %v2608, 0.044715
    %v2617 = vadd.f32 %v2575, %v2609
    %v2618 = vadd.f32 %v2577, %v2610
    %v2619 = vadd.f32 %v2579, %v2611
    %v2620 = vadd.f32 %v2581, %v2612
    %v2621 = vadd.f32 %v2585, %v2613
    %v2622 = vadd.f32 %v2587, %v2614
    %v2623 = vadd.f32 %v2589, %v2615
    %v2624 = vadd.f32 %v2591, %v2616
    %v2625 = vmul.f32 %v2617, 0.7978846
    %v2626 = vmul.f32 %v2618, 0.7978846
    %v2627 = vmul.f32 %v2619, 0.7978846
    %v2628 = vmul.f32 %v2620, 0.7978846
    %v2629 = vmul.f32 %v2621, 0.7978846
    %v2630 = vmul.f32 %v2622, 0.7978846
    %v2631 = vmul.f32 %v2623, 0.7978846
    %v2632 = vmul.f32 %v2624, 0.7978846
    %v2633 = vtanh.pop %v2625
    %v2634 = vtanh.pop %v2626
    %v2635 = vtanh.pop %v2627
    %v2636 = vtanh.pop %v2628
    %v2637 = vtanh.pop %v2629
    %v2638 = vtanh.pop %v2630
    %v2639 = vtanh.pop %v2631
    %v2640 = vtanh.pop %v2632
    %v2641 = vadd.f32 %v2633, 1.0
    %v2642 = vadd.f32 %v2634, 1.0
    %v2643 = vadd.f32 %v2635, 1.0
    %v2644 = vadd.f32 %v2636, 1.0
    %v2645 = vadd.f32 %v2637, 1.0
    %v2646 = vadd.f32 %v2638, 1.0
    %v2647 = vadd.f32 %v2639, 1.0
    %v2648 = vadd.f32 %v2640, 1.0
    %v2649 = vmul.f32 %v2641, 0.5
    %v2650 = vmul.f32 %v2642, 0.5
    %v2651 = vmul.f32 %v2643, 0.5
    %v2652 = vmul.f32 %v2644, 0.5
    %v2653 = vmul.f32 %v2645, 0.5
    %v2654 = vmul.f32 %v2646, 0.5
    %v2655 = vmul.f32 %v2647, 0.5
    %v2656 = vmul.f32 %v2648, 0.5
    %v2657 = vmul.f32 %v2575, %v2649
    %v2658 = vmul.f32 %v2577, %v2650
    %v2659 = vmul.f32 %v2579, %v2651
    %v2660 = vmul.f32 %v2581, %v2652
    %v2661 = vmul.f32 %v2585, %v2653
    %v2662 = vmul.f32 %v2587, %v2654
    %v2663 = vmul.f32 %v2589, %v2655
    %v2664 = vmul.f32 %v2591, %v2656
    %v2665 = vld [vmem:[#allocation14] sm:$0xf]
    %v2666 = vld [vmem:[#allocation14 + $0x4] sm:$0xf]
    %v2667 = vld [vmem:[#allocation14 + $0x8] sm:$0xf]
    %v2668 = vld [vmem:[#allocation14 + $0xc] sm:$0xf]
    %v2669 = vld [vmem:[#allocation14 + $0x10] sm:$0xf]
    %v2670 = vld [vmem:[#allocation14 + $0x14] sm:$0xf]
    %v2671 = vld [vmem:[#allocation14 + $0x18] sm:$0xf]
    %v2672 = vld [vmem:[#allocation14 + $0x1c] sm:$0xf]
    %v2673 = vld [vmem:[#allocation14 + $0x20] sm:$0xf]
    %v2674 = vld [vmem:[#allocation14 + $0x24] sm:$0xf]
    %v2675 = vld [vmem:[#allocation14 + $0x28] sm:$0xf]
    %v2676 = vld [vmem:[#allocation14 + $0x2c] sm:$0xf]
    %v2677 = vld [vmem:[#allocation14 + $0x30] sm:$0xf]
    %v2678 = vld [vmem:[#allocation14 + $0x34] sm:$0xf]
    %v2679 = vld [vmem:[#allocation14 + $0x38] sm:$0xf]
    %v2680 = vld [vmem:[#allocation14 + $0x3c] sm:$0xf]
    %v2681 = vld [vmem:[#allocation14 + $0x40] sm:$0xf]
    %v2682 = vld [vmem:[#allocation14 + $0x44] sm:$0xf]
    %v2683 = vld [vmem:[#allocation14 + $0x48] sm:$0xf]
    %v2684 = vld [vmem:[#allocation14 + $0x4c] sm:$0xf]
    %v2685 = vld [vmem:[#allocation14 + $0x50] sm:$0xf]
    %v2686 = vld [vmem:[#allocation14 + $0x54] sm:$0xf]
    %v2687 = vld [vmem:[#allocation14 + $0x58] sm:$0xf]
    %v2688 = vld [vmem:[#allocation14 + $0x5c] sm:$0xf]
    %v2689 = vld [vmem:[#allocation14 + $0x60] sm:$0xf]
    %v2690 = vld [vmem:[#allocation14 + $0x64] sm:$0xf]
    %v2691 = vld [vmem:[#allocation14 + $0x68] sm:$0xf]
    %v2692 = vld [vmem:[#allocation14 + $0x6c] sm:$0xf]
    %v2693 = vld [vmem:[#allocation14 + $0x70] sm:$0xf]
    %v2694 = vld [vmem:[#allocation14 + $0x74] sm:$0xf]
    %v2695 = vld [vmem:[#allocation14 + $0x78] sm:$0xf]
    %v2696 = vld [vmem:[#allocation14 + $0x7c] sm:$0xf]
    %v2697 = vpack.c.bf16 %v2659, %v2657
    %v2698 = vpack.c.bf16 %v2660, %v2658
    %v2699 = vpack.c.bf16 %v2663, %v2661
    %v2700 = vpack.c.bf16 %v2664, %v2662
    %v2701 = vld [vmem:[%s13] sm:$0x1]
    %v2703 = vlaneseq
    %v2704 = vshrl.u32 %v2703, 7
    %v2705 = vsub.s32 0, %v2704
    %v2706 = vrot.slane %v2701, %v2705
    %v2740 = vunpack.c.l.b16 %v2665
    %v2741 = vunpack.c.l.b16 %v2666
    %v2742 = vunpack.c.l.b16 %v2667
    %v2743 = vunpack.c.l.b16 %v2668
    %v2744 = vunpack.c.l.b16 %v2669
    %v2745 = vunpack.c.l.b16 %v2670
    %v2746 = vunpack.c.l.b16 %v2671
    %v2747 = vunpack.c.l.b16 %v2672
    %v2748 = vunpack.c.l.b16 %v2673
    %v2749 = vunpack.c.l.b16 %v2674
    %v2750 = vunpack.c.l.b16 %v2675
    %v2751 = vunpack.c.l.b16 %v2676
    %v2752 = vunpack.c.l.b16 %v2677
    %v2753 = vunpack.c.l.b16 %v2678
    %v2754 = vunpack.c.l.b16 %v2679
    %v2755 = vunpack.c.l.b16 %v2680
    %v2756 = vunpack.c.l.b16 %v2681
    %v2757 = vunpack.c.l.b16 %v2682
    %v2758 = vunpack.c.l.b16 %v2683
    %v2759 = vunpack.c.l.b16 %v2684
    %v2760 = vunpack.c.l.b16 %v2685
    %v2761 = vunpack.c.l.b16 %v2686
    %v2762 = vunpack.c.l.b16 %v2687
    %v2763 = vunpack.c.l.b16 %v2688
    %v2764 = vunpack.c.l.b16 %v2689
    %v2765 = vunpack.c.l.b16 %v2690
    %v2766 = vunpack.c.l.b16 %v2691
    %v2767 = vunpack.c.l.b16 %v2692
    %v2768 = vunpack.c.l.b16 %v2693
    %v2769 = vunpack.c.l.b16 %v2694
    %v2770 = vunpack.c.l.b16 %v2695
    %v2771 = vunpack.c.l.b16 %v2696
    %v2772 = vpack.c.b16 %v2741, %v2740
    %v2773 = vpack.c.b16 %v2743, %v2742
    %v2774 = vpack.c.b16 %v2745, %v2744
    %v2775 = vpack.c.b16 %v2747, %v2746
    %v2776 = vpack.c.b16 %v2749, %v2748
    %v2777 = vpack.c.b16 %v2751, %v2750
    %v2778 = vpack.c.b16 %v2753, %v2752
    %v2779 = vpack.c.b16 %v2755, %v2754
    %v2780 = vpack.c.b16 %v2757, %v2756
    %v2781 = vpack.c.b16 %v2759, %v2758
    %v2782 = vpack.c.b16 %v2761, %v2760
    %v2783 = vpack.c.b16 %v2763, %v2762
    %v2784 = vpack.c.b16 %v2765, %v2764
    %v2785 = vpack.c.b16 %v2767, %v2766
    %v2786 = vpack.c.b16 %v2769, %v2768
    %v2787 = vpack.c.b16 %v2771, %v2770
    %2804 = vmatprep.subr.bf16.mxu0 0
    %2805 = vmatpush1.bf16.msra.mxu0 %v2772
    %2806 = vmatprep.subr.bf16.mxu0 0
    %2807 = vmatpush1.bf16.msra.mxu0 %v2773
    %2808 = vmatprep.subr.bf16.mxu0 0
    %2809 = vmatpush1.bf16.msra.mxu0 %v2774
    %2810 = vmatprep.subr.bf16.mxu0 0
    %2811 = vmatpush1.bf16.msra.mxu0 %v2775
    %2812 = vmatprep.subr.bf16.mxu0 0
    %2813 = vmatpush1.bf16.msra.mxu0 %v2776
    %2814 = vmatprep.subr.bf16.mxu0 0
    %2815 = vmatpush1.bf16.msra.mxu0 %v2777
    %2816 = vmatprep.subr.bf16.mxu0 0
    %2817 = vmatpush1.bf16.msra.mxu0 %v2778
    %2818 = vmatprep.subr.bf16.mxu0 0
    %2819 = vmatpush1.bf16.msra.mxu0 %v2779
    %2820 = vmatprep.subr.bf16.mxu0 0
    %2821 = vmatpush1.bf16.msra.mxu0 %v2780
    %2822 = vmatprep.subr.bf16.mxu0 0
    %2823 = vmatpush1.bf16.msra.mxu0 %v2781
    %2824 = vmatprep.subr.bf16.mxu0 0
    %2825 = vmatpush1.bf16.msra.mxu0 %v2782
    %2826 = vmatprep.subr.bf16.mxu0 0
    %2827 = vmatpush1.bf16.msra.mxu0 %v2783
    %2828 = vmatprep.subr.bf16.mxu0 0
    %2829 = vmatpush1.bf16.msra.mxu0 %v2784
    %2830 = vmatprep.subr.bf16.mxu0 0
    %2831 = vmatpush1.bf16.msra.mxu0 %v2785
    %2832 = vmatprep.subr.bf16.mxu0 0
    %2833 = vmatpush1.bf16.msra.mxu0 %v2786
    %2834 = vmatprep.subr.bf16.mxu0 0
    %2835 = vmatpush1.bf16.msra.mxu0 %v2787
    %2836 = vmatprep.mubr.bf16.mxu0 %v2698
    %2837 = vmatmul.mubr.bf16.gmra.mrb[0].mxu0 %v2697
    %v2838 = vpop.f32.mrb[0].mxu0
    %v2839 = vadd.f32 %v2706, %v2838
    %v2840 = vpop.f32.mrb[0].mxu0
    %v2841 = vpop.f32.mrb[0].mxu0
    %v2842 = vadd.f32 %v2706, %v2841
    %v2843 = vpop.f32.mrb[0].mxu0
    %2844 = vmatprep.mubr.bf16.mxu0 %v2700
    %2845 = vmatmul.mubr.bf16.gmra.mrb[0].mxu0 %v2699
    %v2846 = vpop.f32.mrb[0].mxu0
    %v2847 = vadd.f32 %v2706, %v2846
    %v2848 = vpop.f32.mrb[0].mxu0
    %v2849 = vpop.f32.mrb[0].mxu0
    %v2850 = vadd.f32 %v2706, %v2849
    %v2851 = vpop.f32.mrb[0].mxu0
    %2852 = vdwg.mxu0
    %v2853 = vadd.f32 %v2839, %v2426
    %v2854 = vadd.f32 %v2842, %v2427
    %v2855 = vadd.f32 %v2847, %v2428
    %v2856 = vadd.f32 %v2850, %v2429
    %v2857 = vld [vmem:[%s14] sm:$0x1]
    %v2858 = vld [vmem:[%s15] sm:$0x1]
    %2859 = vadd.xlane.f32.xlu0 %v2853
    %v2860 = vpop.xlane.xlu0 %2859
    %2861 = vadd.xlane.f32.xlu0 %v2854
    %v2862 = vpop.xlane.xlu0 %2861
    %2863 = vadd.xlane.f32.xlu0 %v2855
    %v2864 = vpop.xlane.xlu0 %2863
    %2865 = vadd.xlane.f32.xlu0 %v2856
    %v2866 = vpop.xlane.xlu0 %2865
    %v2867 = vmul.f32 %v2860, %v212
    %v2868 = vmul.f32 %v2862, %v212
    %v2869 = vmul.f32 %v2864, %v212
    %v2870 = vmul.f32 %v2866, %v212
    %v2871 = vsub.f32 %v2853, %v2867
    %v2872 = vsub.f32 %v2854, %v2868
    %v2873 = vsub.f32 %v2855, %v2869
    %v2874 = vsub.f32 %v2856, %v2870
    %v2875 = vmul.f32 %v2871, %v2871
    %v2876 = vmul.f32 %v2872, %v2872
    %v2877 = vmul.f32 %v2873, %v2873
    %v2878 = vmul.f32 %v2874, %v2874
    %2879 = vadd.xlane.f32.xlu0 %v2875
    %v2880 = vpop.xlane.xlu0 %2879
    %2881 = vadd.xlane.f32.xlu0 %v2876
    %v2882 = vpop.xlane.xlu0 %2881
    %2883 = vadd.xlane.f32.xlu0 %v2877
    %v2884 = vpop.xlane.xlu0 %2883
    %2885 = vadd.xlane.f32.xlu0 %v2878
    %v2886 = vpop.xlane.xlu0 %2885
    %v2887 = vmul.f32 %v2880, %v212
    %v2888 = vmul.f32 %v2882, %v212
    %v2889 = vmul.f32 %v2884, %v212
    %v2890 = vmul.f32 %v2886, %v212
    %v2891 = vadd.f32 %v2887, 1e-07
    %v2892 = vadd.f32 %v2888, 1e-07
    %v2893 = vadd.f32 %v2889, 1e-07
    %v2894 = vadd.f32 %v2890, 1e-07
    %v2895 = vrsqrt.pop %v2891
    %v2896 = vrsqrt.pop %v2892
    %v2897 = vrsqrt.pop %v2893
    %v2898 = vrsqrt.pop %v2894
    %v2899 = vmul.f32 %v2871, %v2895
    %v2900 = vmul.f32 %v2872, %v2896
    %v2901 = vmul.f32 %v2873, %v2897
    %v2902 = vmul.f32 %v2874, %v2898
    %v2904 = vlaneseq
    %v2905 = vshrl.u32 %v2904, 7
    %v2906 = vsub.s32 0, %v2905
    %v2907 = vrot.slane %v2857, %v2906
    %v2909 = vmul.f32 %v2899, %v2907
    %v2910 = vmul.f32 %v2900, %v2907
    %v2911 = vmul.f32 %v2901, %v2907
    %v2912 = vmul.f32 %v2902, %v2907
    %v2914 = vlaneseq
    %v2915 = vshrl.u32 %v2914, 7
    %v2916 = vsub.s32 0, %v2915
    %v2917 = vrot.slane %v2858, %v2916
    %v2919 = vadd.f32 %v2909, %v2917
    %v2920 = vadd.f32 %v2910, %v2917
    %v2921 = vadd.f32 %v2911, %v2917
    %v2922 = vadd.f32 %v2912, %v2917
    %s2923 = scalar_lea.vmem [#allocation10], 192
    %v2924 = vld [vmem:[%s2923] sm:$0xff]
    %v2925 = vld [vmem:[%s2923 + $0x8] sm:$0xf]
    %v2926 = vld [vmem:[%s2923 + $0xc] sm:$0xff]
    %v2927 = vld [vmem:[%s2923 + $0x14] sm:$0xf]
    %v2928 = vld [vmem:[%s2923 + $0x18] sm:$0xff]
    %v2929 = vld [vmem:[%s2923 + $0x20] sm:$0xf]
    %v2930 = vld [vmem:[%s2923 + $0x24] sm:$0xff]
    %v2931 = vld [vmem:[%s2923 + $0x2c] sm:$0xf]
    %v2932 = vld [vmem:[%s2923 + $0x30] sm:$0xff]
    %v2933 = vld [vmem:[%s2923 + $0x38] sm:$0xf]
    %v2934 = vld [vmem:[%s2923 + $0x3c] sm:$0xff]
    %v2935 = vld [vmem:[%s2923 + $0x44] sm:$0xf]
    %v2936 = vld [vmem:[%s2923 + $0x48] sm:$0xff]
    %v2937 = vld [vmem:[%s2923 + $0x50] sm:$0xf]
    %v2938 = vld [vmem:[%s2923 + $0x54] sm:$0xff]
    %v2939 = vld [vmem:[%s2923 + $0x5c] sm:$0xf]
    %v2940 = vld [vmem:[%s2923 + $0x60] sm:$0xff]
    %v2941 = vld [vmem:[%s2923 + $0x68] sm:$0xf]
    %v2942 = vld [vmem:[%s2923 + $0x6c] sm:$0xff]
    %v2943 = vld [vmem:[%s2923 + $0x74] sm:$0xf]
    %v2944 = vld [vmem:[%s2923 + $0x78] sm:$0xff]
    %v2945 = vld [vmem:[%s2923 + $0x80] sm:$0xf]
    %v2946 = vld [vmem:[%s2923 + $0x84] sm:$0xff]
    %v2947 = vld [vmem:[%s2923 + $0x8c] sm:$0xf]
    %v2948 = vld [vmem:[%s2923 + $0x90] sm:$0xff]
    %v2949 = vld [vmem:[%s2923 + $0x98] sm:$0xf]
    %v2950 = vld [vmem:[%s2923 + $0x9c] sm:$0xff]
    %v2951 = vld [vmem:[%s2923 + $0xa4] sm:$0xf]
    %v2952 = vld [vmem:[%s2923 + $0xa8] sm:$0xff]
    %v2953 = vld [vmem:[%s2923 + $0xb0] sm:$0xf]
    %v2954 = vld [vmem:[%s2923 + $0xb4] sm:$0xff]
    %v2955 = vld [vmem:[%s2923 + $0xbc] sm:$0xf]
    %v2956 = vpack.c.bf16 %v2920, %v2919
    %v2957 = vpack.c.bf16 %v2922, %v2921
    %s2958 = scalar_lea.vmem %s5, 3
    %v2959 = vld [vmem:[%s2958] sm:$0x7]
    %v2961 = vlaneseq
    %v2962 = vshrl.u32 %v2961, 7
    %v2963 = vsub.s32 0, %v2962
    %v2964 = vrot.slane %v2959, %v2963
    %v2965 = vlaneseq
    %v2966 = vshrl.u32 %v2965, 7
    %v2967 = vsub.s32 1, %v2966
    %v2968 = vrot.slane %v2959, %v2967
    %v2969 = vlaneseq
    %v2970 = vshrl.u32 %v2969, 7
    %v2971 = vsub.s32 2, %v2970
    %v2972 = vrot.slane %v2959, %v2971
    %v3008 = vunpack.c.l.b16 %v2924
    %v3009 = vunpack.c.h.b16 %v2924
    %v3010 = vunpack.c.l.b16 %v2925
    %v3011 = vunpack.c.l.b16 %v2926
    %v3012 = vunpack.c.h.b16 %v2926
    %v3013 = vunpack.c.l.b16 %v2927
    %v3014 = vunpack.c.l.b16 %v2928
    %v3015 = vunpack.c.h.b16 %v2928
    %v3016 = vunpack.c.l.b16 %v2929
    %v3017 = vunpack.c.l.b16 %v2930
    %v3018 = vunpack.c.h.b16 %v2930
    %v3019 = vunpack.c.l.b16 %v2931
    %v3020 = vunpack.c.l.b16 %v2932
    %v3021 = vunpack.c.h.b16 %v2932
    %v3022 = vunpack.c.l.b16 %v2933
    %v3023 = vunpack.c.l.b16 %v2934
    %v3024 = vunpack.c.h.b16 %v2934
    %v3025 = vunpack.c.l.b16 %v2935
    %v3026 = vunpack.c.l.b16 %v2936
    %v3027 = vunpack.c.h.b16 %v2936
    %v3028 = vunpack.c.l.b16 %v2937
    %v3029 = vunpack.c.l.b16 %v2938
    %v3030 = vunpack.c.h.b16 %v2938
    %v3031 = vunpack.c.l.b16 %v2939
    %v3032 = vunpack.c.l.b16 %v2940
    %v3033 = vunpack.c.h.b16 %v2940
    %v3034 = vunpack.c.l.b16 %v2941
    %v3035 = vunpack.c.l.b16 %v2942
    %v3036 = vunpack.c.h.b16 %v2942
    %v3037 = vunpack.c.l.b16 %v2943
    %v3038 = vunpack.c.l.b16 %v2944
    %v3039 = vunpack.c.h.b16 %v2944
    %v3040 = vunpack.c.l.b16 %v2945
    %v3041 = vunpack.c.l.b16 %v2946
    %v3042 = vunpack.c.h.b16 %v2946
    %v3043 = vunpack.c.l.b16 %v2947
    %v3044 = vunpack.c.l.b16 %v2948
    %v3045 = vunpack.c.h.b16 %v2948
    %v3046 = vunpack.c.l.b16 %v2949
    %v3047 = vunpack.c.l.b16 %v2950
    %v3048 = vunpack.c.h.b16 %v2950
    %v3049 = vunpack.c.l.b16 %v2951
    %v3050 = vunpack.c.l.b16 %v2952
    %v3051 = vunpack.c.h.b16 %v2952
    %v3052 = vunpack.c.l.b16 %v2953
    %v3053 = vunpack.c.l.b16 %v2954
    %v3054 = vunpack.c.h.b16 %v2954
    %v3055 = vunpack.c.l.b16 %v2955
    %v3056 = vpack.c.b16 %v3011, %v3008
    %v3057 = vpack.c.b16 %v3012, %v3009
    %v3058 = vpack.c.b16 %v3013, %v3010
    %v3059 = vpack.c.b16 %v3017, %v3014
    %v3060 = vpack.c.b16 %v3018, %v3015
    %v3061 = vpack.c.b16 %v3019, %v3016
    %v3062 = vpack.c.b16 %v3023, %v3020
    %v3063 = vpack.c.b16 %v3024, %v3021
    %v3064 = vpack.c.b16 %v3025, %v3022
    %v3065 = vpack.c.b16 %v3029, %v3026
    %v3066 = vpack.c.b16 %v3030, %v3027
    %v3067 = vpack.c.b16 %v3031, %v3028
    %v3068 = vpack.c.b16 %v3035, %v3032
    %v3069 = vpack.c.b16 %v3036, %v3033
    %v3070 = vpack.c.b16 %v3037, %v3034
    %v3071 = vpack.c.b16 %v3041, %v3038
    %v3072 = vpack.c.b16 %v3042, %v3039
    %v3073 = vpack.c.b16 %v3043, %v3040
    %v3074 = vpack.c.b16 %v3047, %v3044
    %v3075 = vpack.c.b16 %v3048, %v3045
    %v3076 = vpack.c.b16 %v3049, %v3046
    %v3077 = vpack.c.b16 %v3053, %v3050
    %v3078 = vpack.c.b16 %v3054, %v3051
    %v3079 = vpack.c.b16 %v3055, %v3052
    %3104 = vmatprep.subr.bf16.mxu0 %v3057
    %3105 = vmatpush1.bf16.msra.mxu0 %v3056
    %3106 = vmatprep.subr.bf16.mxu0 %v3060
    %3107 = vmatpush1.bf16.msra.mxu0 %v3059
    %3108 = vmatprep.subr.bf16.mxu0 %v3063
    %3109 = vmatpush1.bf16.msra.mxu0 %v3062
    %3110 = vmatprep.subr.bf16.mxu0 %v3066
    %3111 = vmatpush1.bf16.msra.mxu0 %v3065
    %3112 = vmatprep.subr.bf16.mxu0 %v3069
    %3113 = vmatpush1.bf16.msra.mxu0 %v3068
    %3114 = vmatprep.subr.bf16.mxu0 %v3072
    %3115 = vmatpush1.bf16.msra.mxu0 %v3071
    %3116 = vmatprep.subr.bf16.mxu0 %v3075
    %3117 = vmatpush1.bf16.msra.mxu0 %v3074
    %3118 = vmatprep.subr.bf16.mxu0 %v3078
    %3119 = vmatpush1.bf16.msra.mxu0 %v3077
    %3120 = vmatprep.subr.bf16.mxu0 0
    %3121 = vmatpush1.bf16.msra.mxu0 0
    %3122 = vmatprep.subr.bf16.mxu0 0
    %3123 = vmatpush1.bf16.msra.mxu0 0
    %3124 = vmatprep.subr.bf16.mxu0 0
    %3125 = vmatpush1.bf16.msra.mxu0 0
    %3126 = vmatprep.subr.bf16.mxu0 0
    %3127 = vmatpush1.bf16.msra.mxu0 0
    %3128 = vmatprep.subr.bf16.mxu0 0
    %3129 = vmatpush1.bf16.msra.mxu0 0
    %3130 = vmatprep.subr.bf16.mxu0 0
    %3131 = vmatpush1.bf16.msra.mxu0 0
    %3132 = vmatprep.subr.bf16.mxu0 0
    %3133 = vmatpush1.bf16.msra.mxu0 0
    %3134 = vmatprep.subr.bf16.mxu0 0
    %3135 = vmatpush1.bf16.msra.mxu0 0
    %3136 = vmatprep.mubr.bf16.mxu0 0
    %3137 = vmatmul.mubr.bf16.gmra.mrb[0].mxu0 %v2956
    %v3138 = vpop.f32.mrb[0].mxu0
    %v3139 = vadd.f32 %v2964, %v3138
    %v3140 = vpop.f32.mrb[0].mxu0
    %v3141 = vadd.f32 %v2968, %v3140
    %v3142 = vpop.f32.mrb[0].mxu0
    %v3143 = vadd.f32 %v2964, %v3142
    %v3144 = vpop.f32.mrb[0].mxu0
    %v3145 = vadd.f32 %v2968, %v3144
    %3146 = vmatprep.mubr.bf16.mxu0 0
    %3147 = vmatmul.mubr.bf16.gmra.mrb[0].mxu0 %v2957
    %v3148 = vpop.f32.mrb[0].mxu0
    %v3149 = vadd.f32 %v2964, %v3148
    %v3150 = vpop.f32.mrb[0].mxu0
    %v3151 = vadd.f32 %v2968, %v3150
    %v3152 = vpop.f32.mrb[0].mxu0
    %v3153 = vadd.f32 %v2964, %v3152
    %v3154 = vpop.f32.mrb[0].mxu0
    %v3155 = vadd.f32 %v2968, %v3154
    %3156 = vdwg.mxu0
    %3157 = vmatprep.subr.bf16.mxu0 0
    %3158 = vmatpush1.bf16.msra.mxu0 %v3058
    %3159 = vmatprep.subr.bf16.mxu0 0
    %3160 = vmatpush1.bf16.msra.mxu0 %v3061
    %3161 = vmatprep.subr.bf16.mxu0 0
    %3162 = vmatpush1.bf16.msra.mxu0 %v3064
    %3163 = vmatprep.subr.bf16.mxu0 0
    %3164 = vmatpush1.bf16.msra.mxu0 %v3067
    %3165 = vmatprep.subr.bf16.mxu0 0
    %3166 = vmatpush1.bf16.msra.mxu0 %v3070
    %3167 = vmatprep.subr.bf16.mxu0 0
    %3168 = vmatpush1.bf16.msra.mxu0 %v3073
    %3169 = vmatprep.subr.bf16.mxu0 0
    %3170 = vmatpush1.bf16.msra.mxu0 %v3076
    %3171 = vmatprep.subr.bf16.mxu0 0
    %3172 = vmatpush1.bf16.msra.mxu0 %v3079
    %3173 = vmatprep.subr.bf16.mxu0 0
    %3174 = vmatpush1.bf16.msra.mxu0 0
    %3175 = vmatprep.subr.bf16.mxu0 0
    %3176 = vmatpush1.bf16.msra.mxu0 0
    %3177 = vmatprep.subr.bf16.mxu0 0
    %3178 = vmatpush1.bf16.msra.mxu0 0
    %3179 = vmatprep.subr.bf16.mxu0 0
    %3180 = vmatpush1.bf16.msra.mxu0 0
    %3181 = vmatprep.subr.bf16.mxu0 0
    %3182 = vmatpush1.bf16.msra.mxu0 0
    %3183 = vmatprep.subr.bf16.mxu0 0
    %3184 = vmatpush1.bf16.msra.mxu0 0
    %3185 = vmatprep.subr.bf16.mxu0 0
    %3186 = vmatpush1.bf16.msra.mxu0 0
    %3187 = vmatprep.subr.bf16.mxu0 0
    %3188 = vmatpush1.bf16.msra.mxu0 0
    %3189 = vmatprep.mubr.bf16.mxu0 0
    %3190 = vmatmul.mubr.bf16.gmra.mrb[0].mxu0 %v2956
    %v3191 = vpop.f32.mrb[0].mxu0
    %v3192 = vadd.f32 %v2972, %v3191
    %v3193 = vpop.f32.mrb[0].mxu0
    %v3194 = vpop.f32.mrb[0].mxu0
    %v3195 = vadd.f32 %v2972, %v3194
    %v3196 = vpop.f32.mrb[0].mxu0
    %3197 = vmatprep.mubr.bf16.mxu0 0
    %3198 = vmatmul.mubr.bf16.gmra.mrb[0].mxu0 %v2957
    %v3199 = vpop.f32.mrb[0].mxu0
    %v3200 = vadd.f32 %v2972, %v3199
    %v3201 = vpop.f32.mrb[0].mxu0
    %v3202 = vpop.f32.mrb[0].mxu0
    %v3203 = vadd.f32 %v2972, %v3202
    %v3204 = vpop.f32.mrb[0].mxu0
    %3205 = vdwg.mxu0
    %v3207 = vsel %vm550, %v3139, 0
    %v3210 = vsel %vm550, %v3143, 0
    %v3213 = vsel %vm550, %v3141, 0
    %v3216 = vsel %vm550, %v3145, 0
    %3218 = vmatprep.subr.mxu0 0.0
    %3219 = vmatpush1.xpose.msra.mxu0 %v3213
    %3220 = vmatprep.subr.mxu0 0.0
    %3221 = vmatpush1.xpose.msra.mxu0 %v3216
    %3222 = vmatprep.subr.mxu0 0.0
    %3223 = vmatpush1.xpose.msra.mxu0 0.0
    %3224 = vmatprep.subr.mxu0 0.0
    %3225 = vmatpush1.xpose.msra.mxu0 0.0
    %3226 = vmatprep.subr.mxu0 0.0
    %3227 = vmatpush1.xpose.msra.mxu0 0.0
    %3228 = vmatprep.subr.mxu0 0.0
    %3229 = vmatpush1.xpose.msra.mxu0 0.0
    %3230 = vmatprep.subr.mxu0 0.0
    %3231 = vmatpush1.xpose.msra.mxu0 0.0
    %3232 = vmatprep.subr.mxu0 0.0
    %3233 = vmatpush1.xpose.msra.mxu0 0.0
    %3234 = vmatprep.subr.mxu0 0.0
    %3235 = vmatpush1.xpose.msra.mxu0 0.0
    %3236 = vmatprep.subr.mxu0 0.0
    %3237 = vmatpush1.xpose.msra.mxu0 0.0
    %3238 = vmatprep.subr.mxu0 0.0
    %3239 = vmatpush1.xpose.msra.mxu0 0.0
    %3240 = vmatprep.subr.mxu0 0.0
    %3241 = vmatpush1.xpose.msra.mxu0 0.0
    %3242 = vmatprep.subr.mxu0 0.0
    %3243 = vmatpush1.xpose.msra.mxu0 0.0
    %3244 = vmatprep.subr.mxu0 0.0
    %3245 = vmatpush1.xpose.msra.mxu0 0.0
    %3246 = vmatprep.subr.mxu0 0.0
    %3247 = vmatpush1.xpose.msra.mxu0 0.0
    %3248 = vmatprep.subr.mxu0 0.0
    %3249 = vmatpush1.xpose.msra.mxu0 0.0
    %3250 = vmatprep.subr.mxu0 0.0
    %3251 = vmatpush1.xpose.msra.mxu0 0.0
    %3252 = vmatprep.subr.mxu0 0.0
    %3253 = vmatpush1.xpose.msra.mxu0 0.0
    %3254 = vmatprep.subr.mxu0 0.0
    %3255 = vmatpush1.xpose.msra.mxu0 0.0
    %3256 = vmatprep.subr.mxu0 0.0
    %3257 = vmatpush1.xpose.msra.mxu0 0.0
    %3258 = vmatprep.subr.mxu0 0.0
    %3259 = vmatpush1.xpose.msra.mxu0 0.0
    %3260 = vmatprep.subr.mxu0 0.0
    %3261 = vmatpush1.xpose.msra.mxu0 0.0
    %3262 = vmatprep.subr.mxu0 0.0
    %3263 = vmatpush1.xpose.msra.mxu0 0.0
    %3264 = vmatprep.subr.mxu0 0.0
    %3265 = vmatpush1.xpose.msra.mxu0 0.0
    %3266 = vmatprep.subr.mxu0 0.0
    %3267 = vmatpush1.xpose.msra.mxu0 0.0
    %3268 = vmatprep.subr.mxu0 0.0
    %3269 = vmatpush1.xpose.msra.mxu0 0.0
    %3270 = vmatprep.subr.mxu0 0.0
    %3271 = vmatpush1.xpose.msra.mxu0 0.0
    %3272 = vmatprep.subr.mxu0 0.0
    %3273 = vmatpush1.xpose.msra.mxu0 0.0
    %3274 = vmatprep.subr.mxu0 0.0
    %3275 = vmatpush1.xpose.msra.mxu0 0.0
    %3276 = vmatprep.subr.mxu0 0.0
    %3277 = vmatpush1.xpose.msra.mxu0 0.0
    %3278 = vmatprep.subr.mxu0 0.0
    %3279 = vmatpush1.xpose.msra.mxu0 0.0
    %3280 = vmatprep.subr.mxu0 0.0
    %3281 = vmatpush1.xpose.msra.mxu0 0.0
    %3282 = vmatprep.mubr.f32.mxu0 0.0
    %3283 = vmatmul.mubr.f32.gmra.mrb[0].mxu0 %v3207
    %v3284 = vpop.f32.mrb[0].mxu0
    %v3285 = vadd.f32 0.0, %v3284
    %v3286 = vpop.f32.mrb[0].mxu0
    %3287 = vmatprep.mubr.f32.mxu0 0.0
    %3288 = vmatmul.mubr.f32.gmra.mrb[0].mxu0 %v3210
    %v3289 = vpop.f32.mrb[0].mxu0
    %v3290 = vadd.f32 0.0, %v3289
    %v3291 = vpop.f32.mrb[0].mxu0
    %3292 = vdwg.mxu0
    %v3293 = vmul.f32 %v3285, 0.17677669
    %v3294 = vmul.f32 %v3290, 0.17677669
    %v3295 = vadd.f32 %v3293, %v643
    %v3296 = vadd.f32 %v3294, %v643
    %v3297 = vsel %vm646, %v3295, -inf
    %3298 = vmax.xlane.f32.xlu0 %v3297
    %v3299 = vpop.xlane.xlu0 %3298
    %v3300 = vsel %vm646, %v3296, -inf
    %3301 = vmax.xlane.f32.xlu0 %v3300
    %v3302 = vpop.xlane.xlu0 %3301
    %v3303 = vsub.f32 %v3295, %v3299
    %v3304 = vsub.f32 %v3296, %v3302
    %v3305 = vmul.f32 %v3303, 1.442695
    %v3306 = vpow.pop %v3305
    %v3307 = vmul.f32 %v3304, 1.442695
    %v3308 = vpow.pop %v3307
    %v3309 = vsel %vm646, %v3306, 0.0
    %3310 = vadd.xlane.f32.xlu0 %v3309
    %v3311 = vpop.xlane.xlu0 %3310
    %v3312 = vsel %vm646, %v3308, 0.0
    %3313 = vadd.xlane.f32.xlu0 %v3312
    %v3314 = vpop.xlane.xlu0 %3313
    %v3315 = vrcp.pop %v3311
    %v3316 = vrcp.pop %v3314
    %v3317 = vmul.f32 %v3306, %v3315
    %v3318 = vmul.f32 %v3308, %v3316
    %v3320 = vsel %vm646, %v3317, 0
    %v3323 = vsel %vm646, %v3318, 0
    %3325 = vmatprep.subr.mxu0 0.0
    %3326 = vmatpush1.msra.mxu0 %v3192
    %3327 = vmatprep.subr.mxu0 0.0
    %3328 = vmatpush1.msra.mxu0 %v3195
    %3329 = vmatprep.subr.mxu0 0.0
    %3330 = vmatpush1.msra.mxu0 0.0
    %3331 = vmatprep.subr.mxu0 0.0
    %3332 = vmatpush1.msra.mxu0 0.0
    %3333 = vmatprep.subr.mxu0 0.0
    %3334 = vmatpush1.msra.mxu0 0.0
    %3335 = vmatprep.subr.mxu0 0.0
    %3336 = vmatpush1.msra.mxu0 0.0
    %3337 = vmatprep.subr.mxu0 0.0
    %3338 = vmatpush1.msra.mxu0 0.0
    %3339 = vmatprep.subr.mxu0 0.0
    %3340 = vmatpush1.msra.mxu0 0.0
    %3341 = vmatprep.subr.mxu0 0.0
    %3342 = vmatpush1.msra.mxu0 0.0
    %3343 = vmatprep.subr.mxu0 0.0
    %3344 = vmatpush1.msra.mxu0 0.0
    %3345 = vmatprep.subr.mxu0 0.0
    %3346 = vmatpush1.msra.mxu0 0.0
    %3347 = vmatprep.subr.mxu0 0.0
    %3348 = vmatpush1.msra.mxu0 0.0
    %3349 = vmatprep.subr.mxu0 0.0
    %3350 = vmatpush1.msra.mxu0 0.0
    %3351 = vmatprep.subr.mxu0 0.0
    %3352 = vmatpush1.msra.mxu0 0.0
    %3353 = vmatprep.subr.mxu0 0.0
    %3354 = vmatpush1.msra.mxu0 0.0
    %3355 = vmatprep.subr.mxu0 0.0
    %3356 = vmatpush1.msra.mxu0 0.0
    %3357 = vmatprep.subr.mxu0 0.0
    %3358 = vmatpush1.msra.mxu0 0.0
    %3359 = vmatprep.subr.mxu0 0.0
    %3360 = vmatpush1.msra.mxu0 0.0
    %3361 = vmatprep.subr.mxu0 0.0
    %3362 = vmatpush1.msra.mxu0 0.0
    %3363 = vmatprep.subr.mxu0 0.0
    %3364 = vmatpush1.msra.mxu0 0.0
    %3365 = vmatprep.subr.mxu0 0.0
    %3366 = vmatpush1.msra.mxu0 0.0
    %3367 = vmatprep.subr.mxu0 0.0
    %3368 = vmatpush1.msra.mxu0 0.0
    %3369 = vmatprep.subr.mxu0 0.0
    %3370 = vmatpush1.msra.mxu0 0.0
    %3371 = vmatprep.subr.mxu0 0.0
    %3372 = vmatpush1.msra.mxu0 0.0
    %3373 = vmatprep.subr.mxu0 0.0
    %3374 = vmatpush1.msra.mxu0 0.0
    %3375 = vmatprep.subr.mxu0 0.0
    %3376 = vmatpush1.msra.mxu0 0.0
    %3377 = vmatprep.subr.mxu0 0.0
    %3378 = vmatpush1.msra.mxu0 0.0
    %3379 = vmatprep.subr.mxu0 0.0
    %3380 = vmatpush1.msra.mxu0 0.0
    %3381 = vmatprep.subr.mxu0 0.0
    %3382 = vmatpush1.msra.mxu0 0.0
    %3383 = vmatprep.subr.mxu0 0.0
    %3384 = vmatpush1.msra.mxu0 0.0
    %3385 = vmatprep.subr.mxu0 0.0
    %3386 = vmatpush1.msra.mxu0 0.0
    %3387 = vmatprep.subr.mxu0 0.0
    %3388 = vmatpush1.msra.mxu0 0.0
    %3389 = vmatprep.mubr.f32.mxu0 0.0
    %3390 = vmatmul.mubr.f32.gmra.mrb[0].mxu0 %v3320
    %v3391 = vpop.f32.mrb[0].mxu0
    %v3392 = vadd.f32 0.0, %v3391
    %v3393 = vpop.f32.mrb[0].mxu0
    %3394 = vmatprep.mubr.f32.mxu0 0.0
    %3395 = vmatmul.mubr.f32.gmra.mrb[0].mxu0 %v3323
    %v3396 = vpop.f32.mrb[0].mxu0
    %v3397 = vadd.f32 0.0, %v3396
    %v3398 = vpop.f32.mrb[0].mxu0
    %3399 = vdwg.mxu0
    %3400 = vrot.lane.b32.xlu0 %v3139, 96
    %v3401 = vpop.permute.xlu0 %3400
    %3402 = vrot.lane.b32.xlu0 %v3143, 96
    %v3403 = vpop.permute.xlu0 %3402
    %3404 = vrot.lane.b32.xlu0 %v3141, 96
    %v3405 = vpop.permute.xlu0 %3404
    %3406 = vrot.lane.b32.xlu0 %v3145, 96
    %v3407 = vpop.permute.xlu0 %3406
    %v3408 = vsel %vm550, %v3401, 0
    %v3410 = vsel %vm550, %v3403, 0
    %v3412 = vsel %vm550, %v3405, 0
    %v3414 = vsel %vm550, %v3407, 0
    %3416 = vmatprep.subr.mxu0 0.0
    %3417 = vmatpush1.xpose.msra.mxu0 %v3412
    %3418 = vmatprep.subr.mxu0 0.0
    %3419 = vmatpush1.xpose.msra.mxu0 %v3414
    %3420 = vmatprep.subr.mxu0 0.0
    %3421 = vmatpush1.xpose.msra.mxu0 0.0
    %3422 = vmatprep.subr.mxu0 0.0
    %3423 = vmatpush1.xpose.msra.mxu0 0.0
    %3424 = vmatprep.subr.mxu0 0.0
    %3425 = vmatpush1.xpose.msra.mxu0 0.0
    %3426 = vmatprep.subr.mxu0 0.0
    %3427 = vmatpush1.xpose.msra.mxu0 0.0
    %3428 = vmatprep.subr.mxu0 0.0
    %3429 = vmatpush1.xpose.msra.mxu0 0.0
    %3430 = vmatprep.subr.mxu0 0.0
    %3431 = vmatpush1.xpose.msra.mxu0 0.0
    %3432 = vmatprep.subr.mxu0 0.0
    %3433 = vmatpush1.xpose.msra.mxu0 0.0
    %3434 = vmatprep.subr.mxu0 0.0
    %3435 = vmatpush1.xpose.msra.mxu0 0.0
    %3436 = vmatprep.subr.mxu0 0.0
    %3437 = vmatpush1.xpose.msra.mxu0 0.0
    %3438 = vmatprep.subr.mxu0 0.0
    %3439 = vmatpush1.xpose.msra.mxu0 0.0
    %3440 = vmatprep.subr.mxu0 0.0
    %3441 = vmatpush1.xpose.msra.mxu0 0.0
    %3442 = vmatprep.subr.mxu0 0.0
    %3443 = vmatpush1.xpose.msra.mxu0 0.0
    %3444 = vmatprep.subr.mxu0 0.0
    %3445 = vmatpush1.xpose.msra.mxu0 0.0
    %3446 = vmatprep.subr.mxu0 0.0
    %3447 = vmatpush1.xpose.msra.mxu0 0.0
    %3448 = vmatprep.subr.mxu0 0.0
    %3449 = vmatpush1.xpose.msra.mxu0 0.0
    %3450 = vmatprep.subr.mxu0 0.0
    %3451 = vmatpush1.xpose.msra.mxu0 0.0
    %3452 = vmatprep.subr.mxu0 0.0
    %3453 = vmatpush1.xpose.msra.mxu0 0.0
    %3454 = vmatprep.subr.mxu0 0.0
    %3455 = vmatpush1.xpose.msra.mxu0 0.0
    %3456 = vmatprep.subr.mxu0 0.0
    %3457 = vmatpush1.xpose.msra.mxu0 0.0
    %3458 = vmatprep.subr.mxu0 0.0
    %3459 = vmatpush1.xpose.msra.mxu0 0.0
    %3460 = vmatprep.subr.mxu0 0.0
    %3461 = vmatpush1.xpose.msra.mxu0 0.0
    %3462 = vmatprep.subr.mxu0 0.0
    %3463 = vmatpush1.xpose.msra.mxu0 0.0
    %3464 = vmatprep.subr.mxu0 0.0
    %3465 = vmatpush1.xpose.msra.mxu0 0.0
    %3466 = vmatprep.subr.mxu0 0.0
    %3467 = vmatpush1.xpose.msra.mxu0 0.0
    %3468 = vmatprep.subr.mxu0 0.0
    %3469 = vmatpush1.xpose.msra.mxu0 0.0
    %3470 = vmatprep.subr.mxu0 0.0
    %3471 = vmatpush1.xpose.msra.mxu0 0.0
    %3472 = vmatprep.subr.mxu0 0.0
    %3473 = vmatpush1.xpose.msra.mxu0 0.0
    %3474 = vmatprep.subr.mxu0 0.0
    %3475 = vmatpush1.xpose.msra.mxu0 0.0
    %3476 = vmatprep.subr.mxu0 0.0
    %3477 = vmatpush1.xpose.msra.mxu0 0.0
    %3478 = vmatprep.subr.mxu0 0.0
    %3479 = vmatpush1.xpose.msra.mxu0 0.0
    %3480 = vmatprep.mubr.f32.mxu0 0.0
    %3481 = vmatmul.mubr.f32.gmra.mrb[0].mxu0 %v3408
    %v3482 = vpop.f32.mrb[0].mxu0
    %v3483 = vadd.f32 0.0, %v3482
    %v3484 = vpop.f32.mrb[0].mxu0
    %3485 = vmatprep.mubr.f32.mxu0 0.0
    %3486 = vmatmul.mubr.f32.gmra.mrb[0].mxu0 %v3410
    %v3487 = vpop.f32.mrb[0].mxu0
    %v3488 = vadd.f32 0.0, %v3487
    %v3489 = vpop.f32.mrb[0].mxu0
    %3490 = vdwg.mxu0
    %v3491 = vmul.f32 %v3483, 0.17677669
    %v3492 = vmul.f32 %v3488, 0.17677669
    %v3493 = vadd.f32 %v3491, %v643
    %v3494 = vadd.f32 %v3492, %v643
    %v3495 = vsel %vm646, %v3493, -inf
    %3496 = vmax.xlane.f32.xlu0 %v3495
    %v3497 = vpop.xlane.xlu0 %3496
    %v3498 = vsel %vm646, %v3494, -inf
    %3499 = vmax.xlane.f32.xlu0 %v3498
    %v3500 = vpop.xlane.xlu0 %3499
    %v3501 = vsub.f32 %v3493, %v3497
    %v3502 = vsub.f32 %v3494, %v3500
    %v3503 = vmul.f32 %v3501, 1.442695
    %v3504 = vpow.pop %v3503
    %v3505 = vmul.f32 %v3502, 1.442695
    %v3506 = vpow.pop %v3505
    %v3507 = vsel %vm646, %v3504, 0.0
    %3508 = vadd.xlane.f32.xlu0 %v3507
    %v3509 = vpop.xlane.xlu0 %3508
    %v3510 = vsel %vm646, %v3506, 0.0
    %3511 = vadd.xlane.f32.xlu0 %v3510
    %v3512 = vpop.xlane.xlu0 %3511
    %v3513 = vrcp.pop %v3509
    %v3514 = vrcp.pop %v3512
    %v3515 = vmul.f32 %v3504, %v3513
    %v3516 = vmul.f32 %v3506, %v3514
    %3519 = vrot.lane.b32.xlu0 %v3192, 96
    %v3520 = vpop.permute.xlu0 %3519
    %3521 = vrot.lane.b32.xlu0 %v3195, 96
    %v3522 = vpop.permute.xlu0 %3521
    %v3526 = vsel %vm646, %v3515, 0
    %v3529 = vsel %vm646, %v3516, 0
    %3531 = vmatprep.subr.mxu0 0.0
    %3532 = vmatpush1.msra.mxu0 %v3520
    %3533 = vmatprep.subr.mxu0 0.0
    %3534 = vmatpush1.msra.mxu0 %v3522
    %3535 = vmatprep.subr.mxu0 0.0
    %3536 = vmatpush1.msra.mxu0 0.0
    %3537 = vmatprep.subr.mxu0 0.0
    %3538 = vmatpush1.msra.mxu0 0.0
    %3539 = vmatprep.subr.mxu0 0.0
    %3540 = vmatpush1.msra.mxu0 0.0
    %3541 = vmatprep.subr.mxu0 0.0
    %3542 = vmatpush1.msra.mxu0 0.0
    %3543 = vmatprep.subr.mxu0 0.0
    %3544 = vmatpush1.msra.mxu0 0.0
    %3545 = vmatprep.subr.mxu0 0.0
    %3546 = vmatpush1.msra.mxu0 0.0
    %3547 = vmatprep.subr.mxu0 0.0
    %3548 = vmatpush1.msra.mxu0 0.0
    %3549 = vmatprep.subr.mxu0 0.0
    %3550 = vmatpush1.msra.mxu0 0.0
    %3551 = vmatprep.subr.mxu0 0.0
    %3552 = vmatpush1.msra.mxu0 0.0
    %3553 = vmatprep.subr.mxu0 0.0
    %3554 = vmatpush1.msra.mxu0 0.0
    %3555 = vmatprep.subr.mxu0 0.0
    %3556 = vmatpush1.msra.mxu0 0.0
    %3557 = vmatprep.subr.mxu0 0.0
    %3558 = vmatpush1.msra.mxu0 0.0
    %3559 = vmatprep.subr.mxu0 0.0
    %3560 = vmatpush1.msra.mxu0 0.0
    %3561 = vmatprep.subr.mxu0 0.0
    %3562 = vmatpush1.msra.mxu0 0.0
    %3563 = vmatprep.subr.mxu0 0.0
    %3564 = vmatpush1.msra.mxu0 0.0
    %3565 = vmatprep.subr.mxu0 0.0
    %3566 = vmatpush1.msra.mxu0 0.0
    %3567 = vmatprep.subr.mxu0 0.0
    %3568 = vmatpush1.msra.mxu0 0.0
    %3569 = vmatprep.subr.mxu0 0.0
    %3570 = vmatpush1.msra.mxu0 0.0
    %3571 = vmatprep.subr.mxu0 0.0
    %3572 = vmatpush1.msra.mxu0 0.0
    %3573 = vmatprep.subr.mxu0 0.0
    %3574 = vmatpush1.msra.mxu0 0.0
    %3575 = vmatprep.subr.mxu0 0.0
    %3576 = vmatpush1.msra.mxu0 0.0
    %3577 = vmatprep.subr.mxu0 0.0
    %3578 = vmatpush1.msra.mxu0 0.0
    %3579 = vmatprep.subr.mxu0 0.0
    %3580 = vmatpush1.msra.mxu0 0.0
    %3581 = vmatprep.subr.mxu0 0.0
    %3582 = vmatpush1.msra.mxu0 0.0
    %3583 = vmatprep.subr.mxu0 0.0
    %3584 = vmatpush1.msra.mxu0 0.0
    %3585 = vmatprep.subr.mxu0 0.0
    %3586 = vmatpush1.msra.mxu0 0.0
    %3587 = vmatprep.subr.mxu0 0.0
    %3588 = vmatpush1.msra.mxu0 0.0
    %3589 = vmatprep.subr.mxu0 0.0
    %3590 = vmatpush1.msra.mxu0 0.0
    %3591 = vmatprep.subr.mxu0 0.0
    %3592 = vmatpush1.msra.mxu0 0.0
    %3593 = vmatprep.subr.mxu0 0.0
    %3594 = vmatpush1.msra.mxu0 0.0
    %3595 = vmatprep.mubr.f32.mxu0 0.0
    %3596 = vmatmul.mubr.f32.gmra.mrb[0].mxu0 %v3526
    %v3597 = vpop.f32.mrb[0].mxu0
    %v3598 = vadd.f32 0.0, %v3597
    %v3599 = vpop.f32.mrb[0].mxu0
    %3600 = vmatprep.mubr.f32.mxu0 0.0
    %3601 = vmatmul.mubr.f32.gmra.mrb[0].mxu0 %v3529
    %v3602 = vpop.f32.mrb[0].mxu0
    %v3603 = vadd.f32 0.0, %v3602
    %v3604 = vpop.f32.mrb[0].mxu0
    %3605 = vdwg.mxu0
    %3606 = vrot.lane.b32.xlu0 %v3139, 64
    %v3607 = vpop.permute.xlu0 %3606
    %3608 = vrot.lane.b32.xlu0 %v3143, 64
    %v3609 = vpop.permute.xlu0 %3608
    %3610 = vrot.lane.b32.xlu0 %v3141, 64
    %v3611 = vpop.permute.xlu0 %3610
    %3612 = vrot.lane.b32.xlu0 %v3145, 64
    %v3613 = vpop.permute.xlu0 %3612
    %v3614 = vsel %vm550, %v3607, 0
    %v3616 = vsel %vm550, %v3609, 0
    %v3618 = vsel %vm550, %v3611, 0
    %v3620 = vsel %vm550, %v3613, 0
    %3622 = vmatprep.subr.mxu0 0.0
    %3623 = vmatpush1.xpose.msra.mxu0 %v3618
    %3624 = vmatprep.subr.mxu0 0.0
    %3625 = vmatpush1.xpose.msra.mxu0 %v3620
    %3626 = vmatprep.subr.mxu0 0.0
    %3627 = vmatpush1.xpose.msra.mxu0 0.0
    %3628 = vmatprep.subr.mxu0 0.0
    %3629 = vmatpush1.xpose.msra.mxu0 0.0
    %3630 = vmatprep.subr.mxu0 0.0
    %3631 = vmatpush1.xpose.msra.mxu0 0.0
    %3632 = vmatprep.subr.mxu0 0.0
    %3633 = vmatpush1.xpose.msra.mxu0 0.0
    %3634 = vmatprep.subr.mxu0 0.0
    %3635 = vmatpush1.xpose.msra.mxu0 0.0
    %3636 = vmatprep.subr.mxu0 0.0
    %3637 = vmatpush1.xpose.msra.mxu0 0.0
    %3638 = vmatprep.subr.mxu0 0.0
    %3639 = vmatpush1.xpose.msra.mxu0 0.0
    %3640 = vmatprep.subr.mxu0 0.0
    %3641 = vmatpush1.xpose.msra.mxu0 0.0
    %3642 = vmatprep.subr.mxu0 0.0
    %3643 = vmatpush1.xpose.msra.mxu0 0.0
    %3644 = vmatprep.subr.mxu0 0.0
    %3645 = vmatpush1.xpose.msra.mxu0 0.0
    %3646 = vmatprep.subr.mxu0 0.0
    %3647 = vmatpush1.xpose.msra.mxu0 0.0
    %3648 = vmatprep.subr.mxu0 0.0
    %3649 = vmatpush1.xpose.msra.mxu0 0.0
    %3650 = vmatprep.subr.mxu0 0.0
    %3651 = vmatpush1.xpose.msra.mxu0 0.0
    %3652 = vmatprep.subr.mxu0 0.0
    %3653 = vmatpush1.xpose.msra.mxu0 0.0
    %3654 = vmatprep.subr.mxu0 0.0
    %3655 = vmatpush1.xpose.msra.mxu0 0.0
    %3656 = vmatprep.subr.mxu0 0.0
    %3657 = vmatpush1.xpose.msra.mxu0 0.0
    %3658 = vmatprep.subr.mxu0 0.0
    %3659 = vmatpush1.xpose.msra.mxu0 0.0
    %3660 = vmatprep.subr.mxu0 0.0
    %3661 = vmatpush1.xpose.msra.mxu0 0.0
    %3662 = vmatprep.subr.mxu0 0.0
    %3663 = vmatpush1.xpose.msra.mxu0 0.0
    %3664 = vmatprep.subr.mxu0 0.0
    %3665 = vmatpush1.xpose.msra.mxu0 0.0
    %3666 = vmatprep.subr.mxu0 0.0
    %3667 = vmatpush1.xpose.msra.mxu0 0.0
    %3668 = vmatprep.subr.mxu0 0.0
    %3669 = vmatpush1.xpose.msra.mxu0 0.0
    %3670 = vmatprep.subr.mxu0 0.0
    %3671 = vmatpush1.xpose.msra.mxu0 0.0
    %3672 = vmatprep.subr.mxu0 0.0
    %3673 = vmatpush1.xpose.msra.mxu0 0.0
    %3674 = vmatprep.subr.mxu0 0.0
    %3675 = vmatpush1.xpose.msra.mxu0 0.0
    %3676 = vmatprep.subr.mxu0 0.0
    %3677 = vmatpush1.xpose.msra.mxu0 0.0
    %3678 = vmatprep.subr.mxu0 0.0
    %3679 = vmatpush1.xpose.msra.mxu0 0.0
    %3680 = vmatprep.subr.mxu0 0.0
    %3681 = vmatpush1.xpose.msra.mxu0 0.0
    %3682 = vmatprep.subr.mxu0 0.0
    %3683 = vmatpush1.xpose.msra.mxu0 0.0
    %3684 = vmatprep.subr.mxu0 0.0
    %3685 = vmatpush1.xpose.msra.mxu0 0.0
    %3686 = vmatprep.mubr.f32.mxu0 0.0
    %3687 = vmatmul.mubr.f32.gmra.mrb[0].mxu0 %v3614
    %v3688 = vpop.f32.mrb[0].mxu0
    %v3689 = vadd.f32 0.0, %v3688
    %v3690 = vpop.f32.mrb[0].mxu0
    %3691 = vmatprep.mubr.f32.mxu0 0.0
    %3692 = vmatmul.mubr.f32.gmra.mrb[0].mxu0 %v3616
    %v3693 = vpop.f32.mrb[0].mxu0
    %v3694 = vadd.f32 0.0, %v3693
    %v3695 = vpop.f32.mrb[0].mxu0
    %3696 = vdwg.mxu0
    %v3697 = vmul.f32 %v3689, 0.17677669
    %v3698 = vmul.f32 %v3694, 0.17677669
    %v3699 = vadd.f32 %v3697, %v643
    %v3700 = vadd.f32 %v3698, %v643
    %v3701 = vsel %vm646, %v3699, -inf
    %3702 = vmax.xlane.f32.xlu0 %v3701
    %v3703 = vpop.xlane.xlu0 %3702
    %v3704 = vsel %vm646, %v3700, -inf
    %3705 = vmax.xlane.f32.xlu0 %v3704
    %v3706 = vpop.xlane.xlu0 %3705
    %v3707 = vsub.f32 %v3699, %v3703
    %v3708 = vsub.f32 %v3700, %v3706
    %v3709 = vmul.f32 %v3707, 1.442695
    %v3710 = vpow.pop %v3709
    %v3711 = vmul.f32 %v3708, 1.442695
    %v3712 = vpow.pop %v3711
    %v3713 = vsel %vm646, %v3710, 0.0
    %3714 = vadd.xlane.f32.xlu0 %v3713
    %v3715 = vpop.xlane.xlu0 %3714
    %v3716 = vsel %vm646, %v3712, 0.0
    %3717 = vadd.xlane.f32.xlu0 %v3716
    %v3718 = vpop.xlane.xlu0 %3717
    %v3719 = vrcp.pop %v3715
    %v3720 = vrcp.pop %v3718
    %v3721 = vmul.f32 %v3710, %v3719
    %v3722 = vmul.f32 %v3712, %v3720
    %3723 = vrot.lane.b32.xlu0 %v3192, 64
    %v3724 = vpop.permute.xlu0 %3723
    %3725 = vrot.lane.b32.xlu0 %v3195, 64
    %v3726 = vpop.permute.xlu0 %3725
    %v3730 = vsel %vm646, %v3721, 0
    %v3733 = vsel %vm646, %v3722, 0
    %3735 = vmatprep.subr.mxu0 0.0
    %3736 = vmatpush1.msra.mxu0 %v3724
    %3737 = vmatprep.subr.mxu0 0.0
    %3738 = vmatpush1.msra.mxu0 %v3726
    %3739 = vmatprep.subr.mxu0 0.0
    %3740 = vmatpush1.msra.mxu0 0.0
    %3741 = vmatprep.subr.mxu0 0.0
    %3742 = vmatpush1.msra.mxu0 0.0
    %3743 = vmatprep.subr.mxu0 0.0
    %3744 = vmatpush1.msra.mxu0 0.0
    %3745 = vmatprep.subr.mxu0 0.0
    %3746 = vmatpush1.msra.mxu0 0.0
    %3747 = vmatprep.subr.mxu0 0.0
    %3748 = vmatpush1.msra.mxu0 0.0
    %3749 = vmatprep.subr.mxu0 0.0
    %3750 = vmatpush1.msra.mxu0 0.0
    %3751 = vmatprep.subr.mxu0 0.0
    %3752 = vmatpush1.msra.mxu0 0.0
    %3753 = vmatprep.subr.mxu0 0.0
    %3754 = vmatpush1.msra.mxu0 0.0
    %3755 = vmatprep.subr.mxu0 0.0
    %3756 = vmatpush1.msra.mxu0 0.0
    %3757 = vmatprep.subr.mxu0 0.0
    %3758 = vmatpush1.msra.mxu0 0.0
    %3759 = vmatprep.subr.mxu0 0.0
    %3760 = vmatpush1.msra.mxu0 0.0
    %3761 = vmatprep.subr.mxu0 0.0
    %3762 = vmatpush1.msra.mxu0 0.0
    %3763 = vmatprep.subr.mxu0 0.0
    %3764 = vmatpush1.msra.mxu0 0.0
    %3765 = vmatprep.subr.mxu0 0.0
    %3766 = vmatpush1.msra.mxu0 0.0
    %3767 = vmatprep.subr.mxu0 0.0
    %3768 = vmatpush1.msra.mxu0 0.0
    %3769 = vmatprep.subr.mxu0 0.0
    %3770 = vmatpush1.msra.mxu0 0.0
    %3771 = vmatprep.subr.mxu0 0.0
    %3772 = vmatpush1.msra.mxu0 0.0
    %3773 = vmatprep.subr.mxu0 0.0
    %3774 = vmatpush1.msra.mxu0 0.0
    %3775 = vmatprep.subr.mxu0 0.0
    %3776 = vmatpush1.msra.mxu0 0.0
    %3777 = vmatprep.subr.mxu0 0.0
    %3778 = vmatpush1.msra.mxu0 0.0
    %3779 = vmatprep.subr.mxu0 0.0
    %3780 = vmatpush1.msra.mxu0 0.0
    %3781 = vmatprep.subr.mxu0 0.0
    %3782 = vmatpush1.msra.mxu0 0.0
    %3783 = vmatprep.subr.mxu0 0.0
    %3784 = vmatpush1.msra.mxu0 0.0
    %3785 = vmatprep.subr.mxu0 0.0
    %3786 = vmatpush1.msra.mxu0 0.0
    %3787 = vmatprep.subr.mxu0 0.0
    %3788 = vmatpush1.msra.mxu0 0.0
    %3789 = vmatprep.subr.mxu0 0.0
    %3790 = vmatpush1.msra.mxu0 0.0
    %3791 = vmatprep.subr.mxu0 0.0
    %3792 = vmatpush1.msra.mxu0 0.0
    %3793 = vmatprep.subr.mxu0 0.0
    %3794 = vmatpush1.msra.mxu0 0.0
    %3795 = vmatprep.subr.mxu0 0.0
    %3796 = vmatpush1.msra.mxu0 0.0
    %3797 = vmatprep.subr.mxu0 0.0
    %3798 = vmatpush1.msra.mxu0 0.0
    %3799 = vmatprep.mubr.f32.mxu0 0.0
    %3800 = vmatmul.mubr.f32.gmra.mrb[0].mxu0 %v3730
    %v3801 = vpop.f32.mrb[0].mxu0
    %v3802 = vadd.f32 0.0, %v3801
    %v3803 = vpop.f32.mrb[0].mxu0
    %3804 = vmatprep.mubr.f32.mxu0 0.0
    %3805 = vmatmul.mubr.f32.gmra.mrb[0].mxu0 %v3733
    %v3806 = vpop.f32.mrb[0].mxu0
    %v3807 = vadd.f32 0.0, %v3806
    %v3808 = vpop.f32.mrb[0].mxu0
    %3809 = vdwg.mxu0
    %3810 = vrot.lane.b32.xlu0 %v3139, 32
    %v3811 = vpop.permute.xlu0 %3810
    %3812 = vrot.lane.b32.xlu0 %v3143, 32
    %v3813 = vpop.permute.xlu0 %3812
    %3814 = vrot.lane.b32.xlu0 %v3141, 32
    %v3815 = vpop.permute.xlu0 %3814
    %3816 = vrot.lane.b32.xlu0 %v3145, 32
    %v3817 = vpop.permute.xlu0 %3816
    %v3818 = vsel %vm550, %v3811, 0
    %v3820 = vsel %vm550, %v3813, 0
    %v3822 = vsel %vm550, %v3815, 0
    %v3824 = vsel %vm550, %v3817, 0
    %3826 = vmatprep.subr.mxu0 0.0
    %3827 = vmatpush1.xpose.msra.mxu0 %v3822
    %3828 = vmatprep.subr.mxu0 0.0
    %3829 = vmatpush1.xpose.msra.mxu0 %v3824
    %3830 = vmatprep.subr.mxu0 0.0
    %3831 = vmatpush1.xpose.msra.mxu0 0.0
    %3832 = vmatprep.subr.mxu0 0.0
    %3833 = vmatpush1.xpose.msra.mxu0 0.0
    %3834 = vmatprep.subr.mxu0 0.0
    %3835 = vmatpush1.xpose.msra.mxu0 0.0
    %3836 = vmatprep.subr.mxu0 0.0
    %3837 = vmatpush1.xpose.msra.mxu0 0.0
    %3838 = vmatprep.subr.mxu0 0.0
    %3839 = vmatpush1.xpose.msra.mxu0 0.0
    %3840 = vmatprep.subr.mxu0 0.0
    %3841 = vmatpush1.xpose.msra.mxu0 0.0
    %3842 = vmatprep.subr.mxu0 0.0
    %3843 = vmatpush1.xpose.msra.mxu0 0.0
    %3844 = vmatprep.subr.mxu0 0.0
    %3845 = vmatpush1.xpose.msra.mxu0 0.0
    %3846 = vmatprep.subr.mxu0 0.0
    %3847 = vmatpush1.xpose.msra.mxu0 0.0
    %3848 = vmatprep.subr.mxu0 0.0
    %3849 = vmatpush1.xpose.msra.mxu0 0.0
    %3850 = vmatprep.subr.mxu0 0.0
    %3851 = vmatpush1.xpose.msra.mxu0 0.0
    %3852 = vmatprep.subr.mxu0 0.0
    %3853 = vmatpush1.xpose.msra.mxu0 0.0
    %3854 = vmatprep.subr.mxu0 0.0
    %3855 = vmatpush1.xpose.msra.mxu0 0.0
    %3856 = vmatprep.subr.mxu0 0.0
    %3857 = vmatpush1.xpose.msra.mxu0 0.0
    %3858 = vmatprep.subr.mxu0 0.0
    %3859 = vmatpush1.xpose.msra.mxu0 0.0
    %3860 = vmatprep.subr.mxu0 0.0
    %3861 = vmatpush1.xpose.msra.mxu0 0.0
    %3862 = vmatprep.subr.mxu0 0.0
    %3863 = vmatpush1.xpose.msra.mxu0 0.0
    %3864 = vmatprep.subr.mxu0 0.0
    %3865 = vmatpush1.xpose.msra.mxu0 0.0
    %3866 = vmatprep.subr.mxu0 0.0
    %3867 = vmatpush1.xpose.msra.mxu0 0.0
    %3868 = vmatprep.subr.mxu0 0.0
    %3869 = vmatpush1.xpose.msra.mxu0 0.0
    %3870 = vmatprep.subr.mxu0 0.0
    %3871 = vmatpush1.xpose.msra.mxu0 0.0
    %3872 = vmatprep.subr.mxu0 0.0
    %3873 = vmatpush1.xpose.msra.mxu0 0.0
    %3874 = vmatprep.subr.mxu0 0.0
    %3875 = vmatpush1.xpose.msra.mxu0 0.0
    %3876 = vmatprep.subr.mxu0 0.0
    %3877 = vmatpush1.xpose.msra.mxu0 0.0
    %3878 = vmatprep.subr.mxu0 0.0
    %3879 = vmatpush1.xpose.msra.mxu0 0.0
    %3880 = vmatprep.subr.mxu0 0.0
    %3881 = vmatpush1.xpose.msra.mxu0 0.0
    %3882 = vmatprep.subr.mxu0 0.0
    %3883 = vmatpush1.xpose.msra.mxu0 0.0
    %3884 = vmatprep.subr.mxu0 0.0
    %3885 = vmatpush1.xpose.msra.mxu0 0.0
    %3886 = vmatprep.subr.mxu0 0.0
    %3887 = vmatpush1.xpose.msra.mxu0 0.0
    %3888 = vmatprep.subr.mxu0 0.0
    %3889 = vmatpush1.xpose.msra.mxu0 0.0
    %3890 = vmatprep.mubr.f32.mxu0 0.0
    %3891 = vmatmul.mubr.f32.gmra.mrb[0].mxu0 %v3818
    %v3892 = vpop.f32.mrb[0].mxu0
    %v3893 = vadd.f32 0.0, %v3892
    %v3894 = vpop.f32.mrb[0].mxu0
    %3895 = vmatprep.mubr.f32.mxu0 0.0
    %3896 = vmatmul.mubr.f32.gmra.mrb[0].mxu0 %v3820
    %v3897 = vpop.f32.mrb[0].mxu0
    %v3898 = vadd.f32 0.0, %v3897
    %v3899 = vpop.f32.mrb[0].mxu0
    %3900 = vdwg.mxu0
    %v3901 = vmul.f32 %v3893, 0.17677669
    %v3902 = vmul.f32 %v3898, 0.17677669
    %v3903 = vadd.f32 %v3901, %v643
    %v3904 = vadd.f32 %v3902, %v643
    %v3905 = vsel %vm646, %v3903, -inf
    %3906 = vmax.xlane.f32.xlu0 %v3905
    %v3907 = vpop.xlane.xlu0 %3906
    %v3908 = vsel %vm646, %v3904, -inf
    %3909 = vmax.xlane.f32.xlu0 %v3908
    %v3910 = vpop.xlane.xlu0 %3909
    %v3911 = vsub.f32 %v3903, %v3907
    %v3912 = vsub.f32 %v3904, %v3910
    %v3913 = vmul.f32 %v3911, 1.442695
    %v3914 = vpow.pop %v3913
    %v3915 = vmul.f32 %v3912, 1.442695
    %v3916 = vpow.pop %v3915
    %v3917 = vsel %vm646, %v3914, 0.0
    %3918 = vadd.xlane.f32.xlu0 %v3917
    %v3919 = vpop.xlane.xlu0 %3918
    %v3920 = vsel %vm646, %v3916, 0.0
    %3921 = vadd.xlane.f32.xlu0 %v3920
    %v3922 = vpop.xlane.xlu0 %3921
    %v3923 = vrcp.pop %v3919
    %v3924 = vrcp.pop %v3922
    %v3925 = vmul.f32 %v3914, %v3923
    %v3926 = vmul.f32 %v3916, %v3924
    %3927 = vrot.lane.b32.xlu0 %v3192, 32
    %v3928 = vpop.permute.xlu0 %3927
    %3929 = vrot.lane.b32.xlu0 %v3195, 32
    %v3930 = vpop.permute.xlu0 %3929
    %v3934 = vsel %vm646, %v3925, 0
    %v3937 = vsel %vm646, %v3926, 0
    %3939 = vmatprep.subr.mxu0 0.0
    %3940 = vmatpush1.msra.mxu0 %v3928
    %3941 = vmatprep.subr.mxu0 0.0
    %3942 = vmatpush1.msra.mxu0 %v3930
    %3943 = vmatprep.subr.mxu0 0.0
    %3944 = vmatpush1.msra.mxu0 0.0
    %3945 = vmatprep.subr.mxu0 0.0
    %3946 = vmatpush1.msra.mxu0 0.0
    %3947 = vmatprep.subr.mxu0 0.0
    %3948 = vmatpush1.msra.mxu0 0.0
    %3949 = vmatprep.subr.mxu0 0.0
    %3950 = vmatpush1.msra.mxu0 0.0
    %3951 = vmatprep.subr.mxu0 0.0
    %3952 = vmatpush1.msra.mxu0 0.0
    %3953 = vmatprep.subr.mxu0 0.0
    %3954 = vmatpush1.msra.mxu0 0.0
    %3955 = vmatprep.subr.mxu0 0.0
    %3956 = vmatpush1.msra.mxu0 0.0
    %3957 = vmatprep.subr.mxu0 0.0
    %3958 = vmatpush1.msra.mxu0 0.0
    %3959 = vmatprep.subr.mxu0 0.0
    %3960 = vmatpush1.msra.mxu0 0.0
    %3961 = vmatprep.subr.mxu0 0.0
    %3962 = vmatpush1.msra.mxu0 0.0
    %3963 = vmatprep.subr.mxu0 0.0
    %3964 = vmatpush1.msra.mxu0 0.0
    %3965 = vmatprep.subr.mxu0 0.0
    %3966 = vmatpush1.msra.mxu0 0.0
    %3967 = vmatprep.subr.mxu0 0.0
    %3968 = vmatpush1.msra.mxu0 0.0
    %3969 = vmatprep.subr.mxu0 0.0
    %3970 = vmatpush1.msra.mxu0 0.0
    %3971 = vmatprep.subr.mxu0 0.0
    %3972 = vmatpush1.msra.mxu0 0.0
    %3973 = vmatprep.subr.mxu0 0.0
    %3974 = vmatpush1.msra.mxu0 0.0
    %3975 = vmatprep.subr.mxu0 0.0
    %3976 = vmatpush1.msra.mxu0 0.0
    %3977 = vmatprep.subr.mxu0 0.0
    %3978 = vmatpush1.msra.mxu0 0.0
    %3979 = vmatprep.subr.mxu0 0.0
    %3980 = vmatpush1.msra.mxu0 0.0
    %3981 = vmatprep.subr.mxu0 0.0
    %3982 = vmatpush1.msra.mxu0 0.0
    %3983 = vmatprep.subr.mxu0 0.0
    %3984 = vmatpush1.msra.mxu0 0.0
    %3985 = vmatprep.subr.mxu0 0.0
    %3986 = vmatpush1.msra.mxu0 0.0
    %3987 = vmatprep.subr.mxu0 0.0
    %3988 = vmatpush1.msra.mxu0 0.0
    %3989 = vmatprep.subr.mxu0 0.0
    %3990 = vmatpush1.msra.mxu0 0.0
    %3991 = vmatprep.subr.mxu0 0.0
    %3992 = vmatpush1.msra.mxu0 0.0
    %3993 = vmatprep.subr.mxu0 0.0
    %3994 = vmatpush1.msra.mxu0 0.0
    %3995 = vmatprep.subr.mxu0 0.0
    %3996 = vmatpush1.msra.mxu0 0.0
    %3997 = vmatprep.subr.mxu0 0.0
    %3998 = vmatpush1.msra.mxu0 0.0
    %3999 = vmatprep.subr.mxu0 0.0
    %4000 = vmatpush1.msra.mxu0 0.0
    %4001 = vmatprep.subr.mxu0 0.0
    %4002 = vmatpush1.msra.mxu0 0.0
    %4003 = vmatprep.mubr.f32.mxu0 0.0
    %4004 = vmatmul.mubr.f32.gmra.mrb[0].mxu0 %v3934
    %v4005 = vpop.f32.mrb[0].mxu0
    %v4006 = vadd.f32 0.0, %v4005
    %v4007 = vpop.f32.mrb[0].mxu0
    %4008 = vmatprep.mubr.f32.mxu0 0.0
    %4009 = vmatmul.mubr.f32.gmra.mrb[0].mxu0 %v3937
    %v4010 = vpop.f32.mrb[0].mxu0
    %v4011 = vadd.f32 0.0, %v4010
    %v4012 = vpop.f32.mrb[0].mxu0
    %4013 = vdwg.mxu0
    %4016 = vrot.lane.b32.xlu0 %v3598, 32
    %v4017 = vpop.permute.xlu0 %4016
    %4018 = vrot.lane.b32.xlu0 %v3603, 32
    %v4019 = vpop.permute.xlu0 %4018
    %4024 = vrot.lane.b32.xlu0 %v3802, 64
    %v4025 = vpop.permute.xlu0 %4024
    %4026 = vrot.lane.b32.xlu0 %v3807, 64
    %v4027 = vpop.permute.xlu0 %4026
    %4032 = vrot.lane.b32.xlu0 %v4006, 96
    %v4033 = vpop.permute.xlu0 %4032
    %4034 = vrot.lane.b32.xlu0 %v4011, 96
    %v4035 = vpop.permute.xlu0 %4034
    %v4038 = vsel %vm550, %v3392, %v4017
    %v4039 = vsel %vm550, %v3397, %v4019
    %v4040 = vsel %vm1390, %v4038, %v4025
    %v4041 = vsel %vm1390, %v4039, %v4027
    %v4042 = vsel %vm1393, %v4040, %v4033
    %v4043 = vsel %vm1393, %v4041, %v4035
    %v4045 = vsel %vm550, %v3149, 0
    %v4048 = vsel %vm550, %v3153, 0
    %v4051 = vsel %vm550, %v3151, 0
    %v4054 = vsel %vm550, %v3155, 0
    %4056 = vmatprep.subr.mxu0 0.0
    %4057 = vmatpush1.xpose.msra.mxu0 %v4051
    %4058 = vmatprep.subr.mxu0 0.0
    %4059 = vmatpush1.xpose.msra.mxu0 %v4054
    %4060 = vmatprep.subr.mxu0 0.0
    %4061 = vmatpush1.xpose.msra.mxu0 0.0
    %4062 = vmatprep.subr.mxu0 0.0
    %4063 = vmatpush1.xpose.msra.mxu0 0.0
    %4064 = vmatprep.subr.mxu0 0.0
    %4065 = vmatpush1.xpose.msra.mxu0 0.0
    %4066 = vmatprep.subr.mxu0 0.0
    %4067 = vmatpush1.xpose.msra.mxu0 0.0
    %4068 = vmatprep.subr.mxu0 0.0
    %4069 = vmatpush1.xpose.msra.mxu0 0.0
    %4070 = vmatprep.subr.mxu0 0.0
    %4071 = vmatpush1.xpose.msra.mxu0 0.0
    %4072 = vmatprep.subr.mxu0 0.0
    %4073 = vmatpush1.xpose.msra.mxu0 0.0
    %4074 = vmatprep.subr.mxu0 0.0
    %4075 = vmatpush1.xpose.msra.mxu0 0.0
    %4076 = vmatprep.subr.mxu0 0.0
    %4077 = vmatpush1.xpose.msra.mxu0 0.0
    %4078 = vmatprep.subr.mxu0 0.0
    %4079 = vmatpush1.xpose.msra.mxu0 0.0
    %4080 = vmatprep.subr.mxu0 0.0
    %4081 = vmatpush1.xpose.msra.mxu0 0.0
    %4082 = vmatprep.subr.mxu0 0.0
    %4083 = vmatpush1.xpose.msra.mxu0 0.0
    %4084 = vmatprep.subr.mxu0 0.0
    %4085 = vmatpush1.xpose.msra.mxu0 0.0
    %4086 = vmatprep.subr.mxu0 0.0
    %4087 = vmatpush1.xpose.msra.mxu0 0.0
    %4088 = vmatprep.subr.mxu0 0.0
    %4089 = vmatpush1.xpose.msra.mxu0 0.0
    %4090 = vmatprep.subr.mxu0 0.0
    %4091 = vmatpush1.xpose.msra.mxu0 0.0
    %4092 = vmatprep.subr.mxu0 0.0
    %4093 = vmatpush1.xpose.msra.mxu0 0.0
    %4094 = vmatprep.subr.mxu0 0.0
    %4095 = vmatpush1.xpose.msra.mxu0 0.0
    %4096 = vmatprep.subr.mxu0 0.0
    %4097 = vmatpush1.xpose.msra.mxu0 0.0
    %4098 = vmatprep.subr.mxu0 0.0
    %4099 = vmatpush1.xpose.msra.mxu0 0.0
    %4100 = vmatprep.subr.mxu0 0.0
    %4101 = vmatpush1.xpose.msra.mxu0 0.0
    %4102 = vmatprep.subr.mxu0 0.0
    %4103 = vmatpush1.xpose.msra.mxu0 0.0
    %4104 = vmatprep.subr.mxu0 0.0
    %4105 = vmatpush1.xpose.msra.mxu0 0.0
    %4106 = vmatprep.subr.mxu0 0.0
    %4107 = vmatpush1.xpose.msra.mxu0 0.0
    %4108 = vmatprep.subr.mxu0 0.0
    %4109 = vmatpush1.xpose.msra.mxu0 0.0
    %4110 = vmatprep.subr.mxu0 0.0
    %4111 = vmatpush1.xpose.msra.mxu0 0.0
    %4112 = vmatprep.subr.mxu0 0.0
    %4113 = vmatpush1.xpose.msra.mxu0 0.0
    %4114 = vmatprep.subr.mxu0 0.0
    %4115 = vmatpush1.xpose.msra.mxu0 0.0
    %4116 = vmatprep.subr.mxu0 0.0
    %4117 = vmatpush1.xpose.msra.mxu0 0.0
    %4118 = vmatprep.subr.mxu0 0.0
    %4119 = vmatpush1.xpose.msra.mxu0 0.0
    %4120 = vmatprep.mubr.f32.mxu0 0.0
    %4121 = vmatmul.mubr.f32.gmra.mrb[0].mxu0 %v4045
    %v4122 = vpop.f32.mrb[0].mxu0
    %v4123 = vadd.f32 0.0, %v4122
    %v4124 = vpop.f32.mrb[0].mxu0
    %4125 = vmatprep.mubr.f32.mxu0 0.0
    %4126 = vmatmul.mubr.f32.gmra.mrb[0].mxu0 %v4048
    %v4127 = vpop.f32.mrb[0].mxu0
    %v4128 = vadd.f32 0.0, %v4127
    %v4129 = vpop.f32.mrb[0].mxu0
    %4130 = vdwg.mxu0
    %v4131 = vmul.f32 %v4123, 0.17677669
    %v4132 = vmul.f32 %v4128, 0.17677669
    %v4133 = vadd.f32 %v4131, %v1488
    %v4134 = vadd.f32 %v4132, %v1488
    %v4135 = vsel %vm646, %v4133, -inf
    %4136 = vmax.xlane.f32.xlu0 %v4135
    %v4137 = vpop.xlane.xlu0 %4136
    %v4138 = vsel %vm646, %v4134, -inf
    %4139 = vmax.xlane.f32.xlu0 %v4138
    %v4140 = vpop.xlane.xlu0 %4139
    %v4141 = vsub.f32 %v4133, %v4137
    %v4142 = vsub.f32 %v4134, %v4140
    %v4143 = vmul.f32 %v4141, 1.442695
    %v4144 = vpow.pop %v4143
    %v4145 = vmul.f32 %v4142, 1.442695
    %v4146 = vpow.pop %v4145
    %v4147 = vsel %vm646, %v4144, 0.0
    %4148 = vadd.xlane.f32.xlu0 %v4147
    %v4149 = vpop.xlane.xlu0 %4148
    %v4150 = vsel %vm646, %v4146, 0.0
    %4151 = vadd.xlane.f32.xlu0 %v4150
    %v4152 = vpop.xlane.xlu0 %4151
    %v4153 = vrcp.pop %v4149
    %v4154 = vrcp.pop %v4152
    %v4155 = vmul.f32 %v4144, %v4153
    %v4156 = vmul.f32 %v4146, %v4154
    %v4158 = vsel %vm646, %v4155, 0
    %v4161 = vsel %vm646, %v4156, 0
    %4163 = vmatprep.subr.mxu0 0.0
    %4164 = vmatpush1.msra.mxu0 %v3200
    %4165 = vmatprep.subr.mxu0 0.0
    %4166 = vmatpush1.msra.mxu0 %v3203
    %4167 = vmatprep.subr.mxu0 0.0
    %4168 = vmatpush1.msra.mxu0 0.0
    %4169 = vmatprep.subr.mxu0 0.0
    %4170 = vmatpush1.msra.mxu0 0.0
    %4171 = vmatprep.subr.mxu0 0.0
    %4172 = vmatpush1.msra.mxu0 0.0
    %4173 = vmatprep.subr.mxu0 0.0
    %4174 = vmatpush1.msra.mxu0 0.0
    %4175 = vmatprep.subr.mxu0 0.0
    %4176 = vmatpush1.msra.mxu0 0.0
    %4177 = vmatprep.subr.mxu0 0.0
    %4178 = vmatpush1.msra.mxu0 0.0
    %4179 = vmatprep.subr.mxu0 0.0
    %4180 = vmatpush1.msra.mxu0 0.0
    %4181 = vmatprep.subr.mxu0 0.0
    %4182 = vmatpush1.msra.mxu0 0.0
    %4183 = vmatprep.subr.mxu0 0.0
    %4184 = vmatpush1.msra.mxu0 0.0
    %4185 = vmatprep.subr.mxu0 0.0
    %4186 = vmatpush1.msra.mxu0 0.0
    %4187 = vmatprep.subr.mxu0 0.0
    %4188 = vmatpush1.msra.mxu0 0.0
    %4189 = vmatprep.subr.mxu0 0.0
    %4190 = vmatpush1.msra.mxu0 0.0
    %4191 = vmatprep.subr.mxu0 0.0
    %4192 = vmatpush1.msra.mxu0 0.0
    %4193 = vmatprep.subr.mxu0 0.0
    %4194 = vmatpush1.msra.mxu0 0.0
    %4195 = vmatprep.subr.mxu0 0.0
    %4196 = vmatpush1.msra.mxu0 0.0
    %4197 = vmatprep.subr.mxu0 0.0
    %4198 = vmatpush1.msra.mxu0 0.0
    %4199 = vmatprep.subr.mxu0 0.0
    %4200 = vmatpush1.msra.mxu0 0.0
    %4201 = vmatprep.subr.mxu0 0.0
    %4202 = vmatpush1.msra.mxu0 0.0
    %4203 = vmatprep.subr.mxu0 0.0
    %4204 = vmatpush1.msra.mxu0 0.0
    %4205 = vmatprep.subr.mxu0 0.0
    %4206 = vmatpush1.msra.mxu0 0.0
    %4207 = vmatprep.subr.mxu0 0.0
    %4208 = vmatpush1.msra.mxu0 0.0
    %4209 = vmatprep.subr.mxu0 0.0
    %4210 = vmatpush1.msra.mxu0 0.0
    %4211 = vmatprep.subr.mxu0 0.0
    %4212 = vmatpush1.msra.mxu0 0.0
    %4213 = vmatprep.subr.mxu0 0.0
    %4214 = vmatpush1.msra.mxu0 0.0
    %4215 = vmatprep.subr.mxu0 0.0
    %4216 = vmatpush1.msra.mxu0 0.0
    %4217 = vmatprep.subr.mxu0 0.0
    %4218 = vmatpush1.msra.mxu0 0.0
    %4219 = vmatprep.subr.mxu0 0.0
    %4220 = vmatpush1.msra.mxu0 0.0
    %4221 = vmatprep.subr.mxu0 0.0
    %4222 = vmatpush1.msra.mxu0 0.0
    %4223 = vmatprep.subr.mxu0 0.0
    %4224 = vmatpush1.msra.mxu0 0.0
    %4225 = vmatprep.subr.mxu0 0.0
    %4226 = vmatpush1.msra.mxu0 0.0
    %4227 = vmatprep.mubr.f32.mxu0 0.0
    %4228 = vmatmul.mubr.f32.gmra.mrb[0].mxu0 %v4158
    %v4229 = vpop.f32.mrb[0].mxu0
    %v4230 = vadd.f32 0.0, %v4229
    %v4231 = vpop.f32.mrb[0].mxu0
    %4232 = vmatprep.mubr.f32.mxu0 0.0
    %4233 = vmatmul.mubr.f32.gmra.mrb[0].mxu0 %v4161
    %v4234 = vpop.f32.mrb[0].mxu0
    %v4235 = vadd.f32 0.0, %v4234
    %v4236 = vpop.f32.mrb[0].mxu0
    %4237 = vdwg.mxu0
    %4238 = vrot.lane.b32.xlu0 %v3149, 96
    %v4239 = vpop.permute.xlu0 %4238
    %4240 = vrot.lane.b32.xlu0 %v3153, 96
    %v4241 = vpop.permute.xlu0 %4240
    %4242 = vrot.lane.b32.xlu0 %v3151, 96
    %v4243 = vpop.permute.xlu0 %4242
    %4244 = vrot.lane.b32.xlu0 %v3155, 96
    %v4245 = vpop.permute.xlu0 %4244
    %v4246 = vsel %vm550, %v4239, 0
    %v4248 = vsel %vm550, %v4241, 0
    %v4250 = vsel %vm550, %v4243, 0
    %v4252 = vsel %vm550, %v4245, 0
    %4254 = vmatprep.subr.mxu0 0.0
    %4255 = vmatpush1.xpose.msra.mxu0 %v4250
    %4256 = vmatprep.subr.mxu0 0.0
    %4257 = vmatpush1.xpose.msra.mxu0 %v4252
    %4258 = vmatprep.subr.mxu0 0.0
    %4259 = vmatpush1.xpose.msra.mxu0 0.0
    %4260 = vmatprep.subr.mxu0 0.0
    %4261 = vmatpush1.xpose.msra.mxu0 0.0
    %4262 = vmatprep.subr.mxu0 0.0
    %4263 = vmatpush1.xpose.msra.mxu0 0.0
    %4264 = vmatprep.subr.mxu0 0.0
    %4265 = vmatpush1.xpose.msra.mxu0 0.0
    %4266 = vmatprep.subr.mxu0 0.0
    %4267 = vmatpush1.xpose.msra.mxu0 0.0
    %4268 = vmatprep.subr.mxu0 0.0
    %4269 = vmatpush1.xpose.msra.mxu0 0.0
    %4270 = vmatprep.subr.mxu0 0.0
    %4271 = vmatpush1.xpose.msra.mxu0 0.0
    %4272 = vmatprep.subr.mxu0 0.0
    %4273 = vmatpush1.xpose.msra.mxu0 0.0
    %4274 = vmatprep.subr.mxu0 0.0
    %4275 = vmatpush1.xpose.msra.mxu0 0.0
    %4276 = vmatprep.subr.mxu0 0.0
    %4277 = vmatpush1.xpose.msra.mxu0 0.0
    %4278 = vmatprep.subr.mxu0 0.0
    %4279 = vmatpush1.xpose.msra.mxu0 0.0
    %4280 = vmatprep.subr.mxu0 0.0
    %4281 = vmatpush1.xpose.msra.mxu0 0.0
    %4282 = vmatprep.subr.mxu0 0.0
    %4283 = vmatpush1.xpose.msra.mxu0 0.0
    %4284 = vmatprep.subr.mxu0 0.0
    %4285 = vmatpush1.xpose.msra.mxu0 0.0
    %4286 = vmatprep.subr.mxu0 0.0
    %4287 = vmatpush1.xpose.msra.mxu0 0.0
    %4288 = vmatprep.subr.mxu0 0.0
    %4289 = vmatpush1.xpose.msra.mxu0 0.0
    %4290 = vmatprep.subr.mxu0 0.0
    %4291 = vmatpush1.xpose.msra.mxu0 0.0
    %4292 = vmatprep.subr.mxu0 0.0
    %4293 = vmatpush1.xpose.msra.mxu0 0.0
    %4294 = vmatprep.subr.mxu0 0.0
    %4295 = vmatpush1.xpose.msra.mxu0 0.0
    %4296 = vmatprep.subr.mxu0 0.0
    %4297 = vmatpush1.xpose.msra.mxu0 0.0
    %4298 = vmatprep.subr.mxu0 0.0
    %4299 = vmatpush1.xpose.msra.mxu0 0.0
    %4300 = vmatprep.subr.mxu0 0.0
    %4301 = vmatpush1.xpose.msra.mxu0 0.0
    %4302 = vmatprep.subr.mxu0 0.0
    %4303 = vmatpush1.xpose.msra.mxu0 0.0
    %4304 = vmatprep.subr.mxu0 0.0
    %4305 = vmatpush1.xpose.msra.mxu0 0.0
    %4306 = vmatprep.subr.mxu0 0.0
    %4307 = vmatpush1.xpose.msra.mxu0 0.0
    %4308 = vmatprep.subr.mxu0 0.0
    %4309 = vmatpush1.xpose.msra.mxu0 0.0
    %4310 = vmatprep.subr.mxu0 0.0
    %4311 = vmatpush1.xpose.msra.mxu0 0.0
    %4312 = vmatprep.subr.mxu0 0.0
    %4313 = vmatpush1.xpose.msra.mxu0 0.0
    %4314 = vmatprep.subr.mxu0 0.0
    %4315 = vmatpush1.xpose.msra.mxu0 0.0
    %4316 = vmatprep.subr.mxu0 0.0
    %4317 = vmatpush1.xpose.msra.mxu0 0.0
    %4318 = vmatprep.mubr.f32.mxu0 0.0
    %4319 = vmatmul.mubr.f32.gmra.mrb[0].mxu0 %v4246
    %v4320 = vpop.f32.mrb[0].mxu0
    %v4321 = vadd.f32 0.0, %v4320
    %v4322 = vpop.f32.mrb[0].mxu0
    %4323 = vmatprep.mubr.f32.mxu0 0.0
    %4324 = vmatmul.mubr.f32.gmra.mrb[0].mxu0 %v4248
    %v4325 = vpop.f32.mrb[0].mxu0
    %v4326 = vadd.f32 0.0, %v4325
    %v4327 = vpop.f32.mrb[0].mxu0
    %4328 = vdwg.mxu0
    %v4329 = vmul.f32 %v4321, 0.17677669
    %v4330 = vmul.f32 %v4326, 0.17677669
    %v4331 = vadd.f32 %v4329, %v1488
    %v4332 = vadd.f32 %v4330, %v1488
    %v4333 = vsel %vm646, %v4331, -inf
    %4334 = vmax.xlane.f32.xlu0 %v4333
    %v4335 = vpop.xlane.xlu0 %4334
    %v4336 = vsel %vm646, %v4332, -inf
    %4337 = vmax.xlane.f32.xlu0 %v4336
    %v4338 = vpop.xlane.xlu0 %4337
    %v4339 = vsub.f32 %v4331, %v4335
    %v4340 = vsub.f32 %v4332, %v4338
    %v4341 = vmul.f32 %v4339, 1.442695
    %v4342 = vpow.pop %v4341
    %v4343 = vmul.f32 %v4340, 1.442695
    %v4344 = vpow.pop %v4343
    %v4345 = vsel %vm646, %v4342, 0.0
    %4346 = vadd.xlane.f32.xlu0 %v4345
    %v4347 = vpop.xlane.xlu0 %4346
    %v4348 = vsel %vm646, %v4344, 0.0
    %4349 = vadd.xlane.f32.xlu0 %v4348
    %v4350 = vpop.xlane.xlu0 %4349
    %v4351 = vrcp.pop %v4347
    %v4352 = vrcp.pop %v4350
    %v4353 = vmul.f32 %v4342, %v4351
    %v4354 = vmul.f32 %v4344, %v4352
    %4357 = vrot.lane.b32.xlu0 %v3200, 96
    %v4358 = vpop.permute.xlu0 %4357
    %4359 = vrot.lane.b32.xlu0 %v3203, 96
    %v4360 = vpop.permute.xlu0 %4359
    %v4364 = vsel %vm646, %v4353, 0
    %v4367 = vsel %vm646, %v4354, 0
    %4369 = vmatprep.subr.mxu0 0.0
    %4370 = vmatpush1.msra.mxu0 %v4358
    %4371 = vmatprep.subr.mxu0 0.0
    %4372 = vmatpush1.msra.mxu0 %v4360
    %4373 = vmatprep.subr.mxu0 0.0
    %4374 = vmatpush1.msra.mxu0 0.0
    %4375 = vmatprep.subr.mxu0 0.0
    %4376 = vmatpush1.msra.mxu0 0.0
    %4377 = vmatprep.subr.mxu0 0.0
    %4378 = vmatpush1.msra.mxu0 0.0
    %4379 = vmatprep.subr.mxu0 0.0
    %4380 = vmatpush1.msra.mxu0 0.0
    %4381 = vmatprep.subr.mxu0 0.0
    %4382 = vmatpush1.msra.mxu0 0.0
    %4383 = vmatprep.subr.mxu0 0.0
    %4384 = vmatpush1.msra.mxu0 0.0
    %4385 = vmatprep.subr.mxu0 0.0
    %4386 = vmatpush1.msra.mxu0 0.0
    %4387 = vmatprep.subr.mxu0 0.0
    %4388 = vmatpush1.msra.mxu0 0.0
    %4389 = vmatprep.subr.mxu0 0.0
    %4390 = vmatpush1.msra.mxu0 0.0
    %4391 = vmatprep.subr.mxu0 0.0
    %4392 = vmatpush1.msra.mxu0 0.0
    %4393 = vmatprep.subr.mxu0 0.0
    %4394 = vmatpush1.msra.mxu0 0.0
    %4395 = vmatprep.subr.mxu0 0.0
    %4396 = vmatpush1.msra.mxu0 0.0
    %4397 = vmatprep.subr.mxu0 0.0
    %4398 = vmatpush1.msra.mxu0 0.0
    %4399 = vmatprep.subr.mxu0 0.0
    %4400 = vmatpush1.msra.mxu0 0.0
    %4401 = vmatprep.subr.mxu0 0.0
    %4402 = vmatpush1.msra.mxu0 0.0
    %4403 = vmatprep.subr.mxu0 0.0
    %4404 = vmatpush1.msra.mxu0 0.0
    %4405 = vmatprep.subr.mxu0 0.0
    %4406 = vmatpush1.msra.mxu0 0.0
    %4407 = vmatprep.subr.mxu0 0.0
    %4408 = vmatpush1.msra.mxu0 0.0
    %4409 = vmatprep.subr.mxu0 0.0
    %4410 = vmatpush1.msra.mxu0 0.0
    %4411 = vmatprep.subr.mxu0 0.0
    %4412 = vmatpush1.msra.mxu0 0.0
    %4413 = vmatprep.subr.mxu0 0.0
    %4414 = vmatpush1.msra.mxu0 0.0
    %4415 = vmatprep.subr.mxu0 0.0
    %4416 = vmatpush1.msra.mxu0 0.0
    %4417 = vmatprep.subr.mxu0 0.0
    %4418 = vmatpush1.msra.mxu0 0.0
    %4419 = vmatprep.subr.mxu0 0.0
    %4420 = vmatpush1.msra.mxu0 0.0
    %4421 = vmatprep.subr.mxu0 0.0
    %4422 = vmatpush1.msra.mxu0 0.0
    %4423 = vmatprep.subr.mxu0 0.0
    %4424 = vmatpush1.msra.mxu0 0.0
    %4425 = vmatprep.subr.mxu0 0.0
    %4426 = vmatpush1.msra.mxu0 0.0
    %4427 = vmatprep.subr.mxu0 0.0
    %4428 = vmatpush1.msra.mxu0 0.0
    %4429 = vmatprep.subr.mxu0 0.0
    %4430 = vmatpush1.msra.mxu0 0.0
    %4431 = vmatprep.subr.mxu0 0.0
    %4432 = vmatpush1.msra.mxu0 0.0
    %4433 = vmatprep.mubr.f32.mxu0 0.0
    %4434 = vmatmul.mubr.f32.gmra.mrb[0].mxu0 %v4364
    %v4435 = vpop.f32.mrb[0].mxu0
    %v4436 = vadd.f32 0.0, %v4435
    %v4437 = vpop.f32.mrb[0].mxu0
    %4438 = vmatprep.mubr.f32.mxu0 0.0
    %4439 = vmatmul.mubr.f32.gmra.mrb[0].mxu0 %v4367
    %v4440 = vpop.f32.mrb[0].mxu0
    %v4441 = vadd.f32 0.0, %v4440
    %v4442 = vpop.f32.mrb[0].mxu0
    %4443 = vdwg.mxu0
    %4444 = vrot.lane.b32.xlu0 %v3149, 64
    %v4445 = vpop.permute.xlu0 %4444
    %4446 = vrot.lane.b32.xlu0 %v3153, 64
    %v4447 = vpop.permute.xlu0 %4446
    %4448 = vrot.lane.b32.xlu0 %v3151, 64
    %v4449 = vpop.permute.xlu0 %4448
    %4450 = vrot.lane.b32.xlu0 %v3155, 64
    %v4451 = vpop.permute.xlu0 %4450
    %v4452 = vsel %vm550, %v4445, 0
    %v4454 = vsel %vm550, %v4447, 0
    %v4456 = vsel %vm550, %v4449, 0
    %v4458 = vsel %vm550, %v4451, 0
    %4460 = vmatprep.subr.mxu0 0.0
    %4461 = vmatpush1.xpose.msra.mxu0 %v4456
    %4462 = vmatprep.subr.mxu0 0.0
    %4463 = vmatpush1.xpose.msra.mxu0 %v4458
    %4464 = vmatprep.subr.mxu0 0.0
    %4465 = vmatpush1.xpose.msra.mxu0 0.0
    %4466 = vmatprep.subr.mxu0 0.0
    %4467 = vmatpush1.xpose.msra.mxu0 0.0
    %4468 = vmatprep.subr.mxu0 0.0
    %4469 = vmatpush1.xpose.msra.mxu0 0.0
    %4470 = vmatprep.subr.mxu0 0.0
    %4471 = vmatpush1.xpose.msra.mxu0 0.0
    %4472 = vmatprep.subr.mxu0 0.0
    %4473 = vmatpush1.xpose.msra.mxu0 0.0
    %4474 = vmatprep.subr.mxu0 0.0
    %4475 = vmatpush1.xpose.msra.mxu0 0.0
    %4476 = vmatprep.subr.mxu0 0.0
    %4477 = vmatpush1.xpose.msra.mxu0 0.0
    %4478 = vmatprep.subr.mxu0 0.0
    %4479 = vmatpush1.xpose.msra.mxu0 0.0
    %4480 = vmatprep.subr.mxu0 0.0
    %4481 = vmatpush1.xpose.msra.mxu0 0.0
    %4482 = vmatprep.subr.mxu0 0.0
    %4483 = vmatpush1.xpose.msra.mxu0 0.0
    %4484 = vmatprep.subr.mxu0 0.0
    %4485 = vmatpush1.xpose.msra.mxu0 0.0
    %4486 = vmatprep.subr.mxu0 0.0
    %4487 = vmatpush1.xpose.msra.mxu0 0.0
    %4488 = vmatprep.subr.mxu0 0.0
    %4489 = vmatpush1.xpose.msra.mxu0 0.0
    %4490 = vmatprep.subr.mxu0 0.0
    %4491 = vmatpush1.xpose.msra.mxu0 0.0
    %4492 = vmatprep.subr.mxu0 0.0
    %4493 = vmatpush1.xpose.msra.mxu0 0.0
    %4494 = vmatprep.subr.mxu0 0.0
    %4495 = vmatpush1.xpose.msra.mxu0 0.0
    %4496 = vmatprep.subr.mxu0 0.0
    %4497 = vmatpush1.xpose.msra.mxu0 0.0
    %4498 = vmatprep.subr.mxu0 0.0
    %4499 = vmatpush1.xpose.msra.mxu0 0.0
    %4500 = vmatprep.subr.mxu0 0.0
    %4501 = vmatpush1.xpose.msra.mxu0 0.0
    %4502 = vmatprep.subr.mxu0 0.0
    %4503 = vmatpush1.xpose.msra.mxu0 0.0
    %4504 = vmatprep.subr.mxu0 0.0
    %4505 = vmatpush1.xpose.msra.mxu0 0.0
    %4506 = vmatprep.subr.mxu0 0.0
    %4507 = vmatpush1.xpose.msra.mxu0 0.0
    %4508 = vmatprep.subr.mxu0 0.0
    %4509 = vmatpush1.xpose.msra.mxu0 0.0
    %4510 = vmatprep.subr.mxu0 0.0
    %4511 = vmatpush1.xpose.msra.mxu0 0.0
    %4512 = vmatprep.subr.mxu0 0.0
    %4513 = vmatpush1.xpose.msra.mxu0 0.0
    %4514 = vmatprep.subr.mxu0 0.0
    %4515 = vmatpush1.xpose.msra.mxu0 0.0
    %4516 = vmatprep.subr.mxu0 0.0
    %4517 = vmatpush1.xpose.msra.mxu0 0.0
    %4518 = vmatprep.subr.mxu0 0.0
    %4519 = vmatpush1.xpose.msra.mxu0 0.0
    %4520 = vmatprep.subr.mxu0 0.0
    %4521 = vmatpush1.xpose.msra.mxu0 0.0
    %4522 = vmatprep.subr.mxu0 0.0
    %4523 = vmatpush1.xpose.msra.mxu0 0.0
    %4524 = vmatprep.mubr.f32.mxu0 0.0
    %4525 = vmatmul.mubr.f32.gmra.mrb[0].mxu0 %v4452
    %v4526 = vpop.f32.mrb[0].mxu0
    %v4527 = vadd.f32 0.0, %v4526
    %v4528 = vpop.f32.mrb[0].mxu0
    %4529 = vmatprep.mubr.f32.mxu0 0.0
    %4530 = vmatmul.mubr.f32.gmra.mrb[0].mxu0 %v4454
    %v4531 = vpop.f32.mrb[0].mxu0
    %v4532 = vadd.f32 0.0, %v4531
    %v4533 = vpop.f32.mrb[0].mxu0
    %4534 = vdwg.mxu0
    %v4535 = vmul.f32 %v4527, 0.17677669
    %v4536 = vmul.f32 %v4532, 0.17677669
    %v4537 = vadd.f32 %v4535, %v1488
    %v4538 = vadd.f32 %v4536, %v1488
    %v4539 = vsel %vm646, %v4537, -inf
    %4540 = vmax.xlane.f32.xlu0 %v4539
    %v4541 = vpop.xlane.xlu0 %4540
    %v4542 = vsel %vm646, %v4538, -inf
    %4543 = vmax.xlane.f32.xlu0 %v4542
    %v4544 = vpop.xlane.xlu0 %4543
    %v4545 = vsub.f32 %v4537, %v4541
    %v4546 = vsub.f32 %v4538, %v4544
    %v4547 = vmul.f32 %v4545, 1.442695
    %v4548 = vpow.pop %v4547
    %v4549 = vmul.f32 %v4546, 1.442695
    %v4550 = vpow.pop %v4549
    %v4551 = vsel %vm646, %v4548, 0.0
    %4552 = vadd.xlane.f32.xlu0 %v4551
    %v4553 = vpop.xlane.xlu0 %4552
    %v4554 = vsel %vm646, %v4550, 0.0
    %4555 = vadd.xlane.f32.xlu0 %v4554
    %v4556 = vpop.xlane.xlu0 %4555
    %v4557 = vrcp.pop %v4553
    %v4558 = vrcp.pop %v4556
    %v4559 = vmul.f32 %v4548, %v4557
    %v4560 = vmul.f32 %v4550, %v4558
    %4561 = vrot.lane.b32.xlu0 %v3200, 64
    %v4562 = vpop.permute.xlu0 %4561
    %4563 = vrot.lane.b32.xlu0 %v3203, 64
    %v4564 = vpop.permute.xlu0 %4563
    %v4568 = vsel %vm646, %v4559, 0
    %v4571 = vsel %vm646, %v4560, 0
    %4573 = vmatprep.subr.mxu0 0.0
    %4574 = vmatpush1.msra.mxu0 %v4562
    %4575 = vmatprep.subr.mxu0 0.0
    %4576 = vmatpush1.msra.mxu0 %v4564
    %4577 = vmatprep.subr.mxu0 0.0
    %4578 = vmatpush1.msra.mxu0 0.0
    %4579 = vmatprep.subr.mxu0 0.0
    %4580 = vmatpush1.msra.mxu0 0.0
    %4581 = vmatprep.subr.mxu0 0.0
    %4582 = vmatpush1.msra.mxu0 0.0
    %4583 = vmatprep.subr.mxu0 0.0
    %4584 = vmatpush1.msra.mxu0 0.0
    %4585 = vmatprep.subr.mxu0 0.0
    %4586 = vmatpush1.msra.mxu0 0.0
    %4587 = vmatprep.subr.mxu0 0.0
    %4588 = vmatpush1.msra.mxu0 0.0
    %4589 = vmatprep.subr.mxu0 0.0
    %4590 = vmatpush1.msra.mxu0 0.0
    %4591 = vmatprep.subr.mxu0 0.0
    %4592 = vmatpush1.msra.mxu0 0.0
    %4593 = vmatprep.subr.mxu0 0.0
    %4594 = vmatpush1.msra.mxu0 0.0
    %4595 = vmatprep.subr.mxu0 0.0
    %4596 = vmatpush1.msra.mxu0 0.0
    %4597 = vmatprep.subr.mxu0 0.0
    %4598 = vmatpush1.msra.mxu0 0.0
    %4599 = vmatprep.subr.mxu0 0.0
    %4600 = vmatpush1.msra.mxu0 0.0
    %4601 = vmatprep.subr.mxu0 0.0
    %4602 = vmatpush1.msra.mxu0 0.0
    %4603 = vmatprep.subr.mxu0 0.0
    %4604 = vmatpush1.msra.mxu0 0.0
    %4605 = vmatprep.subr.mxu0 0.0
    %4606 = vmatpush1.msra.mxu0 0.0
    %4607 = vmatprep.subr.mxu0 0.0
    %4608 = vmatpush1.msra.mxu0 0.0
    %4609 = vmatprep.subr.mxu0 0.0
    %4610 = vmatpush1.msra.mxu0 0.0
    %4611 = vmatprep.subr.mxu0 0.0
    %4612 = vmatpush1.msra.mxu0 0.0
    %4613 = vmatprep.subr.mxu0 0.0
    %4614 = vmatpush1.msra.mxu0 0.0
    %4615 = vmatprep.subr.mxu0 0.0
    %4616 = vmatpush1.msra.mxu0 0.0
    %4617 = vmatprep.subr.mxu0 0.0
    %4618 = vmatpush1.msra.mxu0 0.0
    %4619 = vmatprep.subr.mxu0 0.0
    %4620 = vmatpush1.msra.mxu0 0.0
    %4621 = vmatprep.subr.mxu0 0.0
    %4622 = vmatpush1.msra.mxu0 0.0
    %4623 = vmatprep.subr.mxu0 0.0
    %4624 = vmatpush1.msra.mxu0 0.0
    %4625 = vmatprep.subr.mxu0 0.0
    %4626 = vmatpush1.msra.mxu0 0.0
    %4627 = vmatprep.subr.mxu0 0.0
    %4628 = vmatpush1.msra.mxu0 0.0
    %4629 = vmatprep.subr.mxu0 0.0
    %4630 = vmatpush1.msra.mxu0 0.0
    %4631 = vmatprep.subr.mxu0 0.0
    %4632 = vmatpush1.msra.mxu0 0.0
    %4633 = vmatprep.subr.mxu0 0.0
    %4634 = vmatpush1.msra.mxu0 0.0
    %4635 = vmatprep.subr.mxu0 0.0
    %4636 = vmatpush1.msra.mxu0 0.0
    %4637 = vmatprep.mubr.f32.mxu0 0.0
    %4638 = vmatmul.mubr.f32.gmra.mrb[0].mxu0 %v4568
    %v4639 = vpop.f32.mrb[0].mxu0
    %v4640 = vadd.f32 0.0, %v4639
    %v4641 = vpop.f32.mrb[0].mxu0
    %4642 = vmatprep.mubr.f32.mxu0 0.0
    %4643 = vmatmul.mubr.f32.gmra.mrb[0].mxu0 %v4571
    %v4644 = vpop.f32.mrb[0].mxu0
    %v4645 = vadd.f32 0.0, %v4644
    %v4646 = vpop.f32.mrb[0].mxu0
    %4647 = vdwg.mxu0
    %4648 = vrot.lane.b32.xlu0 %v3149, 32
    %v4649 = vpop.permute.xlu0 %4648
    %4650 = vrot.lane.b32.xlu0 %v3153, 32
    %v4651 = vpop.permute.xlu0 %4650
    %4652 = vrot.lane.b32.xlu0 %v3151, 32
    %v4653 = vpop.permute.xlu0 %4652
    %4654 = vrot.lane.b32.xlu0 %v3155, 32
    %v4655 = vpop.permute.xlu0 %4654
    %v4656 = vsel %vm550, %v4649, 0
    %v4658 = vsel %vm550, %v4651, 0
    %v4660 = vsel %vm550, %v4653, 0
    %v4662 = vsel %vm550, %v4655, 0
    %4664 = vmatprep.subr.mxu0 0.0
    %4665 = vmatpush1.xpose.msra.mxu0 %v4660
    %4666 = vmatprep.subr.mxu0 0.0
    %4667 = vmatpush1.xpose.msra.mxu0 %v4662
    %4668 = vmatprep.subr.mxu0 0.0
    %4669 = vmatpush1.xpose.msra.mxu0 0.0
    %4670 = vmatprep.subr.mxu0 0.0
    %4671 = vmatpush1.xpose.msra.mxu0 0.0
    %4672 = vmatprep.subr.mxu0 0.0
    %4673 = vmatpush1.xpose.msra.mxu0 0.0
    %4674 = vmatprep.subr.mxu0 0.0
    %4675 = vmatpush1.xpose.msra.mxu0 0.0
    %4676 = vmatprep.subr.mxu0 0.0
    %4677 = vmatpush1.xpose.msra.mxu0 0.0
    %4678 = vmatprep.subr.mxu0 0.0
    %4679 = vmatpush1.xpose.msra.mxu0 0.0
    %4680 = vmatprep.subr.mxu0 0.0
    %4681 = vmatpush1.xpose.msra.mxu0 0.0
    %4682 = vmatprep.subr.mxu0 0.0
    %4683 = vmatpush1.xpose.msra.mxu0 0.0
    %4684 = vmatprep.subr.mxu0 0.0
    %4685 = vmatpush1.xpose.msra.mxu0 0.0
    %4686 = vmatprep.subr.mxu0 0.0
    %4687 = vmatpush1.xpose.msra.mxu0 0.0
    %4688 = vmatprep.subr.mxu0 0.0
    %4689 = vmatpush1.xpose.msra.mxu0 0.0
    %4690 = vmatprep.subr.mxu0 0.0
    %4691 = vmatpush1.xpose.msra.mxu0 0.0
    %4692 = vmatprep.subr.mxu0 0.0
    %4693 = vmatpush1.xpose.msra.mxu0 0.0
    %4694 = vmatprep.subr.mxu0 0.0
    %4695 = vmatpush1.xpose.msra.mxu0 0.0
    %4696 = vmatprep.subr.mxu0 0.0
    %4697 = vmatpush1.xpose.msra.mxu0 0.0
    %4698 = vmatprep.subr.mxu0 0.0
    %4699 = vmatpush1.xpose.msra.mxu0 0.0
    %4700 = vmatprep.subr.mxu0 0.0
    %4701 = vmatpush1.xpose.msra.mxu0 0.0
    %4702 = vmatprep.subr.mxu0 0.0
    %4703 = vmatpush1.xpose.msra.mxu0 0.0
    %4704 = vmatprep.subr.mxu0 0.0
    %4705 = vmatpush1.xpose.msra.mxu0 0.0
    %4706 = vmatprep.subr.mxu0 0.0
    %4707 = vmatpush1.xpose.msra.mxu0 0.0
    %4708 = vmatprep.subr.mxu0 0.0
    %4709 = vmatpush1.xpose.msra.mxu0 0.0
    %4710 = vmatprep.subr.mxu0 0.0
    %4711 = vmatpush1.xpose.msra.mxu0 0.0
    %4712 = vmatprep.subr.mxu0 0.0
    %4713 = vmatpush1.xpose.msra.mxu0 0.0
    %4714 = vmatprep.subr.mxu0 0.0
    %4715 = vmatpush1.xpose.msra.mxu0 0.0
    %4716 = vmatprep.subr.mxu0 0.0
    %4717 = vmatpush1.xpose.msra.mxu0 0.0
    %4718 = vmatprep.subr.mxu0 0.0
    %4719 = vmatpush1.xpose.msra.mxu0 0.0
    %4720 = vmatprep.subr.mxu0 0.0
    %4721 = vmatpush1.xpose.msra.mxu0 0.0
    %4722 = vmatprep.subr.mxu0 0.0
    %4723 = vmatpush1.xpose.msra.mxu0 0.0
    %4724 = vmatprep.subr.mxu0 0.0
    %4725 = vmatpush1.xpose.msra.mxu0 0.0
    %4726 = vmatprep.subr.mxu0 0.0
    %4727 = vmatpush1.xpose.msra.mxu0 0.0
    %4728 = vmatprep.mubr.f32.mxu0 0.0
    %4729 = vmatmul.mubr.f32.gmra.mrb[0].mxu0 %v4656
    %v4730 = vpop.f32.mrb[0].mxu0
    %v4731 = vadd.f32 0.0, %v4730
    %v4732 = vpop.f32.mrb[0].mxu0
    %4733 = vmatprep.mubr.f32.mxu0 0.0
    %4734 = vmatmul.mubr.f32.gmra.mrb[0].mxu0 %v4658
    %v4735 = vpop.f32.mrb[0].mxu0
    %v4736 = vadd.f32 0.0, %v4735
    %v4737 = vpop.f32.mrb[0].mxu0
    %4738 = vdwg.mxu0
    %v4739 = vmul.f32 %v4731, 0.17677669
    %v4740 = vmul.f32 %v4736, 0.17677669
    %v4741 = vadd.f32 %v4739, %v1488
    %v4742 = vadd.f32 %v4740, %v1488
    %v4743 = vsel %vm646, %v4741, -inf
    %4744 = vmax.xlane.f32.xlu0 %v4743
    %v4745 = vpop.xlane.xlu0 %4744
    %v4746 = vsel %vm646, %v4742, -inf
    %4747 = vmax.xlane.f32.xlu0 %v4746
    %v4748 = vpop.xlane.xlu0 %4747
    %v4749 = vsub.f32 %v4741, %v4745
    %v4750 = vsub.f32 %v4742, %v4748
    %v4751 = vmul.f32 %v4749, 1.442695
    %v4752 = vpow.pop %v4751
    %v4753 = vmul.f32 %v4750, 1.442695
    %v4754 = vpow.pop %v4753
    %v4755 = vsel %vm646, %v4752, 0.0
    %4756 = vadd.xlane.f32.xlu0 %v4755
    %v4757 = vpop.xlane.xlu0 %4756
    %v4758 = vsel %vm646, %v4754, 0.0
    %4759 = vadd.xlane.f32.xlu0 %v4758
    %v4760 = vpop.xlane.xlu0 %4759
    %v4761 = vrcp.pop %v4757
    %v4762 = vrcp.pop %v4760
    %v4763 = vmul.f32 %v4752, %v4761
    %v4764 = vmul.f32 %v4754, %v4762
    %4765 = vrot.lane.b32.xlu0 %v3200, 32
    %v4766 = vpop.permute.xlu0 %4765
    %4767 = vrot.lane.b32.xlu0 %v3203, 32
    %v4768 = vpop.permute.xlu0 %4767
    %v4772 = vsel %vm646, %v4763, 0
    %v4775 = vsel %vm646, %v4764, 0
    %4777 = vmatprep.subr.mxu0 0.0
    %4778 = vmatpush1.msra.mxu0 %v4766
    %4779 = vmatprep.subr.mxu0 0.0
    %4780 = vmatpush1.msra.mxu0 %v4768
    %4781 = vmatprep.subr.mxu0 0.0
    %4782 = vmatpush1.msra.mxu0 0.0
    %4783 = vmatprep.subr.mxu0 0.0
    %4784 = vmatpush1.msra.mxu0 0.0
    %4785 = vmatprep.subr.mxu0 0.0
    %4786 = vmatpush1.msra.mxu0 0.0
    %4787 = vmatprep.subr.mxu0 0.0
    %4788 = vmatpush1.msra.mxu0 0.0
    %4789 = vmatprep.subr.mxu0 0.0
    %4790 = vmatpush1.msra.mxu0 0.0
    %4791 = vmatprep.subr.mxu0 0.0
    %4792 = vmatpush1.msra.mxu0 0.0
    %4793 = vmatprep.subr.mxu0 0.0
    %4794 = vmatpush1.msra.mxu0 0.0
    %4795 = vmatprep.subr.mxu0 0.0
    %4796 = vmatpush1.msra.mxu0 0.0
    %4797 = vmatprep.subr.mxu0 0.0
    %4798 = vmatpush1.msra.mxu0 0.0
    %4799 = vmatprep.subr.mxu0 0.0
    %4800 = vmatpush1.msra.mxu0 0.0
    %4801 = vmatprep.subr.mxu0 0.0
    %4802 = vmatpush1.msra.mxu0 0.0
    %4803 = vmatprep.subr.mxu0 0.0
    %4804 = vmatpush1.msra.mxu0 0.0
    %4805 = vmatprep.subr.mxu0 0.0
    %4806 = vmatpush1.msra.mxu0 0.0
    %4807 = vmatprep.subr.mxu0 0.0
    %4808 = vmatpush1.msra.mxu0 0.0
    %4809 = vmatprep.subr.mxu0 0.0
    %4810 = vmatpush1.msra.mxu0 0.0
    %4811 = vmatprep.subr.mxu0 0.0
    %4812 = vmatpush1.msra.mxu0 0.0
    %4813 = vmatprep.subr.mxu0 0.0
    %4814 = vmatpush1.msra.mxu0 0.0
    %4815 = vmatprep.subr.mxu0 0.0
    %4816 = vmatpush1.msra.mxu0 0.0
    %4817 = vmatprep.subr.mxu0 0.0
    %4818 = vmatpush1.msra.mxu0 0.0
    %4819 = vmatprep.subr.mxu0 0.0
    %4820 = vmatpush1.msra.mxu0 0.0
    %4821 = vmatprep.subr.mxu0 0.0
    %4822 = vmatpush1.msra.mxu0 0.0
    %4823 = vmatprep.subr.mxu0 0.0
    %4824 = vmatpush1.msra.mxu0 0.0
    %4825 = vmatprep.subr.mxu0 0.0
    %4826 = vmatpush1.msra.mxu0 0.0
    %4827 = vmatprep.subr.mxu0 0.0
    %4828 = vmatpush1.msra.mxu0 0.0
    %4829 = vmatprep.subr.mxu0 0.0
    %4830 = vmatpush1.msra.mxu0 0.0
    %4831 = vmatprep.subr.mxu0 0.0
    %4832 = vmatpush1.msra.mxu0 0.0
    %4833 = vmatprep.subr.mxu0 0.0
    %4834 = vmatpush1.msra.mxu0 0.0
    %4835 = vmatprep.subr.mxu0 0.0
    %4836 = vmatpush1.msra.mxu0 0.0
    %4837 = vmatprep.subr.mxu0 0.0
    %4838 = vmatpush1.msra.mxu0 0.0
    %4839 = vmatprep.subr.mxu0 0.0
    %4840 = vmatpush1.msra.mxu0 0.0
    %4841 = vmatprep.mubr.f32.mxu0 0.0
    %4842 = vmatmul.mubr.f32.gmra.mrb[0].mxu0 %v4772
    %v4843 = vpop.f32.mrb[0].mxu0
    %v4844 = vadd.f32 0.0, %v4843
    %v4845 = vpop.f32.mrb[0].mxu0
    %4846 = vmatprep.mubr.f32.mxu0 0.0
    %4847 = vmatmul.mubr.f32.gmra.mrb[0].mxu0 %v4775
    %v4848 = vpop.f32.mrb[0].mxu0
    %v4849 = vadd.f32 0.0, %v4848
    %v4850 = vpop.f32.mrb[0].mxu0
    %4851 = vdwg.mxu0
    %4854 = vrot.lane.b32.xlu0 %v4436, 32
    %v4855 = vpop.permute.xlu0 %4854
    %4856 = vrot.lane.b32.xlu0 %v4441, 32
    %v4857 = vpop.permute.xlu0 %4856
    %4862 = vrot.lane.b32.xlu0 %v4640, 64
    %v4863 = vpop.permute.xlu0 %4862
    %4864 = vrot.lane.b32.xlu0 %v4645, 64
    %v4865 = vpop.permute.xlu0 %4864
    %4870 = vrot.lane.b32.xlu0 %v4844, 96
    %v4871 = vpop.permute.xlu0 %4870
    %4872 = vrot.lane.b32.xlu0 %v4849, 96
    %v4873 = vpop.permute.xlu0 %4872
    %v4876 = vsel %vm550, %v4230, %v4855
    %v4877 = vsel %vm550, %v4235, %v4857
    %v4878 = vsel %vm1390, %v4876, %v4863
    %v4879 = vsel %vm1390, %v4877, %v4865
    %v4880 = vsel %vm1393, %v4878, %v4871
    %v4881 = vsel %vm1393, %v4879, %v4873
    %s4882 = scalar_lea.vmem [#allocation11], 64
    %v4883 = vld [vmem:[%s4882] sm:$0xf]
    %v4884 = vld [vmem:[%s4882 + $0x4] sm:$0xf]
    %v4885 = vld [vmem:[%s4882 + $0x8] sm:$0xf]
    %v4886 = vld [vmem:[%s4882 + $0xc] sm:$0xf]
    %v4887 = vld [vmem:[%s4882 + $0x10] sm:$0xf]
    %v4888 = vld [vmem:[%s4882 + $0x14] sm:$0xf]
    %v4889 = vld [vmem:[%s4882 + $0x18] sm:$0xf]
    %v4890 = vld [vmem:[%s4882 + $0x1c] sm:$0xf]
    %v4891 = vld [vmem:[%s4882 + $0x20] sm:$0xf]
    %v4892 = vld [vmem:[%s4882 + $0x24] sm:$0xf]
    %v4893 = vld [vmem:[%s4882 + $0x28] sm:$0xf]
    %v4894 = vld [vmem:[%s4882 + $0x2c] sm:$0xf]
    %v4895 = vld [vmem:[%s4882 + $0x30] sm:$0xf]
    %v4896 = vld [vmem:[%s4882 + $0x34] sm:$0xf]
    %v4897 = vld [vmem:[%s4882 + $0x38] sm:$0xf]
    %v4898 = vld [vmem:[%s4882 + $0x3c] sm:$0xf]
    %v4899 = vpack.c.bf16 %v4043, %v4042
    %v4900 = vpack.c.bf16 %v4881, %v4880
    %s4901 = scalar_lea.vmem %s7, 1
    %v4902 = vld [vmem:[%s4901] sm:$0x1]
    %v4904 = vlaneseq
    %v4905 = vshrl.u32 %v4904, 7
    %v4906 = vsub.s32 0, %v4905
    %v4907 = vrot.slane %v4902, %v4906
    %v4925 = vunpack.c.l.b16 %v4883
    %v4926 = vunpack.c.l.b16 %v4884
    %v4927 = vunpack.c.l.b16 %v4885
    %v4928 = vunpack.c.l.b16 %v4886
    %v4929 = vunpack.c.l.b16 %v4887
    %v4930 = vunpack.c.l.b16 %v4888
    %v4931 = vunpack.c.l.b16 %v4889
    %v4932 = vunpack.c.l.b16 %v4890
    %v4933 = vunpack.c.l.b16 %v4891
    %v4934 = vunpack.c.l.b16 %v4892
    %v4935 = vunpack.c.l.b16 %v4893
    %v4936 = vunpack.c.l.b16 %v4894
    %v4937 = vunpack.c.l.b16 %v4895
    %v4938 = vunpack.c.l.b16 %v4896
    %v4939 = vunpack.c.l.b16 %v4897
    %v4940 = vunpack.c.l.b16 %v4898
    %v4941 = vpack.c.b16 %v4926, %v4925
    %v4942 = vpack.c.b16 %v4928, %v4927
    %v4943 = vpack.c.b16 %v4930, %v4929
    %v4944 = vpack.c.b16 %v4932, %v4931
    %v4945 = vpack.c.b16 %v4934, %v4933
    %v4946 = vpack.c.b16 %v4936, %v4935
    %v4947 = vpack.c.b16 %v4938, %v4937
    %v4948 = vpack.c.b16 %v4940, %v4939
    %4957 = vmatprep.subr.bf16.mxu0 0
    %4958 = vmatpush1.bf16.msra.mxu0 %v4941
    %4959 = vmatprep.subr.bf16.mxu0 0
    %4960 = vmatpush1.bf16.msra.mxu0 %v4942
    %4961 = vmatprep.subr.bf16.mxu0 0
    %4962 = vmatpush1.bf16.msra.mxu0 %v4943
    %4963 = vmatprep.subr.bf16.mxu0 0
    %4964 = vmatpush1.bf16.msra.mxu0 %v4944
    %4965 = vmatprep.subr.bf16.mxu0 0
    %4966 = vmatpush1.bf16.msra.mxu0 %v4945
    %4967 = vmatprep.subr.bf16.mxu0 0
    %4968 = vmatpush1.bf16.msra.mxu0 %v4946
    %4969 = vmatprep.subr.bf16.mxu0 0
    %4970 = vmatpush1.bf16.msra.mxu0 %v4947
    %4971 = vmatprep.subr.bf16.mxu0 0
    %4972 = vmatpush1.bf16.msra.mxu0 %v4948
    %4973 = vmatprep.subr.bf16.mxu0 0
    %4974 = vmatpush1.bf16.msra.mxu0 0
    %4975 = vmatprep.subr.bf16.mxu0 0
    %4976 = vmatpush1.bf16.msra.mxu0 0
    %4977 = vmatprep.subr.bf16.mxu0 0
    %4978 = vmatpush1.bf16.msra.mxu0 0
    %4979 = vmatprep.subr.bf16.mxu0 0
    %4980 = vmatpush1.bf16.msra.mxu0 0
    %4981 = vmatprep.subr.bf16.mxu0 0
    %4982 = vmatpush1.bf16.msra.mxu0 0
    %4983 = vmatprep.subr.bf16.mxu0 0
    %4984 = vmatpush1.bf16.msra.mxu0 0
    %4985 = vmatprep.subr.bf16.mxu0 0
    %4986 = vmatpush1.bf16.msra.mxu0 0
    %4987 = vmatprep.subr.bf16.mxu0 0
    %4988 = vmatpush1.bf16.msra.mxu0 0
    %4989 = vmatprep.mubr.bf16.mxu0 0
    %4990 = vmatmul.mubr.bf16.gmra.mrb[0].mxu0 %v4899
    %v4991 = vpop.f32.mrb[0].mxu0
    %v4992 = vadd.f32 %v4907, %v4991
    %v4993 = vpop.f32.mrb[0].mxu0
    %v4994 = vpop.f32.mrb[0].mxu0
    %v4995 = vadd.f32 %v4907, %v4994
    %v4996 = vpop.f32.mrb[0].mxu0
    %4997 = vmatprep.mubr.bf16.mxu0 0
    %4998 = vmatmul.mubr.bf16.gmra.mrb[0].mxu0 %v4900
    %v4999 = vpop.f32.mrb[0].mxu0
    %v5000 = vadd.f32 %v4907, %v4999
    %v5001 = vpop.f32.mrb[0].mxu0
    %v5002 = vpop.f32.mrb[0].mxu0
    %v5003 = vadd.f32 %v4907, %v5002
    %v5004 = vpop.f32.mrb[0].mxu0
    %5005 = vdwg.mxu0
    %v5006 = vadd.f32 %v4992, %v2919
    %v5007 = vadd.f32 %v4995, %v2920
    %v5008 = vadd.f32 %v5000, %v2921
    %v5009 = vadd.f32 %v5003, %v2922
    %s5010 = scalar_lea.vmem %s8, 1
    %v5011 = vld [vmem:[%s5010] sm:$0x1]
    %s5012 = scalar_lea.vmem %s9, 1
    %v5013 = vld [vmem:[%s5012] sm:$0x1]
    %5014 = vadd.xlane.f32.xlu0 %v5006
    %v5015 = vpop.xlane.xlu0 %5014
    %5016 = vadd.xlane.f32.xlu0 %v5007
    %v5017 = vpop.xlane.xlu0 %5016
    %5018 = vadd.xlane.f32.xlu0 %v5008
    %v5019 = vpop.xlane.xlu0 %5018
    %5020 = vadd.xlane.f32.xlu0 %v5009
    %v5021 = vpop.xlane.xlu0 %5020
    %v5022 = vmul.f32 %v5015, %v212
    %v5023 = vmul.f32 %v5017, %v212
    %v5024 = vmul.f32 %v5019, %v212
    %v5025 = vmul.f32 %v5021, %v212
    %v5026 = vsub.f32 %v5006, %v5022
    %v5027 = vsub.f32 %v5007, %v5023
    %v5028 = vsub.f32 %v5008, %v5024
    %v5029 = vsub.f32 %v5009, %v5025
    %v5030 = vmul.f32 %v5026, %v5026
    %v5031 = vmul.f32 %v5027, %v5027
    %v5032 = vmul.f32 %v5028, %v5028
    %v5033 = vmul.f32 %v5029, %v5029
    %5034 = vadd.xlane.f32.xlu0 %v5030
    %v5035 = vpop.xlane.xlu0 %5034
    %5036 = vadd.xlane.f32.xlu0 %v5031
    %v5037 = vpop.xlane.xlu0 %5036
    %5038 = vadd.xlane.f32.xlu0 %v5032
    %v5039 = vpop.xlane.xlu0 %5038
    %5040 = vadd.xlane.f32.xlu0 %v5033
    %v5041 = vpop.xlane.xlu0 %5040
    %v5042 = vmul.f32 %v5035, %v212
    %v5043 = vmul.f32 %v5037, %v212
    %v5044 = vmul.f32 %v5039, %v212
    %v5045 = vmul.f32 %v5041, %v212
    %v5046 = vadd.f32 %v5042, 1e-07
    %v5047 = vadd.f32 %v5043, 1e-07
    %v5048 = vadd.f32 %v5044, 1e-07
    %v5049 = vadd.f32 %v5045, 1e-07
    %v5050 = vrsqrt.pop %v5046
    %v5051 = vrsqrt.pop %v5047
    %v5052 = vrsqrt.pop %v5048
    %v5053 = vrsqrt.pop %v5049
    %v5054 = vmul.f32 %v5026, %v5050
    %v5055 = vmul.f32 %v5027, %v5051
    %v5056 = vmul.f32 %v5028, %v5052
    %v5057 = vmul.f32 %v5029, %v5053
    %v5059 = vlaneseq
    %v5060 = vshrl.u32 %v5059, 7
    %v5061 = vsub.s32 0, %v5060
    %v5062 = vrot.slane %v5011, %v5061
    %v5064 = vmul.f32 %v5054, %v5062
    %v5065 = vmul.f32 %v5055, %v5062
    %v5066 = vmul.f32 %v5056, %v5062
    %v5067 = vmul.f32 %v5057, %v5062
    %v5069 = vlaneseq
    %v5070 = vshrl.u32 %v5069, 7
    %v5071 = vsub.s32 0, %v5070
    %v5072 = vrot.slane %v5013, %v5071
    %v5074 = vadd.f32 %v5064, %v5072
    %v5075 = vadd.f32 %v5065, %v5072
    %v5076 = vadd.f32 %v5066, %v5072
    %v5077 = vadd.f32 %v5067, %v5072
    %s5078 = scalar_lea.vmem [#allocation13], 128
    %v5079 = vld [vmem:[%s5078] sm:$0xff]
    %v5080 = vld [vmem:[%s5078 + $0x8] sm:$0xff]
    %v5081 = vld [vmem:[%s5078 + $0x10] sm:$0xff]
    %v5082 = vld [vmem:[%s5078 + $0x18] sm:$0xff]
    %v5083 = vld [vmem:[%s5078 + $0x20] sm:$0xff]
    %v5084 = vld [vmem:[%s5078 + $0x28] sm:$0xff]
    %v5085 = vld [vmem:[%s5078 + $0x30] sm:$0xff]
    %v5086 = vld [vmem:[%s5078 + $0x38] sm:$0xff]
    %v5087 = vld [vmem:[%s5078 + $0x40] sm:$0xff]
    %v5088 = vld [vmem:[%s5078 + $0x48] sm:$0xff]
    %v5089 = vld [vmem:[%s5078 + $0x50] sm:$0xff]
    %v5090 = vld [vmem:[%s5078 + $0x58] sm:$0xff]
    %v5091 = vld [vmem:[%s5078 + $0x60] sm:$0xff]
    %v5092 = vld [vmem:[%s5078 + $0x68] sm:$0xff]
    %v5093 = vld [vmem:[%s5078 + $0x70] sm:$0xff]
    %v5094 = vld [vmem:[%s5078 + $0x78] sm:$0xff]
    %v5095 = vpack.c.bf16 %v5075, %v5074
    %v5096 = vpack.c.bf16 %v5077, %v5076
    %s5097 = scalar_lea.vmem %s11, 2
    %v5098 = vld [vmem:[%s5097] sm:$0x3]
    %v5100 = vlaneseq
    %v5101 = vshrl.u32 %v5100, 7
    %v5102 = vsub.s32 0, %v5101
    %v5103 = vrot.slane %v5098, %v5102
    %v5104 = vlaneseq
    %v5105 = vshrl.u32 %v5104, 7
    %v5106 = vsub.s32 1, %v5105
    %v5107 = vrot.slane %v5098, %v5106
    %v5126 = vunpack.c.l.b16 %v5079
    %v5127 = vunpack.c.h.b16 %v5079
    %v5128 = vunpack.c.l.b16 %v5080
    %v5129 = vunpack.c.h.b16 %v5080
    %v5130 = vunpack.c.l.b16 %v5081
    %v5131 = vunpack.c.h.b16 %v5081
    %v5132 = vunpack.c.l.b16 %v5082
    %v5133 = vunpack.c.h.b16 %v5082
    %v5134 = vunpack.c.l.b16 %v5083
    %v5135 = vunpack.c.h.b16 %v5083
    %v5136 = vunpack.c.l.b16 %v5084
    %v5137 = vunpack.c.h.b16 %v5084
    %v5138 = vunpack.c.l.b16 %v5085
    %v5139 = vunpack.c.h.b16 %v5085
    %v5140 = vunpack.c.l.b16 %v5086
    %v5141 = vunpack.c.h.b16 %v5086
    %v5142 = vunpack.c.l.b16 %v5087
    %v5143 = vunpack.c.h.b16 %v5087
    %v5144 = vunpack.c.l.b16 %v5088
    %v5145 = vunpack.c.h.b16 %v5088
    %v5146 = vunpack.c.l.b16 %v5089
    %v5147 = vunpack.c.h.b16 %v5089
    %v5148 = vunpack.c.l.b16 %v5090
    %v5149 = vunpack.c.h.b16 %v5090
    %v5150 = vunpack.c.l.b16 %v5091
    %v5151 = vunpack.c.h.b16 %v5091
    %v5152 = vunpack.c.l.b16 %v5092
    %v5153 = vunpack.c.h.b16 %v5092
    %v5154 = vunpack.c.l.b16 %v5093
    %v5155 = vunpack.c.h.b16 %v5093
    %v5156 = vunpack.c.l.b16 %v5094
    %v5157 = vunpack.c.h.b16 %v5094
    %v5158 = vpack.c.b16 %v5128, %v5126
    %v5159 = vpack.c.b16 %v5129, %v5127
    %v5160 = vpack.c.b16 %v5132, %v5130
    %v5161 = vpack.c.b16 %v5133, %v5131
    %v5162 = vpack.c.b16 %v5136, %v5134
    %v5163 = vpack.c.b16 %v5137, %v5135
    %v5164 = vpack.c.b16 %v5140, %v5138
    %v5165 = vpack.c.b16 %v5141, %v5139
    %v5166 = vpack.c.b16 %v5144, %v5142
    %v5167 = vpack.c.b16 %v5145, %v5143
    %v5168 = vpack.c.b16 %v5148, %v5146
    %v5169 = vpack.c.b16 %v5149, %v5147
    %v5170 = vpack.c.b16 %v5152, %v5150
    %v5171 = vpack.c.b16 %v5153, %v5151
    %v5172 = vpack.c.b16 %v5156, %v5154
    %v5173 = vpack.c.b16 %v5157, %v5155
    %5190 = vmatprep.subr.bf16.mxu0 %v5159
    %5191 = vmatpush1.bf16.msra.mxu0 %v5158
    %5192 = vmatprep.subr.bf16.mxu0 %v5161
    %5193 = vmatpush1.bf16.msra.mxu0 %v5160
    %5194 = vmatprep.subr.bf16.mxu0 %v5163
    %5195 = vmatpush1.bf16.msra.mxu0 %v5162
    %5196 = vmatprep.subr.bf16.mxu0 %v5165
    %5197 = vmatpush1.bf16.msra.mxu0 %v5164
    %5198 = vmatprep.subr.bf16.mxu0 %v5167
    %5199 = vmatpush1.bf16.msra.mxu0 %v5166
    %5200 = vmatprep.subr.bf16.mxu0 %v5169
    %5201 = vmatpush1.bf16.msra.mxu0 %v5168
    %5202 = vmatprep.subr.bf16.mxu0 %v5171
    %5203 = vmatpush1.bf16.msra.mxu0 %v5170
    %5204 = vmatprep.subr.bf16.mxu0 %v5173
    %5205 = vmatpush1.bf16.msra.mxu0 %v5172
    %5206 = vmatprep.subr.bf16.mxu0 0
    %5207 = vmatpush1.bf16.msra.mxu0 0
    %5208 = vmatprep.subr.bf16.mxu0 0
    %5209 = vmatpush1.bf16.msra.mxu0 0
    %5210 = vmatprep.subr.bf16.mxu0 0
    %5211 = vmatpush1.bf16.msra.mxu0 0
    %5212 = vmatprep.subr.bf16.mxu0 0
    %5213 = vmatpush1.bf16.msra.mxu0 0
    %5214 = vmatprep.subr.bf16.mxu0 0
    %5215 = vmatpush1.bf16.msra.mxu0 0
    %5216 = vmatprep.subr.bf16.mxu0 0
    %5217 = vmatpush1.bf16.msra.mxu0 0
    %5218 = vmatprep.subr.bf16.mxu0 0
    %5219 = vmatpush1.bf16.msra.mxu0 0
    %5220 = vmatprep.subr.bf16.mxu0 0
    %5221 = vmatpush1.bf16.msra.mxu0 0
    %5222 = vmatprep.mubr.bf16.mxu0 0
    %5223 = vmatmul.mubr.bf16.gmra.mrb[0].mxu0 %v5095
    %v5224 = vpop.f32.mrb[0].mxu0
    %v5225 = vadd.f32 %v5103, %v5224
    %v5226 = vpop.f32.mrb[0].mxu0
    %v5227 = vadd.f32 %v5107, %v5226
    %v5228 = vpop.f32.mrb[0].mxu0
    %v5229 = vadd.f32 %v5103, %v5228
    %v5230 = vpop.f32.mrb[0].mxu0
    %v5231 = vadd.f32 %v5107, %v5230
    %5232 = vmatprep.mubr.bf16.mxu0 0
    %5233 = vmatmul.mubr.bf16.gmra.mrb[0].mxu0 %v5096
    %v5234 = vpop.f32.mrb[0].mxu0
    %v5235 = vadd.f32 %v5103, %v5234
    %v5236 = vpop.f32.mrb[0].mxu0
    %v5237 = vadd.f32 %v5107, %v5236
    %v5238 = vpop.f32.mrb[0].mxu0
    %v5239 = vadd.f32 %v5103, %v5238
    %v5240 = vpop.f32.mrb[0].mxu0
    %v5241 = vadd.f32 %v5107, %v5240
    %5242 = vdwg.mxu0
    %v5243 = vmul.f32 %v5225, %v5225
    %v5244 = vmul.f32 %v5227, %v5227
    %v5245 = vmul.f32 %v5229, %v5229
    %v5246 = vmul.f32 %v5231, %v5231
    %v5247 = vmul.f32 %v5235, %v5235
    %v5248 = vmul.f32 %v5237, %v5237
    %v5249 = vmul.f32 %v5239, %v5239
    %v5250 = vmul.f32 %v5241, %v5241
    %v5251 = vmul.f32 %v5225, %v5243
    %v5252 = vmul.f32 %v5227, %v5244
    %v5253 = vmul.f32 %v5229, %v5245
    %v5254 = vmul.f32 %v5231, %v5246
    %v5255 = vmul.f32 %v5235, %v5247
    %v5256 = vmul.f32 %v5237, %v5248
    %v5257 = vmul.f32 %v5239, %v5249
    %v5258 = vmul.f32 %v5241, %v5250
    %v5259 = vmul.f32 %v5251, 0.044715
    %v5260 = vmul.f32 %v5252, 0.044715
    %v5261 = vmul.f32 %v5253, 0.044715
    %v5262 = vmul.f32 %v5254, 0.044715
    %v5263 = vmul.f32 %v5255, 0.044715
    %v5264 = vmul.f32 %v5256, 0.044715
    %v5265 = vmul.f32 %v5257, 0.044715
    %v5266 = vmul.f32 %v5258, 0.044715
    %v5267 = vadd.f32 %v5225, %v5259
    %v5268 = vadd.f32 %v5227, %v5260
    %v5269 = vadd.f32 %v5229, %v5261
    %v5270 = vadd.f32 %v5231, %v5262
    %v5271 = vadd.f32 %v5235, %v5263
    %v5272 = vadd.f32 %v5237, %v5264
    %v5273 = vadd.f32 %v5239, %v5265
    %v5274 = vadd.f32 %v5241, %v5266
    %v5275 = vmul.f32 %v5267, 0.7978846
    %v5276 = vmul.f32 %v5268, 0.7978846
    %v5277 = vmul.f32 %v5269, 0.7978846
    %v5278 = vmul.f32 %v5270, 0.7978846
    %v5279 = vmul.f32 %v5271, 0.7978846
    %v5280 = vmul.f32 %v5272, 0.7978846
    %v5281 = vmul.f32 %v5273, 0.7978846
    %v5282 = vmul.f32 %v5274, 0.7978846
    %v5283 = vtanh.pop %v5275
    %v5284 = vtanh.pop %v5276
    %v5285 = vtanh.pop %v5277
    %v5286 = vtanh.pop %v5278
    %v5287 = vtanh.pop %v5279
    %v5288 = vtanh.pop %v5280
    %v5289 = vtanh.pop %v5281
    %v5290 = vtanh.pop %v5282
    %v5291 = vadd.f32 %v5283, 1.0
    %v5292 = vadd.f32 %v5284, 1.0
    %v5293 = vadd.f32 %v5285, 1.0
    %v5294 = vadd.f32 %v5286, 1.0
    %v5295 = vadd.f32 %v5287, 1.0
    %v5296 = vadd.f32 %v5288, 1.0
    %v5297 = vadd.f32 %v5289, 1.0
    %v5298 = vadd.f32 %v5290, 1.0
    %v5299 = vmul.f32 %v5291, 0.5
    %v5300 = vmul.f32 %v5292, 0.5
    %v5301 = vmul.f32 %v5293, 0.5
    %v5302 = vmul.f32 %v5294, 0.5
    %v5303 = vmul.f32 %v5295, 0.5
    %v5304 = vmul.f32 %v5296, 0.5
    %v5305 = vmul.f32 %v5297, 0.5
    %v5306 = vmul.f32 %v5298, 0.5
    %v5307 = vmul.f32 %v5225, %v5299
    %v5308 = vmul.f32 %v5227, %v5300
    %v5309 = vmul.f32 %v5229, %v5301
    %v5310 = vmul.f32 %v5231, %v5302
    %v5311 = vmul.f32 %v5235, %v5303
    %v5312 = vmul.f32 %v5237, %v5304
    %v5313 = vmul.f32 %v5239, %v5305
    %v5314 = vmul.f32 %v5241, %v5306
    %s5315 = scalar_lea.vmem [#allocation14], 128
    %v5316 = vld [vmem:[%s5315] sm:$0xf]
    %v5317 = vld [vmem:[%s5315 + $0x4] sm:$0xf]
    %v5318 = vld [vmem:[%s5315 + $0x8] sm:$0xf]
    %v5319 = vld [vmem:[%s5315 + $0xc] sm:$0xf]
    %v5320 = vld [vmem:[%s5315 + $0x10] sm:$0xf]
    %v5321 = vld [vmem:[%s5315 + $0x14] sm:$0xf]
    %v5322 = vld [vmem:[%s5315 + $0x18] sm:$0xf]
    %v5323 = vld [vmem:[%s5315 + $0x1c] sm:$0xf]
    %v5324 = vld [vmem:[%s5315 + $0x20] sm:$0xf]
    %v5325 = vld [vmem:[%s5315 + $0x24] sm:$0xf]
    %v5326 = vld [vmem:[%s5315 + $0x28] sm:$0xf]
    %v5327 = vld [vmem:[%s5315 + $0x2c] sm:$0xf]
    %v5328 = vld [vmem:[%s5315 + $0x30] sm:$0xf]
    %v5329 = vld [vmem:[%s5315 + $0x34] sm:$0xf]
    %v5330 = vld [vmem:[%s5315 + $0x38] sm:$0xf]
    %v5331 = vld [vmem:[%s5315 + $0x3c] sm:$0xf]
    %v5332 = vld [vmem:[%s5315 + $0x40] sm:$0xf]
    %v5333 = vld [vmem:[%s5315 + $0x44] sm:$0xf]
    %v5334 = vld [vmem:[%s5315 + $0x48] sm:$0xf]
    %v5335 = vld [vmem:[%s5315 + $0x4c] sm:$0xf]
    %v5336 = vld [vmem:[%s5315 + $0x50] sm:$0xf]
    %v5337 = vld [vmem:[%s5315 + $0x54] sm:$0xf]
    %v5338 = vld [vmem:[%s5315 + $0x58] sm:$0xf]
    %v5339 = vld [vmem:[%s5315 + $0x5c] sm:$0xf]
    %v5340 = vld [vmem:[%s5315 + $0x60] sm:$0xf]
    %v5341 = vld [vmem:[%s5315 + $0x64] sm:$0xf]
    %v5342 = vld [vmem:[%s5315 + $0x68] sm:$0xf]
    %v5343 = vld [vmem:[%s5315 + $0x6c] sm:$0xf]
    %v5344 = vld [vmem:[%s5315 + $0x70] sm:$0xf]
    %v5345 = vld [vmem:[%s5315 + $0x74] sm:$0xf]
    %v5346 = vld [vmem:[%s5315 + $0x78] sm:$0xf]
    %v5347 = vld [vmem:[%s5315 + $0x7c] sm:$0xf]
    %v5348 = vpack.c.bf16 %v5309, %v5307
    %v5349 = vpack.c.bf16 %v5310, %v5308
    %v5350 = vpack.c.bf16 %v5313, %v5311
    %v5351 = vpack.c.bf16 %v5314, %v5312
    %s5352 = scalar_lea.vmem %s13, 1
    %v5353 = vld [vmem:[%s5352] sm:$0x1]
    %v5355 = vlaneseq
    %v5356 = vshrl.u32 %v5355, 7
    %v5357 = vsub.s32 0, %v5356
    %v5358 = vrot.slane %v5353, %v5357
    %v5392 = vunpack.c.l.b16 %v5316
    %v5393 = vunpack.c.l.b16 %v5317
    %v5394 = vunpack.c.l.b16 %v5318
    %v5395 = vunpack.c.l.b16 %v5319
    %v5396 = vunpack.c.l.b16 %v5320
    %v5397 = vunpack.c.l.b16 %v5321
    %v5398 = vunpack.c.l.b16 %v5322
    %v5399 = vunpack.c.l.b16 %v5323
    %v5400 = vunpack.c.l.b16 %v5324
    %v5401 = vunpack.c.l.b16 %v5325
    %v5402 = vunpack.c.l.b16 %v5326
    %v5403 = vunpack.c.l.b16 %v5327
    %v5404 = vunpack.c.l.b16 %v5328
    %v5405 = vunpack.c.l.b16 %v5329
    %v5406 = vunpack.c.l.b16 %v5330
    %v5407 = vunpack.c.l.b16 %v5331
    %v5408 = vunpack.c.l.b16 %v5332
    %v5409 = vunpack.c.l.b16 %v5333
    %v5410 = vunpack.c.l.b16 %v5334
    %v5411 = vunpack.c.l.b16 %v5335
    %v5412 = vunpack.c.l.b16 %v5336
    %v5413 = vunpack.c.l.b16 %v5337
    %v5414 = vunpack.c.l.b16 %v5338
    %v5415 = vunpack.c.l.b16 %v5339
    %v5416 = vunpack.c.l.b16 %v5340
    %v5417 = vunpack.c.l.b16 %v5341
    %v5418 = vunpack.c.l.b16 %v5342
    %v5419 = vunpack.c.l.b16 %v5343
    %v5420 = vunpack.c.l.b16 %v5344
    %v5421 = vunpack.c.l.b16 %v5345
    %v5422 = vunpack.c.l.b16 %v5346
    %v5423 = vunpack.c.l.b16 %v5347
    %v5424 = vpack.c.b16 %v5393, %v5392
    %v5425 = vpack.c.b16 %v5395, %v5394
    %v5426 = vpack.c.b16 %v5397, %v5396
    %v5427 = vpack.c.b16 %v5399, %v5398
    %v5428 = vpack.c.b16 %v5401, %v5400
    %v5429 = vpack.c.b16 %v5403, %v5402
    %v5430 = vpack.c.b16 %v5405, %v5404
    %v5431 = vpack.c.b16 %v5407, %v5406
    %v5432 = vpack.c.b16 %v5409, %v5408
    %v5433 = vpack.c.b16 %v5411, %v5410
    %v5434 = vpack.c.b16 %v5413, %v5412
    %v5435 = vpack.c.b16 %v5415, %v5414
    %v5436 = vpack.c.b16 %v5417, %v5416
    %v5437 = vpack.c.b16 %v5419, %v5418
    %v5438 = vpack.c.b16 %v5421, %v5420
    %v5439 = vpack.c.b16 %v5423, %v5422
    %5456 = vmatprep.subr.bf16.mxu0 0
    %5457 = vmatpush1.bf16.msra.mxu0 %v5424
    %5458 = vmatprep.subr.bf16.mxu0 0
    %5459 = vmatpush1.bf16.msra.mxu0 %v5425
    %5460 = vmatprep.subr.bf16.mxu0 0
    %5461 = vmatpush1.bf16.msra.mxu0 %v5426
    %5462 = vmatprep.subr.bf16.mxu0 0
    %5463 = vmatpush1.bf16.msra.mxu0 %v5427
    %5464 = vmatprep.subr.bf16.mxu0 0
    %5465 = vmatpush1.bf16.msra.mxu0 %v5428
    %5466 = vmatprep.subr.bf16.mxu0 0
    %5467 = vmatpush1.bf16.msra.mxu0 %v5429
    %5468 = vmatprep.subr.bf16.mxu0 0
    %5469 = vmatpush1.bf16.msra.mxu0 %v5430
    %5470 = vmatprep.subr.bf16.mxu0 0
    %5471 = vmatpush1.bf16.msra.mxu0 %v5431
    %5472 = vmatprep.subr.bf16.mxu0 0
    %5473 = vmatpush1.bf16.msra.mxu0 %v5432
    %5474 = vmatprep.subr.bf16.mxu0 0
    %5475 = vmatpush1.bf16.msra.mxu0 %v5433
    %5476 = vmatprep.subr.bf16.mxu0 0
    %5477 = vmatpush1.bf16.msra.mxu0 %v5434
    %5478 = vmatprep.subr.bf16.mxu0 0
    %5479 = vmatpush1.bf16.msra.mxu0 %v5435
    %5480 = vmatprep.subr.bf16.mxu0 0
    %5481 = vmatpush1.bf16.msra.mxu0 %v5436
    %5482 = vmatprep.subr.bf16.mxu0 0
    %5483 = vmatpush1.bf16.msra.mxu0 %v5437
    %5484 = vmatprep.subr.bf16.mxu0 0
    %5485 = vmatpush1.bf16.msra.mxu0 %v5438
    %5486 = vmatprep.subr.bf16.mxu0 0
    %5487 = vmatpush1.bf16.msra.mxu0 %v5439
    %5488 = vmatprep.mubr.bf16.mxu0 %v5349
    %5489 = vmatmul.mubr.bf16.gmra.mrb[0].mxu0 %v5348
    %v5490 = vpop.f32.mrb[0].mxu0
    %v5491 = vadd.f32 %v5358, %v5490
    %v5492 = vpop.f32.mrb[0].mxu0
    %v5493 = vpop.f32.mrb[0].mxu0
    %v5494 = vpop.f32.mrb[0].mxu0
    %5495 = vmatprep.mubr.bf16.mxu0 %v5351
    %5496 = vmatmul.mubr.bf16.gmra.mrb[0].mxu0 %v5350
    %v5497 = vpop.f32.mrb[0].mxu0
    %v5498 = vadd.f32 %v5358, %v5497
    %v5499 = vpop.f32.mrb[0].mxu0
    %v5500 = vpop.f32.mrb[0].mxu0
    %v5501 = vpop.f32.mrb[0].mxu0
    %5502 = vdwg.mxu0
    %v5503 = vadd.f32 %v5491, %v5074
    %v5504 = vadd.f32 %v5498, %v5076
    %s5505 = scalar_lea.vmem %s14, 1
    %v5506 = vld [vmem:[%s5505] sm:$0x1]
    %s5507 = scalar_lea.vmem %s15, 1
    %v5508 = vld [vmem:[%s5507] sm:$0x1]
    %5509 = vadd.xlane.f32.xlu0 %v5503
    %v5510 = vpop.xlane.xlu0 %5509
    %5511 = vadd.xlane.f32.xlu0 %v5504
    %v5512 = vpop.xlane.xlu0 %5511
    %v5513 = vmul.f32 %v5510, %v212
    %v5514 = vmul.f32 %v5512, %v212
    %v5515 = vsub.f32 %v5503, %v5513
    %v5516 = vsub.f32 %v5504, %v5514
    %v5517 = vmul.f32 %v5515, %v5515
    %v5518 = vmul.f32 %v5516, %v5516
    %5519 = vadd.xlane.f32.xlu0 %v5517
    %v5520 = vpop.xlane.xlu0 %5519
    %5521 = vadd.xlane.f32.xlu0 %v5518
    %v5522 = vpop.xlane.xlu0 %5521
    %v5523 = vmul.f32 %v5520, %v212
    %v5524 = vmul.f32 %v5522, %v212
    %v5525 = vadd.f32 %v5523, 1e-07
    %v5526 = vadd.f32 %v5524, 1e-07
    %v5527 = vrsqrt.pop %v5525
    %v5528 = vrsqrt.pop %v5526
    %v5529 = vmul.f32 %v5515, %v5527
    %v5530 = vmul.f32 %v5516, %v5528
    %v5532 = vlaneseq
    %v5533 = vshrl.u32 %v5532, 7
    %v5534 = vsub.s32 0, %v5533
    %v5535 = vrot.slane %v5506, %v5534
    %v5537 = vmul.f32 %v5529, %v5535
    %v5538 = vmul.f32 %v5530, %v5535
    %v5540 = vlaneseq
    %v5541 = vshrl.u32 %v5540, 7
    %v5542 = vsub.s32 0, %v5541
    %v5543 = vrot.slane %v5508, %v5542
    %v5545 = vadd.f32 %v5537, %v5543
    %v5546 = vadd.f32 %v5538, %v5543
    %v5548 = vrot.slane %v5546, 7
    %vm5550 = vcmask 1040384
    %v5551 = vsel %vm5550, %v5545, %v5548
    %v5552 = vld [vmem:[#allocation16] sm:$0xff]
    %v5553 = vld [vmem:[#allocation16 + $0x8] sm:$0xff]
    %v5554 = vld [vmem:[#allocation16 + $0x10] sm:$0xff]
    %v5555 = vld [vmem:[#allocation16 + $0x18] sm:$0xff]
    %v5556 = vld [vmem:[#allocation16 + $0x20] sm:$0xff]
    %v5557 = vld [vmem:[#allocation16 + $0x28] sm:$0xff]
    %v5558 = vld [vmem:[#allocation16 + $0x30] sm:$0xff]
    %v5559 = vld [vmem:[#allocation16 + $0x38] sm:$0xff]
    %v5560 = vld [vmem:[#allocation16 + $0x40] sm:$0xff]
    %v5561 = vld [vmem:[#allocation16 + $0x48] sm:$0xff]
    %v5562 = vld [vmem:[#allocation16 + $0x50] sm:$0xff]
    %v5563 = vld [vmem:[#allocation16 + $0x58] sm:$0xff]
    %v5564 = vld [vmem:[#allocation16 + $0x60] sm:$0xff]
    %v5565 = vld [vmem:[#allocation16 + $0x68] sm:$0xff]
    %v5566 = vld [vmem:[#allocation16 + $0x70] sm:$0xff]
    %v5567 = vld [vmem:[#allocation16 + $0x78] sm:$0xff]
    %v5568 = vld [vmem:[#allocation16 + $0x80] sm:$0xff]
    %v5569 = vld [vmem:[#allocation16 + $0x88] sm:$0xff]
    %v5570 = vld [vmem:[#allocation16 + $0x90] sm:$0xff]
    %v5571 = vld [vmem:[#allocation16 + $0x98] sm:$0xff]
    %v5572 = vld [vmem:[#allocation16 + $0xa0] sm:$0xff]
    %v5573 = vld [vmem:[#allocation16 + $0xa8] sm:$0xff]
    %v5574 = vld [vmem:[#allocation16 + $0xb0] sm:$0xff]
    %v5575 = vld [vmem:[#allocation16 + $0xb8] sm:$0xff]
    %v5576 = vld [vmem:[#allocation16 + $0xc0] sm:$0xff]
    %v5577 = vld [vmem:[#allocation16 + $0xc8] sm:$0xff]
    %v5578 = vld [vmem:[#allocation16 + $0xd0] sm:$0xff]
    %v5579 = vld [vmem:[#allocation16 + $0xd8] sm:$0xff]
    %v5580 = vld [vmem:[#allocation16 + $0xe0] sm:$0xff]
    %v5581 = vld [vmem:[#allocation16 + $0xe8] sm:$0xff]
    %v5582 = vld [vmem:[#allocation16 + $0xf0] sm:$0xff]
    %v5583 = vld [vmem:[#allocation16 + $0xf8] sm:$0xff]
    %v5584 = vpack.c.bf16 %v5551, %v5551
    %v5585 = vld [vmem:[%s17] sm:$0xf]
    %v5587 = vlaneseq
    %v5588 = vshrl.u32 %v5587, 7
    %v5589 = vsub.s32 0, %v5588
    %v5590 = vrot.slane %v5585, %v5589
    %v5591 = vlaneseq
    %v5592 = vshrl.u32 %v5591, 7
    %v5593 = vsub.s32 1, %v5592
    %v5594 = vrot.slane %v5585, %v5593
    %v5595 = vlaneseq
    %v5596 = vshrl.u32 %v5595, 7
    %v5597 = vsub.s32 2, %v5596
    %v5598 = vrot.slane %v5585, %v5597
    %v5599 = vlaneseq
    %v5600 = vshrl.u32 %v5599, 7
    %v5601 = vsub.s32 3, %v5600
    %v5602 = vrot.slane %v5585, %v5601
    %v5639 = vunpack.c.l.b16 %v5552
    %v5640 = vunpack.c.h.b16 %v5552
    %v5641 = vunpack.c.l.b16 %v5553
    %v5642 = vunpack.c.h.b16 %v5553
    %v5643 = vunpack.c.l.b16 %v5554
    %v5644 = vunpack.c.h.b16 %v5554
    %v5645 = vunpack.c.l.b16 %v5555
    %v5646 = vunpack.c.h.b16 %v5555
    %v5647 = vunpack.c.l.b16 %v5556
    %v5648 = vunpack.c.h.b16 %v5556
    %v5649 = vunpack.c.l.b16 %v5557
    %v5650 = vunpack.c.h.b16 %v5557
    %v5651 = vunpack.c.l.b16 %v5558
    %v5652 = vunpack.c.h.b16 %v5558
    %v5653 = vunpack.c.l.b16 %v5559
    %v5654 = vunpack.c.h.b16 %v5559
    %v5655 = vunpack.c.l.b16 %v5560
    %v5656 = vunpack.c.h.b16 %v5560
    %v5657 = vunpack.c.l.b16 %v5561
    %v5658 = vunpack.c.h.b16 %v5561
    %v5659 = vunpack.c.l.b16 %v5562
    %v5660 = vunpack.c.h.b16 %v5562
    %v5661 = vunpack.c.l.b16 %v5563
    %v5662 = vunpack.c.h.b16 %v5563
    %v5663 = vunpack.c.l.b16 %v5564
    %v5664 = vunpack.c.h.b16 %v5564
    %v5665 = vunpack.c.l.b16 %v5565
    %v5666 = vunpack.c.h.b16 %v5565
    %v5667 = vunpack.c.l.b16 %v5566
    %v5668 = vunpack.c.h.b16 %v5566
    %v5669 = vunpack.c.l.b16 %v5567
    %v5670 = vunpack.c.h.b16 %v5567
    %v5671 = vunpack.c.l.b16 %v5568
    %v5672 = vunpack.c.h.b16 %v5568
    %v5673 = vunpack.c.l.b16 %v5569
    %v5674 = vunpack.c.h.b16 %v5569
    %v5675 = vunpack.c.l.b16 %v5570
    %v5676 = vunpack.c.h.b16 %v5570
    %v5677 = vunpack.c.l.b16 %v5571
    %v5678 = vunpack.c.h.b16 %v5571
    %v5679 = vunpack.c.l.b16 %v5572
    %v5680 = vunpack.c.h.b16 %v5572
    %v5681 = vunpack.c.l.b16 %v5573
    %v5682 = vunpack.c.h.b16 %v5573
    %v5683 = vunpack.c.l.b16 %v5574
    %v5684 = vunpack.c.h.b16 %v5574
    %v5685 = vunpack.c.l.b16 %v5575
    %v5686 = vunpack.c.h.b16 %v5575
    %v5687 = vunpack.c.l.b16 %v5576
    %v5688 = vunpack.c.h.b16 %v5576
    %v5689 = vunpack.c.l.b16 %v5577
    %v5690 = vunpack.c.h.b16 %v5577
    %v5691 = vunpack.c.l.b16 %v5578
    %v5692 = vunpack.c.h.b16 %v5578
    %v5693 = vunpack.c.l.b16 %v5579
    %v5694 = vunpack.c.h.b16 %v5579
    %v5695 = vunpack.c.l.b16 %v5580
    %v5696 = vunpack.c.h.b16 %v5580
    %v5697 = vunpack.c.l.b16 %v5581
    %v5698 = vunpack.c.h.b16 %v5581
    %v5699 = vunpack.c.l.b16 %v5582
    %v5700 = vunpack.c.h.b16 %v5582
    %v5701 = vunpack.c.l.b16 %v5583
    %v5702 = vunpack.c.h.b16 %v5583
    %v5703 = vpack.c.b16 %v5643, %v5639
    %v5704 = vpack.c.b16 %v5644, %v5640
    %v5705 = vpack.c.b16 %v5645, %v5641
    %v5706 = vpack.c.b16 %v5646, %v5642
    %v5707 = vpack.c.b16 %v5651, %v5647
    %v5708 = vpack.c.b16 %v5652, %v5648
    %v5709 = vpack.c.b16 %v5653, %v5649
    %v5710 = vpack.c.b16 %v5654, %v5650
    %v5711 = vpack.c.b16 %v5659, %v5655
    %v5712 = vpack.c.b16 %v5660, %v5656
    %v5713 = vpack.c.b16 %v5661, %v5657
    %v5714 = vpack.c.b16 %v5662, %v5658
    %v5715 = vpack.c.b16 %v5667, %v5663
    %v5716 = vpack.c.b16 %v5668, %v5664
    %v5717 = vpack.c.b16 %v5669, %v5665
    %v5718 = vpack.c.b16 %v5670, %v5666
    %v5719 = vpack.c.b16 %v5675, %v5671
    %v5720 = vpack.c.b16 %v5676, %v5672
    %v5721 = vpack.c.b16 %v5677, %v5673
    %v5722 = vpack.c.b16 %v5678, %v5674
    %v5723 = vpack.c.b16 %v5683, %v5679
    %v5724 = vpack.c.b16 %v5684, %v5680
    %v5725 = vpack.c.b16 %v5685, %v5681
    %v5726 = vpack.c.b16 %v5686, %v5682
    %v5727 = vpack.c.b16 %v5691, %v5687
    %v5728 = vpack.c.b16 %v5692, %v5688
    %v5729 = vpack.c.b16 %v5693, %v5689
    %v5730 = vpack.c.b16 %v5694, %v5690
    %v5731 = vpack.c.b16 %v5699, %v5695
    %v5732 = vpack.c.b16 %v5700, %v5696
    %v5733 = vpack.c.b16 %v5701, %v5697
    %v5734 = vpack.c.b16 %v5702, %v5698
    %5767 = vmatprep.subr.bf16.mxu0 %v5704
    %5768 = vmatpush1.bf16.msra.mxu0 %v5703
    %5769 = vmatprep.subr.bf16.mxu0 %v5708
    %5770 = vmatpush1.bf16.msra.mxu0 %v5707
    %5771 = vmatprep.subr.bf16.mxu0 %v5712
    %5772 = vmatpush1.bf16.msra.mxu0 %v5711
    %5773 = vmatprep.subr.bf16.mxu0 %v5716
    %5774 = vmatpush1.bf16.msra.mxu0 %v5715
    %5775 = vmatprep.subr.bf16.mxu0 %v5720
    %5776 = vmatpush1.bf16.msra.mxu0 %v5719
    %5777 = vmatprep.subr.bf16.mxu0 %v5724
    %5778 = vmatpush1.bf16.msra.mxu0 %v5723
    %5779 = vmatprep.subr.bf16.mxu0 %v5728
    %5780 = vmatpush1.bf16.msra.mxu0 %v5727
    %5781 = vmatprep.subr.bf16.mxu0 %v5732
    %5782 = vmatpush1.bf16.msra.mxu0 %v5731
    %5783 = vmatprep.subr.bf16.mxu0 0
    %5784 = vmatpush1.bf16.msra.mxu0 0
    %5785 = vmatprep.subr.bf16.mxu0 0
    %5786 = vmatpush1.bf16.msra.mxu0 0
    %5787 = vmatprep.subr.bf16.mxu0 0
    %5788 = vmatpush1.bf16.msra.mxu0 0
    %5789 = vmatprep.subr.bf16.mxu0 0
    %5790 = vmatpush1.bf16.msra.mxu0 0
    %5791 = vmatprep.subr.bf16.mxu0 0
    %5792 = vmatpush1.bf16.msra.mxu0 0
    %5793 = vmatprep.subr.bf16.mxu0 0
    %5794 = vmatpush1.bf16.msra.mxu0 0
    %5795 = vmatprep.subr.bf16.mxu0 0
    %5796 = vmatpush1.bf16.msra.mxu0 0
    %5797 = vmatprep.subr.bf16.mxu0 0
    %5798 = vmatpush1.bf16.msra.mxu0 0
    %5799 = vmatprep.mubr.bf16.mxu0 0
    %5800 = vmatmul.mubr.bf16.gmra.mrb[0].mxu0 %v5584
    %v5801 = vpop.f32.mrb[0].mxu0
    %v5802 = vadd.f32 %v5590, %v5801
    %v5803 = vpop.f32.mrb[0].mxu0
    %v5804 = vadd.f32 %v5594, %v5803
    %v5805 = vpop.f32.mrb[0].mxu0
    %v5806 = vpop.f32.mrb[0].mxu0
    %5807 = vdwg.mxu0
    %5808 = vmatprep.subr.bf16.mxu0 %v5706
    %5809 = vmatpush1.bf16.msra.mxu0 %v5705
    %5810 = vmatprep.subr.bf16.mxu0 %v5710
    %5811 = vmatpush1.bf16.msra.mxu0 %v5709
    %5812 = vmatprep.subr.bf16.mxu0 %v5714
    %5813 = vmatpush1.bf16.msra.mxu0 %v5713
    %5814 = vmatprep.subr.bf16.mxu0 %v5718
    %5815 = vmatpush1.bf16.msra.mxu0 %v5717
    %5816 = vmatprep.subr.bf16.mxu0 %v5722
    %5817 = vmatpush1.bf16.msra.mxu0 %v5721
    %5818 = vmatprep.subr.bf16.mxu0 %v5726
    %5819 = vmatpush1.bf16.msra.mxu0 %v5725
    %5820 = vmatprep.subr.bf16.mxu0 %v5730
    %5821 = vmatpush1.bf16.msra.mxu0 %v5729
    %5822 = vmatprep.subr.bf16.mxu0 %v5734
    %5823 = vmatpush1.bf16.msra.mxu0 %v5733
    %5824 = vmatprep.subr.bf16.mxu0 0
    %5825 = vmatpush1.bf16.msra.mxu0 0
    %5826 = vmatprep.subr.bf16.mxu0 0
    %5827 = vmatpush1.bf16.msra.mxu0 0
    %5828 = vmatprep.subr.bf16.mxu0 0
    %5829 = vmatpush1.bf16.msra.mxu0 0
    %5830 = vmatprep.subr.bf16.mxu0 0
    %5831 = vmatpush1.bf16.msra.mxu0 0
    %5832 = vmatprep.subr.bf16.mxu0 0
    %5833 = vmatpush1.bf16.msra.mxu0 0
    %5834 = vmatprep.subr.bf16.mxu0 0
    %5835 = vmatpush1.bf16.msra.mxu0 0
    %5836 = vmatprep.subr.bf16.mxu0 0
    %5837 = vmatpush1.bf16.msra.mxu0 0
    %5838 = vmatprep.subr.bf16.mxu0 0
    %5839 = vmatpush1.bf16.msra.mxu0 0
    %5840 = vmatprep.mubr.bf16.mxu0 0
    %5841 = vmatmul.mubr.bf16.gmra.mrb[0].mxu0 %v5584
    %v5842 = vpop.f32.mrb[0].mxu0
    %v5843 = vadd.f32 %v5598, %v5842
    %v5844 = vpop.f32.mrb[0].mxu0
    %v5845 = vadd.f32 %v5602, %v5844
    %v5846 = vpop.f32.mrb[0].mxu0
    %v5847 = vpop.f32.mrb[0].mxu0
    %5848 = vdwg.mxu0
    %v5849 = vmax.f32 %v5802, 0.0
    %v5850 = vmax.f32 %v5804, 0.0
    %v5851 = vmax.f32 %v5843, 0.0
    %v5852 = vmax.f32 %v5845, 0.0
    %v5853 = vld [vmem:[#allocation17] sm:$0xff]
    %v5854 = vld [vmem:[#allocation17 + $0x8] sm:$0xff]
    %v5855 = vld [vmem:[#allocation17 + $0x10] sm:$0xff]
    %v5856 = vld [vmem:[#allocation17 + $0x18] sm:$0xff]
    %v5857 = vld [vmem:[#allocation17 + $0x20] sm:$0xff]
    %v5858 = vld [vmem:[#allocation17 + $0x28] sm:$0xff]
    %v5859 = vld [vmem:[#allocation17 + $0x30] sm:$0xff]
    %v5860 = vld [vmem:[#allocation17 + $0x38] sm:$0xff]
    %v5861 = vld [vmem:[#allocation17 + $0x40] sm:$0xff]
    %v5862 = vld [vmem:[#allocation17 + $0x48] sm:$0xff]
    %v5863 = vld [vmem:[#allocation17 + $0x50] sm:$0xff]
    %v5864 = vld [vmem:[#allocation17 + $0x58] sm:$0xff]
    %v5865 = vld [vmem:[#allocation17 + $0x60] sm:$0xff]
    %v5866 = vld [vmem:[#allocation17 + $0x68] sm:$0xff]
    %v5867 = vld [vmem:[#allocation17 + $0x70] sm:$0xff]
    %v5868 = vld [vmem:[#allocation17 + $0x78] sm:$0xff]
    %v5869 = vld [vmem:[#allocation17 + $0x80] sm:$0xff]
    %v5870 = vld [vmem:[#allocation17 + $0x88] sm:$0xff]
    %v5871 = vld [vmem:[#allocation17 + $0x90] sm:$0xff]
    %v5872 = vld [vmem:[#allocation17 + $0x98] sm:$0xff]
    %v5873 = vld [vmem:[#allocation17 + $0xa0] sm:$0xff]
    %v5874 = vld [vmem:[#allocation17 + $0xa8] sm:$0xff]
    %v5875 = vld [vmem:[#allocation17 + $0xb0] sm:$0xff]
    %v5876 = vld [vmem:[#allocation17 + $0xb8] sm:$0xff]
    %v5877 = vld [vmem:[#allocation17 + $0xc0] sm:$0xff]
    %v5878 = vld [vmem:[#allocation17 + $0xc8] sm:$0xff]
    %v5879 = vld [vmem:[#allocation17 + $0xd0] sm:$0xff]
    %v5880 = vld [vmem:[#allocation17 + $0xd8] sm:$0xff]
    %v5881 = vld [vmem:[#allocation17 + $0xe0] sm:$0xff]
    %v5882 = vld [vmem:[#allocation17 + $0xe8] sm:$0xff]
    %v5883 = vld [vmem:[#allocation17 + $0xf0] sm:$0xff]
    %v5884 = vld [vmem:[#allocation17 + $0xf8] sm:$0xff]
    %v5885 = vld [vmem:[#allocation17 + $0x100] sm:$0xff]
    %v5886 = vld [vmem:[#allocation17 + $0x108] sm:$0xff]
    %v5887 = vld [vmem:[#allocation17 + $0x110] sm:$0xff]
    %v5888 = vld [vmem:[#allocation17 + $0x118] sm:$0xff]
    %v5889 = vld [vmem:[#allocation17 + $0x120] sm:$0xff]
    %v5890 = vld [vmem:[#allocation17 + $0x128] sm:$0xff]
    %v5891 = vld [vmem:[#allocation17 + $0x130] sm:$0xff]
    %v5892 = vld [vmem:[#allocation17 + $0x138] sm:$0xff]
    %v5893 = vld [vmem:[#allocation17 + $0x140] sm:$0xff]
    %v5894 = vld [vmem:[#allocation17 + $0x148] sm:$0xff]
    %v5895 = vld [vmem:[#allocation17 + $0x150] sm:$0xff]
    %v5896 = vld [vmem:[#allocation17 + $0x158] sm:$0xff]
    %v5897 = vld [vmem:[#allocation17 + $0x160] sm:$0xff]
    %v5898 = vld [vmem:[#allocation17 + $0x168] sm:$0xff]
    %v5899 = vld [vmem:[#allocation17 + $0x170] sm:$0xff]
    %v5900 = vld [vmem:[#allocation17 + $0x178] sm:$0xff]
    %v5901 = vld [vmem:[#allocation17 + $0x180] sm:$0xff]
    %v5902 = vld [vmem:[#allocation17 + $0x188] sm:$0xff]
    %v5903 = vld [vmem:[#allocation17 + $0x190] sm:$0xff]
    %v5904 = vld [vmem:[#allocation17 + $0x198] sm:$0xff]
    %v5905 = vld [vmem:[#allocation17 + $0x1a0] sm:$0xff]
    %v5906 = vld [vmem:[#allocation17 + $0x1a8] sm:$0xff]
    %v5907 = vld [vmem:[#allocation17 + $0x1b0] sm:$0xff]
    %v5908 = vld [vmem:[#allocation17 + $0x1b8] sm:$0xff]
    %v5909 = vld [vmem:[#allocation17 + $0x1c0] sm:$0xff]
    %v5910 = vld [vmem:[#allocation17 + $0x1c8] sm:$0xff]
    %v5911 = vld [vmem:[#allocation17 + $0x1d0] sm:$0xff]
    %v5912 = vld [vmem:[#allocation17 + $0x1d8] sm:$0xff]
    %v5913 = vld [vmem:[#allocation17 + $0x1e0] sm:$0xff]
    %v5914 = vld [vmem:[#allocation17 + $0x1e8] sm:$0xff]
    %v5915 = vld [vmem:[#allocation17 + $0x1f0] sm:$0xff]
    %v5916 = vld [vmem:[#allocation17 + $0x1f8] sm:$0xff]
    %v5917 = vpack.c.bf16 %v5849, %v5849
    %v5918 = vpack.c.bf16 %v5850, %v5850
    %v5919 = vpack.c.bf16 %v5851, %v5851
    %v5920 = vpack.c.bf16 %v5852, %v5852
    %v5921 = vld [vmem:[%s19] sm:$0x3]
    %v5923 = vlaneseq
    %v5924 = vshrl.u32 %v5923, 7
    %v5925 = vsub.s32 0, %v5924
    %v5926 = vrot.slane %v5921, %v5925
    %v5927 = vlaneseq
    %v5928 = vshrl.u32 %v5927, 7
    %v5929 = vsub.s32 1, %v5928
    %v5930 = vrot.slane %v5921, %v5929
    %v5997 = vunpack.c.l.b16 %v5853
    %v5998 = vunpack.c.h.b16 %v5853
    %v5999 = vunpack.c.l.b16 %v5854
    %v6000 = vunpack.c.h.b16 %v5854
    %v6001 = vunpack.c.l.b16 %v5855
    %v6002 = vunpack.c.h.b16 %v5855
    %v6003 = vunpack.c.l.b16 %v5856
    %v6004 = vunpack.c.h.b16 %v5856
    %v6005 = vunpack.c.l.b16 %v5857
    %v6006 = vunpack.c.h.b16 %v5857
    %v6007 = vunpack.c.l.b16 %v5858
    %v6008 = vunpack.c.h.b16 %v5858
    %v6009 = vunpack.c.l.b16 %v5859
    %v6010 = vunpack.c.h.b16 %v5859
    %v6011 = vunpack.c.l.b16 %v5860
    %v6012 = vunpack.c.h.b16 %v5860
    %v6013 = vunpack.c.l.b16 %v5861
    %v6014 = vunpack.c.h.b16 %v5861
    %v6015 = vunpack.c.l.b16 %v5862
    %v6016 = vunpack.c.h.b16 %v5862
    %v6017 = vunpack.c.l.b16 %v5863
    %v6018 = vunpack.c.h.b16 %v5863
    %v6019 = vunpack.c.l.b16 %v5864
    %v6020 = vunpack.c.h.b16 %v5864
    %v6021 = vunpack.c.l.b16 %v5865
    %v6022 = vunpack.c.h.b16 %v5865
    %v6023 = vunpack.c.l.b16 %v5866
    %v6024 = vunpack.c.h.b16 %v5866
    %v6025 = vunpack.c.l.b16 %v5867
    %v6026 = vunpack.c.h.b16 %v5867
    %v6027 = vunpack.c.l.b16 %v5868
    %v6028 = vunpack.c.h.b16 %v5868
    %v6029 = vunpack.c.l.b16 %v5869
    %v6030 = vunpack.c.h.b16 %v5869
    %v6031 = vunpack.c.l.b16 %v5870
    %v6032 = vunpack.c.h.b16 %v5870
    %v6033 = vunpack.c.l.b16 %v5871
    %v6034 = vunpack.c.h.b16 %v5871
    %v6035 = vunpack.c.l.b16 %v5872
    %v6036 = vunpack.c.h.b16 %v5872
    %v6037 = vunpack.c.l.b16 %v5873
    %v6038 = vunpack.c.h.b16 %v5873
    %v6039 = vunpack.c.l.b16 %v5874
    %v6040 = vunpack.c.h.b16 %v5874
    %v6041 = vunpack.c.l.b16 %v5875
    %v6042 = vunpack.c.h.b16 %v5875
    %v6043 = vunpack.c.l.b16 %v5876
    %v6044 = vunpack.c.h.b16 %v5876
    %v6045 = vunpack.c.l.b16 %v5877
    %v6046 = vunpack.c.h.b16 %v5877
    %v6047 = vunpack.c.l.b16 %v5878
    %v6048 = vunpack.c.h.b16 %v5878
    %v6049 = vunpack.c.l.b16 %v5879
    %v6050 = vunpack.c.h.b16 %v5879
    %v6051 = vunpack.c.l.b16 %v5880
    %v6052 = vunpack.c.h.b16 %v5880
    %v6053 = vunpack.c.l.b16 %v5881
    %v6054 = vunpack.c.h.b16 %v5881
    %v6055 = vunpack.c.l.b16 %v5882
    %v6056 = vunpack.c.h.b16 %v5882
    %v6057 = vunpack.c.l.b16 %v5883
    %v6058 = vunpack.c.h.b16 %v5883
    %v6059 = vunpack.c.l.b16 %v5884
    %v6060 = vunpack.c.h.b16 %v5884
    %v6061 = vunpack.c.l.b16 %v5885
    %v6062 = vunpack.c.h.b16 %v5885
    %v6063 = vunpack.c.l.b16 %v5886
    %v6064 = vunpack.c.h.b16 %v5886
    %v6065 = vunpack.c.l.b16 %v5887
    %v6066 = vunpack.c.h.b16 %v5887
    %v6067 = vunpack.c.l.b16 %v5888
    %v6068 = vunpack.c.h.b16 %v5888
    %v6069 = vunpack.c.l.b16 %v5889
    %v6070 = vunpack.c.h.b16 %v5889
    %v6071 = vunpack.c.l.b16 %v5890
    %v6072 = vunpack.c.h.b16 %v5890
    %v6073 = vunpack.c.l.b16 %v5891
    %v6074 = vunpack.c.h.b16 %v5891
    %v6075 = vunpack.c.l.b16 %v5892
    %v6076 = vunpack.c.h.b16 %v5892
    %v6077 = vunpack.c.l.b16 %v5893
    %v6078 = vunpack.c.h.b16 %v5893
    %v6079 = vunpack.c.l.b16 %v5894
    %v6080 = vunpack.c.h.b16 %v5894
    %v6081 = vunpack.c.l.b16 %v5895
    %v6082 = vunpack.c.h.b16 %v5895
    %v6083 = vunpack.c.l.b16 %v5896
    %v6084 = vunpack.c.h.b16 %v5896
    %v6085 = vunpack.c.l.b16 %v5897
    %v6086 = vunpack.c.h.b16 %v5897
    %v6087 = vunpack.c.l.b16 %v5898
    %v6088 = vunpack.c.h.b16 %v5898
    %v6089 = vunpack.c.l.b16 %v5899
    %v6090 = vunpack.c.h.b16 %v5899
    %v6091 = vunpack.c.l.b16 %v5900
    %v6092 = vunpack.c.h.b16 %v5900
    %v6093 = vunpack.c.l.b16 %v5901
    %v6094 = vunpack.c.h.b16 %v5901
    %v6095 = vunpack.c.l.b16 %v5902
    %v6096 = vunpack.c.h.b16 %v5902
    %v6097 = vunpack.c.l.b16 %v5903
    %v6098 = vunpack.c.h.b16 %v5903
    %v6099 = vunpack.c.l.b16 %v5904
    %v6100 = vunpack.c.h.b16 %v5904
    %v6101 = vunpack.c.l.b16 %v5905
    %v6102 = vunpack.c.h.b16 %v5905
    %v6103 = vunpack.c.l.b16 %v5906
    %v6104 = vunpack.c.h.b16 %v5906
    %v6105 = vunpack.c.l.b16 %v5907
    %v6106 = vunpack.c.h.b16 %v5907
    %v6107 = vunpack.c.l.b16 %v5908
    %v6108 = vunpack.c.h.b16 %v5908
    %v6109 = vunpack.c.l.b16 %v5909
    %v6110 = vunpack.c.h.b16 %v5909
    %v6111 = vunpack.c.l.b16 %v5910
    %v6112 = vunpack.c.h.b16 %v5910
    %v6113 = vunpack.c.l.b16 %v5911
    %v6114 = vunpack.c.h.b16 %v5911
    %v6115 = vunpack.c.l.b16 %v5912
    %v6116 = vunpack.c.h.b16 %v5912
    %v6117 = vunpack.c.l.b16 %v5913
    %v6118 = vunpack.c.h.b16 %v5913
    %v6119 = vunpack.c.l.b16 %v5914
    %v6120 = vunpack.c.h.b16 %v5914
    %v6121 = vunpack.c.l.b16 %v5915
    %v6122 = vunpack.c.h.b16 %v5915
    %v6123 = vunpack.c.l.b16 %v5916
    %v6124 = vunpack.c.h.b16 %v5916
    %v6125 = vpack.c.b16 %v5999, %v5997
    %v6126 = vpack.c.b16 %v6000, %v5998
    %v6127 = vpack.c.b16 %v6003, %v6001
    %v6128 = vpack.c.b16 %v6004, %v6002
    %v6129 = vpack.c.b16 %v6007, %v6005
    %v6130 = vpack.c.b16 %v6008, %v6006
    %v6131 = vpack.c.b16 %v6011, %v6009
    %v6132 = vpack.c.b16 %v6012, %v6010
    %v6133 = vpack.c.b16 %v6015, %v6013
    %v6134 = vpack.c.b16 %v6016, %v6014
    %v6135 = vpack.c.b16 %v6019, %v6017
    %v6136 = vpack.c.b16 %v6020, %v6018
    %v6137 = vpack.c.b16 %v6023, %v6021
    %v6138 = vpack.c.b16 %v6024, %v6022
    %v6139 = vpack.c.b16 %v6027, %v6025
    %v6140 = vpack.c.b16 %v6028, %v6026
    %v6141 = vpack.c.b16 %v6031, %v6029
    %v6142 = vpack.c.b16 %v6032, %v6030
    %v6143 = vpack.c.b16 %v6035, %v6033
    %v6144 = vpack.c.b16 %v6036, %v6034
    %v6145 = vpack.c.b16 %v6039, %v6037
    %v6146 = vpack.c.b16 %v6040, %v6038
    %v6147 = vpack.c.b16 %v6043, %v6041
    %v6148 = vpack.c.b16 %v6044, %v6042
    %v6149 = vpack.c.b16 %v6047, %v6045
    %v6150 = vpack.c.b16 %v6048, %v6046
    %v6151 = vpack.c.b16 %v6051, %v6049
    %v6152 = vpack.c.b16 %v6052, %v6050
    %v6153 = vpack.c.b16 %v6055, %v6053
    %v6154 = vpack.c.b16 %v6056, %v6054
    %v6155 = vpack.c.b16 %v6059, %v6057
    %v6156 = vpack.c.b16 %v6060, %v6058
    %v6157 = vpack.c.b16 %v6063, %v6061
    %v6158 = vpack.c.b16 %v6064, %v6062
    %v6159 = vpack.c.b16 %v6067, %v6065
    %v6160 = vpack.c.b16 %v6068, %v6066
    %v6161 = vpack.c.b16 %v6071, %v6069
    %v6162 = vpack.c.b16 %v6072, %v6070
    %v6163 = vpack.c.b16 %v6075, %v6073
    %v6164 = vpack.c.b16 %v6076, %v6074
    %v6165 = vpack.c.b16 %v6079, %v6077
    %v6166 = vpack.c.b16 %v6080, %v6078
    %v6167 = vpack.c.b16 %v6083, %v6081
    %v6168 = vpack.c.b16 %v6084, %v6082
    %v6169 = vpack.c.b16 %v6087, %v6085
    %v6170 = vpack.c.b16 %v6088, %v6086
    %v6171 = vpack.c.b16 %v6091, %v6089
    %v6172 = vpack.c.b16 %v6092, %v6090
    %v6173 = vpack.c.b16 %v6095, %v6093
    %v6174 = vpack.c.b16 %v6096, %v6094
    %v6175 = vpack.c.b16 %v6099, %v6097
    %v6176 = vpack.c.b16 %v6100, %v6098
    %v6177 = vpack.c.b16 %v6103, %v6101
    %v6178 = vpack.c.b16 %v6104, %v6102
    %v6179 = vpack.c.b16 %v6107, %v6105
    %v6180 = vpack.c.b16 %v6108, %v6106
    %v6181 = vpack.c.b16 %v6111, %v6109
    %v6182 = vpack.c.b16 %v6112, %v6110
    %v6183 = vpack.c.b16 %v6115, %v6113
    %v6184 = vpack.c.b16 %v6116, %v6114
    %v6185 = vpack.c.b16 %v6119, %v6117
    %v6186 = vpack.c.b16 %v6120, %v6118
    %v6187 = vpack.c.b16 %v6123, %v6121
    %v6188 = vpack.c.b16 %v6124, %v6122
    %6253 = vmatprep.subr.bf16.mxu0 %v6126
    %6254 = vmatpush1.bf16.msra.mxu0 %v6125
    %6255 = vmatprep.subr.bf16.mxu0 %v6128
    %6256 = vmatpush1.bf16.msra.mxu0 %v6127
    %6257 = vmatprep.subr.bf16.mxu0 %v6130
    %6258 = vmatpush1.bf16.msra.mxu0 %v6129
    %6259 = vmatprep.subr.bf16.mxu0 %v6132
    %6260 = vmatpush1.bf16.msra.mxu0 %v6131
    %6261 = vmatprep.subr.bf16.mxu0 %v6134
    %6262 = vmatpush1.bf16.msra.mxu0 %v6133
    %6263 = vmatprep.subr.bf16.mxu0 %v6136
    %6264 = vmatpush1.bf16.msra.mxu0 %v6135
    %6265 = vmatprep.subr.bf16.mxu0 %v6138
    %6266 = vmatpush1.bf16.msra.mxu0 %v6137
    %6267 = vmatprep.subr.bf16.mxu0 %v6140
    %6268 = vmatpush1.bf16.msra.mxu0 %v6139
    %6269 = vmatprep.subr.bf16.mxu0 %v6142
    %6270 = vmatpush1.bf16.msra.mxu0 %v6141
    %6271 = vmatprep.subr.bf16.mxu0 %v6144
    %6272 = vmatpush1.bf16.msra.mxu0 %v6143
    %6273 = vmatprep.subr.bf16.mxu0 %v6146
    %6274 = vmatpush1.bf16.msra.mxu0 %v6145
    %6275 = vmatprep.subr.bf16.mxu0 %v6148
    %6276 = vmatpush1.bf16.msra.mxu0 %v6147
    %6277 = vmatprep.subr.bf16.mxu0 %v6150
    %6278 = vmatpush1.bf16.msra.mxu0 %v6149
    %6279 = vmatprep.subr.bf16.mxu0 %v6152
    %6280 = vmatpush1.bf16.msra.mxu0 %v6151
    %6281 = vmatprep.subr.bf16.mxu0 %v6154
    %6282 = vmatpush1.bf16.msra.mxu0 %v6153
    %6283 = vmatprep.subr.bf16.mxu0 %v6156
    %6284 = vmatpush1.bf16.msra.mxu0 %v6155
    %6285 = vmatprep.mubr.bf16.mxu0 %v5918
    %6286 = vmatmul.mubr.bf16.gmra.mrb[0].mxu0 %v5917
    %v6287 = vpop.f32.mrb[0].mxu0
    %v6288 = vadd.f32 %v5926, %v6287
    %v6289 = vpop.f32.mrb[0].mxu0
    %v6290 = vadd.f32 %v5930, %v6289
    %v6291 = vpop.f32.mrb[0].mxu0
    %v6292 = vpop.f32.mrb[0].mxu0
    %6293 = vdwg.mxu0
    %6294 = vmatprep.subr.bf16.mxu0 %v6158
    %6295 = vmatpush1.bf16.msra.mxu0 %v6157
    %6296 = vmatprep.subr.bf16.mxu0 %v6160
    %6297 = vmatpush1.bf16.msra.mxu0 %v6159
    %6298 = vmatprep.subr.bf16.mxu0 %v6162
    %6299 = vmatpush1.bf16.msra.mxu0 %v6161
    %6300 = vmatprep.subr.bf16.mxu0 %v6164
    %6301 = vmatpush1.bf16.msra.mxu0 %v6163
    %6302 = vmatprep.subr.bf16.mxu0 %v6166
    %6303 = vmatpush1.bf16.msra.mxu0 %v6165
    %6304 = vmatprep.subr.bf16.mxu0 %v6168
    %6305 = vmatpush1.bf16.msra.mxu0 %v6167
    %6306 = vmatprep.subr.bf16.mxu0 %v6170
    %6307 = vmatpush1.bf16.msra.mxu0 %v6169
    %6308 = vmatprep.subr.bf16.mxu0 %v6172
    %6309 = vmatpush1.bf16.msra.mxu0 %v6171
    %6310 = vmatprep.subr.bf16.mxu0 %v6174
    %6311 = vmatpush1.bf16.msra.mxu0 %v6173
    %6312 = vmatprep.subr.bf16.mxu0 %v6176
    %6313 = vmatpush1.bf16.msra.mxu0 %v6175
    %6314 = vmatprep.subr.bf16.mxu0 %v6178
    %6315 = vmatpush1.bf16.msra.mxu0 %v6177
    %6316 = vmatprep.subr.bf16.mxu0 %v6180
    %6317 = vmatpush1.bf16.msra.mxu0 %v6179
    %6318 = vmatprep.subr.bf16.mxu0 %v6182
    %6319 = vmatpush1.bf16.msra.mxu0 %v6181
    %6320 = vmatprep.subr.bf16.mxu0 %v6184
    %6321 = vmatpush1.bf16.msra.mxu0 %v6183
    %6322 = vmatprep.subr.bf16.mxu0 %v6186
    %6323 = vmatpush1.bf16.msra.mxu0 %v6185
    %6324 = vmatprep.subr.bf16.mxu0 %v6188
    %6325 = vmatpush1.bf16.msra.mxu0 %v6187
    %6326 = vmatprep.mubr.bf16.mxu0 %v5920
    %6327 = vmatmul.mubr.bf16.gmra.mrb[0].mxu0 %v5919
    %v6328 = vpop.f32.mrb[0].mxu0
    %v6329 = vadd.f32 %v6288, %v6328
    %v6330 = vpop.f32.mrb[0].mxu0
    %v6331 = vadd.f32 %v6290, %v6330
    %v6332 = vpop.f32.mrb[0].mxu0
    %v6333 = vpop.f32.mrb[0].mxu0
    %6334 = vdwg.mxu0
    %v6337 = vcombine.low %v6329, %v6331
    %v6339 = vunpack.c.l.s4 1983009808
    %v6340 = vunpack.c.0.s8 %v6339
    %v6341 = vlaneseq
    %v6342 = vshrl.u32 %v6341, 7
    %v6343 = vsub.s32 %v6340, %v6342
    %v6344 = vrot.slane %v6337, %v6343
    %6346 = vst [vmem:[#allocation19] sm:$0xf] %v6344
    // Predicated region
    $region122: #{tpu_custom_call.1} parent=1 // pred_check
      _
    $region123: #{tpu_custom_call.1} parent=1 // pred_check_branch
      %6348 = sbr.rel (0) target = $region125
    $region124: #{tpu_custom_call.1} parent=1 // pred_region
      %s6350 = ssub.s32 64, 64
      %6351 = vsyncadd [#allocation4], %s6350
      %s6353 = sshll.u32 [#allocation19], 4
      %s6354 = int_to_ptr.vmem [resolvable:$true] %s6353
      %6356 = dma.vmem_to_hbm [thread:$0]  %s6354, 64, %s20, [#allocation4]
    $region125: #{tpu_custom_call.1} parent=1 // pred_fallthru
      _
    // Predicated region
    $region126: #{tpu_custom_call.1} parent=1 // pred_check
      _
    $region127: #{tpu_custom_call.1} parent=1 // pred_check_branch
      %6358 = sbr.rel (0) target = $region129
    $region128: #{tpu_custom_call.1} parent=1 // pred_region
      %6359 = dma.done [#allocation4], 64
    $region129: #{tpu_custom_call.1} parent=1 // pred_fallthru
      _
    %6360 = vsyncpa [#allocation3], 1
    %6361 = vsyncpa [#allocation6], 1
    %6362 = vsyncpa [#allocation9], 1
    %6363 = vsyncpa [#allocation12], 1
    %6364 = vsyncpa [#allocation15], 1
    %6365 = vsyncpa [#allocation18], 1
    %6366 = vsyncpa [#allocation4], 1

</llo_original>
